<compile_context>
chip_gen: v6e
topology: v6e:2x2x1
jax: 0.10.0
libtpu: 0.0.40
codegen_flags: <defaults>
</compile_context>

<pallas_src>
import functools

import jax
import jax.numpy as jnp
from jax import lax
from jax.experimental import pallas as pl
from jax.experimental.pallas import tpu as pltpu

# ---------------------------------------------------------------------------
# Model configuration (small, TPU-tile friendly)
# ---------------------------------------------------------------------------
VOCAB = 33            # ESM-2 alphabet size
B = 2                 # batch
SEQ = 16              # padded ("longest") sequence length
D = 128               # hidden dim  ("self.dimension")
NUM_HEADS = 4
HEAD_DIM = D // NUM_HEADS
FFN = 4 * D
NUM_LAYERS = 2
LN_EPS = 1e-5
BS = B * SEQ          # flattened (batch*seq) rows fed to the MXU
NEG_INF = -1e30       # f32 additive key-padding bias (scores stay f32)
SCALE = 1.0 / (HEAD_DIM ** 0.5)


def _layernorm(x, gamma, beta):
    mu = jnp.mean(x, axis=-1, keepdims=True)
    var = jnp.mean((x - mu) ** 2, axis=-1, keepdims=True)
    return (x - mu) * lax.rsqrt(var + LN_EPS) * gamma + beta


def _gelu(x):
    # tanh-approximation GELU (EUP tanh; kept in f32 on all generations)
    return 0.5 * x * (1.0 + jnp.tanh(0.7978845608028654 * (x + 0.044715 * x * x * x)))


# ---------------------------------------------------------------------------
# Single fused kernel: NUM_LAYERS pre-LN encoder layers + masked mean pool
# ---------------------------------------------------------------------------
def fused_encoder_kernel(len_ref,                         # SMEM scalar prefetch: (B,) i32
                         x_ref,                           # (BS, D)  f32 embeddings
                         wq_ref, wk_ref, wv_ref,          # (L, H, D, HD)  bf16
                         wo_ref,                          # (L, H, HD, D)  bf16
                         w1_ref, b1_ref,                  # (L, D, FFN) bf16, (L, 1, FFN) f32
                         w2_ref, b2_ref,                  # (L, FFN, D) bf16, (L, 1, D)  f32
                         g1_ref, be1_ref,                 # (L, 1, D) f32
                         g2_ref, be2_ref,                 # (L, 1, D) f32
                         hid_ref, pool_ref):              # (BS, D) f32, (B, D) f32
    x = x_ref[...]                                        # (BS, D) f32, stays resident

    # Additive key-padding bias, hoisted once per batch element: (1, SEQ) f32.
    key_pos = lax.broadcasted_iota(jnp.int32, (1, SEQ), 1)
    key_bias = [jnp.where(key_pos < len_ref[b], 0.0, NEG_INF) for b in range(B)]

    for li in range(NUM_LAYERS):                          # unrolled layer loop
        # ----- self-attention block (pre-LN) -------------------------------
        h = _layernorm(x, g1_ref[li], be1_ref[li])        # (BS, D) f32
        h_bf = h.astype(jnp.bfloat16)

        attn_acc = jnp.zeros((BS, D), jnp.float32)
        for hd in range(NUM_HEADS):
            # per-head projections straight out of the MXU (no lane slicing)
            qh = jnp.dot(h_bf, wq_ref[li, hd], preferred_element_type=jnp.float32)
            kh = jnp.dot(h_bf, wk_ref[li, hd], preferred_element_type=jnp.float32)
            vh = jnp.dot(h_bf, wv_ref[li, hd], preferred_element_type=jnp.float32)
            qh_bf = (qh * SCALE).astype(jnp.bfloat16)     # (BS, HD)
            kh_bf = kh.astype(jnp.bfloat16)
            vh_bf = vh.astype(jnp.bfloat16)

            ctx_rows = []
            for b in range(B):                            # attention is per sequence
                rs = slice(b * SEQ, (b + 1) * SEQ)        # static sublane slice
                # q @ k^T via dot_general contracting last dims (no transpose)
                s = lax.dot_general(qh_bf[rs], kh_bf[rs],
                                    (((1,), (1,)), ((), ())),
                                    preferred_element_type=jnp.float32)   # (S, S) f32
                s = s + key_bias[b]                       # additive mask, (1, S) broadcast
                m = jnp.max(s, axis=-1, keepdims=True)
                p = jnp.exp(s - m)
                p = p * pl.reciprocal(jnp.sum(p, axis=-1, keepdims=True), approx=True)
                ctx_rows.append(jnp.dot(p.astype(jnp.bfloat16), vh_bf[rs],
                                        preferred_element_type=jnp.float32))  # (S, HD)
            ctx = jnp.concatenate(ctx_rows, axis=0).astype(jnp.bfloat16)       # (BS, HD)
            # fold output projection into the head loop (no lane concat of heads)
            attn_acc = attn_acc + jnp.dot(ctx, wo_ref[li, hd],
                                          preferred_element_type=jnp.float32)
        x = x + attn_acc

        # ----- feed-forward block (pre-LN) ----------------------------------
        h2 = _layernorm(x, g2_ref[li], be2_ref[li])
        f = jnp.dot(h2.astype(jnp.bfloat16), w1_ref[li],
                    preferred_element_type=jnp.float32) + b1_ref[li]
        f = _gelu(f)
        f = jnp.dot(f.astype(jnp.bfloat16), w2_ref[li],
                    preferred_element_type=jnp.float32) + b2_ref[li]
        x = x + f

    # ----- outputs: last hidden state + masked mean pool (fused epilogue) ---
    hid_ref[...] = x                                      # (BS, D), lane-dense store

    row_pos = lax.broadcasted_iota(jnp.int32, (SEQ, D), 0)
    pooled_rows = []
    for b in range(B):
        valid = len_ref[b]
        mask = (row_pos < valid).astype(jnp.float32)      # (S, D)
        xb = x[b * SEQ:(b + 1) * SEQ]                     # (S, D) static slice
        ssum = jnp.sum(xb * mask, axis=0, keepdims=True)  # (1, D)
        denom = jnp.full((1, 1), 1.0, jnp.float32) * jnp.maximum(valid, 1).astype(jnp.float32)
        pooled_rows.append(ssum * pl.reciprocal(denom, approx=True))
    pool_ref[...] = jnp.concatenate(pooled_rows, axis=0)  # (B, D)


def run_fused_forward(x_flat, lengths, p):
    """x_flat: (BS, D) f32; lengths: (B,) i32; p: dict of stacked params."""
    def full(shape):
        return pl.BlockSpec(shape, lambda i, lens: (0,) * len(shape))

    grid_spec = pltpu.PrefetchScalarGridSpec(
        num_scalar_prefetch=1,
        grid=(1,),                                        # single fused step
        in_specs=[
            pl.BlockSpec((BS, D), lambda i, lens: (0, 0)),            # x
            full((NUM_LAYERS, NUM_HEADS, D, HEAD_DIM)),               # wq
            full((NUM_LAYERS, NUM_HEADS, D, HEAD_DIM)),               # wk
            full((NUM_LAYERS, NUM_HEADS, D, HEAD_DIM)),               # wv
            full((NUM_LAYERS, NUM_HEADS, HEAD_DIM, D)),               # wo
            full((NUM_LAYERS, D, FFN)), full((NUM_LAYERS, 1, FFN)),   # w1 b1
            full((NUM_LAYERS, FFN, D)), full((NUM_LAYERS, 1, D)),     # w2 b2
            full((NUM_LAYERS, 1, D)), full((NUM_LAYERS, 1, D)),       # ln1 gamma/beta
            full((NUM_LAYERS, 1, D)), full((NUM_LAYERS, 1, D)),       # ln2 gamma/beta
        ],
        out_specs=(
            pl.BlockSpec((BS, D), lambda i, lens: (0, 0)),            # hidden
            pl.BlockSpec((B, D), lambda i, lens: (0, 0)),             # pooled
        ),
    )
    return pl.pallas_call(
        fused_encoder_kernel,
        out_shape=(jax.ShapeDtypeStruct((BS, D), jnp.float32),
                   jax.ShapeDtypeStruct((B, D), jnp.float32)),
        grid_spec=grid_spec,
        compiler_params=pltpu.CompilerParams(
            dimension_semantics=("arbitrary",)),
    )(lengths, x_flat,
      p["wq"], p["wk"], p["wv"], p["wo"],
      p["w1"], p["b1"], p["w2"], p["b2"],
      p["g1"], p["be1"], p["g2"], p["be2"])


# ---------------------------------------------------------------------------
# Deterministic synthetic parameters (pre-sliced per head, bf16 weights)
# ---------------------------------------------------------------------------
def init_params(key):
    keys = jax.random.split(key, 1 + NUM_LAYERS)
    embed = 0.02 * jax.random.normal(keys[0], (VOCAB, D), jnp.float32)

    wq_l, wk_l, wv_l, wo_l, w1_l, w2_l = [], [], [], [], [], []
    for li in range(NUM_LAYERS):
        ks = jax.random.split(keys[1 + li], 6)
        wq = 0.02 * jax.random.normal(ks[0], (D, D), jnp.float32)
        wk = 0.02 * jax.random.normal(ks[1], (D, D), jnp.float32)
        wv = 0.02 * jax.random.normal(ks[2], (D, D), jnp.float32)
        wo = 0.02 * jax.random.normal(ks[3], (D, D), jnp.float32)
        w1 = 0.02 * jax.random.normal(ks[4], (D, FFN), jnp.float32)
        w2 = 0.02 * jax.random.normal(ks[5], (FFN, D), jnp.float32)
        # per-head slicing in the wrapper (free layout plumbing):
        wq_l.append(wq.reshape(D, NUM_HEADS, HEAD_DIM).transpose(1, 0, 2))   # (H, D, HD)
        wk_l.append(wk.reshape(D, NUM_HEADS, HEAD_DIM).transpose(1, 0, 2))
        wv_l.append(wv.reshape(D, NUM_HEADS, HEAD_DIM).transpose(1, 0, 2))
        wo_l.append(wo.reshape(NUM_HEADS, HEAD_DIM, D))                      # (H, HD, D)
        w1_l.append(w1)
        w2_l.append(w2)

    params = {
        "wq": jnp.stack(wq_l).astype(jnp.bfloat16),        # (L, H, D, HD)
        "wk": jnp.stack(wk_l).astype(jnp.bfloat16),
        "wv": jnp.stack(wv_l).astype(jnp.bfloat16),
        "wo": jnp.stack(wo_l).astype(jnp.bfloat16),        # (L, H, HD, D)
        "w1": jnp.stack(w1_l).astype(jnp.bfloat16),        # (L, D, FFN)
        "w2": jnp.stack(w2_l).astype(jnp.bfloat16),        # (L, FFN, D)
        "b1": jnp.zeros((NUM_LAYERS, 1, FFN), jnp.float32),
        "b2": jnp.zeros((NUM_LAYERS, 1, D), jnp.float32),
        "g1": jnp.ones((NUM_LAYERS, 1, D), jnp.float32),
        "be1": jnp.zeros((NUM_LAYERS, 1, D), jnp.float32),
        "g2": jnp.ones((NUM_LAYERS, 1, D), jnp.float32),
        "be2": jnp.zeros((NUM_LAYERS, 1, D), jnp.float32),
    }
    return embed, params


# ---------------------------------------------------------------------------
# RepresentationEngine-equivalent wrappers
# ---------------------------------------------------------------------------
@jax.jit
def forward_and_pool(token_ids, lengths, embed, params):
    """One fused call returns both last_hidden_state (B, S, D) and the
    masked-mean-pooled representation (B, D)."""
    x = embed[token_ids].reshape(BS, D)                   # embedding lookup (glue)
    hidden_flat, pooled = run_fused_forward(x, lengths, params)
    return hidden_flat.reshape(B, SEQ, D), pooled


def forward(token_ids, lengths, embed, params):
    """Equivalent of RepresentationEngine.forward without a head."""
    hidden, _ = forward_and_pool(token_ids, lengths, embed, params)
    return hidden


def compute_representations_avg(token_ids, lengths, embed, params):
    """Equivalent of compute_batch(..., average_pooling=True) -> (B, D)."""
    _, pooled = forward_and_pool(token_ids, lengths, embed, params)
    return pooled


if __name__ == "__main__":
    key = jax.random.PRNGKey(0)
    k_tok, k_par = jax.random.split(key)

    # Synthetic tokenized batch (padding='longest'): token ids + valid lengths.
    token_ids = jax.random.randint(k_tok, (B, SEQ), 0, VOCAB, dtype=jnp.int32)
    lengths = jnp.array([12, 9], dtype=jnp.int32)          # per-sequence seq_len

    embed, params = init_params(k_par)

    hidden, pooled = forward_and_pool(token_ids, lengths, embed, params)
    jax.block_until_ready(hidden)
    jax.block_until_ready(pooled)

    assert hidden.shape == (B, SEQ, D)
    assert pooled.shape == (B, D)
    assert bool(jnp.all(jnp.isfinite(hidden))) and bool(jnp.all(jnp.isfinite(pooled)))

    # self-consistency: in-kernel masked mean pool vs. pure-JAX pool of hidden
    pos = jnp.arange(SEQ)[None, :, None]
    mask = (pos < lengths[:, None, None]).astype(jnp.float32)
    pooled_ref = jnp.sum(hidden * mask, axis=1) / lengths[:, None].astype(jnp.float32)
    assert bool(jnp.allclose(pooled, pooled_ref, rtol=2e-2, atol=2e-3))

    print("KERNEL_OK")
</pallas_src>

<mosaic_0001>
module attributes {stable_mosaic.version = 11 : i64} {
  func.func @fused_encoder_kernel(%arg0: i32, %arg1: memref<2xi32, #tpu.memory_space<smem>>, %arg2: memref<32x128xf32, #tpu.memory_space<vmem>>, %arg3: memref<2x4x128x32xbf16, #tpu.memory_space<vmem>>, %arg4: memref<2x4x128x32xbf16, #tpu.memory_space<vmem>>, %arg5: memref<2x4x128x32xbf16, #tpu.memory_space<vmem>>, %arg6: memref<2x4x32x128xbf16, #tpu.memory_space<vmem>>, %arg7: memref<2x128x512xbf16, #tpu.memory_space<vmem>>, %arg8: memref<2x1x512xf32, #tpu.memory_space<vmem>>, %arg9: memref<2x512x128xbf16, #tpu.memory_space<vmem>>, %arg10: memref<2x1x128xf32, #tpu.memory_space<vmem>>, %arg11: memref<2x1x128xf32, #tpu.memory_space<vmem>>, %arg12: memref<2x1x128xf32, #tpu.memory_space<vmem>>, %arg13: memref<2x1x128xf32, #tpu.memory_space<vmem>>, %arg14: memref<2x1x128xf32, #tpu.memory_space<vmem>>, %arg15: memref<32x128xf32, #tpu.memory_space<vmem>>, %arg16: memref<2x128xf32, #tpu.memory_space<vmem>>) attributes {dimension_semantics = [#tpu.dimension_semantics<arbitrary>], iteration_bounds = array<i64: 1>, scalar_prefetch = 1 : i64, scratch_operands = 0 : i64, tpu.core_type = #tpu.core_type<tc>, window_params = [{pipeline_mode = #tpu.pipeline_mode<synchronous>, transform_indices = @transform_0, window_bounds = array<i64: 32, 128>}, {pipeline_mode = #tpu.pipeline_mode<synchronous>, transform_indices = @transform_1, window_bounds = array<i64: 2, 4, 128, 32>}, {pipeline_mode = #tpu.pipeline_mode<synchronous>, transform_indices = @transform_2, window_bounds = array<i64: 2, 4, 128, 32>}, {pipeline_mode = #tpu.pipeline_mode<synchronous>, transform_indices = @transform_3, window_bounds = array<i64: 2, 4, 128, 32>}, {pipeline_mode = #tpu.pipeline_mode<synchronous>, transform_indices = @transform_4, window_bounds = array<i64: 2, 4, 32, 128>}, {pipeline_mode = #tpu.pipeline_mode<synchronous>, transform_indices = @transform_5, window_bounds = array<i64: 2, 128, 512>}, {pipeline_mode = #tpu.pipeline_mode<synchronous>, transform_indices = @transform_6, window_bounds = array<i64: 2, 1, 512>}, {pipeline_mode = #tpu.pipeline_mode<synchronous>, transform_indices = @transform_7, window_bounds = array<i64: 2, 512, 128>}, {pipeline_mode = #tpu.pipeline_mode<synchronous>, transform_indices = @transform_8, window_bounds = array<i64: 2, 1, 128>}, {pipeline_mode = #tpu.pipeline_mode<synchronous>, transform_indices = @transform_9, window_bounds = array<i64: 2, 1, 128>}, {pipeline_mode = #tpu.pipeline_mode<synchronous>, transform_indices = @transform_10, window_bounds = array<i64: 2, 1, 128>}, {pipeline_mode = #tpu.pipeline_mode<synchronous>, transform_indices = @transform_11, window_bounds = array<i64: 2, 1, 128>}, {pipeline_mode = #tpu.pipeline_mode<synchronous>, transform_indices = @transform_12, window_bounds = array<i64: 2, 1, 128>}, {pipeline_mode = #tpu.pipeline_mode<synchronous>, transform_indices = @transform_13, window_bounds = array<i64: 32, 128>}, {pipeline_mode = #tpu.pipeline_mode<synchronous>, transform_indices = @transform_14, window_bounds = array<i64: 2, 128>}]} {
    %c0 = arith.constant 0 : index
    %c0_0 = arith.constant 0 : index
    %0 = vector.load %arg2[%c0, %c0_0] : memref<32x128xf32, #tpu.memory_space<vmem>>, vector<32x128xf32>
    %1 = tpu.iota {dimensions = array<i32: 1>} : vector<1x16xi32>
    %c0_1 = arith.constant 0 : index
    %2 = memref.load %arg1[%c0_1] : memref<2xi32, #tpu.memory_space<smem>>
    %3 = vector.broadcast %2 : i32 to vector<1x16xi32>
    %4 = arith.cmpi slt, %1, %3 : vector<1x16xi32>
    %cst = arith.constant 0.000000e+00 : f32
    %cst_2 = arith.constant -1.000000e+30 : f32
    %5 = vector.broadcast %cst : f32 to vector<1x16xf32>
    %6 = vector.broadcast %cst_2 : f32 to vector<1x16xf32>
    %7 = arith.select %4, %5, %6 : vector<1x16xi1>, vector<1x16xf32>
    %c1 = arith.constant 1 : index
    %8 = memref.load %arg1[%c1] : memref<2xi32, #tpu.memory_space<smem>>
    %9 = vector.broadcast %8 : i32 to vector<1x16xi32>
    %10 = arith.cmpi slt, %1, %9 : vector<1x16xi32>
    %cst_3 = arith.constant 0.000000e+00 : f32
    %cst_4 = arith.constant -1.000000e+30 : f32
    %11 = vector.broadcast %cst_3 : f32 to vector<1x16xf32>
    %12 = vector.broadcast %cst_4 : f32 to vector<1x16xf32>
    %13 = arith.select %10, %11, %12 : vector<1x16xi1>, vector<1x16xf32>
    %c0_5 = arith.constant 0 : index
    %c0_6 = arith.constant 0 : index
    %c0_7 = arith.constant 0 : index
    %14 = vector.load %arg11[%c0_5, %c0_6, %c0_7] : memref<2x1x128xf32, #tpu.memory_space<vmem>>, vector<1x1x128xf32>
    %15 = vector.shape_cast %14 : vector<1x1x128xf32> to vector<1x128xf32>
    %c0_8 = arith.constant 0 : index
    %c0_9 = arith.constant 0 : index
    %c0_10 = arith.constant 0 : index
    %16 = vector.load %arg12[%c0_8, %c0_9, %c0_10] : memref<2x1x128xf32, #tpu.memory_space<vmem>>, vector<1x1x128xf32>
    %17 = vector.shape_cast %16 : vector<1x1x128xf32> to vector<1x128xf32>
    %cst_11 = arith.constant dense<0.000000e+00> : vector<32xf32>
    %18 = vector.multi_reduction <add>, %0, %cst_11 [1] : vector<32x128xf32> to vector<32xf32>
    %19 = vector.shape_cast %18 : vector<32xf32> to vector<32x1xf32>
    %cst_12 = arith.constant 1.280000e+02 : f32
    %20 = vector.broadcast %cst_12 : f32 to vector<32x1xf32>
    %21 = arith.divf %19, %20 : vector<32x1xf32>
    %22 = vector.broadcast %21 : vector<32x1xf32> to vector<32x128xf32>
    %23 = arith.subf %0, %22 : vector<32x128xf32>
    %24 = arith.mulf %23, %23 : vector<32x128xf32>
    %cst_13 = arith.constant dense<0.000000e+00> : vector<32xf32>
    %25 = vector.multi_reduction <add>, %24, %cst_13 [1] : vector<32x128xf32> to vector<32xf32>
    %26 = vector.shape_cast %25 : vector<32xf32> to vector<32x1xf32>
    %cst_14 = arith.constant 1.280000e+02 : f32
    %27 = vector.broadcast %cst_14 : f32 to vector<32x1xf32>
    %28 = arith.divf %26, %27 : vector<32x1xf32>
    %29 = vector.broadcast %21 : vector<32x1xf32> to vector<32x128xf32>
    %30 = arith.subf %0, %29 : vector<32x128xf32>
    %cst_15 = arith.constant 9.99999974E-6 : f32
    %31 = vector.broadcast %cst_15 : f32 to vector<32x1xf32>
    %32 = arith.addf %28, %31 : vector<32x1xf32>
    %33 = math.rsqrt %32 : vector<32x1xf32>
    %34 = vector.broadcast %33 : vector<32x1xf32> to vector<32x128xf32>
    %35 = arith.mulf %30, %34 : vector<32x128xf32>
    %36 = vector.broadcast %15 : vector<1x128xf32> to vector<32x128xf32>
    %37 = arith.mulf %35, %36 : vector<32x128xf32>
    %38 = vector.broadcast %17 : vector<1x128xf32> to vector<32x128xf32>
    %39 = arith.addf %37, %38 : vector<32x128xf32>
    %40 = arith.truncf %39 : vector<32x128xf32> to vector<32x128xbf16>
    %cst_16 = arith.constant 0.000000e+00 : f32
    %41 = vector.broadcast %cst_16 : f32 to vector<32x128xf32>
    %c0_17 = arith.constant 0 : index
    %c0_18 = arith.constant 0 : index
    %c0_19 = arith.constant 0 : index
    %c0_20 = arith.constant 0 : index
    %42 = vector.load %arg3[%c0_17, %c0_18, %c0_19, %c0_20] : memref<2x4x128x32xbf16, #tpu.memory_space<vmem>>, vector<1x1x128x32xbf16>
    %43 = vector.shape_cast %42 : vector<1x1x128x32xbf16> to vector<128x32xbf16>
    %cst_21 = arith.constant dense<0.000000e+00> : vector<32x32xf32>
    %44 = tpu.matmul %40, %43, %cst_21 {dimension_numbers = #tpu.dot_dimension_numbers<[1], [0], [0], [1], [0, 0, 1, 1], [], []>} : vector<32x128xbf16>, vector<128x32xbf16>, vector<32x32xf32> -> vector<32x32xf32>
    %c0_22 = arith.constant 0 : index
    %c0_23 = arith.constant 0 : index
    %c0_24 = arith.constant 0 : index
    %c0_25 = arith.constant 0 : index
    %45 = vector.load %arg4[%c0_22, %c0_23, %c0_24, %c0_25] : memref<2x4x128x32xbf16, #tpu.memory_space<vmem>>, vector<1x1x128x32xbf16>
    %46 = vector.shape_cast %45 : vector<1x1x128x32xbf16> to vector<128x32xbf16>
    %cst_26 = arith.constant dense<0.000000e+00> : vector<32x32xf32>
    %47 = tpu.matmul %40, %46, %cst_26 {dimension_numbers = #tpu.dot_dimension_numbers<[1], [0], [0], [1], [0, 0, 1, 1], [], []>} : vector<32x128xbf16>, vector<128x32xbf16>, vector<32x32xf32> -> vector<32x32xf32>
    %c0_27 = arith.constant 0 : index
    %c0_28 = arith.constant 0 : index
    %c0_29 = arith.constant 0 : index
    %c0_30 = arith.constant 0 : index
    %48 = vector.load %arg5[%c0_27, %c0_28, %c0_29, %c0_30] : memref<2x4x128x32xbf16, #tpu.memory_space<vmem>>, vector<1x1x128x32xbf16>
    %49 = vector.shape_cast %48 : vector<1x1x128x32xbf16> to vector<128x32xbf16>
    %cst_31 = arith.constant dense<0.000000e+00> : vector<32x32xf32>
    %50 = tpu.matmul %40, %49, %cst_31 {dimension_numbers = #tpu.dot_dimension_numbers<[1], [0], [0], [1], [0, 0, 1, 1], [], []>} : vector<32x128xbf16>, vector<128x32xbf16>, vector<32x32xf32> -> vector<32x32xf32>
    %cst_32 = arith.constant 0.176776692 : f32
    %51 = vector.broadcast %cst_32 : f32 to vector<32x32xf32>
    %52 = arith.mulf %44, %51 : vector<32x32xf32>
    %53 = arith.truncf %52 : vector<32x32xf32> to vector<32x32xbf16>
    %54 = arith.truncf %47 : vector<32x32xf32> to vector<32x32xbf16>
    %55 = arith.truncf %50 : vector<32x32xf32> to vector<32x32xbf16>
    %56 = vector.extract_strided_slice %53 {offsets = [0, 0], sizes = [16, 32], strides = [1, 1]} : vector<32x32xbf16> to vector<16x32xbf16>
    %57 = vector.extract_strided_slice %54 {offsets = [0, 0], sizes = [16, 32], strides = [1, 1]} : vector<32x32xbf16> to vector<16x32xbf16>
    %cst_33 = arith.constant dense<0.000000e+00> : vector<16x16xf32>
    %58 = tpu.matmul %56, %57, %cst_33 {dimension_numbers = #tpu.dot_dimension_numbers<[1], [1], [0], [0], [0, 0, 1, 0], [], []>} : vector<16x32xbf16>, vector<16x32xbf16>, vector<16x16xf32> -> vector<16x16xf32>
    %59 = vector.broadcast %7 : vector<1x16xf32> to vector<16x16xf32>
    %60 = arith.addf %58, %59 : vector<16x16xf32>
    %cst_34 = arith.constant dense<0xFF800000> : vector<16xf32>
    %61 = vector.multi_reduction <maximumf>, %60, %cst_34 [1] : vector<16x16xf32> to vector<16xf32>
    %62 = vector.shape_cast %61 : vector<16xf32> to vector<16x1xf32>
    %63 = vector.broadcast %62 : vector<16x1xf32> to vector<16x16xf32>
    %64 = arith.subf %60, %63 : vector<16x16xf32>
    %65 = math.exp %64 : vector<16x16xf32>
    %cst_35 = arith.constant dense<0.000000e+00> : vector<16xf32>
    %66 = vector.multi_reduction <add>, %65, %cst_35 [1] : vector<16x16xf32> to vector<16xf32>
    %67 = vector.shape_cast %66 : vector<16xf32> to vector<16x1xf32>
    %68 = tpu.reciprocal %67 {approx = true} : vector<16x1xf32> -> vector<16x1xf32>
    %69 = vector.broadcast %68 : vector<16x1xf32> to vector<16x16xf32>
    %70 = arith.mulf %65, %69 : vector<16x16xf32>
    %71 = arith.truncf %70 : vector<16x16xf32> to vector<16x16xbf16>
    %72 = vector.extract_strided_slice %55 {offsets = [0, 0], sizes = [16, 32], strides = [1, 1]} : vector<32x32xbf16> to vector<16x32xbf16>
    %cst_36 = arith.constant dense<0.000000e+00> : vector<16x32xf32>
    %73 = tpu.matmul %71, %72, %cst_36 {dimension_numbers = #tpu.dot_dimension_numbers<[1], [0], [0], [1], [0, 0, 1, 1], [], []>} : vector<16x16xbf16>, vector<16x32xbf16>, vector<16x32xf32> -> vector<16x32xf32>
    %74 = vector.extract_strided_slice %53 {offsets = [16, 0], sizes = [16, 32], strides = [1, 1]} : vector<32x32xbf16> to vector<16x32xbf16>
    %75 = vector.extract_strided_slice %54 {offsets = [16, 0], sizes = [16, 32], strides = [1, 1]} : vector<32x32xbf16> to vector<16x32xbf16>
    %cst_37 = arith.constant dense<0.000000e+00> : vector<16x16xf32>
    %76 = tpu.matmul %74, %75, %cst_37 {dimension_numbers = #tpu.dot_dimension_numbers<[1], [1], [0], [0], [0, 0, 1, 0], [], []>} : vector<16x32xbf16>, vector<16x32xbf16>, vector<16x16xf32> -> vector<16x16xf32>
    %77 = vector.broadcast %13 : vector<1x16xf32> to vector<16x16xf32>
    %78 = arith.addf %76, %77 : vector<16x16xf32>
    %cst_38 = arith.constant dense<0xFF800000> : vector<16xf32>
    %79 = vector.multi_reduction <maximumf>, %78, %cst_38 [1] : vector<16x16xf32> to vector<16xf32>
    %80 = vector.shape_cast %79 : vector<16xf32> to vector<16x1xf32>
    %81 = vector.broadcast %80 : vector<16x1xf32> to vector<16x16xf32>
    %82 = arith.subf %78, %81 : vector<16x16xf32>
    %83 = math.exp %82 : vector<16x16xf32>
    %cst_39 = arith.constant dense<0.000000e+00> : vector<16xf32>
    %84 = vector.multi_reduction <add>, %83, %cst_39 [1] : vector<16x16xf32> to vector<16xf32>
    %85 = vector.shape_cast %84 : vector<16xf32> to vector<16x1xf32>
    %86 = tpu.reciprocal %85 {approx = true} : vector<16x1xf32> -> vector<16x1xf32>
    %87 = vector.broadcast %86 : vector<16x1xf32> to vector<16x16xf32>
    %88 = arith.mulf %83, %87 : vector<16x16xf32>
    %89 = arith.truncf %88 : vector<16x16xf32> to vector<16x16xbf16>
    %90 = vector.extract_strided_slice %55 {offsets = [16, 0], sizes = [16, 32], strides = [1, 1]} : vector<32x32xbf16> to vector<16x32xbf16>
    %cst_40 = arith.constant dense<0.000000e+00> : vector<16x32xf32>
    %91 = tpu.matmul %89, %90, %cst_40 {dimension_numbers = #tpu.dot_dimension_numbers<[1], [0], [0], [1], [0, 0, 1, 1], [], []>} : vector<16x16xbf16>, vector<16x32xbf16>, vector<16x32xf32> -> vector<16x32xf32>
    %92 = tpu.concatenate %73, %91 in 0 : vector<16x32xf32>, vector<16x32xf32> -> vector<32x32xf32>
    %93 = arith.truncf %92 : vector<32x32xf32> to vector<32x32xbf16>
    %c0_41 = arith.constant 0 : index
    %c0_42 = arith.constant 0 : index
    %c0_43 = arith.constant 0 : index
    %c0_44 = arith.constant 0 : index
    %94 = vector.load %arg6[%c0_41, %c0_42, %c0_43, %c0_44] : memref<2x4x32x128xbf16, #tpu.memory_space<vmem>>, vector<1x1x32x128xbf16>
    %95 = vector.shape_cast %94 : vector<1x1x32x128xbf16> to vector<32x128xbf16>
    %cst_45 = arith.constant dense<0.000000e+00> : vector<32x128xf32>
    %96 = tpu.matmul %93, %95, %cst_45 {dimension_numbers = #tpu.dot_dimension_numbers<[1], [0], [0], [1], [0, 0, 1, 1], [], []>} : vector<32x32xbf16>, vector<32x128xbf16>, vector<32x128xf32> -> vector<32x128xf32>
    %97 = arith.addf %41, %96 : vector<32x128xf32>
    %c0_46 = arith.constant 0 : index
    %c1_47 = arith.constant 1 : index
    %c0_48 = arith.constant 0 : index
    %c0_49 = arith.constant 0 : index
    %98 = vector.load %arg3[%c0_46, %c1_47, %c0_48, %c0_49] : memref<2x4x128x32xbf16, #tpu.memory_space<vmem>>, vector<1x1x128x32xbf16>
    %99 = vector.shape_cast %98 : vector<1x1x128x32xbf16> to vector<128x32xbf16>
    %cst_50 = arith.constant dense<0.000000e+00> : vector<32x32xf32>
    %100 = tpu.matmul %40, %99, %cst_50 {dimension_numbers = #tpu.dot_dimension_numbers<[1], [0], [0], [1], [0, 0, 1, 1], [], []>} : vector<32x128xbf16>, vector<128x32xbf16>, vector<32x32xf32> -> vector<32x32xf32>
    %c0_51 = arith.constant 0 : index
    %c1_52 = arith.constant 1 : index
    %c0_53 = arith.constant 0 : index
    %c0_54 = arith.constant 0 : index
    %101 = vector.load %arg4[%c0_51, %c1_52, %c0_53, %c0_54] : memref<2x4x128x32xbf16, #tpu.memory_space<vmem>>, vector<1x1x128x32xbf16>
    %102 = vector.shape_cast %101 : vector<1x1x128x32xbf16> to vector<128x32xbf16>
    %cst_55 = arith.constant dense<0.000000e+00> : vector<32x32xf32>
    %103 = tpu.matmul %40, %102, %cst_55 {dimension_numbers = #tpu.dot_dimension_numbers<[1], [0], [0], [1], [0, 0, 1, 1], [], []>} : vector<32x128xbf16>, vector<128x32xbf16>, vector<32x32xf32> -> vector<32x32xf32>
    %c0_56 = arith.constant 0 : index
    %c1_57 = arith.constant 1 : index
    %c0_58 = arith.constant 0 : index
    %c0_59 = arith.constant 0 : index
    %104 = vector.load %arg5[%c0_56, %c1_57, %c0_58, %c0_59] : memref<2x4x128x32xbf16, #tpu.memory_space<vmem>>, vector<1x1x128x32xbf16>
    %105 = vector.shape_cast %104 : vector<1x1x128x32xbf16> to vector<128x32xbf16>
    %cst_60 = arith.constant dense<0.000000e+00> : vector<32x32xf32>
    %106 = tpu.matmul %40, %105, %cst_60 {dimension_numbers = #tpu.dot_dimension_numbers<[1], [0], [0], [1], [0, 0, 1, 1], [], []>} : vector<32x128xbf16>, vector<128x32xbf16>, vector<32x32xf32> -> vector<32x32xf32>
    %cst_61 = arith.constant 0.176776692 : f32
    %107 = vector.broadcast %cst_61 : f32 to vector<32x32xf32>
    %108 = arith.mulf %100, %107 : vector<32x32xf32>
    %109 = arith.truncf %108 : vector<32x32xf32> to vector<32x32xbf16>
    %110 = arith.truncf %103 : vector<32x32xf32> to vector<32x32xbf16>
    %111 = arith.truncf %106 : vector<32x32xf32> to vector<32x32xbf16>
    %112 = vector.extract_strided_slice %109 {offsets = [0, 0], sizes = [16, 32], strides = [1, 1]} : vector<32x32xbf16> to vector<16x32xbf16>
    %113 = vector.extract_strided_slice %110 {offsets = [0, 0], sizes = [16, 32], strides = [1, 1]} : vector<32x32xbf16> to vector<16x32xbf16>
    %cst_62 = arith.constant dense<0.000000e+00> : vector<16x16xf32>
    %114 = tpu.matmul %112, %113, %cst_62 {dimension_numbers = #tpu.dot_dimension_numbers<[1], [1], [0], [0], [0, 0, 1, 0], [], []>} : vector<16x32xbf16>, vector<16x32xbf16>, vector<16x16xf32> -> vector<16x16xf32>
    %115 = vector.broadcast %7 : vector<1x16xf32> to vector<16x16xf32>
    %116 = arith.addf %114, %115 : vector<16x16xf32>
    %cst_63 = arith.constant dense<0xFF800000> : vector<16xf32>
    %117 = vector.multi_reduction <maximumf>, %116, %cst_63 [1] : vector<16x16xf32> to vector<16xf32>
    %118 = vector.shape_cast %117 : vector<16xf32> to vector<16x1xf32>
    %119 = vector.broadcast %118 : vector<16x1xf32> to vector<16x16xf32>
    %120 = arith.subf %116, %119 : vector<16x16xf32>
    %121 = math.exp %120 : vector<16x16xf32>
    %cst_64 = arith.constant dense<0.000000e+00> : vector<16xf32>
    %122 = vector.multi_reduction <add>, %121, %cst_64 [1] : vector<16x16xf32> to vector<16xf32>
    %123 = vector.shape_cast %122 : vector<16xf32> to vector<16x1xf32>
    %124 = tpu.reciprocal %123 {approx = true} : vector<16x1xf32> -> vector<16x1xf32>
    %125 = vector.broadcast %124 : vector<16x1xf32> to vector<16x16xf32>
    %126 = arith.mulf %121, %125 : vector<16x16xf32>
    %127 = arith.truncf %126 : vector<16x16xf32> to vector<16x16xbf16>
    %128 = vector.extract_strided_slice %111 {offsets = [0, 0], sizes = [16, 32], strides = [1, 1]} : vector<32x32xbf16> to vector<16x32xbf16>
    %cst_65 = arith.constant dense<0.000000e+00> : vector<16x32xf32>
    %129 = tpu.matmul %127, %128, %cst_65 {dimension_numbers = #tpu.dot_dimension_numbers<[1], [0], [0], [1], [0, 0, 1, 1], [], []>} : vector<16x16xbf16>, vector<16x32xbf16>, vector<16x32xf32> -> vector<16x32xf32>
    %130 = vector.extract_strided_slice %109 {offsets = [16, 0], sizes = [16, 32], strides = [1, 1]} : vector<32x32xbf16> to vector<16x32xbf16>
    %131 = vector.extract_strided_slice %110 {offsets = [16, 0], sizes = [16, 32], strides = [1, 1]} : vector<32x32xbf16> to vector<16x32xbf16>
    %cst_66 = arith.constant dense<0.000000e+00> : vector<16x16xf32>
    %132 = tpu.matmul %130, %131, %cst_66 {dimension_numbers = #tpu.dot_dimension_numbers<[1], [1], [0], [0], [0, 0, 1, 0], [], []>} : vector<16x32xbf16>, vector<16x32xbf16>, vector<16x16xf32> -> vector<16x16xf32>
    %133 = vector.broadcast %13 : vector<1x16xf32> to vector<16x16xf32>
    %134 = arith.addf %132, %133 : vector<16x16xf32>
    %cst_67 = arith.constant dense<0xFF800000> : vector<16xf32>
    %135 = vector.multi_reduction <maximumf>, %134, %cst_67 [1] : vector<16x16xf32> to vector<16xf32>
    %136 = vector.shape_cast %135 : vector<16xf32> to vector<16x1xf32>
    %137 = vector.broadcast %136 : vector<16x1xf32> to vector<16x16xf32>
    %138 = arith.subf %134, %137 : vector<16x16xf32>
    %139 = math.exp %138 : vector<16x16xf32>
    %cst_68 = arith.constant dense<0.000000e+00> : vector<16xf32>
    %140 = vector.multi_reduction <add>, %139, %cst_68 [1] : vector<16x16xf32> to vector<16xf32>
    %141 = vector.shape_cast %140 : vector<16xf32> to vector<16x1xf32>
    %142 = tpu.reciprocal %141 {approx = true} : vector<16x1xf32> -> vector<16x1xf32>
    %143 = vector.broadcast %142 : vector<16x1xf32> to vector<16x16xf32>
    %144 = arith.mulf %139, %143 : vector<16x16xf32>
    %145 = arith.truncf %144 : vector<16x16xf32> to vector<16x16xbf16>
    %146 = vector.extract_strided_slice %111 {offsets = [16, 0], sizes = [16, 32], strides = [1, 1]} : vector<32x32xbf16> to vector<16x32xbf16>
    %cst_69 = arith.constant dense<0.000000e+00> : vector<16x32xf32>
    %147 = tpu.matmul %145, %146, %cst_69 {dimension_numbers = #tpu.dot_dimension_numbers<[1], [0], [0], [1], [0, 0, 1, 1], [], []>} : vector<16x16xbf16>, vector<16x32xbf16>, vector<16x32xf32> -> vector<16x32xf32>
    %148 = tpu.concatenate %129, %147 in 0 : vector<16x32xf32>, vector<16x32xf32> -> vector<32x32xf32>
    %149 = arith.truncf %148 : vector<32x32xf32> to vector<32x32xbf16>
    %c0_70 = arith.constant 0 : index
    %c1_71 = arith.constant 1 : index
    %c0_72 = arith.constant 0 : index
    %c0_73 = arith.constant 0 : index
    %150 = vector.load %arg6[%c0_70, %c1_71, %c0_72, %c0_73] : memref<2x4x32x128xbf16, #tpu.memory_space<vmem>>, vector<1x1x32x128xbf16>
    %151 = vector.shape_cast %150 : vector<1x1x32x128xbf16> to vector<32x128xbf16>
    %cst_74 = arith.constant dense<0.000000e+00> : vector<32x128xf32>
    %152 = tpu.matmul %149, %151, %cst_74 {dimension_numbers = #tpu.dot_dimension_numbers<[1], [0], [0], [1], [0, 0, 1, 1], [], []>} : vector<32x32xbf16>, vector<32x128xbf16>, vector<32x128xf32> -> vector<32x128xf32>
    %153 = arith.addf %97, %152 : vector<32x128xf32>
    %c0_75 = arith.constant 0 : index
    %c2 = arith.constant 2 : index
    %c0_76 = arith.constant 0 : index
    %c0_77 = arith.constant 0 : index
    %154 = vector.load %arg3[%c0_75, %c2, %c0_76, %c0_77] : memref<2x4x128x32xbf16, #tpu.memory_space<vmem>>, vector<1x1x128x32xbf16>
    %155 = vector.shape_cast %154 : vector<1x1x128x32xbf16> to vector<128x32xbf16>
    %cst_78 = arith.constant dense<0.000000e+00> : vector<32x32xf32>
    %156 = tpu.matmul %40, %155, %cst_78 {dimension_numbers = #tpu.dot_dimension_numbers<[1], [0], [0], [1], [0, 0, 1, 1], [], []>} : vector<32x128xbf16>, vector<128x32xbf16>, vector<32x32xf32> -> vector<32x32xf32>
    %c0_79 = arith.constant 0 : index
    %c2_80 = arith.constant 2 : index
    %c0_81 = arith.constant 0 : index
    %c0_82 = arith.constant 0 : index
    %157 = vector.load %arg4[%c0_79, %c2_80, %c0_81, %c0_82] : memref<2x4x128x32xbf16, #tpu.memory_space<vmem>>, vector<1x1x128x32xbf16>
    %158 = vector.shape_cast %157 : vector<1x1x128x32xbf16> to vector<128x32xbf16>
    %cst_83 = arith.constant dense<0.000000e+00> : vector<32x32xf32>
    %159 = tpu.matmul %40, %158, %cst_83 {dimension_numbers = #tpu.dot_dimension_numbers<[1], [0], [0], [1], [0, 0, 1, 1], [], []>} : vector<32x128xbf16>, vector<128x32xbf16>, vector<32x32xf32> -> vector<32x32xf32>
    %c0_84 = arith.constant 0 : index
    %c2_85 = arith.constant 2 : index
    %c0_86 = arith.constant 0 : index
    %c0_87 = arith.constant 0 : index
    %160 = vector.load %arg5[%c0_84, %c2_85, %c0_86, %c0_87] : memref<2x4x128x32xbf16, #tpu.memory_space<vmem>>, vector<1x1x128x32xbf16>
    %161 = vector.shape_cast %160 : vector<1x1x128x32xbf16> to vector<128x32xbf16>
    %cst_88 = arith.constant dense<0.000000e+00> : vector<32x32xf32>
    %162 = tpu.matmul %40, %161, %cst_88 {dimension_numbers = #tpu.dot_dimension_numbers<[1], [0], [0], [1], [0, 0, 1, 1], [], []>} : vector<32x128xbf16>, vector<128x32xbf16>, vector<32x32xf32> -> vector<32x32xf32>
    %cst_89 = arith.constant 0.176776692 : f32
    %163 = vector.broadcast %cst_89 : f32 to vector<32x32xf32>
    %164 = arith.mulf %156, %163 : vector<32x32xf32>
    %165 = arith.truncf %164 : vector<32x32xf32> to vector<32x32xbf16>
    %166 = arith.truncf %159 : vector<32x32xf32> to vector<32x32xbf16>
    %167 = arith.truncf %162 : vector<32x32xf32> to vector<32x32xbf16>
    %168 = vector.extract_strided_slice %165 {offsets = [0, 0], sizes = [16, 32], strides = [1, 1]} : vector<32x32xbf16> to vector<16x32xbf16>
    %169 = vector.extract_strided_slice %166 {offsets = [0, 0], sizes = [16, 32], strides = [1, 1]} : vector<32x32xbf16> to vector<16x32xbf16>
    %cst_90 = arith.constant dense<0.000000e+00> : vector<16x16xf32>
    %170 = tpu.matmul %168, %169, %cst_90 {dimension_numbers = #tpu.dot_dimension_numbers<[1], [1], [0], [0], [0, 0, 1, 0], [], []>} : vector<16x32xbf16>, vector<16x32xbf16>, vector<16x16xf32> -> vector<16x16xf32>
    %171 = vector.broadcast %7 : vector<1x16xf32> to vector<16x16xf32>
    %172 = arith.addf %170, %171 : vector<16x16xf32>
    %cst_91 = arith.constant dense<0xFF800000> : vector<16xf32>
    %173 = vector.multi_reduction <maximumf>, %172, %cst_91 [1] : vector<16x16xf32> to vector<16xf32>
    %174 = vector.shape_cast %173 : vector<16xf32> to vector<16x1xf32>
    %175 = vector.broadcast %174 : vector<16x1xf32> to vector<16x16xf32>
    %176 = arith.subf %172, %175 : vector<16x16xf32>
    %177 = math.exp %176 : vector<16x16xf32>
    %cst_92 = arith.constant dense<0.000000e+00> : vector<16xf32>
    %178 = vector.multi_reduction <add>, %177, %cst_92 [1] : vector<16x16xf32> to vector<16xf32>
    %179 = vector.shape_cast %178 : vector<16xf32> to vector<16x1xf32>
    %180 = tpu.reciprocal %179 {approx = true} : vector<16x1xf32> -> vector<16x1xf32>
    %181 = vector.broadcast %180 : vector<16x1xf32> to vector<16x16xf32>
    %182 = arith.mulf %177, %181 : vector<16x16xf32>
    %183 = arith.truncf %182 : vector<16x16xf32> to vector<16x16xbf16>
    %184 = vector.extract_strided_slice %167 {offsets = [0, 0], sizes = [16, 32], strides = [1, 1]} : vector<32x32xbf16> to vector<16x32xbf16>
    %cst_93 = arith.constant dense<0.000000e+00> : vector<16x32xf32>
    %185 = tpu.matmul %183, %184, %cst_93 {dimension_numbers = #tpu.dot_dimension_numbers<[1], [0], [0], [1], [0, 0, 1, 1], [], []>} : vector<16x16xbf16>, vector<16x32xbf16>, vector<16x32xf32> -> vector<16x32xf32>
    %186 = vector.extract_strided_slice %165 {offsets = [16, 0], sizes = [16, 32], strides = [1, 1]} : vector<32x32xbf16> to vector<16x32xbf16>
    %187 = vector.extract_strided_slice %166 {offsets = [16, 0], sizes = [16, 32], strides = [1, 1]} : vector<32x32xbf16> to vector<16x32xbf16>
    %cst_94 = arith.constant dense<0.000000e+00> : vector<16x16xf32>
    %188 = tpu.matmul %186, %187, %cst_94 {dimension_numbers = #tpu.dot_dimension_numbers<[1], [1], [0], [0], [0, 0, 1, 0], [], []>} : vector<16x32xbf16>, vector<16x32xbf16>, vector<16x16xf32> -> vector<16x16xf32>
    %189 = vector.broadcast %13 : vector<1x16xf32> to vector<16x16xf32>
    %190 = arith.addf %188, %189 : vector<16x16xf32>
    %cst_95 = arith.constant dense<0xFF800000> : vector<16xf32>
    %191 = vector.multi_reduction <maximumf>, %190, %cst_95 [1] : vector<16x16xf32> to vector<16xf32>
    %192 = vector.shape_cast %191 : vector<16xf32> to vector<16x1xf32>
    %193 = vector.broadcast %192 : vector<16x1xf32> to vector<16x16xf32>
    %194 = arith.subf %190, %193 : vector<16x16xf32>
    %195 = math.exp %194 : vector<16x16xf32>
    %cst_96 = arith.constant dense<0.000000e+00> : vector<16xf32>
    %196 = vector.multi_reduction <add>, %195, %cst_96 [1] : vector<16x16xf32> to vector<16xf32>
    %197 = vector.shape_cast %196 : vector<16xf32> to vector<16x1xf32>
    %198 = tpu.reciprocal %197 {approx = true} : vector<16x1xf32> -> vector<16x1xf32>
    %199 = vector.broadcast %198 : vector<16x1xf32> to vector<16x16xf32>
    %200 = arith.mulf %195, %199 : vector<16x16xf32>
    %201 = arith.truncf %200 : vector<16x16xf32> to vector<16x16xbf16>
    %202 = vector.extract_strided_slice %167 {offsets = [16, 0], sizes = [16, 32], strides = [1, 1]} : vector<32x32xbf16> to vector<16x32xbf16>
    %cst_97 = arith.constant dense<0.000000e+00> : vector<16x32xf32>
    %203 = tpu.matmul %201, %202, %cst_97 {dimension_numbers = #tpu.dot_dimension_numbers<[1], [0], [0], [1], [0, 0, 1, 1], [], []>} : vector<16x16xbf16>, vector<16x32xbf16>, vector<16x32xf32> -> vector<16x32xf32>
    %204 = tpu.concatenate %185, %203 in 0 : vector<16x32xf32>, vector<16x32xf32> -> vector<32x32xf32>
    %205 = arith.truncf %204 : vector<32x32xf32> to vector<32x32xbf16>
    %c0_98 = arith.constant 0 : index
    %c2_99 = arith.constant 2 : index
    %c0_100 = arith.constant 0 : index
    %c0_101 = arith.constant 0 : index
    %206 = vector.load %arg6[%c0_98, %c2_99, %c0_100, %c0_101] : memref<2x4x32x128xbf16, #tpu.memory_space<vmem>>, vector<1x1x32x128xbf16>
    %207 = vector.shape_cast %206 : vector<1x1x32x128xbf16> to vector<32x128xbf16>
    %cst_102 = arith.constant dense<0.000000e+00> : vector<32x128xf32>
    %208 = tpu.matmul %205, %207, %cst_102 {dimension_numbers = #tpu.dot_dimension_numbers<[1], [0], [0], [1], [0, 0, 1, 1], [], []>} : vector<32x32xbf16>, vector<32x128xbf16>, vector<32x128xf32> -> vector<32x128xf32>
    %209 = arith.addf %153, %208 : vector<32x128xf32>
    %c0_103 = arith.constant 0 : index
    %c3 = arith.constant 3 : index
    %c0_104 = arith.constant 0 : index
    %c0_105 = arith.constant 0 : index
    %210 = vector.load %arg3[%c0_103, %c3, %c0_104, %c0_105] : memref<2x4x128x32xbf16, #tpu.memory_space<vmem>>, vector<1x1x128x32xbf16>
    %211 = vector.shape_cast %210 : vector<1x1x128x32xbf16> to vector<128x32xbf16>
    %cst_106 = arith.constant dense<0.000000e+00> : vector<32x32xf32>
    %212 = tpu.matmul %40, %211, %cst_106 {dimension_numbers = #tpu.dot_dimension_numbers<[1], [0], [0], [1], [0, 0, 1, 1], [], []>} : vector<32x128xbf16>, vector<128x32xbf16>, vector<32x32xf32> -> vector<32x32xf32>
    %c0_107 = arith.constant 0 : index
    %c3_108 = arith.constant 3 : index
    %c0_109 = arith.constant 0 : index
    %c0_110 = arith.constant 0 : index
    %213 = vector.load %arg4[%c0_107, %c3_108, %c0_109, %c0_110] : memref<2x4x128x32xbf16, #tpu.memory_space<vmem>>, vector<1x1x128x32xbf16>
    %214 = vector.shape_cast %213 : vector<1x1x128x32xbf16> to vector<128x32xbf16>
    %cst_111 = arith.constant dense<0.000000e+00> : vector<32x32xf32>
    %215 = tpu.matmul %40, %214, %cst_111 {dimension_numbers = #tpu.dot_dimension_numbers<[1], [0], [0], [1], [0, 0, 1, 1], [], []>} : vector<32x128xbf16>, vector<128x32xbf16>, vector<32x32xf32> -> vector<32x32xf32>
    %c0_112 = arith.constant 0 : index
    %c3_113 = arith.constant 3 : index
    %c0_114 = arith.constant 0 : index
    %c0_115 = arith.constant 0 : index
    %216 = vector.load %arg5[%c0_112, %c3_113, %c0_114, %c0_115] : memref<2x4x128x32xbf16, #tpu.memory_space<vmem>>, vector<1x1x128x32xbf16>
    %217 = vector.shape_cast %216 : vector<1x1x128x32xbf16> to vector<128x32xbf16>
    %cst_116 = arith.constant dense<0.000000e+00> : vector<32x32xf32>
    %218 = tpu.matmul %40, %217, %cst_116 {dimension_numbers = #tpu.dot_dimension_numbers<[1], [0], [0], [1], [0, 0, 1, 1], [], []>} : vector<32x128xbf16>, vector<128x32xbf16>, vector<32x32xf32> -> vector<32x32xf32>
    %cst_117 = arith.constant 0.176776692 : f32
    %219 = vector.broadcast %cst_117 : f32 to vector<32x32xf32>
    %220 = arith.mulf %212, %219 : vector<32x32xf32>
    %221 = arith.truncf %220 : vector<32x32xf32> to vector<32x32xbf16>
    %222 = arith.truncf %215 : vector<32x32xf32> to vector<32x32xbf16>
    %223 = arith.truncf %218 : vector<32x32xf32> to vector<32x32xbf16>
    %224 = vector.extract_strided_slice %221 {offsets = [0, 0], sizes = [16, 32], strides = [1, 1]} : vector<32x32xbf16> to vector<16x32xbf16>
    %225 = vector.extract_strided_slice %222 {offsets = [0, 0], sizes = [16, 32], strides = [1, 1]} : vector<32x32xbf16> to vector<16x32xbf16>
    %cst_118 = arith.constant dense<0.000000e+00> : vector<16x16xf32>
    %226 = tpu.matmul %224, %225, %cst_118 {dimension_numbers = #tpu.dot_dimension_numbers<[1], [1], [0], [0], [0, 0, 1, 0], [], []>} : vector<16x32xbf16>, vector<16x32xbf16>, vector<16x16xf32> -> vector<16x16xf32>
    %227 = vector.broadcast %7 : vector<1x16xf32> to vector<16x16xf32>
    %228 = arith.addf %226, %227 : vector<16x16xf32>
    %cst_119 = arith.constant dense<0xFF800000> : vector<16xf32>
    %229 = vector.multi_reduction <maximumf>, %228, %cst_119 [1] : vector<16x16xf32> to vector<16xf32>
    %230 = vector.shape_cast %229 : vector<16xf32> to vector<16x1xf32>
    %231 = vector.broadcast %230 : vector<16x1xf32> to vector<16x16xf32>
    %232 = arith.subf %228, %231 : vector<16x16xf32>
    %233 = math.exp %232 : vector<16x16xf32>
    %cst_120 = arith.constant dense<0.000000e+00> : vector<16xf32>
    %234 = vector.multi_reduction <add>, %233, %cst_120 [1] : vector<16x16xf32> to vector<16xf32>
    %235 = vector.shape_cast %234 : vector<16xf32> to vector<16x1xf32>
    %236 = tpu.reciprocal %235 {approx = true} : vector<16x1xf32> -> vector<16x1xf32>
    %237 = vector.broadcast %236 : vector<16x1xf32> to vector<16x16xf32>
    %238 = arith.mulf %233, %237 : vector<16x16xf32>
    %239 = arith.truncf %238 : vector<16x16xf32> to vector<16x16xbf16>
    %240 = vector.extract_strided_slice %223 {offsets = [0, 0], sizes = [16, 32], strides = [1, 1]} : vector<32x32xbf16> to vector<16x32xbf16>
    %cst_121 = arith.constant dense<0.000000e+00> : vector<16x32xf32>
    %241 = tpu.matmul %239, %240, %cst_121 {dimension_numbers = #tpu.dot_dimension_numbers<[1], [0], [0], [1], [0, 0, 1, 1], [], []>} : vector<16x16xbf16>, vector<16x32xbf16>, vector<16x32xf32> -> vector<16x32xf32>
    %242 = vector.extract_strided_slice %221 {offsets = [16, 0], sizes = [16, 32], strides = [1, 1]} : vector<32x32xbf16> to vector<16x32xbf16>
    %243 = vector.extract_strided_slice %222 {offsets = [16, 0], sizes = [16, 32], strides = [1, 1]} : vector<32x32xbf16> to vector<16x32xbf16>
    %cst_122 = arith.constant dense<0.000000e+00> : vector<16x16xf32>
    %244 = tpu.matmul %242, %243, %cst_122 {dimension_numbers = #tpu.dot_dimension_numbers<[1], [1], [0], [0], [0, 0, 1, 0], [], []>} : vector<16x32xbf16>, vector<16x32xbf16>, vector<16x16xf32> -> vector<16x16xf32>
    %245 = vector.broadcast %13 : vector<1x16xf32> to vector<16x16xf32>
    %246 = arith.addf %244, %245 : vector<16x16xf32>
    %cst_123 = arith.constant dense<0xFF800000> : vector<16xf32>
    %247 = vector.multi_reduction <maximumf>, %246, %cst_123 [1] : vector<16x16xf32> to vector<16xf32>
    %248 = vector.shape_cast %247 : vector<16xf32> to vector<16x1xf32>
    %249 = vector.broadcast %248 : vector<16x1xf32> to vector<16x16xf32>
    %250 = arith.subf %246, %249 : vector<16x16xf32>
    %251 = math.exp %250 : vector<16x16xf32>
    %cst_124 = arith.constant dense<0.000000e+00> : vector<16xf32>
    %252 = vector.multi_reduction <add>, %251, %cst_124 [1] : vector<16x16xf32> to vector<16xf32>
    %253 = vector.shape_cast %252 : vector<16xf32> to vector<16x1xf32>
    %254 = tpu.reciprocal %253 {approx = true} : vector<16x1xf32> -> vector<16x1xf32>
    %255 = vector.broadcast %254 : vector<16x1xf32> to vector<16x16xf32>
    %256 = arith.mulf %251, %255 : vector<16x16xf32>
    %257 = arith.truncf %256 : vector<16x16xf32> to vector<16x16xbf16>
    %258 = vector.extract_strided_slice %223 {offsets = [16, 0], sizes = [16, 32], strides = [1, 1]} : vector<32x32xbf16> to vector<16x32xbf16>
    %cst_125 = arith.constant dense<0.000000e+00> : vector<16x32xf32>
    %259 = tpu.matmul %257, %258, %cst_125 {dimension_numbers = #tpu.dot_dimension_numbers<[1], [0], [0], [1], [0, 0, 1, 1], [], []>} : vector<16x16xbf16>, vector<16x32xbf16>, vector<16x32xf32> -> vector<16x32xf32>
    %260 = tpu.concatenate %241, %259 in 0 : vector<16x32xf32>, vector<16x32xf32> -> vector<32x32xf32>
    %261 = arith.truncf %260 : vector<32x32xf32> to vector<32x32xbf16>
    %c0_126 = arith.constant 0 : index
    %c3_127 = arith.constant 3 : index
    %c0_128 = arith.constant 0 : index
    %c0_129 = arith.constant 0 : index
    %262 = vector.load %arg6[%c0_126, %c3_127, %c0_128, %c0_129] : memref<2x4x32x128xbf16, #tpu.memory_space<vmem>>, vector<1x1x32x128xbf16>
    %263 = vector.shape_cast %262 : vector<1x1x32x128xbf16> to vector<32x128xbf16>
    %cst_130 = arith.constant dense<0.000000e+00> : vector<32x128xf32>
    %264 = tpu.matmul %261, %263, %cst_130 {dimension_numbers = #tpu.dot_dimension_numbers<[1], [0], [0], [1], [0, 0, 1, 1], [], []>} : vector<32x32xbf16>, vector<32x128xbf16>, vector<32x128xf32> -> vector<32x128xf32>
    %265 = arith.addf %209, %264 : vector<32x128xf32>
    %266 = arith.addf %0, %265 : vector<32x128xf32>
    %c0_131 = arith.constant 0 : index
    %c0_132 = arith.constant 0 : index
    %c0_133 = arith.constant 0 : index
    %267 = vector.load %arg13[%c0_131, %c0_132, %c0_133] : memref<2x1x128xf32, #tpu.memory_space<vmem>>, vector<1x1x128xf32>
    %268 = vector.shape_cast %267 : vector<1x1x128xf32> to vector<1x128xf32>
    %c0_134 = arith.constant 0 : index
    %c0_135 = arith.constant 0 : index
    %c0_136 = arith.constant 0 : index
    %269 = vector.load %arg14[%c0_134, %c0_135, %c0_136] : memref<2x1x128xf32, #tpu.memory_space<vmem>>, vector<1x1x128xf32>
    %270 = vector.shape_cast %269 : vector<1x1x128xf32> to vector<1x128xf32>
    %cst_137 = arith.constant dense<0.000000e+00> : vector<32xf32>
    %271 = vector.multi_reduction <add>, %266, %cst_137 [1] : vector<32x128xf32> to vector<32xf32>
    %272 = vector.shape_cast %271 : vector<32xf32> to vector<32x1xf32>
    %cst_138 = arith.constant 1.280000e+02 : f32
    %273 = vector.broadcast %cst_138 : f32 to vector<32x1xf32>
    %274 = arith.divf %272, %273 : vector<32x1xf32>
    %275 = vector.broadcast %274 : vector<32x1xf32> to vector<32x128xf32>
    %276 = arith.subf %266, %275 : vector<32x128xf32>
    %277 = arith.mulf %276, %276 : vector<32x128xf32>
    %cst_139 = arith.constant dense<0.000000e+00> : vector<32xf32>
    %278 = vector.multi_reduction <add>, %277, %cst_139 [1] : vector<32x128xf32> to vector<32xf32>
    %279 = vector.shape_cast %278 : vector<32xf32> to vector<32x1xf32>
    %cst_140 = arith.constant 1.280000e+02 : f32
    %280 = vector.broadcast %cst_140 : f32 to vector<32x1xf32>
    %281 = arith.divf %279, %280 : vector<32x1xf32>
    %282 = vector.broadcast %274 : vector<32x1xf32> to vector<32x128xf32>
    %283 = arith.subf %266, %282 : vector<32x128xf32>
    %cst_141 = arith.constant 9.99999974E-6 : f32
    %284 = vector.broadcast %cst_141 : f32 to vector<32x1xf32>
    %285 = arith.addf %281, %284 : vector<32x1xf32>
    %286 = math.rsqrt %285 : vector<32x1xf32>
    %287 = vector.broadcast %286 : vector<32x1xf32> to vector<32x128xf32>
    %288 = arith.mulf %283, %287 : vector<32x128xf32>
    %289 = vector.broadcast %268 : vector<1x128xf32> to vector<32x128xf32>
    %290 = arith.mulf %288, %289 : vector<32x128xf32>
    %291 = vector.broadcast %270 : vector<1x128xf32> to vector<32x128xf32>
    %292 = arith.addf %290, %291 : vector<32x128xf32>
    %293 = arith.truncf %292 : vector<32x128xf32> to vector<32x128xbf16>
    %c0_142 = arith.constant 0 : index
    %c0_143 = arith.constant 0 : index
    %c0_144 = arith.constant 0 : index
    %294 = vector.load %arg7[%c0_142, %c0_143, %c0_144] : memref<2x128x512xbf16, #tpu.memory_space<vmem>>, vector<1x128x512xbf16>
    %295 = vector.shape_cast %294 : vector<1x128x512xbf16> to vector<128x512xbf16>
    %cst_145 = arith.constant dense<0.000000e+00> : vector<32x512xf32>
    %296 = tpu.matmul %293, %295, %cst_145 {dimension_numbers = #tpu.dot_dimension_numbers<[1], [0], [0], [1], [0, 0, 1, 1], [], []>} : vector<32x128xbf16>, vector<128x512xbf16>, vector<32x512xf32> -> vector<32x512xf32>
    %c0_146 = arith.constant 0 : index
    %c0_147 = arith.constant 0 : index
    %c0_148 = arith.constant 0 : index
    %297 = vector.load %arg8[%c0_146, %c0_147, %c0_148] : memref<2x1x512xf32, #tpu.memory_space<vmem>>, vector<1x1x512xf32>
    %298 = vector.shape_cast %297 : vector<1x1x512xf32> to vector<1x512xf32>
    %299 = vector.broadcast %298 : vector<1x512xf32> to vector<32x512xf32>
    %300 = arith.addf %296, %299 : vector<32x512xf32>
    %cst_149 = arith.constant 5.000000e-01 : f32
    %301 = vector.broadcast %cst_149 : f32 to vector<32x512xf32>
    %302 = arith.mulf %301, %300 : vector<32x512xf32>
    %cst_150 = arith.constant 4.471500e-02 : f32
    %303 = vector.broadcast %cst_150 : f32 to vector<32x512xf32>
    %304 = arith.mulf %303, %300 : vector<32x512xf32>
    %305 = arith.mulf %304, %300 : vector<32x512xf32>
    %306 = arith.mulf %305, %300 : vector<32x512xf32>
    %307 = arith.addf %300, %306 : vector<32x512xf32>
    %cst_151 = arith.constant 0.797884583 : f32
    %308 = vector.broadcast %cst_151 : f32 to vector<32x512xf32>
    %309 = arith.mulf %308, %307 : vector<32x512xf32>
    %310 = math.tanh %309 : vector<32x512xf32>
    %cst_152 = arith.constant 1.000000e+00 : f32
    %311 = vector.broadcast %cst_152 : f32 to vector<32x512xf32>
    %312 = arith.addf %311, %310 : vector<32x512xf32>
    %313 = arith.mulf %302, %312 : vector<32x512xf32>
    %314 = arith.truncf %313 : vector<32x512xf32> to vector<32x512xbf16>
    %c0_153 = arith.constant 0 : index
    %c0_154 = arith.constant 0 : index
    %c0_155 = arith.constant 0 : index
    %315 = vector.load %arg9[%c0_153, %c0_154, %c0_155] : memref<2x512x128xbf16, #tpu.memory_space<vmem>>, vector<1x512x128xbf16>
    %316 = vector.shape_cast %315 : vector<1x512x128xbf16> to vector<512x128xbf16>
    %cst_156 = arith.constant dense<0.000000e+00> : vector<32x128xf32>
    %317 = tpu.matmul %314, %316, %cst_156 {dimension_numbers = #tpu.dot_dimension_numbers<[1], [0], [0], [1], [0, 0, 1, 1], [], []>} : vector<32x512xbf16>, vector<512x128xbf16>, vector<32x128xf32> -> vector<32x128xf32>
    %c0_157 = arith.constant 0 : index
    %c0_158 = arith.constant 0 : index
    %c0_159 = arith.constant 0 : index
    %318 = vector.load %arg10[%c0_157, %c0_158, %c0_159] : memref<2x1x128xf32, #tpu.memory_space<vmem>>, vector<1x1x128xf32>
    %319 = vector.shape_cast %318 : vector<1x1x128xf32> to vector<1x128xf32>
    %320 = vector.broadcast %319 : vector<1x128xf32> to vector<32x128xf32>
    %321 = arith.addf %317, %320 : vector<32x128xf32>
    %322 = arith.addf %266, %321 : vector<32x128xf32>
    %c1_160 = arith.constant 1 : index
    %c0_161 = arith.constant 0 : index
    %c0_162 = arith.constant 0 : index
    %323 = vector.load %arg11[%c1_160, %c0_161, %c0_162] : memref<2x1x128xf32, #tpu.memory_space<vmem>>, vector<1x1x128xf32>
    %324 = vector.shape_cast %323 : vector<1x1x128xf32> to vector<1x128xf32>
    %c1_163 = arith.constant 1 : index
    %c0_164 = arith.constant 0 : index
    %c0_165 = arith.constant 0 : index
    %325 = vector.load %arg12[%c1_163, %c0_164, %c0_165] : memref<2x1x128xf32, #tpu.memory_space<vmem>>, vector<1x1x128xf32>
    %326 = vector.shape_cast %325 : vector<1x1x128xf32> to vector<1x128xf32>
    %cst_166 = arith.constant dense<0.000000e+00> : vector<32xf32>
    %327 = vector.multi_reduction <add>, %322, %cst_166 [1] : vector<32x128xf32> to vector<32xf32>
    %328 = vector.shape_cast %327 : vector<32xf32> to vector<32x1xf32>
    %cst_167 = arith.constant 1.280000e+02 : f32
    %329 = vector.broadcast %cst_167 : f32 to vector<32x1xf32>
    %330 = arith.divf %328, %329 : vector<32x1xf32>
    %331 = vector.broadcast %330 : vector<32x1xf32> to vector<32x128xf32>
    %332 = arith.subf %322, %331 : vector<32x128xf32>
    %333 = arith.mulf %332, %332 : vector<32x128xf32>
    %cst_168 = arith.constant dense<0.000000e+00> : vector<32xf32>
    %334 = vector.multi_reduction <add>, %333, %cst_168 [1] : vector<32x128xf32> to vector<32xf32>
    %335 = vector.shape_cast %334 : vector<32xf32> to vector<32x1xf32>
    %cst_169 = arith.constant 1.280000e+02 : f32
    %336 = vector.broadcast %cst_169 : f32 to vector<32x1xf32>
    %337 = arith.divf %335, %336 : vector<32x1xf32>
    %338 = vector.broadcast %330 : vector<32x1xf32> to vector<32x128xf32>
    %339 = arith.subf %322, %338 : vector<32x128xf32>
    %cst_170 = arith.constant 9.99999974E-6 : f32
    %340 = vector.broadcast %cst_170 : f32 to vector<32x1xf32>
    %341 = arith.addf %337, %340 : vector<32x1xf32>
    %342 = math.rsqrt %341 : vector<32x1xf32>
    %343 = vector.broadcast %342 : vector<32x1xf32> to vector<32x128xf32>
    %344 = arith.mulf %339, %343 : vector<32x128xf32>
    %345 = vector.broadcast %324 : vector<1x128xf32> to vector<32x128xf32>
    %346 = arith.mulf %344, %345 : vector<32x128xf32>
    %347 = vector.broadcast %326 : vector<1x128xf32> to vector<32x128xf32>
    %348 = arith.addf %346, %347 : vector<32x128xf32>
    %349 = arith.truncf %348 : vector<32x128xf32> to vector<32x128xbf16>
    %cst_171 = arith.constant 0.000000e+00 : f32
    %350 = vector.broadcast %cst_171 : f32 to vector<32x128xf32>
    %c1_172 = arith.constant 1 : index
    %c0_173 = arith.constant 0 : index
    %c0_174 = arith.constant 0 : index
    %c0_175 = arith.constant 0 : index
    %351 = vector.load %arg3[%c1_172, %c0_173, %c0_174, %c0_175] : memref<2x4x128x32xbf16, #tpu.memory_space<vmem>>, vector<1x1x128x32xbf16>
    %352 = vector.shape_cast %351 : vector<1x1x128x32xbf16> to vector<128x32xbf16>
    %cst_176 = arith.constant dense<0.000000e+00> : vector<32x32xf32>
    %353 = tpu.matmul %349, %352, %cst_176 {dimension_numbers = #tpu.dot_dimension_numbers<[1], [0], [0], [1], [0, 0, 1, 1], [], []>} : vector<32x128xbf16>, vector<128x32xbf16>, vector<32x32xf32> -> vector<32x32xf32>
    %c1_177 = arith.constant 1 : index
    %c0_178 = arith.constant 0 : index
    %c0_179 = arith.constant 0 : index
    %c0_180 = arith.constant 0 : index
    %354 = vector.load %arg4[%c1_177, %c0_178, %c0_179, %c0_180] : memref<2x4x128x32xbf16, #tpu.memory_space<vmem>>, vector<1x1x128x32xbf16>
    %355 = vector.shape_cast %354 : vector<1x1x128x32xbf16> to vector<128x32xbf16>
    %cst_181 = arith.constant dense<0.000000e+00> : vector<32x32xf32>
    %356 = tpu.matmul %349, %355, %cst_181 {dimension_numbers = #tpu.dot_dimension_numbers<[1], [0], [0], [1], [0, 0, 1, 1], [], []>} : vector<32x128xbf16>, vector<128x32xbf16>, vector<32x32xf32> -> vector<32x32xf32>
    %c1_182 = arith.constant 1 : index
    %c0_183 = arith.constant 0 : index
    %c0_184 = arith.constant 0 : index
    %c0_185 = arith.constant 0 : index
    %357 = vector.load %arg5[%c1_182, %c0_183, %c0_184, %c0_185] : memref<2x4x128x32xbf16, #tpu.memory_space<vmem>>, vector<1x1x128x32xbf16>
    %358 = vector.shape_cast %357 : vector<1x1x128x32xbf16> to vector<128x32xbf16>
    %cst_186 = arith.constant dense<0.000000e+00> : vector<32x32xf32>
    %359 = tpu.matmul %349, %358, %cst_186 {dimension_numbers = #tpu.dot_dimension_numbers<[1], [0], [0], [1], [0, 0, 1, 1], [], []>} : vector<32x128xbf16>, vector<128x32xbf16>, vector<32x32xf32> -> vector<32x32xf32>
    %cst_187 = arith.constant 0.176776692 : f32
    %360 = vector.broadcast %cst_187 : f32 to vector<32x32xf32>
    %361 = arith.mulf %353, %360 : vector<32x32xf32>
    %362 = arith.truncf %361 : vector<32x32xf32> to vector<32x32xbf16>
    %363 = arith.truncf %356 : vector<32x32xf32> to vector<32x32xbf16>
    %364 = arith.truncf %359 : vector<32x32xf32> to vector<32x32xbf16>
    %365 = vector.extract_strided_slice %362 {offsets = [0, 0], sizes = [16, 32], strides = [1, 1]} : vector<32x32xbf16> to vector<16x32xbf16>
    %366 = vector.extract_strided_slice %363 {offsets = [0, 0], sizes = [16, 32], strides = [1, 1]} : vector<32x32xbf16> to vector<16x32xbf16>
    %cst_188 = arith.constant dense<0.000000e+00> : vector<16x16xf32>
    %367 = tpu.matmul %365, %366, %cst_188 {dimension_numbers = #tpu.dot_dimension_numbers<[1], [1], [0], [0], [0, 0, 1, 0], [], []>} : vector<16x32xbf16>, vector<16x32xbf16>, vector<16x16xf32> -> vector<16x16xf32>
    %368 = vector.broadcast %7 : vector<1x16xf32> to vector<16x16xf32>
    %369 = arith.addf %367, %368 : vector<16x16xf32>
    %cst_189 = arith.constant dense<0xFF800000> : vector<16xf32>
    %370 = vector.multi_reduction <maximumf>, %369, %cst_189 [1] : vector<16x16xf32> to vector<16xf32>
    %371 = vector.shape_cast %370 : vector<16xf32> to vector<16x1xf32>
    %372 = vector.broadcast %371 : vector<16x1xf32> to vector<16x16xf32>
    %373 = arith.subf %369, %372 : vector<16x16xf32>
    %374 = math.exp %373 : vector<16x16xf32>
    %cst_190 = arith.constant dense<0.000000e+00> : vector<16xf32>
    %375 = vector.multi_reduction <add>, %374, %cst_190 [1] : vector<16x16xf32> to vector<16xf32>
    %376 = vector.shape_cast %375 : vector<16xf32> to vector<16x1xf32>
    %377 = tpu.reciprocal %376 {approx = true} : vector<16x1xf32> -> vector<16x1xf32>
    %378 = vector.broadcast %377 : vector<16x1xf32> to vector<16x16xf32>
    %379 = arith.mulf %374, %378 : vector<16x16xf32>
    %380 = arith.truncf %379 : vector<16x16xf32> to vector<16x16xbf16>
    %381 = vector.extract_strided_slice %364 {offsets = [0, 0], sizes = [16, 32], strides = [1, 1]} : vector<32x32xbf16> to vector<16x32xbf16>
    %cst_191 = arith.constant dense<0.000000e+00> : vector<16x32xf32>
    %382 = tpu.matmul %380, %381, %cst_191 {dimension_numbers = #tpu.dot_dimension_numbers<[1], [0], [0], [1], [0, 0, 1, 1], [], []>} : vector<16x16xbf16>, vector<16x32xbf16>, vector<16x32xf32> -> vector<16x32xf32>
    %383 = vector.extract_strided_slice %362 {offsets = [16, 0], sizes = [16, 32], strides = [1, 1]} : vector<32x32xbf16> to vector<16x32xbf16>
    %384 = vector.extract_strided_slice %363 {offsets = [16, 0], sizes = [16, 32], strides = [1, 1]} : vector<32x32xbf16> to vector<16x32xbf16>
    %cst_192 = arith.constant dense<0.000000e+00> : vector<16x16xf32>
    %385 = tpu.matmul %383, %384, %cst_192 {dimension_numbers = #tpu.dot_dimension_numbers<[1], [1], [0], [0], [0, 0, 1, 0], [], []>} : vector<16x32xbf16>, vector<16x32xbf16>, vector<16x16xf32> -> vector<16x16xf32>
    %386 = vector.broadcast %13 : vector<1x16xf32> to vector<16x16xf32>
    %387 = arith.addf %385, %386 : vector<16x16xf32>
    %cst_193 = arith.constant dense<0xFF800000> : vector<16xf32>
    %388 = vector.multi_reduction <maximumf>, %387, %cst_193 [1] : vector<16x16xf32> to vector<16xf32>
    %389 = vector.shape_cast %388 : vector<16xf32> to vector<16x1xf32>
    %390 = vector.broadcast %389 : vector<16x1xf32> to vector<16x16xf32>
    %391 = arith.subf %387, %390 : vector<16x16xf32>
    %392 = math.exp %391 : vector<16x16xf32>
    %cst_194 = arith.constant dense<0.000000e+00> : vector<16xf32>
    %393 = vector.multi_reduction <add>, %392, %cst_194 [1] : vector<16x16xf32> to vector<16xf32>
    %394 = vector.shape_cast %393 : vector<16xf32> to vector<16x1xf32>
    %395 = tpu.reciprocal %394 {approx = true} : vector<16x1xf32> -> vector<16x1xf32>
    %396 = vector.broadcast %395 : vector<16x1xf32> to vector<16x16xf32>
    %397 = arith.mulf %392, %396 : vector<16x16xf32>
    %398 = arith.truncf %397 : vector<16x16xf32> to vector<16x16xbf16>
    %399 = vector.extract_strided_slice %364 {offsets = [16, 0], sizes = [16, 32], strides = [1, 1]} : vector<32x32xbf16> to vector<16x32xbf16>
    %cst_195 = arith.constant dense<0.000000e+00> : vector<16x32xf32>
    %400 = tpu.matmul %398, %399, %cst_195 {dimension_numbers = #tpu.dot_dimension_numbers<[1], [0], [0], [1], [0, 0, 1, 1], [], []>} : vector<16x16xbf16>, vector<16x32xbf16>, vector<16x32xf32> -> vector<16x32xf32>
    %401 = tpu.concatenate %382, %400 in 0 : vector<16x32xf32>, vector<16x32xf32> -> vector<32x32xf32>
    %402 = arith.truncf %401 : vector<32x32xf32> to vector<32x32xbf16>
    %c1_196 = arith.constant 1 : index
    %c0_197 = arith.constant 0 : index
    %c0_198 = arith.constant 0 : index
    %c0_199 = arith.constant 0 : index
    %403 = vector.load %arg6[%c1_196, %c0_197, %c0_198, %c0_199] : memref<2x4x32x128xbf16, #tpu.memory_space<vmem>>, vector<1x1x32x128xbf16>
    %404 = vector.shape_cast %403 : vector<1x1x32x128xbf16> to vector<32x128xbf16>
    %cst_200 = arith.constant dense<0.000000e+00> : vector<32x128xf32>
    %405 = tpu.matmul %402, %404, %cst_200 {dimension_numbers = #tpu.dot_dimension_numbers<[1], [0], [0], [1], [0, 0, 1, 1], [], []>} : vector<32x32xbf16>, vector<32x128xbf16>, vector<32x128xf32> -> vector<32x128xf32>
    %406 = arith.addf %350, %405 : vector<32x128xf32>
    %c1_201 = arith.constant 1 : index
    %c1_202 = arith.constant 1 : index
    %c0_203 = arith.constant 0 : index
    %c0_204 = arith.constant 0 : index
    %407 = vector.load %arg3[%c1_201, %c1_202, %c0_203, %c0_204] : memref<2x4x128x32xbf16, #tpu.memory_space<vmem>>, vector<1x1x128x32xbf16>
    %408 = vector.shape_cast %407 : vector<1x1x128x32xbf16> to vector<128x32xbf16>
    %cst_205 = arith.constant dense<0.000000e+00> : vector<32x32xf32>
    %409 = tpu.matmul %349, %408, %cst_205 {dimension_numbers = #tpu.dot_dimension_numbers<[1], [0], [0], [1], [0, 0, 1, 1], [], []>} : vector<32x128xbf16>, vector<128x32xbf16>, vector<32x32xf32> -> vector<32x32xf32>
    %c1_206 = arith.constant 1 : index
    %c1_207 = arith.constant 1 : index
    %c0_208 = arith.constant 0 : index
    %c0_209 = arith.constant 0 : index
    %410 = vector.load %arg4[%c1_206, %c1_207, %c0_208, %c0_209] : memref<2x4x128x32xbf16, #tpu.memory_space<vmem>>, vector<1x1x128x32xbf16>
    %411 = vector.shape_cast %410 : vector<1x1x128x32xbf16> to vector<128x32xbf16>
    %cst_210 = arith.constant dense<0.000000e+00> : vector<32x32xf32>
    %412 = tpu.matmul %349, %411, %cst_210 {dimension_numbers = #tpu.dot_dimension_numbers<[1], [0], [0], [1], [0, 0, 1, 1], [], []>} : vector<32x128xbf16>, vector<128x32xbf16>, vector<32x32xf32> -> vector<32x32xf32>
    %c1_211 = arith.constant 1 : index
    %c1_212 = arith.constant 1 : index
    %c0_213 = arith.constant 0 : index
    %c0_214 = arith.constant 0 : index
    %413 = vector.load %arg5[%c1_211, %c1_212, %c0_213, %c0_214] : memref<2x4x128x32xbf16, #tpu.memory_space<vmem>>, vector<1x1x128x32xbf16>
    %414 = vector.shape_cast %413 : vector<1x1x128x32xbf16> to vector<128x32xbf16>
    %cst_215 = arith.constant dense<0.000000e+00> : vector<32x32xf32>
    %415 = tpu.matmul %349, %414, %cst_215 {dimension_numbers = #tpu.dot_dimension_numbers<[1], [0], [0], [1], [0, 0, 1, 1], [], []>} : vector<32x128xbf16>, vector<128x32xbf16>, vector<32x32xf32> -> vector<32x32xf32>
    %cst_216 = arith.constant 0.176776692 : f32
    %416 = vector.broadcast %cst_216 : f32 to vector<32x32xf32>
    %417 = arith.mulf %409, %416 : vector<32x32xf32>
    %418 = arith.truncf %417 : vector<32x32xf32> to vector<32x32xbf16>
    %419 = arith.truncf %412 : vector<32x32xf32> to vector<32x32xbf16>
    %420 = arith.truncf %415 : vector<32x32xf32> to vector<32x32xbf16>
    %421 = vector.extract_strided_slice %418 {offsets = [0, 0], sizes = [16, 32], strides = [1, 1]} : vector<32x32xbf16> to vector<16x32xbf16>
    %422 = vector.extract_strided_slice %419 {offsets = [0, 0], sizes = [16, 32], strides = [1, 1]} : vector<32x32xbf16> to vector<16x32xbf16>
    %cst_217 = arith.constant dense<0.000000e+00> : vector<16x16xf32>
    %423 = tpu.matmul %421, %422, %cst_217 {dimension_numbers = #tpu.dot_dimension_numbers<[1], [1], [0], [0], [0, 0, 1, 0], [], []>} : vector<16x32xbf16>, vector<16x32xbf16>, vector<16x16xf32> -> vector<16x16xf32>
    %424 = vector.broadcast %7 : vector<1x16xf32> to vector<16x16xf32>
    %425 = arith.addf %423, %424 : vector<16x16xf32>
    %cst_218 = arith.constant dense<0xFF800000> : vector<16xf32>
    %426 = vector.multi_reduction <maximumf>, %425, %cst_218 [1] : vector<16x16xf32> to vector<16xf32>
    %427 = vector.shape_cast %426 : vector<16xf32> to vector<16x1xf32>
    %428 = vector.broadcast %427 : vector<16x1xf32> to vector<16x16xf32>
    %429 = arith.subf %425, %428 : vector<16x16xf32>
    %430 = math.exp %429 : vector<16x16xf32>
    %cst_219 = arith.constant dense<0.000000e+00> : vector<16xf32>
    %431 = vector.multi_reduction <add>, %430, %cst_219 [1] : vector<16x16xf32> to vector<16xf32>
    %432 = vector.shape_cast %431 : vector<16xf32> to vector<16x1xf32>
    %433 = tpu.reciprocal %432 {approx = true} : vector<16x1xf32> -> vector<16x1xf32>
    %434 = vector.broadcast %433 : vector<16x1xf32> to vector<16x16xf32>
    %435 = arith.mulf %430, %434 : vector<16x16xf32>
    %436 = arith.truncf %435 : vector<16x16xf32> to vector<16x16xbf16>
    %437 = vector.extract_strided_slice %420 {offsets = [0, 0], sizes = [16, 32], strides = [1, 1]} : vector<32x32xbf16> to vector<16x32xbf16>
    %cst_220 = arith.constant dense<0.000000e+00> : vector<16x32xf32>
    %438 = tpu.matmul %436, %437, %cst_220 {dimension_numbers = #tpu.dot_dimension_numbers<[1], [0], [0], [1], [0, 0, 1, 1], [], []>} : vector<16x16xbf16>, vector<16x32xbf16>, vector<16x32xf32> -> vector<16x32xf32>
    %439 = vector.extract_strided_slice %418 {offsets = [16, 0], sizes = [16, 32], strides = [1, 1]} : vector<32x32xbf16> to vector<16x32xbf16>
    %440 = vector.extract_strided_slice %419 {offsets = [16, 0], sizes = [16, 32], strides = [1, 1]} : vector<32x32xbf16> to vector<16x32xbf16>
    %cst_221 = arith.constant dense<0.000000e+00> : vector<16x16xf32>
    %441 = tpu.matmul %439, %440, %cst_221 {dimension_numbers = #tpu.dot_dimension_numbers<[1], [1], [0], [0], [0, 0, 1, 0], [], []>} : vector<16x32xbf16>, vector<16x32xbf16>, vector<16x16xf32> -> vector<16x16xf32>
    %442 = vector.broadcast %13 : vector<1x16xf32> to vector<16x16xf32>
    %443 = arith.addf %441, %442 : vector<16x16xf32>
    %cst_222 = arith.constant dense<0xFF800000> : vector<16xf32>
    %444 = vector.multi_reduction <maximumf>, %443, %cst_222 [1] : vector<16x16xf32> to vector<16xf32>
    %445 = vector.shape_cast %444 : vector<16xf32> to vector<16x1xf32>
    %446 = vector.broadcast %445 : vector<16x1xf32> to vector<16x16xf32>
    %447 = arith.subf %443, %446 : vector<16x16xf32>
    %448 = math.exp %447 : vector<16x16xf32>
    %cst_223 = arith.constant dense<0.000000e+00> : vector<16xf32>
    %449 = vector.multi_reduction <add>, %448, %cst_223 [1] : vector<16x16xf32> to vector<16xf32>
    %450 = vector.shape_cast %449 : vector<16xf32> to vector<16x1xf32>
    %451 = tpu.reciprocal %450 {approx = true} : vector<16x1xf32> -> vector<16x1xf32>
    %452 = vector.broadcast %451 : vector<16x1xf32> to vector<16x16xf32>
    %453 = arith.mulf %448, %452 : vector<16x16xf32>
    %454 = arith.truncf %453 : vector<16x16xf32> to vector<16x16xbf16>
    %455 = vector.extract_strided_slice %420 {offsets = [16, 0], sizes = [16, 32], strides = [1, 1]} : vector<32x32xbf16> to vector<16x32xbf16>
    %cst_224 = arith.constant dense<0.000000e+00> : vector<16x32xf32>
    %456 = tpu.matmul %454, %455, %cst_224 {dimension_numbers = #tpu.dot_dimension_numbers<[1], [0], [0], [1], [0, 0, 1, 1], [], []>} : vector<16x16xbf16>, vector<16x32xbf16>, vector<16x32xf32> -> vector<16x32xf32>
    %457 = tpu.concatenate %438, %456 in 0 : vector<16x32xf32>, vector<16x32xf32> -> vector<32x32xf32>
    %458 = arith.truncf %457 : vector<32x32xf32> to vector<32x32xbf16>
    %c1_225 = arith.constant 1 : index
    %c1_226 = arith.constant 1 : index
    %c0_227 = arith.constant 0 : index
    %c0_228 = arith.constant 0 : index
    %459 = vector.load %arg6[%c1_225, %c1_226, %c0_227, %c0_228] : memref<2x4x32x128xbf16, #tpu.memory_space<vmem>>, vector<1x1x32x128xbf16>
    %460 = vector.shape_cast %459 : vector<1x1x32x128xbf16> to vector<32x128xbf16>
    %cst_229 = arith.constant dense<0.000000e+00> : vector<32x128xf32>
    %461 = tpu.matmul %458, %460, %cst_229 {dimension_numbers = #tpu.dot_dimension_numbers<[1], [0], [0], [1], [0, 0, 1, 1], [], []>} : vector<32x32xbf16>, vector<32x128xbf16>, vector<32x128xf32> -> vector<32x128xf32>
    %462 = arith.addf %406, %461 : vector<32x128xf32>
    %c1_230 = arith.constant 1 : index
    %c2_231 = arith.constant 2 : index
    %c0_232 = arith.constant 0 : index
    %c0_233 = arith.constant 0 : index
    %463 = vector.load %arg3[%c1_230, %c2_231, %c0_232, %c0_233] : memref<2x4x128x32xbf16, #tpu.memory_space<vmem>>, vector<1x1x128x32xbf16>
    %464 = vector.shape_cast %463 : vector<1x1x128x32xbf16> to vector<128x32xbf16>
    %cst_234 = arith.constant dense<0.000000e+00> : vector<32x32xf32>
    %465 = tpu.matmul %349, %464, %cst_234 {dimension_numbers = #tpu.dot_dimension_numbers<[1], [0], [0], [1], [0, 0, 1, 1], [], []>} : vector<32x128xbf16>, vector<128x32xbf16>, vector<32x32xf32> -> vector<32x32xf32>
    %c1_235 = arith.constant 1 : index
    %c2_236 = arith.constant 2 : index
    %c0_237 = arith.constant 0 : index
    %c0_238 = arith.constant 0 : index
    %466 = vector.load %arg4[%c1_235, %c2_236, %c0_237, %c0_238] : memref<2x4x128x32xbf16, #tpu.memory_space<vmem>>, vector<1x1x128x32xbf16>
    %467 = vector.shape_cast %466 : vector<1x1x128x32xbf16> to vector<128x32xbf16>
    %cst_239 = arith.constant dense<0.000000e+00> : vector<32x32xf32>
    %468 = tpu.matmul %349, %467, %cst_239 {dimension_numbers = #tpu.dot_dimension_numbers<[1], [0], [0], [1], [0, 0, 1, 1], [], []>} : vector<32x128xbf16>, vector<128x32xbf16>, vector<32x32xf32> -> vector<32x32xf32>
    %c1_240 = arith.constant 1 : index
    %c2_241 = arith.constant 2 : index
    %c0_242 = arith.constant 0 : index
    %c0_243 = arith.constant 0 : index
    %469 = vector.load %arg5[%c1_240, %c2_241, %c0_242, %c0_243] : memref<2x4x128x32xbf16, #tpu.memory_space<vmem>>, vector<1x1x128x32xbf16>
    %470 = vector.shape_cast %469 : vector<1x1x128x32xbf16> to vector<128x32xbf16>
    %cst_244 = arith.constant dense<0.000000e+00> : vector<32x32xf32>
    %471 = tpu.matmul %349, %470, %cst_244 {dimension_numbers = #tpu.dot_dimension_numbers<[1], [0], [0], [1], [0, 0, 1, 1], [], []>} : vector<32x128xbf16>, vector<128x32xbf16>, vector<32x32xf32> -> vector<32x32xf32>
    %cst_245 = arith.constant 0.176776692 : f32
    %472 = vector.broadcast %cst_245 : f32 to vector<32x32xf32>
    %473 = arith.mulf %465, %472 : vector<32x32xf32>
    %474 = arith.truncf %473 : vector<32x32xf32> to vector<32x32xbf16>
    %475 = arith.truncf %468 : vector<32x32xf32> to vector<32x32xbf16>
    %476 = arith.truncf %471 : vector<32x32xf32> to vector<32x32xbf16>
    %477 = vector.extract_strided_slice %474 {offsets = [0, 0], sizes = [16, 32], strides = [1, 1]} : vector<32x32xbf16> to vector<16x32xbf16>
    %478 = vector.extract_strided_slice %475 {offsets = [0, 0], sizes = [16, 32], strides = [1, 1]} : vector<32x32xbf16> to vector<16x32xbf16>
    %cst_246 = arith.constant dense<0.000000e+00> : vector<16x16xf32>
    %479 = tpu.matmul %477, %478, %cst_246 {dimension_numbers = #tpu.dot_dimension_numbers<[1], [1], [0], [0], [0, 0, 1, 0], [], []>} : vector<16x32xbf16>, vector<16x32xbf16>, vector<16x16xf32> -> vector<16x16xf32>
    %480 = vector.broadcast %7 : vector<1x16xf32> to vector<16x16xf32>
    %481 = arith.addf %479, %480 : vector<16x16xf32>
    %cst_247 = arith.constant dense<0xFF800000> : vector<16xf32>
    %482 = vector.multi_reduction <maximumf>, %481, %cst_247 [1] : vector<16x16xf32> to vector<16xf32>
    %483 = vector.shape_cast %482 : vector<16xf32> to vector<16x1xf32>
    %484 = vector.broadcast %483 : vector<16x1xf32> to vector<16x16xf32>
    %485 = arith.subf %481, %484 : vector<16x16xf32>
    %486 = math.exp %485 : vector<16x16xf32>
    %cst_248 = arith.constant dense<0.000000e+00> : vector<16xf32>
    %487 = vector.multi_reduction <add>, %486, %cst_248 [1] : vector<16x16xf32> to vector<16xf32>
    %488 = vector.shape_cast %487 : vector<16xf32> to vector<16x1xf32>
    %489 = tpu.reciprocal %488 {approx = true} : vector<16x1xf32> -> vector<16x1xf32>
    %490 = vector.broadcast %489 : vector<16x1xf32> to vector<16x16xf32>
    %491 = arith.mulf %486, %490 : vector<16x16xf32>
    %492 = arith.truncf %491 : vector<16x16xf32> to vector<16x16xbf16>
    %493 = vector.extract_strided_slice %476 {offsets = [0, 0], sizes = [16, 32], strides = [1, 1]} : vector<32x32xbf16> to vector<16x32xbf16>
    %cst_249 = arith.constant dense<0.000000e+00> : vector<16x32xf32>
    %494 = tpu.matmul %492, %493, %cst_249 {dimension_numbers = #tpu.dot_dimension_numbers<[1], [0], [0], [1], [0, 0, 1, 1], [], []>} : vector<16x16xbf16>, vector<16x32xbf16>, vector<16x32xf32> -> vector<16x32xf32>
    %495 = vector.extract_strided_slice %474 {offsets = [16, 0], sizes = [16, 32], strides = [1, 1]} : vector<32x32xbf16> to vector<16x32xbf16>
    %496 = vector.extract_strided_slice %475 {offsets = [16, 0], sizes = [16, 32], strides = [1, 1]} : vector<32x32xbf16> to vector<16x32xbf16>
    %cst_250 = arith.constant dense<0.000000e+00> : vector<16x16xf32>
    %497 = tpu.matmul %495, %496, %cst_250 {dimension_numbers = #tpu.dot_dimension_numbers<[1], [1], [0], [0], [0, 0, 1, 0], [], []>} : vector<16x32xbf16>, vector<16x32xbf16>, vector<16x16xf32> -> vector<16x16xf32>
    %498 = vector.broadcast %13 : vector<1x16xf32> to vector<16x16xf32>
    %499 = arith.addf %497, %498 : vector<16x16xf32>
    %cst_251 = arith.constant dense<0xFF800000> : vector<16xf32>
    %500 = vector.multi_reduction <maximumf>, %499, %cst_251 [1] : vector<16x16xf32> to vector<16xf32>
    %501 = vector.shape_cast %500 : vector<16xf32> to vector<16x1xf32>
    %502 = vector.broadcast %501 : vector<16x1xf32> to vector<16x16xf32>
    %503 = arith.subf %499, %502 : vector<16x16xf32>
    %504 = math.exp %503 : vector<16x16xf32>
    %cst_252 = arith.constant dense<0.000000e+00> : vector<16xf32>
    %505 = vector.multi_reduction <add>, %504, %cst_252 [1] : vector<16x16xf32> to vector<16xf32>
    %506 = vector.shape_cast %505 : vector<16xf32> to vector<16x1xf32>
    %507 = tpu.reciprocal %506 {approx = true} : vector<16x1xf32> -> vector<16x1xf32>
    %508 = vector.broadcast %507 : vector<16x1xf32> to vector<16x16xf32>
    %509 = arith.mulf %504, %508 : vector<16x16xf32>
    %510 = arith.truncf %509 : vector<16x16xf32> to vector<16x16xbf16>
    %511 = vector.extract_strided_slice %476 {offsets = [16, 0], sizes = [16, 32], strides = [1, 1]} : vector<32x32xbf16> to vector<16x32xbf16>
    %cst_253 = arith.constant dense<0.000000e+00> : vector<16x32xf32>
    %512 = tpu.matmul %510, %511, %cst_253 {dimension_numbers = #tpu.dot_dimension_numbers<[1], [0], [0], [1], [0, 0, 1, 1], [], []>} : vector<16x16xbf16>, vector<16x32xbf16>, vector<16x32xf32> -> vector<16x32xf32>
    %513 = tpu.concatenate %494, %512 in 0 : vector<16x32xf32>, vector<16x32xf32> -> vector<32x32xf32>
    %514 = arith.truncf %513 : vector<32x32xf32> to vector<32x32xbf16>
    %c1_254 = arith.constant 1 : index
    %c2_255 = arith.constant 2 : index
    %c0_256 = arith.constant 0 : index
    %c0_257 = arith.constant 0 : index
    %515 = vector.load %arg6[%c1_254, %c2_255, %c0_256, %c0_257] : memref<2x4x32x128xbf16, #tpu.memory_space<vmem>>, vector<1x1x32x128xbf16>
    %516 = vector.shape_cast %515 : vector<1x1x32x128xbf16> to vector<32x128xbf16>
    %cst_258 = arith.constant dense<0.000000e+00> : vector<32x128xf32>
    %517 = tpu.matmul %514, %516, %cst_258 {dimension_numbers = #tpu.dot_dimension_numbers<[1], [0], [0], [1], [0, 0, 1, 1], [], []>} : vector<32x32xbf16>, vector<32x128xbf16>, vector<32x128xf32> -> vector<32x128xf32>
    %518 = arith.addf %462, %517 : vector<32x128xf32>
    %c1_259 = arith.constant 1 : index
    %c3_260 = arith.constant 3 : index
    %c0_261 = arith.constant 0 : index
    %c0_262 = arith.constant 0 : index
    %519 = vector.load %arg3[%c1_259, %c3_260, %c0_261, %c0_262] : memref<2x4x128x32xbf16, #tpu.memory_space<vmem>>, vector<1x1x128x32xbf16>
    %520 = vector.shape_cast %519 : vector<1x1x128x32xbf16> to vector<128x32xbf16>
    %cst_263 = arith.constant dense<0.000000e+00> : vector<32x32xf32>
    %521 = tpu.matmul %349, %520, %cst_263 {dimension_numbers = #tpu.dot_dimension_numbers<[1], [0], [0], [1], [0, 0, 1, 1], [], []>} : vector<32x128xbf16>, vector<128x32xbf16>, vector<32x32xf32> -> vector<32x32xf32>
    %c1_264 = arith.constant 1 : index
    %c3_265 = arith.constant 3 : index
    %c0_266 = arith.constant 0 : index
    %c0_267 = arith.constant 0 : index
    %522 = vector.load %arg4[%c1_264, %c3_265, %c0_266, %c0_267] : memref<2x4x128x32xbf16, #tpu.memory_space<vmem>>, vector<1x1x128x32xbf16>
    %523 = vector.shape_cast %522 : vector<1x1x128x32xbf16> to vector<128x32xbf16>
    %cst_268 = arith.constant dense<0.000000e+00> : vector<32x32xf32>
    %524 = tpu.matmul %349, %523, %cst_268 {dimension_numbers = #tpu.dot_dimension_numbers<[1], [0], [0], [1], [0, 0, 1, 1], [], []>} : vector<32x128xbf16>, vector<128x32xbf16>, vector<32x32xf32> -> vector<32x32xf32>
    %c1_269 = arith.constant 1 : index
    %c3_270 = arith.constant 3 : index
    %c0_271 = arith.constant 0 : index
    %c0_272 = arith.constant 0 : index
    %525 = vector.load %arg5[%c1_269, %c3_270, %c0_271, %c0_272] : memref<2x4x128x32xbf16, #tpu.memory_space<vmem>>, vector<1x1x128x32xbf16>
    %526 = vector.shape_cast %525 : vector<1x1x128x32xbf16> to vector<128x32xbf16>
    %cst_273 = arith.constant dense<0.000000e+00> : vector<32x32xf32>
    %527 = tpu.matmul %349, %526, %cst_273 {dimension_numbers = #tpu.dot_dimension_numbers<[1], [0], [0], [1], [0, 0, 1, 1], [], []>} : vector<32x128xbf16>, vector<128x32xbf16>, vector<32x32xf32> -> vector<32x32xf32>
    %cst_274 = arith.constant 0.176776692 : f32
    %528 = vector.broadcast %cst_274 : f32 to vector<32x32xf32>
    %529 = arith.mulf %521, %528 : vector<32x32xf32>
    %530 = arith.truncf %529 : vector<32x32xf32> to vector<32x32xbf16>
    %531 = arith.truncf %524 : vector<32x32xf32> to vector<32x32xbf16>
    %532 = arith.truncf %527 : vector<32x32xf32> to vector<32x32xbf16>
    %533 = vector.extract_strided_slice %530 {offsets = [0, 0], sizes = [16, 32], strides = [1, 1]} : vector<32x32xbf16> to vector<16x32xbf16>
    %534 = vector.extract_strided_slice %531 {offsets = [0, 0], sizes = [16, 32], strides = [1, 1]} : vector<32x32xbf16> to vector<16x32xbf16>
    %cst_275 = arith.constant dense<0.000000e+00> : vector<16x16xf32>
    %535 = tpu.matmul %533, %534, %cst_275 {dimension_numbers = #tpu.dot_dimension_numbers<[1], [1], [0], [0], [0, 0, 1, 0], [], []>} : vector<16x32xbf16>, vector<16x32xbf16>, vector<16x16xf32> -> vector<16x16xf32>
    %536 = vector.broadcast %7 : vector<1x16xf32> to vector<16x16xf32>
    %537 = arith.addf %535, %536 : vector<16x16xf32>
    %cst_276 = arith.constant dense<0xFF800000> : vector<16xf32>
    %538 = vector.multi_reduction <maximumf>, %537, %cst_276 [1] : vector<16x16xf32> to vector<16xf32>
    %539 = vector.shape_cast %538 : vector<16xf32> to vector<16x1xf32>
    %540 = vector.broadcast %539 : vector<16x1xf32> to vector<16x16xf32>
    %541 = arith.subf %537, %540 : vector<16x16xf32>
    %542 = math.exp %541 : vector<16x16xf32>
    %cst_277 = arith.constant dense<0.000000e+00> : vector<16xf32>
    %543 = vector.multi_reduction <add>, %542, %cst_277 [1] : vector<16x16xf32> to vector<16xf32>
    %544 = vector.shape_cast %543 : vector<16xf32> to vector<16x1xf32>
    %545 = tpu.reciprocal %544 {approx = true} : vector<16x1xf32> -> vector<16x1xf32>
    %546 = vector.broadcast %545 : vector<16x1xf32> to vector<16x16xf32>
    %547 = arith.mulf %542, %546 : vector<16x16xf32>
    %548 = arith.truncf %547 : vector<16x16xf32> to vector<16x16xbf16>
    %549 = vector.extract_strided_slice %532 {offsets = [0, 0], sizes = [16, 32], strides = [1, 1]} : vector<32x32xbf16> to vector<16x32xbf16>
    %cst_278 = arith.constant dense<0.000000e+00> : vector<16x32xf32>
    %550 = tpu.matmul %548, %549, %cst_278 {dimension_numbers = #tpu.dot_dimension_numbers<[1], [0], [0], [1], [0, 0, 1, 1], [], []>} : vector<16x16xbf16>, vector<16x32xbf16>, vector<16x32xf32> -> vector<16x32xf32>
    %551 = vector.extract_strided_slice %530 {offsets = [16, 0], sizes = [16, 32], strides = [1, 1]} : vector<32x32xbf16> to vector<16x32xbf16>
    %552 = vector.extract_strided_slice %531 {offsets = [16, 0], sizes = [16, 32], strides = [1, 1]} : vector<32x32xbf16> to vector<16x32xbf16>
    %cst_279 = arith.constant dense<0.000000e+00> : vector<16x16xf32>
    %553 = tpu.matmul %551, %552, %cst_279 {dimension_numbers = #tpu.dot_dimension_numbers<[1], [1], [0], [0], [0, 0, 1, 0], [], []>} : vector<16x32xbf16>, vector<16x32xbf16>, vector<16x16xf32> -> vector<16x16xf32>
    %554 = vector.broadcast %13 : vector<1x16xf32> to vector<16x16xf32>
    %555 = arith.addf %553, %554 : vector<16x16xf32>
    %cst_280 = arith.constant dense<0xFF800000> : vector<16xf32>
    %556 = vector.multi_reduction <maximumf>, %555, %cst_280 [1] : vector<16x16xf32> to vector<16xf32>
    %557 = vector.shape_cast %556 : vector<16xf32> to vector<16x1xf32>
    %558 = vector.broadcast %557 : vector<16x1xf32> to vector<16x16xf32>
    %559 = arith.subf %555, %558 : vector<16x16xf32>
    %560 = math.exp %559 : vector<16x16xf32>
    %cst_281 = arith.constant dense<0.000000e+00> : vector<16xf32>
    %561 = vector.multi_reduction <add>, %560, %cst_281 [1] : vector<16x16xf32> to vector<16xf32>
    %562 = vector.shape_cast %561 : vector<16xf32> to vector<16x1xf32>
    %563 = tpu.reciprocal %562 {approx = true} : vector<16x1xf32> -> vector<16x1xf32>
    %564 = vector.broadcast %563 : vector<16x1xf32> to vector<16x16xf32>
    %565 = arith.mulf %560, %564 : vector<16x16xf32>
    %566 = arith.truncf %565 : vector<16x16xf32> to vector<16x16xbf16>
    %567 = vector.extract_strided_slice %532 {offsets = [16, 0], sizes = [16, 32], strides = [1, 1]} : vector<32x32xbf16> to vector<16x32xbf16>
    %cst_282 = arith.constant dense<0.000000e+00> : vector<16x32xf32>
    %568 = tpu.matmul %566, %567, %cst_282 {dimension_numbers = #tpu.dot_dimension_numbers<[1], [0], [0], [1], [0, 0, 1, 1], [], []>} : vector<16x16xbf16>, vector<16x32xbf16>, vector<16x32xf32> -> vector<16x32xf32>
    %569 = tpu.concatenate %550, %568 in 0 : vector<16x32xf32>, vector<16x32xf32> -> vector<32x32xf32>
    %570 = arith.truncf %569 : vector<32x32xf32> to vector<32x32xbf16>
    %c1_283 = arith.constant 1 : index
    %c3_284 = arith.constant 3 : index
    %c0_285 = arith.constant 0 : index
    %c0_286 = arith.constant 0 : index
    %571 = vector.load %arg6[%c1_283, %c3_284, %c0_285, %c0_286] : memref<2x4x32x128xbf16, #tpu.memory_space<vmem>>, vector<1x1x32x128xbf16>
    %572 = vector.shape_cast %571 : vector<1x1x32x128xbf16> to vector<32x128xbf16>
    %cst_287 = arith.constant dense<0.000000e+00> : vector<32x128xf32>
    %573 = tpu.matmul %570, %572, %cst_287 {dimension_numbers = #tpu.dot_dimension_numbers<[1], [0], [0], [1], [0, 0, 1, 1], [], []>} : vector<32x32xbf16>, vector<32x128xbf16>, vector<32x128xf32> -> vector<32x128xf32>
    %574 = arith.addf %518, %573 : vector<32x128xf32>
    %575 = arith.addf %322, %574 : vector<32x128xf32>
    %c1_288 = arith.constant 1 : index
    %c0_289 = arith.constant 0 : index
    %c0_290 = arith.constant 0 : index
    %576 = vector.load %arg13[%c1_288, %c0_289, %c0_290] : memref<2x1x128xf32, #tpu.memory_space<vmem>>, vector<1x1x128xf32>
    %577 = vector.shape_cast %576 : vector<1x1x128xf32> to vector<1x128xf32>
    %c1_291 = arith.constant 1 : index
    %c0_292 = arith.constant 0 : index
    %c0_293 = arith.constant 0 : index
    %578 = vector.load %arg14[%c1_291, %c0_292, %c0_293] : memref<2x1x128xf32, #tpu.memory_space<vmem>>, vector<1x1x128xf32>
    %579 = vector.shape_cast %578 : vector<1x1x128xf32> to vector<1x128xf32>
    %cst_294 = arith.constant dense<0.000000e+00> : vector<32xf32>
    %580 = vector.multi_reduction <add>, %575, %cst_294 [1] : vector<32x128xf32> to vector<32xf32>
    %581 = vector.shape_cast %580 : vector<32xf32> to vector<32x1xf32>
    %cst_295 = arith.constant 1.280000e+02 : f32
    %582 = vector.broadcast %cst_295 : f32 to vector<32x1xf32>
    %583 = arith.divf %581, %582 : vector<32x1xf32>
    %584 = vector.broadcast %583 : vector<32x1xf32> to vector<32x128xf32>
    %585 = arith.subf %575, %584 : vector<32x128xf32>
    %586 = arith.mulf %585, %585 : vector<32x128xf32>
    %cst_296 = arith.constant dense<0.000000e+00> : vector<32xf32>
    %587 = vector.multi_reduction <add>, %586, %cst_296 [1] : vector<32x128xf32> to vector<32xf32>
    %588 = vector.shape_cast %587 : vector<32xf32> to vector<32x1xf32>
    %cst_297 = arith.constant 1.280000e+02 : f32
    %589 = vector.broadcast %cst_297 : f32 to vector<32x1xf32>
    %590 = arith.divf %588, %589 : vector<32x1xf32>
    %591 = vector.broadcast %583 : vector<32x1xf32> to vector<32x128xf32>
    %592 = arith.subf %575, %591 : vector<32x128xf32>
    %cst_298 = arith.constant 9.99999974E-6 : f32
    %593 = vector.broadcast %cst_298 : f32 to vector<32x1xf32>
    %594 = arith.addf %590, %593 : vector<32x1xf32>
    %595 = math.rsqrt %594 : vector<32x1xf32>
    %596 = vector.broadcast %595 : vector<32x1xf32> to vector<32x128xf32>
    %597 = arith.mulf %592, %596 : vector<32x128xf32>
    %598 = vector.broadcast %577 : vector<1x128xf32> to vector<32x128xf32>
    %599 = arith.mulf %597, %598 : vector<32x128xf32>
    %600 = vector.broadcast %579 : vector<1x128xf32> to vector<32x128xf32>
    %601 = arith.addf %599, %600 : vector<32x128xf32>
    %602 = arith.truncf %601 : vector<32x128xf32> to vector<32x128xbf16>
    %c1_299 = arith.constant 1 : index
    %c0_300 = arith.constant 0 : index
    %c0_301 = arith.constant 0 : index
    %603 = vector.load %arg7[%c1_299, %c0_300, %c0_301] : memref<2x128x512xbf16, #tpu.memory_space<vmem>>, vector<1x128x512xbf16>
    %604 = vector.shape_cast %603 : vector<1x128x512xbf16> to vector<128x512xbf16>
    %cst_302 = arith.constant dense<0.000000e+00> : vector<32x512xf32>
    %605 = tpu.matmul %602, %604, %cst_302 {dimension_numbers = #tpu.dot_dimension_numbers<[1], [0], [0], [1], [0, 0, 1, 1], [], []>} : vector<32x128xbf16>, vector<128x512xbf16>, vector<32x512xf32> -> vector<32x512xf32>
    %c1_303 = arith.constant 1 : index
    %c0_304 = arith.constant 0 : index
    %c0_305 = arith.constant 0 : index
    %606 = vector.load %arg8[%c1_303, %c0_304, %c0_305] : memref<2x1x512xf32, #tpu.memory_space<vmem>>, vector<1x1x512xf32>
    %607 = vector.shape_cast %606 : vector<1x1x512xf32> to vector<1x512xf32>
    %608 = vector.broadcast %607 : vector<1x512xf32> to vector<32x512xf32>
    %609 = arith.addf %605, %608 : vector<32x512xf32>
    %cst_306 = arith.constant 5.000000e-01 : f32
    %610 = vector.broadcast %cst_306 : f32 to vector<32x512xf32>
    %611 = arith.mulf %610, %609 : vector<32x512xf32>
    %cst_307 = arith.constant 4.471500e-02 : f32
    %612 = vector.broadcast %cst_307 : f32 to vector<32x512xf32>
    %613 = arith.mulf %612, %609 : vector<32x512xf32>
    %614 = arith.mulf %613, %609 : vector<32x512xf32>
    %615 = arith.mulf %614, %609 : vector<32x512xf32>
    %616 = arith.addf %609, %615 : vector<32x512xf32>
    %cst_308 = arith.constant 0.797884583 : f32
    %617 = vector.broadcast %cst_308 : f32 to vector<32x512xf32>
    %618 = arith.mulf %617, %616 : vector<32x512xf32>
    %619 = math.tanh %618 : vector<32x512xf32>
    %cst_309 = arith.constant 1.000000e+00 : f32
    %620 = vector.broadcast %cst_309 : f32 to vector<32x512xf32>
    %621 = arith.addf %620, %619 : vector<32x512xf32>
    %622 = arith.mulf %611, %621 : vector<32x512xf32>
    %623 = arith.truncf %622 : vector<32x512xf32> to vector<32x512xbf16>
    %c1_310 = arith.constant 1 : index
    %c0_311 = arith.constant 0 : index
    %c0_312 = arith.constant 0 : index
    %624 = vector.load %arg9[%c1_310, %c0_311, %c0_312] : memref<2x512x128xbf16, #tpu.memory_space<vmem>>, vector<1x512x128xbf16>
    %625 = vector.shape_cast %624 : vector<1x512x128xbf16> to vector<512x128xbf16>
    %cst_313 = arith.constant dense<0.000000e+00> : vector<32x128xf32>
    %626 = tpu.matmul %623, %625, %cst_313 {dimension_numbers = #tpu.dot_dimension_numbers<[1], [0], [0], [1], [0, 0, 1, 1], [], []>} : vector<32x512xbf16>, vector<512x128xbf16>, vector<32x128xf32> -> vector<32x128xf32>
    %c1_314 = arith.constant 1 : index
    %c0_315 = arith.constant 0 : index
    %c0_316 = arith.constant 0 : index
    %627 = vector.load %arg10[%c1_314, %c0_315, %c0_316] : memref<2x1x128xf32, #tpu.memory_space<vmem>>, vector<1x1x128xf32>
    %628 = vector.shape_cast %627 : vector<1x1x128xf32> to vector<1x128xf32>
    %629 = vector.broadcast %628 : vector<1x128xf32> to vector<32x128xf32>
    %630 = arith.addf %626, %629 : vector<32x128xf32>
    %631 = arith.addf %575, %630 : vector<32x128xf32>
    %c0_317 = arith.constant 0 : index
    %c0_318 = arith.constant 0 : index
    %632 = vector.load %arg15[%c0_317, %c0_318] : memref<32x128xf32, #tpu.memory_space<vmem>>, vector<32x128xf32>
    tpu.vector_store %arg15[%c0_317, %c0_318], %631 {strides = array<i32>} : memref<32x128xf32, #tpu.memory_space<vmem>>, vector<32x128xf32>,
    %633 = tpu.iota {dimensions = array<i32: 0>} : vector<16x128xi32>
    %c0_319 = arith.constant 0 : index
    %634 = memref.load %arg1[%c0_319] : memref<2xi32, #tpu.memory_space<smem>>
    %635 = vector.broadcast %634 : i32 to vector<16x128xi32>
    %636 = arith.cmpi slt, %633, %635 : vector<16x128xi32>
    %637 = arith.extui %636 : vector<16x128xi1> to vector<16x128xi32>
    %638 = arith.sitofp %637 : vector<16x128xi32> to vector<16x128xf32>
    %639 = vector.extract_strided_slice %631 {offsets = [0, 0], sizes = [16, 128], strides = [1, 1]} : vector<32x128xf32> to vector<16x128xf32>
    %640 = arith.mulf %639, %638 : vector<16x128xf32>
    %cst_320 = arith.constant dense<0.000000e+00> : vector<128xf32>
    %641 = vector.multi_reduction <add>, %640, %cst_320 [0] : vector<16x128xf32> to vector<128xf32>
    %642 = vector.shape_cast %641 : vector<128xf32> to vector<1x128xf32>
    %cst_321 = arith.constant 1.000000e+00 : f32
    %643 = vector.broadcast %cst_321 : f32 to vector<1x1xf32>
    %c1_i32 = arith.constant 1 : i32
    %644 = arith.maxsi %634, %c1_i32 : i32
    %645 = arith.sitofp %644 : i32 to f32
    %646 = vector.broadcast %645 : f32 to vector<1x1xf32>
    %647 = arith.mulf %643, %646 : vector<1x1xf32>
    %648 = tpu.reciprocal %647 {approx = true} : vector<1x1xf32> -> vector<1x1xf32>
    %649 = vector.broadcast %648 : vector<1x1xf32> to vector<1x128xf32>
    %650 = arith.mulf %642, %649 : vector<1x128xf32>
    %c1_322 = arith.constant 1 : index
    %651 = memref.load %arg1[%c1_322] : memref<2xi32, #tpu.memory_space<smem>>
    %652 = vector.broadcast %651 : i32 to vector<16x128xi32>
    %653 = arith.cmpi slt, %633, %652 : vector<16x128xi32>
    %654 = arith.extui %653 : vector<16x128xi1> to vector<16x128xi32>
    %655 = arith.sitofp %654 : vector<16x128xi32> to vector<16x128xf32>
    %656 = vector.extract_strided_slice %631 {offsets = [16, 0], sizes = [16, 128], strides = [1, 1]} : vector<32x128xf32> to vector<16x128xf32>
    %657 = arith.mulf %656, %655 : vector<16x128xf32>
    %cst_323 = arith.constant dense<0.000000e+00> : vector<128xf32>
    %658 = vector.multi_reduction <add>, %657, %cst_323 [0] : vector<16x128xf32> to vector<128xf32>
    %659 = vector.shape_cast %658 : vector<128xf32> to vector<1x128xf32>
    %cst_324 = arith.constant 1.000000e+00 : f32
    %660 = vector.broadcast %cst_324 : f32 to vector<1x1xf32>
    %c1_i32_325 = arith.constant 1 : i32
    %661 = arith.maxsi %651, %c1_i32_325 : i32
    %662 = arith.sitofp %661 : i32 to f32
    %663 = vector.broadcast %662 : f32 to vector<1x1xf32>
    %664 = arith.mulf %660, %663 : vector<1x1xf32>
    %665 = tpu.reciprocal %664 {approx = true} : vector<1x1xf32> -> vector<1x1xf32>
    %666 = vector.broadcast %665 : vector<1x1xf32> to vector<1x128xf32>
    %667 = arith.mulf %659, %666 : vector<1x128xf32>
    %668 = tpu.concatenate %650, %667 in 0 : vector<1x128xf32>, vector<1x128xf32> -> vector<2x128xf32>
    %c0_326 = arith.constant 0 : index
    %c0_327 = arith.constant 0 : index
    %669 = vector.load %arg16[%c0_326, %c0_327] : memref<2x128xf32, #tpu.memory_space<vmem>>, vector<2x128xf32>
    tpu.vector_store %arg16[%c0_326, %c0_327], %668 {strides = array<i32>} : memref<2x128xf32, #tpu.memory_space<vmem>>, vector<2x128xf32>,
    return
  }
  func.func @transform_0(%arg0: i32, %arg1: memref<2xi32, #tpu.memory_space<smem>>) -> (i32, i32) {
    %c0_i32 = arith.constant 0 : i32
    %c0_i32_0 = arith.constant 0 : i32
    %c0_i32_1 = arith.constant 0 : i32
    return %c0_i32, %c0_i32_0 : i32, i32
  }
  func.func @transform_1(%arg0: i32, %arg1: memref<2xi32, #tpu.memory_space<smem>>) -> (i32, i32, i32, i32) {
    %c0_i32 = arith.constant 0 : i32
    %c0_i32_0 = arith.constant 0 : i32
    %c0_i32_1 = arith.constant 0 : i32
    %c0_i32_2 = arith.constant 0 : i32
    %c0_i32_3 = arith.constant 0 : i32
    return %c0_i32, %c0_i32_0, %c0_i32_1, %c0_i32_2 : i32, i32, i32, i32
  }
  func.func @transform_2(%arg0: i32, %arg1: memref<2xi32, #tpu.memory_space<smem>>) -> (i32, i32, i32, i32) {
    %c0_i32 = arith.constant 0 : i32
    %c0_i32_0 = arith.constant 0 : i32
    %c0_i32_1 = arith.constant 0 : i32
    %c0_i32_2 = arith.constant 0 : i32
    %c0_i32_3 = arith.constant 0 : i32
    return %c0_i32, %c0_i32_0, %c0_i32_1, %c0_i32_2 : i32, i32, i32, i32
  }
  func.func @transform_3(%arg0: i32, %arg1: memref<2xi32, #tpu.memory_space<smem>>) -> (i32, i32, i32, i32) {
    %c0_i32 = arith.constant 0 : i32
    %c0_i32_0 = arith.constant 0 : i32
    %c0_i32_1 = arith.constant 0 : i32
    %c0_i32_2 = arith.constant 0 : i32
    %c0_i32_3 = arith.constant 0 : i32
    return %c0_i32, %c0_i32_0, %c0_i32_1, %c0_i32_2 : i32, i32, i32, i32
  }
  func.func @transform_4(%arg0: i32, %arg1: memref<2xi32, #tpu.memory_space<smem>>) -> (i32, i32, i32, i32) {
    %c0_i32 = arith.constant 0 : i32
    %c0_i32_0 = arith.constant 0 : i32
    %c0_i32_1 = arith.constant 0 : i32
    %c0_i32_2 = arith.constant 0 : i32
    %c0_i32_3 = arith.constant 0 : i32
    return %c0_i32, %c0_i32_0, %c0_i32_1, %c0_i32_2 : i32, i32, i32, i32
  }
  func.func @transform_5(%arg0: i32, %arg1: memref<2xi32, #tpu.memory_space<smem>>) -> (i32, i32, i32) {
    %c0_i32 = arith.constant 0 : i32
    %c0_i32_0 = arith.constant 0 : i32
    %c0_i32_1 = arith.constant 0 : i32
    %c0_i32_2 = arith.constant 0 : i32
    return %c0_i32, %c0_i32_0, %c0_i32_1 : i32, i32, i32
  }
  func.func @transform_6(%arg0: i32, %arg1: memref<2xi32, #tpu.memory_space<smem>>) -> (i32, i32, i32) {
    %c0_i32 = arith.constant 0 : i32
    %c0_i32_0 = arith.constant 0 : i32
    %c0_i32_1 = arith.constant 0 : i32
    %c0_i32_2 = arith.constant 0 : i32
    return %c0_i32, %c0_i32_0, %c0_i32_1 : i32, i32, i32
  }
  func.func @transform_7(%arg0: i32, %arg1: memref<2xi32, #tpu.memory_space<smem>>) -> (i32, i32, i32) {
    %c0_i32 = arith.constant 0 : i32
    %c0_i32_0 = arith.constant 0 : i32
    %c0_i32_1 = arith.constant 0 : i32
    %c0_i32_2 = arith.constant 0 : i32
    return %c0_i32, %c0_i32_0, %c0_i32_1 : i32, i32, i32
  }
  func.func @transform_8(%arg0: i32, %arg1: memref<2xi32, #tpu.memory_space<smem>>) -> (i32, i32, i32) {
    %c0_i32 = arith.constant 0 : i32
    %c0_i32_0 = arith.constant 0 : i32
    %c0_i32_1 = arith.constant 0 : i32
    %c0_i32_2 = arith.constant 0 : i32
    return %c0_i32, %c0_i32_0, %c0_i32_1 : i32, i32, i32
  }
  func.func @transform_9(%arg0: i32, %arg1: memref<2xi32, #tpu.memory_space<smem>>) -> (i32, i32, i32) {
    %c0_i32 = arith.constant 0 : i32
    %c0_i32_0 = arith.constant 0 : i32
    %c0_i32_1 = arith.constant 0 : i32
    %c0_i32_2 = arith.constant 0 : i32
    return %c0_i32, %c0_i32_0, %c0_i32_1 : i32, i32, i32
  }
  func.func @transform_10(%arg0: i32, %arg1: memref<2xi32, #tpu.memory_space<smem>>) -> (i32, i32, i32) {
    %c0_i32 = arith.constant 0 : i32
    %c0_i32_0 = arith.constant 0 : i32
    %c0_i32_1 = arith.constant 0 : i32
    %c0_i32_2 = arith.constant 0 : i32
    return %c0_i32, %c0_i32_0, %c0_i32_1 : i32, i32, i32
  }
  func.func @transform_11(%arg0: i32, %arg1: memref<2xi32, #tpu.memory_space<smem>>) -> (i32, i32, i32) {
    %c0_i32 = arith.constant 0 : i32
    %c0_i32_0 = arith.constant 0 : i32
    %c0_i32_1 = arith.constant 0 : i32
    %c0_i32_2 = arith.constant 0 : i32
    return %c0_i32, %c0_i32_0, %c0_i32_1 : i32, i32, i32
  }
  func.func @transform_12(%arg0: i32, %arg1: memref<2xi32, #tpu.memory_space<smem>>) -> (i32, i32, i32) {
    %c0_i32 = arith.constant 0 : i32
    %c0_i32_0 = arith.constant 0 : i32
    %c0_i32_1 = arith.constant 0 : i32
    %c0_i32_2 = arith.constant 0 : i32
    return %c0_i32, %c0_i32_0, %c0_i32_1 : i32, i32, i32
  }
  func.func @transform_13(%arg0: i32, %arg1: memref<2xi32, #tpu.memory_space<smem>>) -> (i32, i32) {
    %c0_i32 = arith.constant 0 : i32
    %c0_i32_0 = arith.constant 0 : i32
    %c0_i32_1 = arith.constant 0 : i32
    return %c0_i32, %c0_i32_0 : i32, i32
  }
  func.func @transform_14(%arg0: i32, %arg1: memref<2xi32, #tpu.memory_space<smem>>) -> (i32, i32) {
    %c0_i32 = arith.constant 0 : i32
    %c0_i32_0 = arith.constant 0 : i32
    %c0_i32_1 = arith.constant 0 : i32
    return %c0_i32, %c0_i32_0 : i32, i32
  }
}

</mosaic_0001>

<llo_original>
// kernel: forward_and_pool.1
$region0: #{forward_and_pool.1}
  #allocation0 [shape = 'u32[]', space=smem, size = 0x4, offset = 0x4, fixed_abs, tag = 'smem constant byte address 0x4 - core index']
  #allocation1 [shape = 'u32[144,128]{1,0:T(1,128)}', space=vmem, size = 0x12000, scoped, tag = 'internal scratch']
  #allocation2 [shape = 's32[1]{0}', space=sflag, size = 0x4, scoped, tag = 'scoped memory for forward_and_pool.1']
  #allocation3 [shape = 'u8[512]{0}', space=smem, size = 0x200, scoped, tag = 'prefetched SMEM operand 0']
  %s0 = inlined_call_operand.vmem [shape: s32[2], index: 0, kind: input, shape index: {}]
  %s1 = inlined_call_operand.vmem [shape: f32[32,128], index: 1, kind: input, shape index: {}]
  %s2 = inlined_call_operand.vmem [shape: bf16[2,4,128,32], index: 2, kind: input, shape index: {}]
  %s3 = inlined_call_operand.vmem [shape: bf16[2,4,128,32], index: 3, kind: input, shape index: {}]
  %s4 = inlined_call_operand.vmem [shape: bf16[2,4,128,32], index: 4, kind: input, shape index: {}]
  %s5 = inlined_call_operand.vmem [shape: bf16[2,4,32,128], index: 5, kind: input, shape index: {}]
  %s6 = inlined_call_operand.vmem [shape: bf16[2,128,512], index: 6, kind: input, shape index: {}]
  %s7 = inlined_call_operand.vmem [shape: f32[2,1,512], index: 7, kind: input, shape index: {}]
  %s8 = inlined_call_operand.vmem [shape: bf16[2,512,128], index: 8, kind: input, shape index: {}]
  %s9 = inlined_call_operand.vmem [shape: f32[2,1,128], index: 9, kind: input, shape index: {}]
  %s10 = inlined_call_operand.vmem [shape: f32[2,1,128], index: 10, kind: input, shape index: {}]
  %s11 = inlined_call_operand.vmem [shape: f32[2,1,128], index: 11, kind: input, shape index: {}]
  %s12 = inlined_call_operand.vmem [shape: f32[2,1,128], index: 12, kind: input, shape index: {}]
  %s13 = inlined_call_operand.vmem [shape: f32[2,1,128], index: 13, kind: input, shape index: {}]
  %s14 = inlined_call_operand.hbm [shape: f32[32,128], index: 14, kind: output, shape index: {0}]
  %s15 = inlined_call_operand.hbm [shape: f32[2,128], index: 15, kind: output, shape index: {1}]
  %16 = xla_tuple %s14, %s15
  %s17 = sld [smem:[#allocation0]]
  $region70: #{forward_and_pool.1} parent=0
    _
  %s19 = ssub.s32 1, %s17
  %s20 = scalar_select 0, %s19, %s17
  %s21 = sshll.u32 %s0, 4
  %s22 = int_to_ptr.vmem [resolvable:$true] %s21
  %24 = dma.vmem_to_smem %s22, 16, [#allocation3], [#allocation2]
  %25 = dma.done [#allocation2], 16
  %26 = sfence
  $region1: #{forward_and_pool.1} parent=0
    #allocation4 [shape = 'u8[16384]{0}', space=vmem, size = 0x4000, scoped, tag = 'output window, operand 0, single buffered']
    #allocation5 [shape = 's32[1]{0}', space=sflag, size = 0x4, scoped, tag = 'scoped memory for forward_and_pool.1']
    #allocation6 [shape = 'u8[1024]{0}', space=vmem, size = 0x400, scoped, tag = 'output window, operand 1, single buffered']
    #allocation7 [shape = 's32[1]{0}', space=sflag, size = 0x4, scoped, tag = 'scoped memory for forward_and_pool.1']
    %27 = vsyncpa [#allocation5], 0
    %28 = vsyncpa [#allocation7], 0
    // Predicated region
    $region2: #{forward_and_pool.1} parent=1 // pred_check
      _
    $region3: #{forward_and_pool.1} parent=1 // pred_check_branch
      %30 = sbr.rel (0) target = $region5
    $region4: #{forward_and_pool.1} parent=1 // pred_region
      _
    $region5: #{forward_and_pool.1} parent=1 // pred_fallthru
      _
    // Predicated region
    $region6: #{forward_and_pool.1} parent=1 // pred_check
      _
    $region7: #{forward_and_pool.1} parent=1 // pred_check_branch
      %32 = sbr.rel (0) target = $region9
    $region8: #{forward_and_pool.1} parent=1 // pred_region
      _
    $region9: #{forward_and_pool.1} parent=1 // pred_fallthru
      _
    // Predicated region
    $region10: #{forward_and_pool.1} parent=1 // pred_check
      _
    $region11: #{forward_and_pool.1} parent=1 // pred_check_branch
      %34 = sbr.rel (0) target = $region13
    $region12: #{forward_and_pool.1} parent=1 // pred_region
      _
    $region13: #{forward_and_pool.1} parent=1 // pred_fallthru
      _
    // Predicated region
    $region14: #{forward_and_pool.1} parent=1 // pred_check
      _
    $region15: #{forward_and_pool.1} parent=1 // pred_check_branch
      %36 = sbr.rel (0) target = $region17
    $region16: #{forward_and_pool.1} parent=1 // pred_region
      _
    $region17: #{forward_and_pool.1} parent=1 // pred_fallthru
      _
    // Predicated region
    $region18: #{forward_and_pool.1} parent=1 // pred_check
      _
    $region19: #{forward_and_pool.1} parent=1 // pred_check_branch
      %38 = sbr.rel (0) target = $region21
    $region20: #{forward_and_pool.1} parent=1 // pred_region
      _
    $region21: #{forward_and_pool.1} parent=1 // pred_fallthru
      _
    // Predicated region
    $region22: #{forward_and_pool.1} parent=1 // pred_check
      _
    $region23: #{forward_and_pool.1} parent=1 // pred_check_branch
      %40 = sbr.rel (0) target = $region25
    $region24: #{forward_and_pool.1} parent=1 // pred_region
      _
    $region25: #{forward_and_pool.1} parent=1 // pred_fallthru
      _
    // Predicated region
    $region26: #{forward_and_pool.1} parent=1 // pred_check
      _
    $region27: #{forward_and_pool.1} parent=1 // pred_check_branch
      %42 = sbr.rel (0) target = $region29
    $region28: #{forward_and_pool.1} parent=1 // pred_region
      _
    $region29: #{forward_and_pool.1} parent=1 // pred_fallthru
      _
    // Predicated region
    $region30: #{forward_and_pool.1} parent=1 // pred_check
      _
    $region31: #{forward_and_pool.1} parent=1 // pred_check_branch
      %44 = sbr.rel (0) target = $region33
    $region32: #{forward_and_pool.1} parent=1 // pred_region
      _
    $region33: #{forward_and_pool.1} parent=1 // pred_fallthru
      _
    // Predicated region
    $region34: #{forward_and_pool.1} parent=1 // pred_check
      _
    $region35: #{forward_and_pool.1} parent=1 // pred_check_branch
      %46 = sbr.rel (0) target = $region37
    $region36: #{forward_and_pool.1} parent=1 // pred_region
      _
    $region37: #{forward_and_pool.1} parent=1 // pred_fallthru
      _
    // Predicated region
    $region38: #{forward_and_pool.1} parent=1 // pred_check
      _
    $region39: #{forward_and_pool.1} parent=1 // pred_check_branch
      %48 = sbr.rel (0) target = $region41
    $region40: #{forward_and_pool.1} parent=1 // pred_region
      _
    $region41: #{forward_and_pool.1} parent=1 // pred_fallthru
      _
    // Predicated region
    $region42: #{forward_and_pool.1} parent=1 // pred_check
      _
    $region43: #{forward_and_pool.1} parent=1 // pred_check_branch
      %50 = sbr.rel (0) target = $region45
    $region44: #{forward_and_pool.1} parent=1 // pred_region
      _
    $region45: #{forward_and_pool.1} parent=1 // pred_fallthru
      _
    // Predicated region
    $region46: #{forward_and_pool.1} parent=1 // pred_check
      _
    $region47: #{forward_and_pool.1} parent=1 // pred_check_branch
      %52 = sbr.rel (0) target = $region49
    $region48: #{forward_and_pool.1} parent=1 // pred_region
      _
    $region49: #{forward_and_pool.1} parent=1 // pred_fallthru
      _
    // Predicated region
    $region50: #{forward_and_pool.1} parent=1 // pred_check
      _
    $region51: #{forward_and_pool.1} parent=1 // pred_check_branch
      %54 = sbr.rel (0) target = $region53
    $region52: #{forward_and_pool.1} parent=1 // pred_region
      _
    $region53: #{forward_and_pool.1} parent=1 // pred_fallthru
      _
    %v56 = vld [vmem:[%s1] sm:$0xff]
    %v57 = vld [vmem:[%s1 + $0x8] sm:$0xff]
    %v58 = vld [vmem:[%s1 + $0x10] sm:$0xff]
    %v59 = vld [vmem:[%s1 + $0x18] sm:$0xff]
    %v60 = vlaneseq
    %v61 = vand.u32 %v60, 127
    %s62 = sld [smem:[#allocation3]]
    %v63 = vstv %s62
    %vm64 = vcmp.lt.s32.totalorder %v61, %v63
    %v65 = vsel %vm64, 0.0, -1e+30
    %s66 = sld [smem:[#allocation3 + $0x1]]
    %v67 = vstv %s66
    %vm68 = vcmp.lt.s32.totalorder %v61, %v67
    %v69 = vsel %vm68, 0.0, -1e+30
    %v70 = vld [vmem:[%s10] sm:$0x1]
    %v71 = vld [vmem:[%s11] sm:$0x1]
    %72 = vadd.xlane.f32.xlu0 %v56
    %v73 = vpop.xlane.xlu0 %72
    %74 = vadd.xlane.f32.xlu0 %v57
    %v75 = vpop.xlane.xlu0 %74
    %76 = vadd.xlane.f32.xlu0 %v58
    %v77 = vpop.xlane.xlu0 %76
    %78 = vadd.xlane.f32.xlu0 %v59
    %v79 = vpop.xlane.xlu0 %78
    %v80 = vrcp.pop 128.0
    %v81 = vmul.f32 %v73, %v80
    %v82 = vmul.f32 %v75, %v80
    %v83 = vmul.f32 %v77, %v80
    %v84 = vmul.f32 %v79, %v80
    %v85 = vsub.f32 %v56, %v81
    %v86 = vsub.f32 %v57, %v82
    %v87 = vsub.f32 %v58, %v83
    %v88 = vsub.f32 %v59, %v84
    %v89 = vmul.f32 %v85, %v85
    %v90 = vmul.f32 %v86, %v86
    %v91 = vmul.f32 %v87, %v87
    %v92 = vmul.f32 %v88, %v88
    %93 = vadd.xlane.f32.xlu0 %v89
    %v94 = vpop.xlane.xlu0 %93
    %95 = vadd.xlane.f32.xlu0 %v90
    %v96 = vpop.xlane.xlu0 %95
    %97 = vadd.xlane.f32.xlu0 %v91
    %v98 = vpop.xlane.xlu0 %97
    %99 = vadd.xlane.f32.xlu0 %v92
    %v100 = vpop.xlane.xlu0 %99
    %v101 = vmul.f32 %v94, %v80
    %v102 = vmul.f32 %v96, %v80
    %v103 = vmul.f32 %v98, %v80
    %v104 = vmul.f32 %v100, %v80
    %v105 = vadd.f32 %v101, 1e-05
    %v106 = vadd.f32 %v102, 1e-05
    %v107 = vadd.f32 %v103, 1e-05
    %v108 = vadd.f32 %v104, 1e-05
    %v109 = vrsqrt.pop %v105
    %v110 = vrsqrt.pop %v106
    %v111 = vrsqrt.pop %v107
    %v112 = vrsqrt.pop %v108
    %v113 = vmul.f32 %v85, %v109
    %v114 = vmul.f32 %v86, %v110
    %v115 = vmul.f32 %v87, %v111
    %v116 = vmul.f32 %v88, %v112
    %v118 = vlaneseq
    %v119 = vshrl.u32 %v118, 7
    %v120 = vsub.s32 0, %v119
    %v121 = vrot.slane %v70, %v120
    %v123 = vmul.f32 %v113, %v121
    %v124 = vmul.f32 %v114, %v121
    %v125 = vmul.f32 %v115, %v121
    %v126 = vmul.f32 %v116, %v121
    %v128 = vlaneseq
    %v129 = vshrl.u32 %v128, 7
    %v130 = vsub.s32 0, %v129
    %v131 = vrot.slane %v71, %v130
    %v133 = vadd.f32 %v123, %v131
    %v134 = vadd.f32 %v124, %v131
    %v135 = vadd.f32 %v125, %v131
    %v136 = vadd.f32 %v126, %v131
    %v137 = vpack.c.bf16 %v134, %v133
    %v138 = vpack.c.bf16 %v136, %v135
    %v139 = vld [vmem:[%s2] sm:$0xf]
    %v140 = vld [vmem:[%s2 + $0x4] sm:$0xf]
    %v141 = vld [vmem:[%s2 + $0x8] sm:$0xf]
    %v142 = vld [vmem:[%s2 + $0xc] sm:$0xf]
    %v143 = vld [vmem:[%s2 + $0x10] sm:$0xf]
    %v144 = vld [vmem:[%s2 + $0x14] sm:$0xf]
    %v145 = vld [vmem:[%s2 + $0x18] sm:$0xf]
    %v146 = vld [vmem:[%s2 + $0x1c] sm:$0xf]
    %v147 = vld [vmem:[%s2 + $0x20] sm:$0xf]
    %v148 = vld [vmem:[%s2 + $0x24] sm:$0xf]
    %v149 = vld [vmem:[%s2 + $0x28] sm:$0xf]
    %v150 = vld [vmem:[%s2 + $0x2c] sm:$0xf]
    %v151 = vld [vmem:[%s2 + $0x30] sm:$0xf]
    %v152 = vld [vmem:[%s2 + $0x34] sm:$0xf]
    %v153 = vld [vmem:[%s2 + $0x38] sm:$0xf]
    %v154 = vld [vmem:[%s2 + $0x3c] sm:$0xf]
    %v171 = vunpack.c.l.b16 %v139
    %v172 = vunpack.c.l.b16 %v140
    %v173 = vunpack.c.l.b16 %v141
    %v174 = vunpack.c.l.b16 %v142
    %v175 = vunpack.c.l.b16 %v143
    %v176 = vunpack.c.l.b16 %v144
    %v177 = vunpack.c.l.b16 %v145
    %v178 = vunpack.c.l.b16 %v146
    %v179 = vunpack.c.l.b16 %v147
    %v180 = vunpack.c.l.b16 %v148
    %v181 = vunpack.c.l.b16 %v149
    %v182 = vunpack.c.l.b16 %v150
    %v183 = vunpack.c.l.b16 %v151
    %v184 = vunpack.c.l.b16 %v152
    %v185 = vunpack.c.l.b16 %v153
    %v186 = vunpack.c.l.b16 %v154
    %v187 = vpack.c.b16 %v172, %v171
    %v188 = vpack.c.b16 %v174, %v173
    %v189 = vpack.c.b16 %v176, %v175
    %v190 = vpack.c.b16 %v178, %v177
    %v191 = vpack.c.b16 %v180, %v179
    %v192 = vpack.c.b16 %v182, %v181
    %v193 = vpack.c.b16 %v184, %v183
    %v194 = vpack.c.b16 %v186, %v185
    %203 = vmatprep.subr.bf16.mxu0 0
    %204 = vmatpush1.bf16.msra.mxu0 %v194
    %205 = vmatprep.subr.bf16.mxu0 0
    %206 = vmatpush1.bf16.msra.mxu0 %v193
    %207 = vmatprep.subr.bf16.mxu0 0
    %208 = vmatpush1.bf16.msra.mxu0 %v192
    %209 = vmatprep.subr.bf16.mxu0 0
    %210 = vmatpush1.bf16.msra.mxu0 %v191
    %211 = vmatprep.subr.bf16.mxu0 0
    %212 = vmatpush1.bf16.msra.mxu0 %v190
    %213 = vmatprep.subr.bf16.mxu0 0
    %214 = vmatpush1.bf16.msra.mxu0 %v189
    %215 = vmatprep.subr.bf16.mxu0 0
    %216 = vmatpush1.bf16.msra.mxu0 %v188
    %217 = vmatprep.subr.bf16.mxu0 0
    %218 = vmatpush1.bf16.msra.mxu0 %v187
    %219 = vmatprep.subr.bf16.mxu0 0
    %220 = vmatpush2.bf16.msra.mxu0 0
    %221 = vmatprep.subr.bf16.mxu0 0
    %222 = vmatpush2.bf16.msra.mxu0 0
    %223 = vmatprep.subr.bf16.mxu0 0
    %224 = vmatpush2.bf16.msra.mxu0 0
    %225 = vmatprep.subr.bf16.mxu0 0
    %226 = vmatpush2.bf16.msra.mxu0 0
    %227 = vmatprep.subr.bf16.mxu0 0
    %228 = vmatpush2.bf16.msra.mxu0 0
    %229 = vmatprep.subr.bf16.mxu0 0
    %230 = vmatpush2.bf16.msra.mxu0 0
    %231 = vmatprep.subr.bf16.mxu0 0
    %232 = vmatpush2.bf16.msra.mxu0 0
    %233 = vmatprep.subr.bf16.mxu0 0
    %234 = vmatpush2.bf16.msra.mxu0 0
    %235 = vmatprep.mubr.bf16.mxu0 0
    %236 = vmatmul.mubr.bf16.gmra.mxu0 %v137
    %v237 = vpop.f32.mrf.mxu0
    %v238 = vadd.f32 0.0, %v237
    %v239 = vpop.f32.mrf.mxu0
    %v240 = vpop.f32.mrf.mxu0
    %v241 = vadd.f32 0.0, %v240
    %v242 = vpop.f32.mrf.mxu0
    %243 = vmatprep.mubr.bf16.mxu0 0
    %244 = vmatmul.mubr.bf16.gmra.mxu0 %v138
    %v245 = vpop.f32.mrf.mxu0
    %v246 = vadd.f32 0.0, %v245
    %v247 = vpop.f32.mrf.mxu0
    %v248 = vpop.f32.mrf.mxu0
    %v249 = vadd.f32 0.0, %v248
    %v250 = vpop.f32.mrf.mxu0
    %251 = vdwg.mxu0
    %v252 = vld [vmem:[%s3] sm:$0xf]
    %v253 = vld [vmem:[%s3 + $0x4] sm:$0xf]
    %v254 = vld [vmem:[%s3 + $0x8] sm:$0xf]
    %v255 = vld [vmem:[%s3 + $0xc] sm:$0xf]
    %v256 = vld [vmem:[%s3 + $0x10] sm:$0xf]
    %v257 = vld [vmem:[%s3 + $0x14] sm:$0xf]
    %v258 = vld [vmem:[%s3 + $0x18] sm:$0xf]
    %v259 = vld [vmem:[%s3 + $0x1c] sm:$0xf]
    %v260 = vld [vmem:[%s3 + $0x20] sm:$0xf]
    %v261 = vld [vmem:[%s3 + $0x24] sm:$0xf]
    %v262 = vld [vmem:[%s3 + $0x28] sm:$0xf]
    %v263 = vld [vmem:[%s3 + $0x2c] sm:$0xf]
    %v264 = vld [vmem:[%s3 + $0x30] sm:$0xf]
    %v265 = vld [vmem:[%s3 + $0x34] sm:$0xf]
    %v266 = vld [vmem:[%s3 + $0x38] sm:$0xf]
    %v267 = vld [vmem:[%s3 + $0x3c] sm:$0xf]
    %v284 = vunpack.c.l.b16 %v252
    %v285 = vunpack.c.l.b16 %v253
    %v286 = vunpack.c.l.b16 %v254
    %v287 = vunpack.c.l.b16 %v255
    %v288 = vunpack.c.l.b16 %v256
    %v289 = vunpack.c.l.b16 %v257
    %v290 = vunpack.c.l.b16 %v258
    %v291 = vunpack.c.l.b16 %v259
    %v292 = vunpack.c.l.b16 %v260
    %v293 = vunpack.c.l.b16 %v261
    %v294 = vunpack.c.l.b16 %v262
    %v295 = vunpack.c.l.b16 %v263
    %v296 = vunpack.c.l.b16 %v264
    %v297 = vunpack.c.l.b16 %v265
    %v298 = vunpack.c.l.b16 %v266
    %v299 = vunpack.c.l.b16 %v267
    %v300 = vpack.c.b16 %v285, %v284
    %v301 = vpack.c.b16 %v287, %v286
    %v302 = vpack.c.b16 %v289, %v288
    %v303 = vpack.c.b16 %v291, %v290
    %v304 = vpack.c.b16 %v293, %v292
    %v305 = vpack.c.b16 %v295, %v294
    %v306 = vpack.c.b16 %v297, %v296
    %v307 = vpack.c.b16 %v299, %v298
    %316 = vmatprep.subr.bf16.mxu0 0
    %317 = vmatpush1.bf16.msra.mxu0 %v307
    %318 = vmatprep.subr.bf16.mxu0 0
    %319 = vmatpush1.bf16.msra.mxu0 %v306
    %320 = vmatprep.subr.bf16.mxu0 0
    %321 = vmatpush1.bf16.msra.mxu0 %v305
    %322 = vmatprep.subr.bf16.mxu0 0
    %323 = vmatpush1.bf16.msra.mxu0 %v304
    %324 = vmatprep.subr.bf16.mxu0 0
    %325 = vmatpush1.bf16.msra.mxu0 %v303
    %326 = vmatprep.subr.bf16.mxu0 0
    %327 = vmatpush1.bf16.msra.mxu0 %v302
    %328 = vmatprep.subr.bf16.mxu0 0
    %329 = vmatpush1.bf16.msra.mxu0 %v301
    %330 = vmatprep.subr.bf16.mxu0 0
    %331 = vmatpush1.bf16.msra.mxu0 %v300
    %332 = vmatprep.subr.bf16.mxu0 0
    %333 = vmatpush2.bf16.msra.mxu0 0
    %334 = vmatprep.subr.bf16.mxu0 0
    %335 = vmatpush2.bf16.msra.mxu0 0
    %336 = vmatprep.subr.bf16.mxu0 0
    %337 = vmatpush2.bf16.msra.mxu0 0
    %338 = vmatprep.subr.bf16.mxu0 0
    %339 = vmatpush2.bf16.msra.mxu0 0
    %340 = vmatprep.subr.bf16.mxu0 0
    %341 = vmatpush2.bf16.msra.mxu0 0
    %342 = vmatprep.subr.bf16.mxu0 0
    %343 = vmatpush2.bf16.msra.mxu0 0
    %344 = vmatprep.subr.bf16.mxu0 0
    %345 = vmatpush2.bf16.msra.mxu0 0
    %346 = vmatprep.subr.bf16.mxu0 0
    %347 = vmatpush2.bf16.msra.mxu0 0
    %348 = vmatprep.mubr.bf16.mxu0 0
    %349 = vmatmul.mubr.bf16.gmra.mxu0 %v137
    %v350 = vpop.f32.mrf.mxu0
    %v351 = vadd.f32 0.0, %v350
    %v352 = vpop.f32.mrf.mxu0
    %v353 = vpop.f32.mrf.mxu0
    %v354 = vadd.f32 0.0, %v353
    %v355 = vpop.f32.mrf.mxu0
    %356 = vmatprep.mubr.bf16.mxu0 0
    %357 = vmatmul.mubr.bf16.gmra.mxu0 %v138
    %v358 = vpop.f32.mrf.mxu0
    %v359 = vadd.f32 0.0, %v358
    %v360 = vpop.f32.mrf.mxu0
    %v361 = vpop.f32.mrf.mxu0
    %v362 = vadd.f32 0.0, %v361
    %v363 = vpop.f32.mrf.mxu0
    %364 = vdwg.mxu0
    %v365 = vld [vmem:[%s4] sm:$0xf]
    %v366 = vld [vmem:[%s4 + $0x4] sm:$0xf]
    %v367 = vld [vmem:[%s4 + $0x8] sm:$0xf]
    %v368 = vld [vmem:[%s4 + $0xc] sm:$0xf]
    %v369 = vld [vmem:[%s4 + $0x10] sm:$0xf]
    %v370 = vld [vmem:[%s4 + $0x14] sm:$0xf]
    %v371 = vld [vmem:[%s4 + $0x18] sm:$0xf]
    %v372 = vld [vmem:[%s4 + $0x1c] sm:$0xf]
    %v373 = vld [vmem:[%s4 + $0x20] sm:$0xf]
    %v374 = vld [vmem:[%s4 + $0x24] sm:$0xf]
    %v375 = vld [vmem:[%s4 + $0x28] sm:$0xf]
    %v376 = vld [vmem:[%s4 + $0x2c] sm:$0xf]
    %v377 = vld [vmem:[%s4 + $0x30] sm:$0xf]
    %v378 = vld [vmem:[%s4 + $0x34] sm:$0xf]
    %v379 = vld [vmem:[%s4 + $0x38] sm:$0xf]
    %v380 = vld [vmem:[%s4 + $0x3c] sm:$0xf]
    %v397 = vunpack.c.l.b16 %v365
    %v398 = vunpack.c.l.b16 %v366
    %v399 = vunpack.c.l.b16 %v367
    %v400 = vunpack.c.l.b16 %v368
    %v401 = vunpack.c.l.b16 %v369
    %v402 = vunpack.c.l.b16 %v370
    %v403 = vunpack.c.l.b16 %v371
    %v404 = vunpack.c.l.b16 %v372
    %v405 = vunpack.c.l.b16 %v373
    %v406 = vunpack.c.l.b16 %v374
    %v407 = vunpack.c.l.b16 %v375
    %v408 = vunpack.c.l.b16 %v376
    %v409 = vunpack.c.l.b16 %v377
    %v410 = vunpack.c.l.b16 %v378
    %v411 = vunpack.c.l.b16 %v379
    %v412 = vunpack.c.l.b16 %v380
    %v413 = vpack.c.b16 %v398, %v397
    %v414 = vpack.c.b16 %v400, %v399
    %v415 = vpack.c.b16 %v402, %v401
    %v416 = vpack.c.b16 %v404, %v403
    %v417 = vpack.c.b16 %v406, %v405
    %v418 = vpack.c.b16 %v408, %v407
    %v419 = vpack.c.b16 %v410, %v409
    %v420 = vpack.c.b16 %v412, %v411
    %429 = vmatprep.subr.bf16.mxu0 0
    %430 = vmatpush1.bf16.msra.mxu0 %v420
    %431 = vmatprep.subr.bf16.mxu0 0
    %432 = vmatpush1.bf16.msra.mxu0 %v419
    %433 = vmatprep.subr.bf16.mxu0 0
    %434 = vmatpush1.bf16.msra.mxu0 %v418
    %435 = vmatprep.subr.bf16.mxu0 0
    %436 = vmatpush1.bf16.msra.mxu0 %v417
    %437 = vmatprep.subr.bf16.mxu0 0
    %438 = vmatpush1.bf16.msra.mxu0 %v416
    %439 = vmatprep.subr.bf16.mxu0 0
    %440 = vmatpush1.bf16.msra.mxu0 %v415
    %441 = vmatprep.subr.bf16.mxu0 0
    %442 = vmatpush1.bf16.msra.mxu0 %v414
    %443 = vmatprep.subr.bf16.mxu0 0
    %444 = vmatpush1.bf16.msra.mxu0 %v413
    %445 = vmatprep.subr.bf16.mxu0 0
    %446 = vmatpush2.bf16.msra.mxu0 0
    %447 = vmatprep.subr.bf16.mxu0 0
    %448 = vmatpush2.bf16.msra.mxu0 0
    %449 = vmatprep.subr.bf16.mxu0 0
    %450 = vmatpush2.bf16.msra.mxu0 0
    %451 = vmatprep.subr.bf16.mxu0 0
    %452 = vmatpush2.bf16.msra.mxu0 0
    %453 = vmatprep.subr.bf16.mxu0 0
    %454 = vmatpush2.bf16.msra.mxu0 0
    %455 = vmatprep.subr.bf16.mxu0 0
    %456 = vmatpush2.bf16.msra.mxu0 0
    %457 = vmatprep.subr.bf16.mxu0 0
    %458 = vmatpush2.bf16.msra.mxu0 0
    %459 = vmatprep.subr.bf16.mxu0 0
    %460 = vmatpush2.bf16.msra.mxu0 0
    %461 = vmatprep.mubr.bf16.mxu0 0
    %462 = vmatmul.mubr.bf16.gmra.mxu0 %v137
    %v463 = vpop.f32.mrf.mxu0
    %v464 = vadd.f32 0.0, %v463
    %v465 = vpop.f32.mrf.mxu0
    %v466 = vpop.f32.mrf.mxu0
    %v467 = vadd.f32 0.0, %v466
    %v468 = vpop.f32.mrf.mxu0
    %469 = vmatprep.mubr.bf16.mxu0 0
    %470 = vmatmul.mubr.bf16.gmra.mxu0 %v138
    %v471 = vpop.f32.mrf.mxu0
    %v472 = vadd.f32 0.0, %v471
    %v473 = vpop.f32.mrf.mxu0
    %v474 = vpop.f32.mrf.mxu0
    %v475 = vadd.f32 0.0, %v474
    %v476 = vpop.f32.mrf.mxu0
    %477 = vdwg.mxu0
    %v478 = vmul.f32 %v238, 0.17677669
    %v479 = vmul.f32 %v241, 0.17677669
    %v480 = vmul.f32 %v246, 0.17677669
    %v481 = vmul.f32 %v249, 0.17677669
    %v482 = vpack.c.bf16 %v479, %v478
    %v483 = vpack.c.bf16 %v481, %v480
    %v484 = vpack.c.bf16 %v354, %v351
    %v485 = vpack.c.bf16 %v362, %v359
    %v486 = vpack.c.bf16 %v467, %v464
    %v487 = vpack.c.bf16 %v475, %v472
    %vm488 = vcmask 261120
    %v490 = vsel %vm488, %v482, 0
    %v493 = vsel %vm488, %v484, 0
    %495 = vmatprep.subr.bf16.mxu0 0
    %496 = vmatpush1.bf16.xpose.msra.mxu0 0
    %497 = vmatprep.subr.bf16.mxu0 0
    %498 = vmatpush1.bf16.xpose.msra.mxu0 0
    %499 = vmatprep.subr.bf16.mxu0 0
    %500 = vmatpush1.bf16.xpose.msra.mxu0 0
    %501 = vmatprep.subr.bf16.mxu0 0
    %502 = vmatpush1.bf16.xpose.msra.mxu0 0
    %503 = vmatprep.subr.bf16.mxu0 0
    %504 = vmatpush1.bf16.xpose.msra.mxu0 0
    %505 = vmatprep.subr.bf16.mxu0 0
    %506 = vmatpush1.bf16.xpose.msra.mxu0 0
    %507 = vmatprep.subr.bf16.mxu0 0
    %508 = vmatpush1.bf16.xpose.msra.mxu0 0
    %509 = vmatprep.subr.bf16.mxu0 0
    %510 = vmatpush1.bf16.xpose.msra.mxu0 %v493
    %511 = vmatprep.subr.bf16.mxu0 0
    %512 = vmatpush2.bf16.xpose.msra.mxu0 0
    %513 = vmatprep.subr.bf16.mxu0 0
    %514 = vmatpush2.bf16.xpose.msra.mxu0 0
    %515 = vmatprep.subr.bf16.mxu0 0
    %516 = vmatpush2.bf16.xpose.msra.mxu0 0
    %517 = vmatprep.subr.bf16.mxu0 0
    %518 = vmatpush2.bf16.xpose.msra.mxu0 0
    %519 = vmatprep.subr.bf16.mxu0 0
    %520 = vmatpush2.bf16.xpose.msra.mxu0 0
    %521 = vmatprep.subr.bf16.mxu0 0
    %522 = vmatpush2.bf16.xpose.msra.mxu0 0
    %523 = vmatprep.subr.bf16.mxu0 0
    %524 = vmatpush2.bf16.xpose.msra.mxu0 0
    %525 = vmatprep.subr.bf16.mxu0 0
    %526 = vmatpush2.bf16.xpose.msra.mxu0 0
    %527 = vmatprep.mubr.bf16.mxu0 0
    %528 = vmatmul.mubr.bf16.gmra.mxu0 %v490
    %v529 = vpop.f32.mrf.mxu0
    %v530 = vadd.f32 %v65, %v529
    %v531 = vpop.f32.mrf.mxu0
    %v532 = vpop.f32.mrf.mxu0
    %v533 = vadd.f32 %v65, %v532
    %v534 = vpop.f32.mrf.mxu0
    %535 = vdwg.mxu0
    %vm536 = vcmask 130048
    %v537 = vsel %vm536, %v530, -inf
    %538 = vmax.xlane.f32.xlu0 %v537
    %v539 = vpop.xlane.xlu0 %538
    %v540 = vsel %vm536, %v533, -inf
    %541 = vmax.xlane.f32.xlu0 %v540
    %v542 = vpop.xlane.xlu0 %541
    %v543 = vsub.f32 %v530, %v539
    %v544 = vsub.f32 %v533, %v542
    %v545 = vmul.f32 %v543, 1.442695
    %v546 = vpow.pop %v545
    %v547 = vmul.f32 %v544, 1.442695
    %v548 = vpow.pop %v547
    %v549 = vsel %vm536, %v546, 0.0
    %550 = vadd.xlane.f32.xlu0 %v549
    %v551 = vpop.xlane.xlu0 %550
    %v552 = vsel %vm536, %v548, 0.0
    %553 = vadd.xlane.f32.xlu0 %v552
    %v554 = vpop.xlane.xlu0 %553
    %v555 = vrcp.pop %v551
    %v556 = vrcp.pop %v554
    %v557 = vmul.f32 %v546, %v555
    %v558 = vmul.f32 %v548, %v556
    %v559 = vpack.c.bf16 %v558, %v557
    %v561 = vsel %vm536, %v559, 0
    %563 = vmatprep.subr.bf16.mxu0 0
    %564 = vmatpush1.bf16.msra.mxu0 0
    %565 = vmatprep.subr.bf16.mxu0 0
    %566 = vmatpush1.bf16.msra.mxu0 0
    %567 = vmatprep.subr.bf16.mxu0 0
    %568 = vmatpush1.bf16.msra.mxu0 0
    %569 = vmatprep.subr.bf16.mxu0 0
    %570 = vmatpush1.bf16.msra.mxu0 0
    %571 = vmatprep.subr.bf16.mxu0 0
    %572 = vmatpush1.bf16.msra.mxu0 0
    %573 = vmatprep.subr.bf16.mxu0 0
    %574 = vmatpush1.bf16.msra.mxu0 0
    %575 = vmatprep.subr.bf16.mxu0 0
    %576 = vmatpush1.bf16.msra.mxu0 0
    %577 = vmatprep.subr.bf16.mxu0 0
    %578 = vmatpush1.bf16.msra.mxu0 %v486
    %579 = vmatprep.subr.bf16.mxu0 0
    %580 = vmatpush2.bf16.msra.mxu0 0
    %581 = vmatprep.subr.bf16.mxu0 0
    %582 = vmatpush2.bf16.msra.mxu0 0
    %583 = vmatprep.subr.bf16.mxu0 0
    %584 = vmatpush2.bf16.msra.mxu0 0
    %585 = vmatprep.subr.bf16.mxu0 0
    %586 = vmatpush2.bf16.msra.mxu0 0
    %587 = vmatprep.subr.bf16.mxu0 0
    %588 = vmatpush2.bf16.msra.mxu0 0
    %589 = vmatprep.subr.bf16.mxu0 0
    %590 = vmatpush2.bf16.msra.mxu0 0
    %591 = vmatprep.subr.bf16.mxu0 0
    %592 = vmatpush2.bf16.msra.mxu0 0
    %593 = vmatprep.subr.bf16.mxu0 0
    %594 = vmatpush2.bf16.msra.mxu0 0
    %595 = vmatprep.mubr.bf16.mxu0 0
    %596 = vmatmul.mubr.bf16.gmra.mxu0 %v561
    %v597 = vpop.f32.mrf.mxu0
    %v598 = vadd.f32 0.0, %v597
    %v599 = vpop.f32.mrf.mxu0
    %v600 = vpop.f32.mrf.mxu0
    %v601 = vadd.f32 0.0, %v600
    %v602 = vpop.f32.mrf.mxu0
    %603 = vdwg.mxu0
    %v605 = vsel %vm488, %v483, 0
    %v608 = vsel %vm488, %v485, 0
    %610 = vmatprep.subr.bf16.mxu0 0
    %611 = vmatpush1.bf16.xpose.msra.mxu0 0
    %612 = vmatprep.subr.bf16.mxu0 0
    %613 = vmatpush1.bf16.xpose.msra.mxu0 0
    %614 = vmatprep.subr.bf16.mxu0 0
    %615 = vmatpush1.bf16.xpose.msra.mxu0 0
    %616 = vmatprep.subr.bf16.mxu0 0
    %617 = vmatpush1.bf16.xpose.msra.mxu0 0
    %618 = vmatprep.subr.bf16.mxu0 0
    %619 = vmatpush1.bf16.xpose.msra.mxu0 0
    %620 = vmatprep.subr.bf16.mxu0 0
    %621 = vmatpush1.bf16.xpose.msra.mxu0 0
    %622 = vmatprep.subr.bf16.mxu0 0
    %623 = vmatpush1.bf16.xpose.msra.mxu0 0
    %624 = vmatprep.subr.bf16.mxu0 0
    %625 = vmatpush1.bf16.xpose.msra.mxu0 %v608
    %626 = vmatprep.subr.bf16.mxu0 0
    %627 = vmatpush2.bf16.xpose.msra.mxu0 0
    %628 = vmatprep.subr.bf16.mxu0 0
    %629 = vmatpush2.bf16.xpose.msra.mxu0 0
    %630 = vmatprep.subr.bf16.mxu0 0
    %631 = vmatpush2.bf16.xpose.msra.mxu0 0
    %632 = vmatprep.subr.bf16.mxu0 0
    %633 = vmatpush2.bf16.xpose.msra.mxu0 0
    %634 = vmatprep.subr.bf16.mxu0 0
    %635 = vmatpush2.bf16.xpose.msra.mxu0 0
    %636 = vmatprep.subr.bf16.mxu0 0
    %637 = vmatpush2.bf16.xpose.msra.mxu0 0
    %638 = vmatprep.subr.bf16.mxu0 0
    %639 = vmatpush2.bf16.xpose.msra.mxu0 0
    %640 = vmatprep.subr.bf16.mxu0 0
    %641 = vmatpush2.bf16.xpose.msra.mxu0 0
    %642 = vmatprep.mubr.bf16.mxu0 0
    %643 = vmatmul.mubr.bf16.gmra.mxu0 %v605
    %v644 = vpop.f32.mrf.mxu0
    %v645 = vadd.f32 %v69, %v644
    %v646 = vpop.f32.mrf.mxu0
    %v647 = vpop.f32.mrf.mxu0
    %v648 = vadd.f32 %v69, %v647
    %v649 = vpop.f32.mrf.mxu0
    %650 = vdwg.mxu0
    %v651 = vsel %vm536, %v645, -inf
    %652 = vmax.xlane.f32.xlu0 %v651
    %v653 = vpop.xlane.xlu0 %652
    %v654 = vsel %vm536, %v648, -inf
    %655 = vmax.xlane.f32.xlu0 %v654
    %v656 = vpop.xlane.xlu0 %655
    %v657 = vsub.f32 %v645, %v653
    %v658 = vsub.f32 %v648, %v656
    %v659 = vmul.f32 %v657, 1.442695
    %v660 = vpow.pop %v659
    %v661 = vmul.f32 %v658, 1.442695
    %v662 = vpow.pop %v661
    %v663 = vsel %vm536, %v660, 0.0
    %664 = vadd.xlane.f32.xlu0 %v663
    %v665 = vpop.xlane.xlu0 %664
    %v666 = vsel %vm536, %v662, 0.0
    %667 = vadd.xlane.f32.xlu0 %v666
    %v668 = vpop.xlane.xlu0 %667
    %v669 = vrcp.pop %v665
    %v670 = vrcp.pop %v668
    %v671 = vmul.f32 %v660, %v669
    %v672 = vmul.f32 %v662, %v670
    %v673 = vpack.c.bf16 %v672, %v671
    %v675 = vsel %vm536, %v673, 0
    %677 = vmatprep.subr.bf16.mxu0 0
    %678 = vmatpush1.bf16.msra.mxu0 0
    %679 = vmatprep.subr.bf16.mxu0 0
    %680 = vmatpush1.bf16.msra.mxu0 0
    %681 = vmatprep.subr.bf16.mxu0 0
    %682 = vmatpush1.bf16.msra.mxu0 0
    %683 = vmatprep.subr.bf16.mxu0 0
    %684 = vmatpush1.bf16.msra.mxu0 0
    %685 = vmatprep.subr.bf16.mxu0 0
    %686 = vmatpush1.bf16.msra.mxu0 0
    %687 = vmatprep.subr.bf16.mxu0 0
    %688 = vmatpush1.bf16.msra.mxu0 0
    %689 = vmatprep.subr.bf16.mxu0 0
    %690 = vmatpush1.bf16.msra.mxu0 0
    %691 = vmatprep.subr.bf16.mxu0 0
    %692 = vmatpush1.bf16.msra.mxu0 %v487
    %693 = vmatprep.subr.bf16.mxu0 0
    %694 = vmatpush2.bf16.msra.mxu0 0
    %695 = vmatprep.subr.bf16.mxu0 0
    %696 = vmatpush2.bf16.msra.mxu0 0
    %697 = vmatprep.subr.bf16.mxu0 0
    %698 = vmatpush2.bf16.msra.mxu0 0
    %699 = vmatprep.subr.bf16.mxu0 0
    %700 = vmatpush2.bf16.msra.mxu0 0
    %701 = vmatprep.subr.bf16.mxu0 0
    %702 = vmatpush2.bf16.msra.mxu0 0
    %703 = vmatprep.subr.bf16.mxu0 0
    %704 = vmatpush2.bf16.msra.mxu0 0
    %705 = vmatprep.subr.bf16.mxu0 0
    %706 = vmatpush2.bf16.msra.mxu0 0
    %707 = vmatprep.subr.bf16.mxu0 0
    %708 = vmatpush2.bf16.msra.mxu0 0
    %709 = vmatprep.mubr.bf16.mxu0 0
    %710 = vmatmul.mubr.bf16.gmra.mxu0 %v675
    %v711 = vpop.f32.mrf.mxu0
    %v712 = vadd.f32 0.0, %v711
    %v713 = vpop.f32.mrf.mxu0
    %v714 = vpop.f32.mrf.mxu0
    %v715 = vadd.f32 0.0, %v714
    %v716 = vpop.f32.mrf.mxu0
    %717 = vdwg.mxu0
    %v718 = vpack.c.bf16 %v601, %v598
    %v719 = vpack.c.bf16 %v715, %v712
    %v720 = vld [vmem:[%s5] sm:$0xf]
    %v721 = vld [vmem:[%s5 + $0x4] sm:$0xf]
    %v722 = vld [vmem:[%s5 + $0x8] sm:$0xf]
    %v723 = vld [vmem:[%s5 + $0xc] sm:$0xf]
    %s724 = scalar_lea.vmem %s2, 64
    %v725 = vld [vmem:[%s724] sm:$0xf]
    %v726 = vld [vmem:[%s724 + $0x4] sm:$0xf]
    %v727 = vld [vmem:[%s724 + $0x8] sm:$0xf]
    %v728 = vld [vmem:[%s724 + $0xc] sm:$0xf]
    %v729 = vld [vmem:[%s724 + $0x10] sm:$0xf]
    %v730 = vld [vmem:[%s724 + $0x14] sm:$0xf]
    %v731 = vld [vmem:[%s724 + $0x18] sm:$0xf]
    %v732 = vld [vmem:[%s724 + $0x1c] sm:$0xf]
    %v733 = vld [vmem:[%s724 + $0x20] sm:$0xf]
    %v734 = vld [vmem:[%s724 + $0x24] sm:$0xf]
    %v735 = vld [vmem:[%s724 + $0x28] sm:$0xf]
    %v736 = vld [vmem:[%s724 + $0x2c] sm:$0xf]
    %v737 = vld [vmem:[%s724 + $0x30] sm:$0xf]
    %v738 = vld [vmem:[%s724 + $0x34] sm:$0xf]
    %v739 = vld [vmem:[%s724 + $0x38] sm:$0xf]
    %v740 = vld [vmem:[%s724 + $0x3c] sm:$0xf]
    %v757 = vunpack.c.l.b16 %v725
    %v758 = vunpack.c.l.b16 %v726
    %v759 = vunpack.c.l.b16 %v727
    %v760 = vunpack.c.l.b16 %v728
    %v761 = vunpack.c.l.b16 %v729
    %v762 = vunpack.c.l.b16 %v730
    %v763 = vunpack.c.l.b16 %v731
    %v764 = vunpack.c.l.b16 %v732
    %v765 = vunpack.c.l.b16 %v733
    %v766 = vunpack.c.l.b16 %v734
    %v767 = vunpack.c.l.b16 %v735
    %v768 = vunpack.c.l.b16 %v736
    %v769 = vunpack.c.l.b16 %v737
    %v770 = vunpack.c.l.b16 %v738
    %v771 = vunpack.c.l.b16 %v739
    %v772 = vunpack.c.l.b16 %v740
    %v773 = vpack.c.b16 %v758, %v757
    %v774 = vpack.c.b16 %v760, %v759
    %v775 = vpack.c.b16 %v762, %v761
    %v776 = vpack.c.b16 %v764, %v763
    %v777 = vpack.c.b16 %v766, %v765
    %v778 = vpack.c.b16 %v768, %v767
    %v779 = vpack.c.b16 %v770, %v769
    %v780 = vpack.c.b16 %v772, %v771
    %789 = vmatprep.subr.bf16.mxu0 0
    %790 = vmatpush1.bf16.msra.mxu0 %v780
    %791 = vmatprep.subr.bf16.mxu0 0
    %792 = vmatpush1.bf16.msra.mxu0 %v779
    %793 = vmatprep.subr.bf16.mxu0 0
    %794 = vmatpush1.bf16.msra.mxu0 %v778
    %795 = vmatprep.subr.bf16.mxu0 0
    %796 = vmatpush1.bf16.msra.mxu0 %v777
    %797 = vmatprep.subr.bf16.mxu0 0
    %798 = vmatpush1.bf16.msra.mxu0 %v776
    %799 = vmatprep.subr.bf16.mxu0 0
    %800 = vmatpush1.bf16.msra.mxu0 %v775
    %801 = vmatprep.subr.bf16.mxu0 0
    %802 = vmatpush1.bf16.msra.mxu0 %v774
    %803 = vmatprep.subr.bf16.mxu0 0
    %804 = vmatpush1.bf16.msra.mxu0 %v773
    %805 = vmatprep.subr.bf16.mxu0 0
    %806 = vmatpush2.bf16.msra.mxu0 0
    %807 = vmatprep.subr.bf16.mxu0 0
    %808 = vmatpush2.bf16.msra.mxu0 0
    %809 = vmatprep.subr.bf16.mxu0 0
    %810 = vmatpush2.bf16.msra.mxu0 0
    %811 = vmatprep.subr.bf16.mxu0 0
    %812 = vmatpush2.bf16.msra.mxu0 0
    %813 = vmatprep.subr.bf16.mxu0 0
    %814 = vmatpush2.bf16.msra.mxu0 0
    %815 = vmatprep.subr.bf16.mxu0 0
    %816 = vmatpush2.bf16.msra.mxu0 0
    %817 = vmatprep.subr.bf16.mxu0 0
    %818 = vmatpush2.bf16.msra.mxu0 0
    %819 = vmatprep.subr.bf16.mxu0 0
    %820 = vmatpush2.bf16.msra.mxu0 0
    %821 = vmatprep.mubr.bf16.mxu0 0
    %822 = vmatmul.mubr.bf16.gmra.mxu0 %v137
    %v823 = vpop.f32.mrf.mxu0
    %v824 = vadd.f32 0.0, %v823
    %v825 = vpop.f32.mrf.mxu0
    %v826 = vpop.f32.mrf.mxu0
    %v827 = vadd.f32 0.0, %v826
    %v828 = vpop.f32.mrf.mxu0
    %829 = vmatprep.mubr.bf16.mxu0 0
    %830 = vmatmul.mubr.bf16.gmra.mxu0 %v138
    %v831 = vpop.f32.mrf.mxu0
    %v832 = vadd.f32 0.0, %v831
    %v833 = vpop.f32.mrf.mxu0
    %v834 = vpop.f32.mrf.mxu0
    %v835 = vadd.f32 0.0, %v834
    %v836 = vpop.f32.mrf.mxu0
    %837 = vdwg.mxu0
    %s838 = scalar_lea.vmem %s3, 64
    %v839 = vld [vmem:[%s838] sm:$0xf]
    %v840 = vld [vmem:[%s838 + $0x4] sm:$0xf]
    %v841 = vld [vmem:[%s838 + $0x8] sm:$0xf]
    %v842 = vld [vmem:[%s838 + $0xc] sm:$0xf]
    %v843 = vld [vmem:[%s838 + $0x10] sm:$0xf]
    %v844 = vld [vmem:[%s838 + $0x14] sm:$0xf]
    %v845 = vld [vmem:[%s838 + $0x18] sm:$0xf]
    %v846 = vld [vmem:[%s838 + $0x1c] sm:$0xf]
    %v847 = vld [vmem:[%s838 + $0x20] sm:$0xf]
    %v848 = vld [vmem:[%s838 + $0x24] sm:$0xf]
    %v849 = vld [vmem:[%s838 + $0x28] sm:$0xf]
    %v850 = vld [vmem:[%s838 + $0x2c] sm:$0xf]
    %v851 = vld [vmem:[%s838 + $0x30] sm:$0xf]
    %v852 = vld [vmem:[%s838 + $0x34] sm:$0xf]
    %v853 = vld [vmem:[%s838 + $0x38] sm:$0xf]
    %v854 = vld [vmem:[%s838 + $0x3c] sm:$0xf]
    %v871 = vunpack.c.l.b16 %v839
    %v872 = vunpack.c.l.b16 %v840
    %v873 = vunpack.c.l.b16 %v841
    %v874 = vunpack.c.l.b16 %v842
    %v875 = vunpack.c.l.b16 %v843
    %v876 = vunpack.c.l.b16 %v844
    %v877 = vunpack.c.l.b16 %v845
    %v878 = vunpack.c.l.b16 %v846
    %v879 = vunpack.c.l.b16 %v847
    %v880 = vunpack.c.l.b16 %v848
    %v881 = vunpack.c.l.b16 %v849
    %v882 = vunpack.c.l.b16 %v850
    %v883 = vunpack.c.l.b16 %v851
    %v884 = vunpack.c.l.b16 %v852
    %v885 = vunpack.c.l.b16 %v853
    %v886 = vunpack.c.l.b16 %v854
    %v887 = vpack.c.b16 %v872, %v871
    %v888 = vpack.c.b16 %v874, %v873
    %v889 = vpack.c.b16 %v876, %v875
    %v890 = vpack.c.b16 %v878, %v877
    %v891 = vpack.c.b16 %v880, %v879
    %v892 = vpack.c.b16 %v882, %v881
    %v893 = vpack.c.b16 %v884, %v883
    %v894 = vpack.c.b16 %v886, %v885
    %903 = vmatprep.subr.bf16.mxu0 0
    %904 = vmatpush1.bf16.msra.mxu0 %v894
    %905 = vmatprep.subr.bf16.mxu0 0
    %906 = vmatpush1.bf16.msra.mxu0 %v893
    %907 = vmatprep.subr.bf16.mxu0 0
    %908 = vmatpush1.bf16.msra.mxu0 %v892
    %909 = vmatprep.subr.bf16.mxu0 0
    %910 = vmatpush1.bf16.msra.mxu0 %v891
    %911 = vmatprep.subr.bf16.mxu0 0
    %912 = vmatpush1.bf16.msra.mxu0 %v890
    %913 = vmatprep.subr.bf16.mxu0 0
    %914 = vmatpush1.bf16.msra.mxu0 %v889
    %915 = vmatprep.subr.bf16.mxu0 0
    %916 = vmatpush1.bf16.msra.mxu0 %v888
    %917 = vmatprep.subr.bf16.mxu0 0
    %918 = vmatpush1.bf16.msra.mxu0 %v887
    %919 = vmatprep.subr.bf16.mxu0 0
    %920 = vmatpush2.bf16.msra.mxu0 0
    %921 = vmatprep.subr.bf16.mxu0 0
    %922 = vmatpush2.bf16.msra.mxu0 0
    %923 = vmatprep.subr.bf16.mxu0 0
    %924 = vmatpush2.bf16.msra.mxu0 0
    %925 = vmatprep.subr.bf16.mxu0 0
    %926 = vmatpush2.bf16.msra.mxu0 0
    %927 = vmatprep.subr.bf16.mxu0 0
    %928 = vmatpush2.bf16.msra.mxu0 0
    %929 = vmatprep.subr.bf16.mxu0 0
    %930 = vmatpush2.bf16.msra.mxu0 0
    %931 = vmatprep.subr.bf16.mxu0 0
    %932 = vmatpush2.bf16.msra.mxu0 0
    %933 = vmatprep.subr.bf16.mxu0 0
    %934 = vmatpush2.bf16.msra.mxu0 0
    %935 = vmatprep.mubr.bf16.mxu0 0
    %936 = vmatmul.mubr.bf16.gmra.mxu0 %v137
    %v937 = vpop.f32.mrf.mxu0
    %v938 = vadd.f32 0.0, %v937
    %v939 = vpop.f32.mrf.mxu0
    %v940 = vpop.f32.mrf.mxu0
    %v941 = vadd.f32 0.0, %v940
    %v942 = vpop.f32.mrf.mxu0
    %943 = vmatprep.mubr.bf16.mxu0 0
    %944 = vmatmul.mubr.bf16.gmra.mxu0 %v138
    %v945 = vpop.f32.mrf.mxu0
    %v946 = vadd.f32 0.0, %v945
    %v947 = vpop.f32.mrf.mxu0
    %v948 = vpop.f32.mrf.mxu0
    %v949 = vadd.f32 0.0, %v948
    %v950 = vpop.f32.mrf.mxu0
    %951 = vdwg.mxu0
    %s952 = scalar_lea.vmem %s4, 64
    %v953 = vld [vmem:[%s952] sm:$0xf]
    %v954 = vld [vmem:[%s952 + $0x4] sm:$0xf]
    %v955 = vld [vmem:[%s952 + $0x8] sm:$0xf]
    %v956 = vld [vmem:[%s952 + $0xc] sm:$0xf]
    %v957 = vld [vmem:[%s952 + $0x10] sm:$0xf]
    %v958 = vld [vmem:[%s952 + $0x14] sm:$0xf]
    %v959 = vld [vmem:[%s952 + $0x18] sm:$0xf]
    %v960 = vld [vmem:[%s952 + $0x1c] sm:$0xf]
    %v961 = vld [vmem:[%s952 + $0x20] sm:$0xf]
    %v962 = vld [vmem:[%s952 + $0x24] sm:$0xf]
    %v963 = vld [vmem:[%s952 + $0x28] sm:$0xf]
    %v964 = vld [vmem:[%s952 + $0x2c] sm:$0xf]
    %v965 = vld [vmem:[%s952 + $0x30] sm:$0xf]
    %v966 = vld [vmem:[%s952 + $0x34] sm:$0xf]
    %v967 = vld [vmem:[%s952 + $0x38] sm:$0xf]
    %v968 = vld [vmem:[%s952 + $0x3c] sm:$0xf]
    %v985 = vunpack.c.l.b16 %v953
    %v986 = vunpack.c.l.b16 %v954
    %v987 = vunpack.c.l.b16 %v955
    %v988 = vunpack.c.l.b16 %v956
    %v989 = vunpack.c.l.b16 %v957
    %v990 = vunpack.c.l.b16 %v958
    %v991 = vunpack.c.l.b16 %v959
    %v992 = vunpack.c.l.b16 %v960
    %v993 = vunpack.c.l.b16 %v961
    %v994 = vunpack.c.l.b16 %v962
    %v995 = vunpack.c.l.b16 %v963
    %v996 = vunpack.c.l.b16 %v964
    %v997 = vunpack.c.l.b16 %v965
    %v998 = vunpack.c.l.b16 %v966
    %v999 = vunpack.c.l.b16 %v967
    %v1000 = vunpack.c.l.b16 %v968
    %v1001 = vpack.c.b16 %v986, %v985
    %v1002 = vpack.c.b16 %v988, %v987
    %v1003 = vpack.c.b16 %v990, %v989
    %v1004 = vpack.c.b16 %v992, %v991
    %v1005 = vpack.c.b16 %v994, %v993
    %v1006 = vpack.c.b16 %v996, %v995
    %v1007 = vpack.c.b16 %v998, %v997
    %v1008 = vpack.c.b16 %v1000, %v999
    %1017 = vmatprep.subr.bf16.mxu0 0
    %1018 = vmatpush1.bf16.msra.mxu0 %v1008
    %1019 = vmatprep.subr.bf16.mxu0 0
    %1020 = vmatpush1.bf16.msra.mxu0 %v1007
    %1021 = vmatprep.subr.bf16.mxu0 0
    %1022 = vmatpush1.bf16.msra.mxu0 %v1006
    %1023 = vmatprep.subr.bf16.mxu0 0
    %1024 = vmatpush1.bf16.msra.mxu0 %v1005
    %1025 = vmatprep.subr.bf16.mxu0 0
    %1026 = vmatpush1.bf16.msra.mxu0 %v1004
    %1027 = vmatprep.subr.bf16.mxu0 0
    %1028 = vmatpush1.bf16.msra.mxu0 %v1003
    %1029 = vmatprep.subr.bf16.mxu0 0
    %1030 = vmatpush1.bf16.msra.mxu0 %v1002
    %1031 = vmatprep.subr.bf16.mxu0 0
    %1032 = vmatpush1.bf16.msra.mxu0 %v1001
    %1033 = vmatprep.subr.bf16.mxu0 0
    %1034 = vmatpush2.bf16.msra.mxu0 0
    %1035 = vmatprep.subr.bf16.mxu0 0
    %1036 = vmatpush2.bf16.msra.mxu0 0
    %1037 = vmatprep.subr.bf16.mxu0 0
    %1038 = vmatpush2.bf16.msra.mxu0 0
    %1039 = vmatprep.subr.bf16.mxu0 0
    %1040 = vmatpush2.bf16.msra.mxu0 0
    %1041 = vmatprep.subr.bf16.mxu0 0
    %1042 = vmatpush2.bf16.msra.mxu0 0
    %1043 = vmatprep.subr.bf16.mxu0 0
    %1044 = vmatpush2.bf16.msra.mxu0 0
    %1045 = vmatprep.subr.bf16.mxu0 0
    %1046 = vmatpush2.bf16.msra.mxu0 0
    %1047 = vmatprep.subr.bf16.mxu0 0
    %1048 = vmatpush2.bf16.msra.mxu0 0
    %1049 = vmatprep.mubr.bf16.mxu0 0
    %1050 = vmatmul.mubr.bf16.gmra.mxu0 %v137
    %v1051 = vpop.f32.mrf.mxu0
    %v1052 = vadd.f32 0.0, %v1051
    %v1053 = vpop.f32.mrf.mxu0
    %v1054 = vpop.f32.mrf.mxu0
    %v1055 = vadd.f32 0.0, %v1054
    %v1056 = vpop.f32.mrf.mxu0
    %1057 = vmatprep.mubr.bf16.mxu0 0
    %1058 = vmatmul.mubr.bf16.gmra.mxu0 %v138
    %v1059 = vpop.f32.mrf.mxu0
    %v1060 = vadd.f32 0.0, %v1059
    %v1061 = vpop.f32.mrf.mxu0
    %v1062 = vpop.f32.mrf.mxu0
    %v1063 = vadd.f32 0.0, %v1062
    %v1064 = vpop.f32.mrf.mxu0
    %1065 = vdwg.mxu0
    %v1066 = vmul.f32 %v824, 0.17677669
    %v1067 = vmul.f32 %v827, 0.17677669
    %v1068 = vmul.f32 %v832, 0.17677669
    %v1069 = vmul.f32 %v835, 0.17677669
    %v1070 = vpack.c.bf16 %v1067, %v1066
    %v1071 = vpack.c.bf16 %v1069, %v1068
    %v1072 = vpack.c.bf16 %v941, %v938
    %v1073 = vpack.c.bf16 %v949, %v946
    %v1074 = vpack.c.bf16 %v1055, %v1052
    %v1075 = vpack.c.bf16 %v1063, %v1060
    %v1077 = vsel %vm488, %v1070, 0
    %v1080 = vsel %vm488, %v1072, 0
    %1082 = vmatprep.subr.bf16.mxu0 0
    %1083 = vmatpush1.bf16.xpose.msra.mxu0 0
    %1084 = vmatprep.subr.bf16.mxu0 0
    %1085 = vmatpush1.bf16.xpose.msra.mxu0 0
    %1086 = vmatprep.subr.bf16.mxu0 0
    %1087 = vmatpush1.bf16.xpose.msra.mxu0 0
    %1088 = vmatprep.subr.bf16.mxu0 0
    %1089 = vmatpush1.bf16.xpose.msra.mxu0 0
    %1090 = vmatprep.subr.bf16.mxu0 0
    %1091 = vmatpush1.bf16.xpose.msra.mxu0 0
    %1092 = vmatprep.subr.bf16.mxu0 0
    %1093 = vmatpush1.bf16.xpose.msra.mxu0 0
    %1094 = vmatprep.subr.bf16.mxu0 0
    %1095 = vmatpush1.bf16.xpose.msra.mxu0 0
    %1096 = vmatprep.subr.bf16.mxu0 0
    %1097 = vmatpush1.bf16.xpose.msra.mxu0 %v1080
    %1098 = vmatprep.subr.bf16.mxu0 0
    %1099 = vmatpush2.bf16.xpose.msra.mxu0 0
    %1100 = vmatprep.subr.bf16.mxu0 0
    %1101 = vmatpush2.bf16.xpose.msra.mxu0 0
    %1102 = vmatprep.subr.bf16.mxu0 0
    %1103 = vmatpush2.bf16.xpose.msra.mxu0 0
    %1104 = vmatprep.subr.bf16.mxu0 0
    %1105 = vmatpush2.bf16.xpose.msra.mxu0 0
    %1106 = vmatprep.subr.bf16.mxu0 0
    %1107 = vmatpush2.bf16.xpose.msra.mxu0 0
    %1108 = vmatprep.subr.bf16.mxu0 0
    %1109 = vmatpush2.bf16.xpose.msra.mxu0 0
    %1110 = vmatprep.subr.bf16.mxu0 0
    %1111 = vmatpush2.bf16.xpose.msra.mxu0 0
    %1112 = vmatprep.subr.bf16.mxu0 0
    %1113 = vmatpush2.bf16.xpose.msra.mxu0 0
    %1114 = vmatprep.mubr.bf16.mxu0 0
    %1115 = vmatmul.mubr.bf16.gmra.mxu0 %v1077
    %v1116 = vpop.f32.mrf.mxu0
    %v1117 = vadd.f32 %v65, %v1116
    %v1118 = vpop.f32.mrf.mxu0
    %v1119 = vpop.f32.mrf.mxu0
    %v1120 = vadd.f32 %v65, %v1119
    %v1121 = vpop.f32.mrf.mxu0
    %1122 = vdwg.mxu0
    %v1123 = vsel %vm536, %v1117, -inf
    %1124 = vmax.xlane.f32.xlu0 %v1123
    %v1125 = vpop.xlane.xlu0 %1124
    %v1126 = vsel %vm536, %v1120, -inf
    %1127 = vmax.xlane.f32.xlu0 %v1126
    %v1128 = vpop.xlane.xlu0 %1127
    %v1129 = vsub.f32 %v1117, %v1125
    %v1130 = vsub.f32 %v1120, %v1128
    %v1131 = vmul.f32 %v1129, 1.442695
    %v1132 = vpow.pop %v1131
    %v1133 = vmul.f32 %v1130, 1.442695
    %v1134 = vpow.pop %v1133
    %v1135 = vsel %vm536, %v1132, 0.0
    %1136 = vadd.xlane.f32.xlu0 %v1135
    %v1137 = vpop.xlane.xlu0 %1136
    %v1138 = vsel %vm536, %v1134, 0.0
    %1139 = vadd.xlane.f32.xlu0 %v1138
    %v1140 = vpop.xlane.xlu0 %1139
    %v1141 = vrcp.pop %v1137
    %v1142 = vrcp.pop %v1140
    %v1143 = vmul.f32 %v1132, %v1141
    %v1144 = vmul.f32 %v1134, %v1142
    %v1145 = vpack.c.bf16 %v1144, %v1143
    %v1147 = vsel %vm536, %v1145, 0
    %1149 = vmatprep.subr.bf16.mxu0 0
    %1150 = vmatpush1.bf16.msra.mxu0 0
    %1151 = vmatprep.subr.bf16.mxu0 0
    %1152 = vmatpush1.bf16.msra.mxu0 0
    %1153 = vmatprep.subr.bf16.mxu0 0
    %1154 = vmatpush1.bf16.msra.mxu0 0
    %1155 = vmatprep.subr.bf16.mxu0 0
    %1156 = vmatpush1.bf16.msra.mxu0 0
    %1157 = vmatprep.subr.bf16.mxu0 0
    %1158 = vmatpush1.bf16.msra.mxu0 0
    %1159 = vmatprep.subr.bf16.mxu0 0
    %1160 = vmatpush1.bf16.msra.mxu0 0
    %1161 = vmatprep.subr.bf16.mxu0 0
    %1162 = vmatpush1.bf16.msra.mxu0 0
    %1163 = vmatprep.subr.bf16.mxu0 0
    %1164 = vmatpush1.bf16.msra.mxu0 %v1074
    %1165 = vmatprep.subr.bf16.mxu0 0
    %1166 = vmatpush2.bf16.msra.mxu0 0
    %1167 = vmatprep.subr.bf16.mxu0 0
    %1168 = vmatpush2.bf16.msra.mxu0 0
    %1169 = vmatprep.subr.bf16.mxu0 0
    %1170 = vmatpush2.bf16.msra.mxu0 0
    %1171 = vmatprep.subr.bf16.mxu0 0
    %1172 = vmatpush2.bf16.msra.mxu0 0
    %1173 = vmatprep.subr.bf16.mxu0 0
    %1174 = vmatpush2.bf16.msra.mxu0 0
    %1175 = vmatprep.subr.bf16.mxu0 0
    %1176 = vmatpush2.bf16.msra.mxu0 0
    %1177 = vmatprep.subr.bf16.mxu0 0
    %1178 = vmatpush2.bf16.msra.mxu0 0
    %1179 = vmatprep.subr.bf16.mxu0 0
    %1180 = vmatpush2.bf16.msra.mxu0 0
    %1181 = vmatprep.mubr.bf16.mxu0 0
    %1182 = vmatmul.mubr.bf16.gmra.mxu0 %v1147
    %v1183 = vpop.f32.mrf.mxu0
    %v1184 = vadd.f32 0.0, %v1183
    %v1185 = vpop.f32.mrf.mxu0
    %v1186 = vpop.f32.mrf.mxu0
    %v1187 = vadd.f32 0.0, %v1186
    %v1188 = vpop.f32.mrf.mxu0
    %1189 = vdwg.mxu0
    %v1191 = vsel %vm488, %v1071, 0
    %v1194 = vsel %vm488, %v1073, 0
    %1196 = vmatprep.subr.bf16.mxu0 0
    %1197 = vmatpush1.bf16.xpose.msra.mxu0 0
    %1198 = vmatprep.subr.bf16.mxu0 0
    %1199 = vmatpush1.bf16.xpose.msra.mxu0 0
    %1200 = vmatprep.subr.bf16.mxu0 0
    %1201 = vmatpush1.bf16.xpose.msra.mxu0 0
    %1202 = vmatprep.subr.bf16.mxu0 0
    %1203 = vmatpush1.bf16.xpose.msra.mxu0 0
    %1204 = vmatprep.subr.bf16.mxu0 0
    %1205 = vmatpush1.bf16.xpose.msra.mxu0 0
    %1206 = vmatprep.subr.bf16.mxu0 0
    %1207 = vmatpush1.bf16.xpose.msra.mxu0 0
    %1208 = vmatprep.subr.bf16.mxu0 0
    %1209 = vmatpush1.bf16.xpose.msra.mxu0 0
    %1210 = vmatprep.subr.bf16.mxu0 0
    %1211 = vmatpush1.bf16.xpose.msra.mxu0 %v1194
    %1212 = vmatprep.subr.bf16.mxu0 0
    %1213 = vmatpush2.bf16.xpose.msra.mxu0 0
    %1214 = vmatprep.subr.bf16.mxu0 0
    %1215 = vmatpush2.bf16.xpose.msra.mxu0 0
    %1216 = vmatprep.subr.bf16.mxu0 0
    %1217 = vmatpush2.bf16.xpose.msra.mxu0 0
    %1218 = vmatprep.subr.bf16.mxu0 0
    %1219 = vmatpush2.bf16.xpose.msra.mxu0 0
    %1220 = vmatprep.subr.bf16.mxu0 0
    %1221 = vmatpush2.bf16.xpose.msra.mxu0 0
    %1222 = vmatprep.subr.bf16.mxu0 0
    %1223 = vmatpush2.bf16.xpose.msra.mxu0 0
    %1224 = vmatprep.subr.bf16.mxu0 0
    %1225 = vmatpush2.bf16.xpose.msra.mxu0 0
    %1226 = vmatprep.subr.bf16.mxu0 0
    %1227 = vmatpush2.bf16.xpose.msra.mxu0 0
    %1228 = vmatprep.mubr.bf16.mxu0 0
    %1229 = vmatmul.mubr.bf16.gmra.mxu0 %v1191
    %v1230 = vpop.f32.mrf.mxu0
    %v1231 = vadd.f32 %v69, %v1230
    %v1232 = vpop.f32.mrf.mxu0
    %v1233 = vpop.f32.mrf.mxu0
    %v1234 = vadd.f32 %v69, %v1233
    %v1235 = vpop.f32.mrf.mxu0
    %1236 = vdwg.mxu0
    %v1237 = vsel %vm536, %v1231, -inf
    %1238 = vmax.xlane.f32.xlu0 %v1237
    %v1239 = vpop.xlane.xlu0 %1238
    %v1240 = vsel %vm536, %v1234, -inf
    %1241 = vmax.xlane.f32.xlu0 %v1240
    %v1242 = vpop.xlane.xlu0 %1241
    %v1243 = vsub.f32 %v1231, %v1239
    %v1244 = vsub.f32 %v1234, %v1242
    %v1245 = vmul.f32 %v1243, 1.442695
    %v1246 = vpow.pop %v1245
    %v1247 = vmul.f32 %v1244, 1.442695
    %v1248 = vpow.pop %v1247
    %v1249 = vsel %vm536, %v1246, 0.0
    %1250 = vadd.xlane.f32.xlu0 %v1249
    %v1251 = vpop.xlane.xlu0 %1250
    %v1252 = vsel %vm536, %v1248, 0.0
    %1253 = vadd.xlane.f32.xlu0 %v1252
    %v1254 = vpop.xlane.xlu0 %1253
    %v1255 = vrcp.pop %v1251
    %v1256 = vrcp.pop %v1254
    %v1257 = vmul.f32 %v1246, %v1255
    %v1258 = vmul.f32 %v1248, %v1256
    %v1259 = vpack.c.bf16 %v1258, %v1257
    %v1261 = vsel %vm536, %v1259, 0
    %1263 = vmatprep.subr.bf16.mxu0 0
    %1264 = vmatpush1.bf16.msra.mxu0 0
    %1265 = vmatprep.subr.bf16.mxu0 0
    %1266 = vmatpush1.bf16.msra.mxu0 0
    %1267 = vmatprep.subr.bf16.mxu0 0
    %1268 = vmatpush1.bf16.msra.mxu0 0
    %1269 = vmatprep.subr.bf16.mxu0 0
    %1270 = vmatpush1.bf16.msra.mxu0 0
    %1271 = vmatprep.subr.bf16.mxu0 0
    %1272 = vmatpush1.bf16.msra.mxu0 0
    %1273 = vmatprep.subr.bf16.mxu0 0
    %1274 = vmatpush1.bf16.msra.mxu0 0
    %1275 = vmatprep.subr.bf16.mxu0 0
    %1276 = vmatpush1.bf16.msra.mxu0 0
    %1277 = vmatprep.subr.bf16.mxu0 0
    %1278 = vmatpush1.bf16.msra.mxu0 %v1075
    %1279 = vmatprep.subr.bf16.mxu0 0
    %1280 = vmatpush2.bf16.msra.mxu0 0
    %1281 = vmatprep.subr.bf16.mxu0 0
    %1282 = vmatpush2.bf16.msra.mxu0 0
    %1283 = vmatprep.subr.bf16.mxu0 0
    %1284 = vmatpush2.bf16.msra.mxu0 0
    %1285 = vmatprep.subr.bf16.mxu0 0
    %1286 = vmatpush2.bf16.msra.mxu0 0
    %1287 = vmatprep.subr.bf16.mxu0 0
    %1288 = vmatpush2.bf16.msra.mxu0 0
    %1289 = vmatprep.subr.bf16.mxu0 0
    %1290 = vmatpush2.bf16.msra.mxu0 0
    %1291 = vmatprep.subr.bf16.mxu0 0
    %1292 = vmatpush2.bf16.msra.mxu0 0
    %1293 = vmatprep.subr.bf16.mxu0 0
    %1294 = vmatpush2.bf16.msra.mxu0 0
    %1295 = vmatprep.mubr.bf16.mxu0 0
    %1296 = vmatmul.mubr.bf16.gmra.mxu0 %v1261
    %v1297 = vpop.f32.mrf.mxu0
    %v1298 = vadd.f32 0.0, %v1297
    %v1299 = vpop.f32.mrf.mxu0
    %v1300 = vpop.f32.mrf.mxu0
    %v1301 = vadd.f32 0.0, %v1300
    %v1302 = vpop.f32.mrf.mxu0
    %1303 = vdwg.mxu0
    %v1304 = vpack.c.bf16 %v1187, %v1184
    %v1305 = vpack.c.bf16 %v1301, %v1298
    %s1306 = scalar_lea.vmem %s5, 16
    %v1307 = vld [vmem:[%s1306] sm:$0xf]
    %v1308 = vld [vmem:[%s1306 + $0x4] sm:$0xf]
    %v1309 = vld [vmem:[%s1306 + $0x8] sm:$0xf]
    %v1310 = vld [vmem:[%s1306 + $0xc] sm:$0xf]
    %v1315 = vunpack.c.l.b16 %v1307
    %v1316 = vunpack.c.l.b16 %v1308
    %v1317 = vunpack.c.l.b16 %v1309
    %v1318 = vunpack.c.l.b16 %v1310
    %v1319 = vpack.c.b16 %v1316, %v1315
    %v1320 = vpack.c.b16 %v1318, %v1317
    %v1324 = vsel %vm488, %v1304, 0
    %v1327 = vsel %vm488, %v1305, 0
    %1329 = vmatprep.subr.bf16.mxu0 0
    %1330 = vmatpush1.bf16.msra.mxu0 0
    %1331 = vmatprep.subr.bf16.mxu0 0
    %1332 = vmatpush1.bf16.msra.mxu0 0
    %1333 = vmatprep.subr.bf16.mxu0 0
    %1334 = vmatpush1.bf16.msra.mxu0 0
    %1335 = vmatprep.subr.bf16.mxu0 0
    %1336 = vmatpush1.bf16.msra.mxu0 0
    %1337 = vmatprep.subr.bf16.mxu0 0
    %1338 = vmatpush1.bf16.msra.mxu0 0
    %1339 = vmatprep.subr.bf16.mxu0 0
    %1340 = vmatpush1.bf16.msra.mxu0 0
    %1341 = vmatprep.subr.bf16.mxu0 0
    %1342 = vmatpush1.bf16.msra.mxu0 %v1320
    %1343 = vmatprep.subr.bf16.mxu0 0
    %1344 = vmatpush1.bf16.msra.mxu0 %v1319
    %1345 = vmatprep.subr.bf16.mxu0 0
    %1346 = vmatpush2.bf16.msra.mxu0 0
    %1347 = vmatprep.subr.bf16.mxu0 0
    %1348 = vmatpush2.bf16.msra.mxu0 0
    %1349 = vmatprep.subr.bf16.mxu0 0
    %1350 = vmatpush2.bf16.msra.mxu0 0
    %1351 = vmatprep.subr.bf16.mxu0 0
    %1352 = vmatpush2.bf16.msra.mxu0 0
    %1353 = vmatprep.subr.bf16.mxu0 0
    %1354 = vmatpush2.bf16.msra.mxu0 0
    %1355 = vmatprep.subr.bf16.mxu0 0
    %1356 = vmatpush2.bf16.msra.mxu0 0
    %1357 = vmatprep.subr.bf16.mxu0 0
    %1358 = vmatpush2.bf16.msra.mxu0 0
    %1359 = vmatprep.subr.bf16.mxu0 0
    %1360 = vmatpush2.bf16.msra.mxu0 0
    %1361 = vmatprep.mubr.bf16.mxu0 0
    %1362 = vmatmul.mubr.bf16.gmra.mxu0 %v1324
    %v1363 = vpop.f32.mrf.mxu0
    %v1364 = vadd.f32 0.0, %v1363
    %v1365 = vpop.f32.mrf.mxu0
    %v1366 = vpop.f32.mrf.mxu0
    %v1367 = vadd.f32 0.0, %v1366
    %v1368 = vpop.f32.mrf.mxu0
    %1369 = vmatprep.mubr.bf16.mxu0 0
    %1370 = vmatmul.mubr.bf16.gmra.mxu0 %v1327
    %v1371 = vpop.f32.mrf.mxu0
    %v1372 = vadd.f32 0.0, %v1371
    %v1373 = vpop.f32.mrf.mxu0
    %v1374 = vpop.f32.mrf.mxu0
    %v1375 = vadd.f32 0.0, %v1374
    %v1376 = vpop.f32.mrf.mxu0
    %1377 = vdwg.mxu0
    %v1382 = vunpack.c.l.b16 %v720
    %v1383 = vunpack.c.l.b16 %v721
    %v1384 = vunpack.c.l.b16 %v722
    %v1385 = vunpack.c.l.b16 %v723
    %v1386 = vpack.c.b16 %v1383, %v1382
    %v1387 = vpack.c.b16 %v1385, %v1384
    %v1391 = vsel %vm488, %v718, 0
    %v1394 = vsel %vm488, %v719, 0
    %1396 = vmatprep.subr.bf16.mxu0 0
    %1397 = vmatpush1.bf16.msra.mxu0 0
    %1398 = vmatprep.subr.bf16.mxu0 0
    %1399 = vmatpush1.bf16.msra.mxu0 0
    %1400 = vmatprep.subr.bf16.mxu0 0
    %1401 = vmatpush1.bf16.msra.mxu0 0
    %1402 = vmatprep.subr.bf16.mxu0 0
    %1403 = vmatpush1.bf16.msra.mxu0 0
    %1404 = vmatprep.subr.bf16.mxu0 0
    %1405 = vmatpush1.bf16.msra.mxu0 0
    %1406 = vmatprep.subr.bf16.mxu0 0
    %1407 = vmatpush1.bf16.msra.mxu0 0
    %1408 = vmatprep.subr.bf16.mxu0 0
    %1409 = vmatpush1.bf16.msra.mxu0 %v1387
    %1410 = vmatprep.subr.bf16.mxu0 0
    %1411 = vmatpush1.bf16.msra.mxu0 %v1386
    %1412 = vmatprep.subr.bf16.mxu0 0
    %1413 = vmatpush2.bf16.msra.mxu0 0
    %1414 = vmatprep.subr.bf16.mxu0 0
    %1415 = vmatpush2.bf16.msra.mxu0 0
    %1416 = vmatprep.subr.bf16.mxu0 0
    %1417 = vmatpush2.bf16.msra.mxu0 0
    %1418 = vmatprep.subr.bf16.mxu0 0
    %1419 = vmatpush2.bf16.msra.mxu0 0
    %1420 = vmatprep.subr.bf16.mxu0 0
    %1421 = vmatpush2.bf16.msra.mxu0 0
    %1422 = vmatprep.subr.bf16.mxu0 0
    %1423 = vmatpush2.bf16.msra.mxu0 0
    %1424 = vmatprep.subr.bf16.mxu0 0
    %1425 = vmatpush2.bf16.msra.mxu0 0
    %1426 = vmatprep.subr.bf16.mxu0 0
    %1427 = vmatpush2.bf16.msra.mxu0 0
    %1428 = vmatprep.mubr.bf16.mxu0 0
    %1429 = vmatmul.mubr.bf16.gmra.mxu0 %v1391
    %v1430 = vpop.f32.mrf.mxu0
    %v1431 = vadd.f32 %v1364, %v1430
    %v1432 = vpop.f32.mrf.mxu0
    %v1433 = vpop.f32.mrf.mxu0
    %v1434 = vadd.f32 %v1367, %v1433
    %v1435 = vpop.f32.mrf.mxu0
    %1436 = vmatprep.mubr.bf16.mxu0 0
    %1437 = vmatmul.mubr.bf16.gmra.mxu0 %v1394
    %v1438 = vpop.f32.mrf.mxu0
    %v1439 = vadd.f32 %v1372, %v1438
    %v1440 = vpop.f32.mrf.mxu0
    %v1441 = vpop.f32.mrf.mxu0
    %v1442 = vadd.f32 %v1375, %v1441
    %v1443 = vpop.f32.mrf.mxu0
    %1444 = vdwg.mxu0
    %s1445 = scalar_lea.vmem %s2, 128
    %v1446 = vld [vmem:[%s1445] sm:$0xf]
    %v1447 = vld [vmem:[%s1445 + $0x4] sm:$0xf]
    %v1448 = vld [vmem:[%s1445 + $0x8] sm:$0xf]
    %v1449 = vld [vmem:[%s1445 + $0xc] sm:$0xf]
    %v1450 = vld [vmem:[%s1445 + $0x10] sm:$0xf]
    %v1451 = vld [vmem:[%s1445 + $0x14] sm:$0xf]
    %v1452 = vld [vmem:[%s1445 + $0x18] sm:$0xf]
    %v1453 = vld [vmem:[%s1445 + $0x1c] sm:$0xf]
    %v1454 = vld [vmem:[%s1445 + $0x20] sm:$0xf]
    %v1455 = vld [vmem:[%s1445 + $0x24] sm:$0xf]
    %v1456 = vld [vmem:[%s1445 + $0x28] sm:$0xf]
    %v1457 = vld [vmem:[%s1445 + $0x2c] sm:$0xf]
    %v1458 = vld [vmem:[%s1445 + $0x30] sm:$0xf]
    %v1459 = vld [vmem:[%s1445 + $0x34] sm:$0xf]
    %v1460 = vld [vmem:[%s1445 + $0x38] sm:$0xf]
    %v1461 = vld [vmem:[%s1445 + $0x3c] sm:$0xf]
    %v1478 = vunpack.c.l.b16 %v1446
    %v1479 = vunpack.c.l.b16 %v1447
    %v1480 = vunpack.c.l.b16 %v1448
    %v1481 = vunpack.c.l.b16 %v1449
    %v1482 = vunpack.c.l.b16 %v1450
    %v1483 = vunpack.c.l.b16 %v1451
    %v1484 = vunpack.c.l.b16 %v1452
    %v1485 = vunpack.c.l.b16 %v1453
    %v1486 = vunpack.c.l.b16 %v1454
    %v1487 = vunpack.c.l.b16 %v1455
    %v1488 = vunpack.c.l.b16 %v1456
    %v1489 = vunpack.c.l.b16 %v1457
    %v1490 = vunpack.c.l.b16 %v1458
    %v1491 = vunpack.c.l.b16 %v1459
    %v1492 = vunpack.c.l.b16 %v1460
    %v1493 = vunpack.c.l.b16 %v1461
    %v1494 = vpack.c.b16 %v1479, %v1478
    %v1495 = vpack.c.b16 %v1481, %v1480
    %v1496 = vpack.c.b16 %v1483, %v1482
    %v1497 = vpack.c.b16 %v1485, %v1484
    %v1498 = vpack.c.b16 %v1487, %v1486
    %v1499 = vpack.c.b16 %v1489, %v1488
    %v1500 = vpack.c.b16 %v1491, %v1490
    %v1501 = vpack.c.b16 %v1493, %v1492
    %1510 = vmatprep.subr.bf16.mxu0 0
    %1511 = vmatpush1.bf16.msra.mxu0 %v1501
    %1512 = vmatprep.subr.bf16.mxu0 0
    %1513 = vmatpush1.bf16.msra.mxu0 %v1500
    %1514 = vmatprep.subr.bf16.mxu0 0
    %1515 = vmatpush1.bf16.msra.mxu0 %v1499
    %1516 = vmatprep.subr.bf16.mxu0 0
    %1517 = vmatpush1.bf16.msra.mxu0 %v1498
    %1518 = vmatprep.subr.bf16.mxu0 0
    %1519 = vmatpush1.bf16.msra.mxu0 %v1497
    %1520 = vmatprep.subr.bf16.mxu0 0
    %1521 = vmatpush1.bf16.msra.mxu0 %v1496
    %1522 = vmatprep.subr.bf16.mxu0 0
    %1523 = vmatpush1.bf16.msra.mxu0 %v1495
    %1524 = vmatprep.subr.bf16.mxu0 0
    %1525 = vmatpush1.bf16.msra.mxu0 %v1494
    %1526 = vmatprep.subr.bf16.mxu0 0
    %1527 = vmatpush2.bf16.msra.mxu0 0
    %1528 = vmatprep.subr.bf16.mxu0 0
    %1529 = vmatpush2.bf16.msra.mxu0 0
    %1530 = vmatprep.subr.bf16.mxu0 0
    %1531 = vmatpush2.bf16.msra.mxu0 0
    %1532 = vmatprep.subr.bf16.mxu0 0
    %1533 = vmatpush2.bf16.msra.mxu0 0
    %1534 = vmatprep.subr.bf16.mxu0 0
    %1535 = vmatpush2.bf16.msra.mxu0 0
    %1536 = vmatprep.subr.bf16.mxu0 0
    %1537 = vmatpush2.bf16.msra.mxu0 0
    %1538 = vmatprep.subr.bf16.mxu0 0
    %1539 = vmatpush2.bf16.msra.mxu0 0
    %1540 = vmatprep.subr.bf16.mxu0 0
    %1541 = vmatpush2.bf16.msra.mxu0 0
    %1542 = vmatprep.mubr.bf16.mxu0 0
    %1543 = vmatmul.mubr.bf16.gmra.mxu0 %v137
    %v1544 = vpop.f32.mrf.mxu0
    %v1545 = vadd.f32 0.0, %v1544
    %v1546 = vpop.f32.mrf.mxu0
    %v1547 = vpop.f32.mrf.mxu0
    %v1548 = vadd.f32 0.0, %v1547
    %v1549 = vpop.f32.mrf.mxu0
    %1550 = vmatprep.mubr.bf16.mxu0 0
    %1551 = vmatmul.mubr.bf16.gmra.mxu0 %v138
    %v1552 = vpop.f32.mrf.mxu0
    %v1553 = vadd.f32 0.0, %v1552
    %v1554 = vpop.f32.mrf.mxu0
    %v1555 = vpop.f32.mrf.mxu0
    %v1556 = vadd.f32 0.0, %v1555
    %v1557 = vpop.f32.mrf.mxu0
    %1558 = vdwg.mxu0
    %s1559 = scalar_lea.vmem %s3, 128
    %v1560 = vld [vmem:[%s1559] sm:$0xf]
    %v1561 = vld [vmem:[%s1559 + $0x4] sm:$0xf]
    %v1562 = vld [vmem:[%s1559 + $0x8] sm:$0xf]
    %v1563 = vld [vmem:[%s1559 + $0xc] sm:$0xf]
    %v1564 = vld [vmem:[%s1559 + $0x10] sm:$0xf]
    %v1565 = vld [vmem:[%s1559 + $0x14] sm:$0xf]
    %v1566 = vld [vmem:[%s1559 + $0x18] sm:$0xf]
    %v1567 = vld [vmem:[%s1559 + $0x1c] sm:$0xf]
    %v1568 = vld [vmem:[%s1559 + $0x20] sm:$0xf]
    %v1569 = vld [vmem:[%s1559 + $0x24] sm:$0xf]
    %v1570 = vld [vmem:[%s1559 + $0x28] sm:$0xf]
    %v1571 = vld [vmem:[%s1559 + $0x2c] sm:$0xf]
    %v1572 = vld [vmem:[%s1559 + $0x30] sm:$0xf]
    %v1573 = vld [vmem:[%s1559 + $0x34] sm:$0xf]
    %v1574 = vld [vmem:[%s1559 + $0x38] sm:$0xf]
    %v1575 = vld [vmem:[%s1559 + $0x3c] sm:$0xf]
    %v1592 = vunpack.c.l.b16 %v1560
    %v1593 = vunpack.c.l.b16 %v1561
    %v1594 = vunpack.c.l.b16 %v1562
    %v1595 = vunpack.c.l.b16 %v1563
    %v1596 = vunpack.c.l.b16 %v1564
    %v1597 = vunpack.c.l.b16 %v1565
    %v1598 = vunpack.c.l.b16 %v1566
    %v1599 = vunpack.c.l.b16 %v1567
    %v1600 = vunpack.c.l.b16 %v1568
    %v1601 = vunpack.c.l.b16 %v1569
    %v1602 = vunpack.c.l.b16 %v1570
    %v1603 = vunpack.c.l.b16 %v1571
    %v1604 = vunpack.c.l.b16 %v1572
    %v1605 = vunpack.c.l.b16 %v1573
    %v1606 = vunpack.c.l.b16 %v1574
    %v1607 = vunpack.c.l.b16 %v1575
    %v1608 = vpack.c.b16 %v1593, %v1592
    %v1609 = vpack.c.b16 %v1595, %v1594
    %v1610 = vpack.c.b16 %v1597, %v1596
    %v1611 = vpack.c.b16 %v1599, %v1598
    %v1612 = vpack.c.b16 %v1601, %v1600
    %v1613 = vpack.c.b16 %v1603, %v1602
    %v1614 = vpack.c.b16 %v1605, %v1604
    %v1615 = vpack.c.b16 %v1607, %v1606
    %1624 = vmatprep.subr.bf16.mxu0 0
    %1625 = vmatpush1.bf16.msra.mxu0 %v1615
    %1626 = vmatprep.subr.bf16.mxu0 0
    %1627 = vmatpush1.bf16.msra.mxu0 %v1614
    %1628 = vmatprep.subr.bf16.mxu0 0
    %1629 = vmatpush1.bf16.msra.mxu0 %v1613
    %1630 = vmatprep.subr.bf16.mxu0 0
    %1631 = vmatpush1.bf16.msra.mxu0 %v1612
    %1632 = vmatprep.subr.bf16.mxu0 0
    %1633 = vmatpush1.bf16.msra.mxu0 %v1611
    %1634 = vmatprep.subr.bf16.mxu0 0
    %1635 = vmatpush1.bf16.msra.mxu0 %v1610
    %1636 = vmatprep.subr.bf16.mxu0 0
    %1637 = vmatpush1.bf16.msra.mxu0 %v1609
    %1638 = vmatprep.subr.bf16.mxu0 0
    %1639 = vmatpush1.bf16.msra.mxu0 %v1608
    %1640 = vmatprep.subr.bf16.mxu0 0
    %1641 = vmatpush2.bf16.msra.mxu0 0
    %1642 = vmatprep.subr.bf16.mxu0 0
    %1643 = vmatpush2.bf16.msra.mxu0 0
    %1644 = vmatprep.subr.bf16.mxu0 0
    %1645 = vmatpush2.bf16.msra.mxu0 0
    %1646 = vmatprep.subr.bf16.mxu0 0
    %1647 = vmatpush2.bf16.msra.mxu0 0
    %1648 = vmatprep.subr.bf16.mxu0 0
    %1649 = vmatpush2.bf16.msra.mxu0 0
    %1650 = vmatprep.subr.bf16.mxu0 0
    %1651 = vmatpush2.bf16.msra.mxu0 0
    %1652 = vmatprep.subr.bf16.mxu0 0
    %1653 = vmatpush2.bf16.msra.mxu0 0
    %1654 = vmatprep.subr.bf16.mxu0 0
    %1655 = vmatpush2.bf16.msra.mxu0 0
    %1656 = vmatprep.mubr.bf16.mxu0 0
    %1657 = vmatmul.mubr.bf16.gmra.mxu0 %v137
    %v1658 = vpop.f32.mrf.mxu0
    %v1659 = vadd.f32 0.0, %v1658
    %v1660 = vpop.f32.mrf.mxu0
    %v1661 = vpop.f32.mrf.mxu0
    %v1662 = vadd.f32 0.0, %v1661
    %v1663 = vpop.f32.mrf.mxu0
    %1664 = vmatprep.mubr.bf16.mxu0 0
    %1665 = vmatmul.mubr.bf16.gmra.mxu0 %v138
    %v1666 = vpop.f32.mrf.mxu0
    %v1667 = vadd.f32 0.0, %v1666
    %v1668 = vpop.f32.mrf.mxu0
    %v1669 = vpop.f32.mrf.mxu0
    %v1670 = vadd.f32 0.0, %v1669
    %v1671 = vpop.f32.mrf.mxu0
    %1672 = vdwg.mxu0
    %s1673 = scalar_lea.vmem %s4, 128
    %v1674 = vld [vmem:[%s1673] sm:$0xf]
    %v1675 = vld [vmem:[%s1673 + $0x4] sm:$0xf]
    %v1676 = vld [vmem:[%s1673 + $0x8] sm:$0xf]
    %v1677 = vld [vmem:[%s1673 + $0xc] sm:$0xf]
    %v1678 = vld [vmem:[%s1673 + $0x10] sm:$0xf]
    %v1679 = vld [vmem:[%s1673 + $0x14] sm:$0xf]
    %v1680 = vld [vmem:[%s1673 + $0x18] sm:$0xf]
    %v1681 = vld [vmem:[%s1673 + $0x1c] sm:$0xf]
    %v1682 = vld [vmem:[%s1673 + $0x20] sm:$0xf]
    %v1683 = vld [vmem:[%s1673 + $0x24] sm:$0xf]
    %v1684 = vld [vmem:[%s1673 + $0x28] sm:$0xf]
    %v1685 = vld [vmem:[%s1673 + $0x2c] sm:$0xf]
    %v1686 = vld [vmem:[%s1673 + $0x30] sm:$0xf]
    %v1687 = vld [vmem:[%s1673 + $0x34] sm:$0xf]
    %v1688 = vld [vmem:[%s1673 + $0x38] sm:$0xf]
    %v1689 = vld [vmem:[%s1673 + $0x3c] sm:$0xf]
    %v1706 = vunpack.c.l.b16 %v1674
    %v1707 = vunpack.c.l.b16 %v1675
    %v1708 = vunpack.c.l.b16 %v1676
    %v1709 = vunpack.c.l.b16 %v1677
    %v1710 = vunpack.c.l.b16 %v1678
    %v1711 = vunpack.c.l.b16 %v1679
    %v1712 = vunpack.c.l.b16 %v1680
    %v1713 = vunpack.c.l.b16 %v1681
    %v1714 = vunpack.c.l.b16 %v1682
    %v1715 = vunpack.c.l.b16 %v1683
    %v1716 = vunpack.c.l.b16 %v1684
    %v1717 = vunpack.c.l.b16 %v1685
    %v1718 = vunpack.c.l.b16 %v1686
    %v1719 = vunpack.c.l.b16 %v1687
    %v1720 = vunpack.c.l.b16 %v1688
    %v1721 = vunpack.c.l.b16 %v1689
    %v1722 = vpack.c.b16 %v1707, %v1706
    %v1723 = vpack.c.b16 %v1709, %v1708
    %v1724 = vpack.c.b16 %v1711, %v1710
    %v1725 = vpack.c.b16 %v1713, %v1712
    %v1726 = vpack.c.b16 %v1715, %v1714
    %v1727 = vpack.c.b16 %v1717, %v1716
    %v1728 = vpack.c.b16 %v1719, %v1718
    %v1729 = vpack.c.b16 %v1721, %v1720
    %1738 = vmatprep.subr.bf16.mxu0 0
    %1739 = vmatpush1.bf16.msra.mxu0 %v1729
    %1740 = vmatprep.subr.bf16.mxu0 0
    %1741 = vmatpush1.bf16.msra.mxu0 %v1728
    %1742 = vmatprep.subr.bf16.mxu0 0
    %1743 = vmatpush1.bf16.msra.mxu0 %v1727
    %1744 = vmatprep.subr.bf16.mxu0 0
    %1745 = vmatpush1.bf16.msra.mxu0 %v1726
    %1746 = vmatprep.subr.bf16.mxu0 0
    %1747 = vmatpush1.bf16.msra.mxu0 %v1725
    %1748 = vmatprep.subr.bf16.mxu0 0
    %1749 = vmatpush1.bf16.msra.mxu0 %v1724
    %1750 = vmatprep.subr.bf16.mxu0 0
    %1751 = vmatpush1.bf16.msra.mxu0 %v1723
    %1752 = vmatprep.subr.bf16.mxu0 0
    %1753 = vmatpush1.bf16.msra.mxu0 %v1722
    %1754 = vmatprep.subr.bf16.mxu0 0
    %1755 = vmatpush2.bf16.msra.mxu0 0
    %1756 = vmatprep.subr.bf16.mxu0 0
    %1757 = vmatpush2.bf16.msra.mxu0 0
    %1758 = vmatprep.subr.bf16.mxu0 0
    %1759 = vmatpush2.bf16.msra.mxu0 0
    %1760 = vmatprep.subr.bf16.mxu0 0
    %1761 = vmatpush2.bf16.msra.mxu0 0
    %1762 = vmatprep.subr.bf16.mxu0 0
    %1763 = vmatpush2.bf16.msra.mxu0 0
    %1764 = vmatprep.subr.bf16.mxu0 0
    %1765 = vmatpush2.bf16.msra.mxu0 0
    %1766 = vmatprep.subr.bf16.mxu0 0
    %1767 = vmatpush2.bf16.msra.mxu0 0
    %1768 = vmatprep.subr.bf16.mxu0 0
    %1769 = vmatpush2.bf16.msra.mxu0 0
    %1770 = vmatprep.mubr.bf16.mxu0 0
    %1771 = vmatmul.mubr.bf16.gmra.mxu0 %v137
    %v1772 = vpop.f32.mrf.mxu0
    %v1773 = vadd.f32 0.0, %v1772
    %v1774 = vpop.f32.mrf.mxu0
    %v1775 = vpop.f32.mrf.mxu0
    %v1776 = vadd.f32 0.0, %v1775
    %v1777 = vpop.f32.mrf.mxu0
    %1778 = vmatprep.mubr.bf16.mxu0 0
    %1779 = vmatmul.mubr.bf16.gmra.mxu0 %v138
    %v1780 = vpop.f32.mrf.mxu0
    %v1781 = vadd.f32 0.0, %v1780
    %v1782 = vpop.f32.mrf.mxu0
    %v1783 = vpop.f32.mrf.mxu0
    %v1784 = vadd.f32 0.0, %v1783
    %v1785 = vpop.f32.mrf.mxu0
    %1786 = vdwg.mxu0
    %v1787 = vmul.f32 %v1545, 0.17677669
    %v1788 = vmul.f32 %v1548, 0.17677669
    %v1789 = vmul.f32 %v1553, 0.17677669
    %v1790 = vmul.f32 %v1556, 0.17677669
    %v1791 = vpack.c.bf16 %v1788, %v1787
    %v1792 = vpack.c.bf16 %v1790, %v1789
    %v1793 = vpack.c.bf16 %v1662, %v1659
    %v1794 = vpack.c.bf16 %v1670, %v1667
    %v1795 = vpack.c.bf16 %v1776, %v1773
    %v1796 = vpack.c.bf16 %v1784, %v1781
    %v1798 = vsel %vm488, %v1791, 0
    %v1801 = vsel %vm488, %v1793, 0
    %1803 = vmatprep.subr.bf16.mxu0 0
    %1804 = vmatpush1.bf16.xpose.msra.mxu0 0
    %1805 = vmatprep.subr.bf16.mxu0 0
    %1806 = vmatpush1.bf16.xpose.msra.mxu0 0
    %1807 = vmatprep.subr.bf16.mxu0 0
    %1808 = vmatpush1.bf16.xpose.msra.mxu0 0
    %1809 = vmatprep.subr.bf16.mxu0 0
    %1810 = vmatpush1.bf16.xpose.msra.mxu0 0
    %1811 = vmatprep.subr.bf16.mxu0 0
    %1812 = vmatpush1.bf16.xpose.msra.mxu0 0
    %1813 = vmatprep.subr.bf16.mxu0 0
    %1814 = vmatpush1.bf16.xpose.msra.mxu0 0
    %1815 = vmatprep.subr.bf16.mxu0 0
    %1816 = vmatpush1.bf16.xpose.msra.mxu0 0
    %1817 = vmatprep.subr.bf16.mxu0 0
    %1818 = vmatpush1.bf16.xpose.msra.mxu0 %v1801
    %1819 = vmatprep.subr.bf16.mxu0 0
    %1820 = vmatpush2.bf16.xpose.msra.mxu0 0
    %1821 = vmatprep.subr.bf16.mxu0 0
    %1822 = vmatpush2.bf16.xpose.msra.mxu0 0
    %1823 = vmatprep.subr.bf16.mxu0 0
    %1824 = vmatpush2.bf16.xpose.msra.mxu0 0
    %1825 = vmatprep.subr.bf16.mxu0 0
    %1826 = vmatpush2.bf16.xpose.msra.mxu0 0
    %1827 = vmatprep.subr.bf16.mxu0 0
    %1828 = vmatpush2.bf16.xpose.msra.mxu0 0
    %1829 = vmatprep.subr.bf16.mxu0 0
    %1830 = vmatpush2.bf16.xpose.msra.mxu0 0
    %1831 = vmatprep.subr.bf16.mxu0 0
    %1832 = vmatpush2.bf16.xpose.msra.mxu0 0
    %1833 = vmatprep.subr.bf16.mxu0 0
    %1834 = vmatpush2.bf16.xpose.msra.mxu0 0
    %1835 = vmatprep.mubr.bf16.mxu0 0
    %1836 = vmatmul.mubr.bf16.gmra.mxu0 %v1798
    %v1837 = vpop.f32.mrf.mxu0
    %v1838 = vadd.f32 %v65, %v1837
    %v1839 = vpop.f32.mrf.mxu0
    %v1840 = vpop.f32.mrf.mxu0
    %v1841 = vadd.f32 %v65, %v1840
    %v1842 = vpop.f32.mrf.mxu0
    %1843 = vdwg.mxu0
    %v1844 = vsel %vm536, %v1838, -inf
    %1845 = vmax.xlane.f32.xlu0 %v1844
    %v1846 = vpop.xlane.xlu0 %1845
    %v1847 = vsel %vm536, %v1841, -inf
    %1848 = vmax.xlane.f32.xlu0 %v1847
    %v1849 = vpop.xlane.xlu0 %1848
    %v1850 = vsub.f32 %v1838, %v1846
    %v1851 = vsub.f32 %v1841, %v1849
    %v1852 = vmul.f32 %v1850, 1.442695
    %v1853 = vpow.pop %v1852
    %v1854 = vmul.f32 %v1851, 1.442695
    %v1855 = vpow.pop %v1854
    %v1856 = vsel %vm536, %v1853, 0.0
    %1857 = vadd.xlane.f32.xlu0 %v1856
    %v1858 = vpop.xlane.xlu0 %1857
    %v1859 = vsel %vm536, %v1855, 0.0
    %1860 = vadd.xlane.f32.xlu0 %v1859
    %v1861 = vpop.xlane.xlu0 %1860
    %v1862 = vrcp.pop %v1858
    %v1863 = vrcp.pop %v1861
    %v1864 = vmul.f32 %v1853, %v1862
    %v1865 = vmul.f32 %v1855, %v1863
    %v1866 = vpack.c.bf16 %v1865, %v1864
    %v1868 = vsel %vm536, %v1866, 0
    %1870 = vmatprep.subr.bf16.mxu0 0
    %1871 = vmatpush1.bf16.msra.mxu0 0
    %1872 = vmatprep.subr.bf16.mxu0 0
    %1873 = vmatpush1.bf16.msra.mxu0 0
    %1874 = vmatprep.subr.bf16.mxu0 0
    %1875 = vmatpush1.bf16.msra.mxu0 0
    %1876 = vmatprep.subr.bf16.mxu0 0
    %1877 = vmatpush1.bf16.msra.mxu0 0
    %1878 = vmatprep.subr.bf16.mxu0 0
    %1879 = vmatpush1.bf16.msra.mxu0 0
    %1880 = vmatprep.subr.bf16.mxu0 0
    %1881 = vmatpush1.bf16.msra.mxu0 0
    %1882 = vmatprep.subr.bf16.mxu0 0
    %1883 = vmatpush1.bf16.msra.mxu0 0
    %1884 = vmatprep.subr.bf16.mxu0 0
    %1885 = vmatpush1.bf16.msra.mxu0 %v1795
    %1886 = vmatprep.subr.bf16.mxu0 0
    %1887 = vmatpush2.bf16.msra.mxu0 0
    %1888 = vmatprep.subr.bf16.mxu0 0
    %1889 = vmatpush2.bf16.msra.mxu0 0
    %1890 = vmatprep.subr.bf16.mxu0 0
    %1891 = vmatpush2.bf16.msra.mxu0 0
    %1892 = vmatprep.subr.bf16.mxu0 0
    %1893 = vmatpush2.bf16.msra.mxu0 0
    %1894 = vmatprep.subr.bf16.mxu0 0
    %1895 = vmatpush2.bf16.msra.mxu0 0
    %1896 = vmatprep.subr.bf16.mxu0 0
    %1897 = vmatpush2.bf16.msra.mxu0 0
    %1898 = vmatprep.subr.bf16.mxu0 0
    %1899 = vmatpush2.bf16.msra.mxu0 0
    %1900 = vmatprep.subr.bf16.mxu0 0
    %1901 = vmatpush2.bf16.msra.mxu0 0
    %1902 = vmatprep.mubr.bf16.mxu0 0
    %1903 = vmatmul.mubr.bf16.gmra.mxu0 %v1868
    %v1904 = vpop.f32.mrf.mxu0
    %v1905 = vadd.f32 0.0, %v1904
    %v1906 = vpop.f32.mrf.mxu0
    %v1907 = vpop.f32.mrf.mxu0
    %v1908 = vadd.f32 0.0, %v1907
    %v1909 = vpop.f32.mrf.mxu0
    %1910 = vdwg.mxu0
    %v1912 = vsel %vm488, %v1792, 0
    %v1915 = vsel %vm488, %v1794, 0
    %1917 = vmatprep.subr.bf16.mxu0 0
    %1918 = vmatpush1.bf16.xpose.msra.mxu0 0
    %1919 = vmatprep.subr.bf16.mxu0 0
    %1920 = vmatpush1.bf16.xpose.msra.mxu0 0
    %1921 = vmatprep.subr.bf16.mxu0 0
    %1922 = vmatpush1.bf16.xpose.msra.mxu0 0
    %1923 = vmatprep.subr.bf16.mxu0 0
    %1924 = vmatpush1.bf16.xpose.msra.mxu0 0
    %1925 = vmatprep.subr.bf16.mxu0 0
    %1926 = vmatpush1.bf16.xpose.msra.mxu0 0
    %1927 = vmatprep.subr.bf16.mxu0 0
    %1928 = vmatpush1.bf16.xpose.msra.mxu0 0
    %1929 = vmatprep.subr.bf16.mxu0 0
    %1930 = vmatpush1.bf16.xpose.msra.mxu0 0
    %1931 = vmatprep.subr.bf16.mxu0 0
    %1932 = vmatpush1.bf16.xpose.msra.mxu0 %v1915
    %1933 = vmatprep.subr.bf16.mxu0 0
    %1934 = vmatpush2.bf16.xpose.msra.mxu0 0
    %1935 = vmatprep.subr.bf16.mxu0 0
    %1936 = vmatpush2.bf16.xpose.msra.mxu0 0
    %1937 = vmatprep.subr.bf16.mxu0 0
    %1938 = vmatpush2.bf16.xpose.msra.mxu0 0
    %1939 = vmatprep.subr.bf16.mxu0 0
    %1940 = vmatpush2.bf16.xpose.msra.mxu0 0
    %1941 = vmatprep.subr.bf16.mxu0 0
    %1942 = vmatpush2.bf16.xpose.msra.mxu0 0
    %1943 = vmatprep.subr.bf16.mxu0 0
    %1944 = vmatpush2.bf16.xpose.msra.mxu0 0
    %1945 = vmatprep.subr.bf16.mxu0 0
    %1946 = vmatpush2.bf16.xpose.msra.mxu0 0
    %1947 = vmatprep.subr.bf16.mxu0 0
    %1948 = vmatpush2.bf16.xpose.msra.mxu0 0
    %1949 = vmatprep.mubr.bf16.mxu0 0
    %1950 = vmatmul.mubr.bf16.gmra.mxu0 %v1912
    %v1951 = vpop.f32.mrf.mxu0
    %v1952 = vadd.f32 %v69, %v1951
    %v1953 = vpop.f32.mrf.mxu0
    %v1954 = vpop.f32.mrf.mxu0
    %v1955 = vadd.f32 %v69, %v1954
    %v1956 = vpop.f32.mrf.mxu0
    %1957 = vdwg.mxu0
    %v1958 = vsel %vm536, %v1952, -inf
    %1959 = vmax.xlane.f32.xlu0 %v1958
    %v1960 = vpop.xlane.xlu0 %1959
    %v1961 = vsel %vm536, %v1955, -inf
    %1962 = vmax.xlane.f32.xlu0 %v1961
    %v1963 = vpop.xlane.xlu0 %1962
    %v1964 = vsub.f32 %v1952, %v1960
    %v1965 = vsub.f32 %v1955, %v1963
    %v1966 = vmul.f32 %v1964, 1.442695
    %v1967 = vpow.pop %v1966
    %v1968 = vmul.f32 %v1965, 1.442695
    %v1969 = vpow.pop %v1968
    %v1970 = vsel %vm536, %v1967, 0.0
    %1971 = vadd.xlane.f32.xlu0 %v1970
    %v1972 = vpop.xlane.xlu0 %1971
    %v1973 = vsel %vm536, %v1969, 0.0
    %1974 = vadd.xlane.f32.xlu0 %v1973
    %v1975 = vpop.xlane.xlu0 %1974
    %v1976 = vrcp.pop %v1972
    %v1977 = vrcp.pop %v1975
    %v1978 = vmul.f32 %v1967, %v1976
    %v1979 = vmul.f32 %v1969, %v1977
    %v1980 = vpack.c.bf16 %v1979, %v1978
    %v1982 = vsel %vm536, %v1980, 0
    %1984 = vmatprep.subr.bf16.mxu0 0
    %1985 = vmatpush1.bf16.msra.mxu0 0
    %1986 = vmatprep.subr.bf16.mxu0 0
    %1987 = vmatpush1.bf16.msra.mxu0 0
    %1988 = vmatprep.subr.bf16.mxu0 0
    %1989 = vmatpush1.bf16.msra.mxu0 0
    %1990 = vmatprep.subr.bf16.mxu0 0
    %1991 = vmatpush1.bf16.msra.mxu0 0
    %1992 = vmatprep.subr.bf16.mxu0 0
    %1993 = vmatpush1.bf16.msra.mxu0 0
    %1994 = vmatprep.subr.bf16.mxu0 0
    %1995 = vmatpush1.bf16.msra.mxu0 0
    %1996 = vmatprep.subr.bf16.mxu0 0
    %1997 = vmatpush1.bf16.msra.mxu0 0
    %1998 = vmatprep.subr.bf16.mxu0 0
    %1999 = vmatpush1.bf16.msra.mxu0 %v1796
    %2000 = vmatprep.subr.bf16.mxu0 0
    %2001 = vmatpush2.bf16.msra.mxu0 0
    %2002 = vmatprep.subr.bf16.mxu0 0
    %2003 = vmatpush2.bf16.msra.mxu0 0
    %2004 = vmatprep.subr.bf16.mxu0 0
    %2005 = vmatpush2.bf16.msra.mxu0 0
    %2006 = vmatprep.subr.bf16.mxu0 0
    %2007 = vmatpush2.bf16.msra.mxu0 0
    %2008 = vmatprep.subr.bf16.mxu0 0
    %2009 = vmatpush2.bf16.msra.mxu0 0
    %2010 = vmatprep.subr.bf16.mxu0 0
    %2011 = vmatpush2.bf16.msra.mxu0 0
    %2012 = vmatprep.subr.bf16.mxu0 0
    %2013 = vmatpush2.bf16.msra.mxu0 0
    %2014 = vmatprep.subr.bf16.mxu0 0
    %2015 = vmatpush2.bf16.msra.mxu0 0
    %2016 = vmatprep.mubr.bf16.mxu0 0
    %2017 = vmatmul.mubr.bf16.gmra.mxu0 %v1982
    %v2018 = vpop.f32.mrf.mxu0
    %v2019 = vadd.f32 0.0, %v2018
    %v2020 = vpop.f32.mrf.mxu0
    %v2021 = vpop.f32.mrf.mxu0
    %v2022 = vadd.f32 0.0, %v2021
    %v2023 = vpop.f32.mrf.mxu0
    %2024 = vdwg.mxu0
    %v2025 = vpack.c.bf16 %v1908, %v1905
    %v2026 = vpack.c.bf16 %v2022, %v2019
    %s2027 = scalar_lea.vmem %s5, 32
    %v2028 = vld [vmem:[%s2027] sm:$0xf]
    %v2029 = vld [vmem:[%s2027 + $0x4] sm:$0xf]
    %v2030 = vld [vmem:[%s2027 + $0x8] sm:$0xf]
    %v2031 = vld [vmem:[%s2027 + $0xc] sm:$0xf]
    %v2036 = vunpack.c.l.b16 %v2028
    %v2037 = vunpack.c.l.b16 %v2029
    %v2038 = vunpack.c.l.b16 %v2030
    %v2039 = vunpack.c.l.b16 %v2031
    %v2040 = vpack.c.b16 %v2037, %v2036
    %v2041 = vpack.c.b16 %v2039, %v2038
    %v2045 = vsel %vm488, %v2025, 0
    %v2048 = vsel %vm488, %v2026, 0
    %2050 = vmatprep.subr.bf16.mxu0 0
    %2051 = vmatpush1.bf16.msra.mxu0 0
    %2052 = vmatprep.subr.bf16.mxu0 0
    %2053 = vmatpush1.bf16.msra.mxu0 0
    %2054 = vmatprep.subr.bf16.mxu0 0
    %2055 = vmatpush1.bf16.msra.mxu0 0
    %2056 = vmatprep.subr.bf16.mxu0 0
    %2057 = vmatpush1.bf16.msra.mxu0 0
    %2058 = vmatprep.subr.bf16.mxu0 0
    %2059 = vmatpush1.bf16.msra.mxu0 0
    %2060 = vmatprep.subr.bf16.mxu0 0
    %2061 = vmatpush1.bf16.msra.mxu0 0
    %2062 = vmatprep.subr.bf16.mxu0 0
    %2063 = vmatpush1.bf16.msra.mxu0 %v2041
    %2064 = vmatprep.subr.bf16.mxu0 0
    %2065 = vmatpush1.bf16.msra.mxu0 %v2040
    %2066 = vmatprep.subr.bf16.mxu0 0
    %2067 = vmatpush2.bf16.msra.mxu0 0
    %2068 = vmatprep.subr.bf16.mxu0 0
    %2069 = vmatpush2.bf16.msra.mxu0 0
    %2070 = vmatprep.subr.bf16.mxu0 0
    %2071 = vmatpush2.bf16.msra.mxu0 0
    %2072 = vmatprep.subr.bf16.mxu0 0
    %2073 = vmatpush2.bf16.msra.mxu0 0
    %2074 = vmatprep.subr.bf16.mxu0 0
    %2075 = vmatpush2.bf16.msra.mxu0 0
    %2076 = vmatprep.subr.bf16.mxu0 0
    %2077 = vmatpush2.bf16.msra.mxu0 0
    %2078 = vmatprep.subr.bf16.mxu0 0
    %2079 = vmatpush2.bf16.msra.mxu0 0
    %2080 = vmatprep.subr.bf16.mxu0 0
    %2081 = vmatpush2.bf16.msra.mxu0 0
    %2082 = vmatprep.mubr.bf16.mxu0 0
    %2083 = vmatmul.mubr.bf16.gmra.mxu0 %v2045
    %v2084 = vpop.f32.mrf.mxu0
    %v2085 = vadd.f32 0.0, %v2084
    %v2086 = vpop.f32.mrf.mxu0
    %v2087 = vpop.f32.mrf.mxu0
    %v2088 = vadd.f32 0.0, %v2087
    %v2089 = vpop.f32.mrf.mxu0
    %2090 = vmatprep.mubr.bf16.mxu0 0
    %2091 = vmatmul.mubr.bf16.gmra.mxu0 %v2048
    %v2092 = vpop.f32.mrf.mxu0
    %v2093 = vadd.f32 0.0, %v2092
    %v2094 = vpop.f32.mrf.mxu0
    %v2095 = vpop.f32.mrf.mxu0
    %v2096 = vadd.f32 0.0, %v2095
    %v2097 = vpop.f32.mrf.mxu0
    %2098 = vdwg.mxu0
    %v2099 = vadd.f32 %v1431, %v2085
    %v2100 = vadd.f32 %v1434, %v2088
    %v2101 = vadd.f32 %v1439, %v2093
    %v2102 = vadd.f32 %v1442, %v2096
    %s2103 = scalar_lea.vmem %s2, 192
    %v2104 = vld [vmem:[%s2103] sm:$0xf]
    %v2105 = vld [vmem:[%s2103 + $0x4] sm:$0xf]
    %v2106 = vld [vmem:[%s2103 + $0x8] sm:$0xf]
    %v2107 = vld [vmem:[%s2103 + $0xc] sm:$0xf]
    %v2108 = vld [vmem:[%s2103 + $0x10] sm:$0xf]
    %v2109 = vld [vmem:[%s2103 + $0x14] sm:$0xf]
    %v2110 = vld [vmem:[%s2103 + $0x18] sm:$0xf]
    %v2111 = vld [vmem:[%s2103 + $0x1c] sm:$0xf]
    %v2112 = vld [vmem:[%s2103 + $0x20] sm:$0xf]
    %v2113 = vld [vmem:[%s2103 + $0x24] sm:$0xf]
    %v2114 = vld [vmem:[%s2103 + $0x28] sm:$0xf]
    %v2115 = vld [vmem:[%s2103 + $0x2c] sm:$0xf]
    %v2116 = vld [vmem:[%s2103 + $0x30] sm:$0xf]
    %v2117 = vld [vmem:[%s2103 + $0x34] sm:$0xf]
    %v2118 = vld [vmem:[%s2103 + $0x38] sm:$0xf]
    %v2119 = vld [vmem:[%s2103 + $0x3c] sm:$0xf]
    %v2136 = vunpack.c.l.b16 %v2104
    %v2137 = vunpack.c.l.b16 %v2105
    %v2138 = vunpack.c.l.b16 %v2106
    %v2139 = vunpack.c.l.b16 %v2107
    %v2140 = vunpack.c.l.b16 %v2108
    %v2141 = vunpack.c.l.b16 %v2109
    %v2142 = vunpack.c.l.b16 %v2110
    %v2143 = vunpack.c.l.b16 %v2111
    %v2144 = vunpack.c.l.b16 %v2112
    %v2145 = vunpack.c.l.b16 %v2113
    %v2146 = vunpack.c.l.b16 %v2114
    %v2147 = vunpack.c.l.b16 %v2115
    %v2148 = vunpack.c.l.b16 %v2116
    %v2149 = vunpack.c.l.b16 %v2117
    %v2150 = vunpack.c.l.b16 %v2118
    %v2151 = vunpack.c.l.b16 %v2119
    %v2152 = vpack.c.b16 %v2137, %v2136
    %v2153 = vpack.c.b16 %v2139, %v2138
    %v2154 = vpack.c.b16 %v2141, %v2140
    %v2155 = vpack.c.b16 %v2143, %v2142
    %v2156 = vpack.c.b16 %v2145, %v2144
    %v2157 = vpack.c.b16 %v2147, %v2146
    %v2158 = vpack.c.b16 %v2149, %v2148
    %v2159 = vpack.c.b16 %v2151, %v2150
    %2168 = vmatprep.subr.bf16.mxu0 0
    %2169 = vmatpush1.bf16.msra.mxu0 %v2159
    %2170 = vmatprep.subr.bf16.mxu0 0
    %2171 = vmatpush1.bf16.msra.mxu0 %v2158
    %2172 = vmatprep.subr.bf16.mxu0 0
    %2173 = vmatpush1.bf16.msra.mxu0 %v2157
    %2174 = vmatprep.subr.bf16.mxu0 0
    %2175 = vmatpush1.bf16.msra.mxu0 %v2156
    %2176 = vmatprep.subr.bf16.mxu0 0
    %2177 = vmatpush1.bf16.msra.mxu0 %v2155
    %2178 = vmatprep.subr.bf16.mxu0 0
    %2179 = vmatpush1.bf16.msra.mxu0 %v2154
    %2180 = vmatprep.subr.bf16.mxu0 0
    %2181 = vmatpush1.bf16.msra.mxu0 %v2153
    %2182 = vmatprep.subr.bf16.mxu0 0
    %2183 = vmatpush1.bf16.msra.mxu0 %v2152
    %2184 = vmatprep.subr.bf16.mxu0 0
    %2185 = vmatpush2.bf16.msra.mxu0 0
    %2186 = vmatprep.subr.bf16.mxu0 0
    %2187 = vmatpush2.bf16.msra.mxu0 0
    %2188 = vmatprep.subr.bf16.mxu0 0
    %2189 = vmatpush2.bf16.msra.mxu0 0
    %2190 = vmatprep.subr.bf16.mxu0 0
    %2191 = vmatpush2.bf16.msra.mxu0 0
    %2192 = vmatprep.subr.bf16.mxu0 0
    %2193 = vmatpush2.bf16.msra.mxu0 0
    %2194 = vmatprep.subr.bf16.mxu0 0
    %2195 = vmatpush2.bf16.msra.mxu0 0
    %2196 = vmatprep.subr.bf16.mxu0 0
    %2197 = vmatpush2.bf16.msra.mxu0 0
    %2198 = vmatprep.subr.bf16.mxu0 0
    %2199 = vmatpush2.bf16.msra.mxu0 0
    %2200 = vmatprep.mubr.bf16.mxu0 0
    %2201 = vmatmul.mubr.bf16.gmra.mxu0 %v137
    %v2202 = vpop.f32.mrf.mxu0
    %v2203 = vadd.f32 0.0, %v2202
    %v2204 = vpop.f32.mrf.mxu0
    %v2205 = vpop.f32.mrf.mxu0
    %v2206 = vadd.f32 0.0, %v2205
    %v2207 = vpop.f32.mrf.mxu0
    %2208 = vmatprep.mubr.bf16.mxu0 0
    %2209 = vmatmul.mubr.bf16.gmra.mxu0 %v138
    %v2210 = vpop.f32.mrf.mxu0
    %v2211 = vadd.f32 0.0, %v2210
    %v2212 = vpop.f32.mrf.mxu0
    %v2213 = vpop.f32.mrf.mxu0
    %v2214 = vadd.f32 0.0, %v2213
    %v2215 = vpop.f32.mrf.mxu0
    %2216 = vdwg.mxu0
    %s2217 = scalar_lea.vmem %s3, 192
    %v2218 = vld [vmem:[%s2217] sm:$0xf]
    %v2219 = vld [vmem:[%s2217 + $0x4] sm:$0xf]
    %v2220 = vld [vmem:[%s2217 + $0x8] sm:$0xf]
    %v2221 = vld [vmem:[%s2217 + $0xc] sm:$0xf]
    %v2222 = vld [vmem:[%s2217 + $0x10] sm:$0xf]
    %v2223 = vld [vmem:[%s2217 + $0x14] sm:$0xf]
    %v2224 = vld [vmem:[%s2217 + $0x18] sm:$0xf]
    %v2225 = vld [vmem:[%s2217 + $0x1c] sm:$0xf]
    %v2226 = vld [vmem:[%s2217 + $0x20] sm:$0xf]
    %v2227 = vld [vmem:[%s2217 + $0x24] sm:$0xf]
    %v2228 = vld [vmem:[%s2217 + $0x28] sm:$0xf]
    %v2229 = vld [vmem:[%s2217 + $0x2c] sm:$0xf]
    %v2230 = vld [vmem:[%s2217 + $0x30] sm:$0xf]
    %v2231 = vld [vmem:[%s2217 + $0x34] sm:$0xf]
    %v2232 = vld [vmem:[%s2217 + $0x38] sm:$0xf]
    %v2233 = vld [vmem:[%s2217 + $0x3c] sm:$0xf]
    %v2250 = vunpack.c.l.b16 %v2218
    %v2251 = vunpack.c.l.b16 %v2219
    %v2252 = vunpack.c.l.b16 %v2220
    %v2253 = vunpack.c.l.b16 %v2221
    %v2254 = vunpack.c.l.b16 %v2222
    %v2255 = vunpack.c.l.b16 %v2223
    %v2256 = vunpack.c.l.b16 %v2224
    %v2257 = vunpack.c.l.b16 %v2225
    %v2258 = vunpack.c.l.b16 %v2226
    %v2259 = vunpack.c.l.b16 %v2227
    %v2260 = vunpack.c.l.b16 %v2228
    %v2261 = vunpack.c.l.b16 %v2229
    %v2262 = vunpack.c.l.b16 %v2230
    %v2263 = vunpack.c.l.b16 %v2231
    %v2264 = vunpack.c.l.b16 %v2232
    %v2265 = vunpack.c.l.b16 %v2233
    %v2266 = vpack.c.b16 %v2251, %v2250
    %v2267 = vpack.c.b16 %v2253, %v2252
    %v2268 = vpack.c.b16 %v2255, %v2254
    %v2269 = vpack.c.b16 %v2257, %v2256
    %v2270 = vpack.c.b16 %v2259, %v2258
    %v2271 = vpack.c.b16 %v2261, %v2260
    %v2272 = vpack.c.b16 %v2263, %v2262
    %v2273 = vpack.c.b16 %v2265, %v2264
    %2282 = vmatprep.subr.bf16.mxu0 0
    %2283 = vmatpush1.bf16.msra.mxu0 %v2273
    %2284 = vmatprep.subr.bf16.mxu0 0
    %2285 = vmatpush1.bf16.msra.mxu0 %v2272
    %2286 = vmatprep.subr.bf16.mxu0 0
    %2287 = vmatpush1.bf16.msra.mxu0 %v2271
    %2288 = vmatprep.subr.bf16.mxu0 0
    %2289 = vmatpush1.bf16.msra.mxu0 %v2270
    %2290 = vmatprep.subr.bf16.mxu0 0
    %2291 = vmatpush1.bf16.msra.mxu0 %v2269
    %2292 = vmatprep.subr.bf16.mxu0 0
    %2293 = vmatpush1.bf16.msra.mxu0 %v2268
    %2294 = vmatprep.subr.bf16.mxu0 0
    %2295 = vmatpush1.bf16.msra.mxu0 %v2267
    %2296 = vmatprep.subr.bf16.mxu0 0
    %2297 = vmatpush1.bf16.msra.mxu0 %v2266
    %2298 = vmatprep.subr.bf16.mxu0 0
    %2299 = vmatpush2.bf16.msra.mxu0 0
    %2300 = vmatprep.subr.bf16.mxu0 0
    %2301 = vmatpush2.bf16.msra.mxu0 0
    %2302 = vmatprep.subr.bf16.mxu0 0
    %2303 = vmatpush2.bf16.msra.mxu0 0
    %2304 = vmatprep.subr.bf16.mxu0 0
    %2305 = vmatpush2.bf16.msra.mxu0 0
    %2306 = vmatprep.subr.bf16.mxu0 0
    %2307 = vmatpush2.bf16.msra.mxu0 0
    %2308 = vmatprep.subr.bf16.mxu0 0
    %2309 = vmatpush2.bf16.msra.mxu0 0
    %2310 = vmatprep.subr.bf16.mxu0 0
    %2311 = vmatpush2.bf16.msra.mxu0 0
    %2312 = vmatprep.subr.bf16.mxu0 0
    %2313 = vmatpush2.bf16.msra.mxu0 0
    %2314 = vmatprep.mubr.bf16.mxu0 0
    %2315 = vmatmul.mubr.bf16.gmra.mxu0 %v137
    %v2316 = vpop.f32.mrf.mxu0
    %v2317 = vadd.f32 0.0, %v2316
    %v2318 = vpop.f32.mrf.mxu0
    %v2319 = vpop.f32.mrf.mxu0
    %v2320 = vadd.f32 0.0, %v2319
    %v2321 = vpop.f32.mrf.mxu0
    %2322 = vmatprep.mubr.bf16.mxu0 0
    %2323 = vmatmul.mubr.bf16.gmra.mxu0 %v138
    %v2324 = vpop.f32.mrf.mxu0
    %v2325 = vadd.f32 0.0, %v2324
    %v2326 = vpop.f32.mrf.mxu0
    %v2327 = vpop.f32.mrf.mxu0
    %v2328 = vadd.f32 0.0, %v2327
    %v2329 = vpop.f32.mrf.mxu0
    %2330 = vdwg.mxu0
    %s2331 = scalar_lea.vmem %s4, 192
    %v2332 = vld [vmem:[%s2331] sm:$0xf]
    %v2333 = vld [vmem:[%s2331 + $0x4] sm:$0xf]
    %v2334 = vld [vmem:[%s2331 + $0x8] sm:$0xf]
    %v2335 = vld [vmem:[%s2331 + $0xc] sm:$0xf]
    %v2336 = vld [vmem:[%s2331 + $0x10] sm:$0xf]
    %v2337 = vld [vmem:[%s2331 + $0x14] sm:$0xf]
    %v2338 = vld [vmem:[%s2331 + $0x18] sm:$0xf]
    %v2339 = vld [vmem:[%s2331 + $0x1c] sm:$0xf]
    %v2340 = vld [vmem:[%s2331 + $0x20] sm:$0xf]
    %v2341 = vld [vmem:[%s2331 + $0x24] sm:$0xf]
    %v2342 = vld [vmem:[%s2331 + $0x28] sm:$0xf]
    %v2343 = vld [vmem:[%s2331 + $0x2c] sm:$0xf]
    %v2344 = vld [vmem:[%s2331 + $0x30] sm:$0xf]
    %v2345 = vld [vmem:[%s2331 + $0x34] sm:$0xf]
    %v2346 = vld [vmem:[%s2331 + $0x38] sm:$0xf]
    %v2347 = vld [vmem:[%s2331 + $0x3c] sm:$0xf]
    %v2364 = vunpack.c.l.b16 %v2332
    %v2365 = vunpack.c.l.b16 %v2333
    %v2366 = vunpack.c.l.b16 %v2334
    %v2367 = vunpack.c.l.b16 %v2335
    %v2368 = vunpack.c.l.b16 %v2336
    %v2369 = vunpack.c.l.b16 %v2337
    %v2370 = vunpack.c.l.b16 %v2338
    %v2371 = vunpack.c.l.b16 %v2339
    %v2372 = vunpack.c.l.b16 %v2340
    %v2373 = vunpack.c.l.b16 %v2341
    %v2374 = vunpack.c.l.b16 %v2342
    %v2375 = vunpack.c.l.b16 %v2343
    %v2376 = vunpack.c.l.b16 %v2344
    %v2377 = vunpack.c.l.b16 %v2345
    %v2378 = vunpack.c.l.b16 %v2346
    %v2379 = vunpack.c.l.b16 %v2347
    %v2380 = vpack.c.b16 %v2365, %v2364
    %v2381 = vpack.c.b16 %v2367, %v2366
    %v2382 = vpack.c.b16 %v2369, %v2368
    %v2383 = vpack.c.b16 %v2371, %v2370
    %v2384 = vpack.c.b16 %v2373, %v2372
    %v2385 = vpack.c.b16 %v2375, %v2374
    %v2386 = vpack.c.b16 %v2377, %v2376
    %v2387 = vpack.c.b16 %v2379, %v2378
    %2396 = vmatprep.subr.bf16.mxu0 0
    %2397 = vmatpush1.bf16.msra.mxu0 %v2387
    %2398 = vmatprep.subr.bf16.mxu0 0
    %2399 = vmatpush1.bf16.msra.mxu0 %v2386
    %2400 = vmatprep.subr.bf16.mxu0 0
    %2401 = vmatpush1.bf16.msra.mxu0 %v2385
    %2402 = vmatprep.subr.bf16.mxu0 0
    %2403 = vmatpush1.bf16.msra.mxu0 %v2384
    %2404 = vmatprep.subr.bf16.mxu0 0
    %2405 = vmatpush1.bf16.msra.mxu0 %v2383
    %2406 = vmatprep.subr.bf16.mxu0 0
    %2407 = vmatpush1.bf16.msra.mxu0 %v2382
    %2408 = vmatprep.subr.bf16.mxu0 0
    %2409 = vmatpush1.bf16.msra.mxu0 %v2381
    %2410 = vmatprep.subr.bf16.mxu0 0
    %2411 = vmatpush1.bf16.msra.mxu0 %v2380
    %2412 = vmatprep.subr.bf16.mxu0 0
    %2413 = vmatpush2.bf16.msra.mxu0 0
    %2414 = vmatprep.subr.bf16.mxu0 0
    %2415 = vmatpush2.bf16.msra.mxu0 0
    %2416 = vmatprep.subr.bf16.mxu0 0
    %2417 = vmatpush2.bf16.msra.mxu0 0
    %2418 = vmatprep.subr.bf16.mxu0 0
    %2419 = vmatpush2.bf16.msra.mxu0 0
    %2420 = vmatprep.subr.bf16.mxu0 0
    %2421 = vmatpush2.bf16.msra.mxu0 0
    %2422 = vmatprep.subr.bf16.mxu0 0
    %2423 = vmatpush2.bf16.msra.mxu0 0
    %2424 = vmatprep.subr.bf16.mxu0 0
    %2425 = vmatpush2.bf16.msra.mxu0 0
    %2426 = vmatprep.subr.bf16.mxu0 0
    %2427 = vmatpush2.bf16.msra.mxu0 0
    %2428 = vmatprep.mubr.bf16.mxu0 0
    %2429 = vmatmul.mubr.bf16.gmra.mxu0 %v137
    %v2430 = vpop.f32.mrf.mxu0
    %v2431 = vadd.f32 0.0, %v2430
    %v2432 = vpop.f32.mrf.mxu0
    %v2433 = vpop.f32.mrf.mxu0
    %v2434 = vadd.f32 0.0, %v2433
    %v2435 = vpop.f32.mrf.mxu0
    %2436 = vmatprep.mubr.bf16.mxu0 0
    %2437 = vmatmul.mubr.bf16.gmra.mxu0 %v138
    %v2438 = vpop.f32.mrf.mxu0
    %v2439 = vadd.f32 0.0, %v2438
    %v2440 = vpop.f32.mrf.mxu0
    %v2441 = vpop.f32.mrf.mxu0
    %v2442 = vadd.f32 0.0, %v2441
    %v2443 = vpop.f32.mrf.mxu0
    %2444 = vdwg.mxu0
    %v2445 = vmul.f32 %v2203, 0.17677669
    %v2446 = vmul.f32 %v2206, 0.17677669
    %v2447 = vmul.f32 %v2211, 0.17677669
    %v2448 = vmul.f32 %v2214, 0.17677669
    %v2449 = vpack.c.bf16 %v2446, %v2445
    %v2450 = vpack.c.bf16 %v2448, %v2447
    %v2451 = vpack.c.bf16 %v2320, %v2317
    %v2452 = vpack.c.bf16 %v2328, %v2325
    %v2453 = vpack.c.bf16 %v2434, %v2431
    %v2454 = vpack.c.bf16 %v2442, %v2439
    %v2456 = vsel %vm488, %v2449, 0
    %v2459 = vsel %vm488, %v2451, 0
    %2461 = vmatprep.subr.bf16.mxu0 0
    %2462 = vmatpush1.bf16.xpose.msra.mxu0 0
    %2463 = vmatprep.subr.bf16.mxu0 0
    %2464 = vmatpush1.bf16.xpose.msra.mxu0 0
    %2465 = vmatprep.subr.bf16.mxu0 0
    %2466 = vmatpush1.bf16.xpose.msra.mxu0 0
    %2467 = vmatprep.subr.bf16.mxu0 0
    %2468 = vmatpush1.bf16.xpose.msra.mxu0 0
    %2469 = vmatprep.subr.bf16.mxu0 0
    %2470 = vmatpush1.bf16.xpose.msra.mxu0 0
    %2471 = vmatprep.subr.bf16.mxu0 0
    %2472 = vmatpush1.bf16.xpose.msra.mxu0 0
    %2473 = vmatprep.subr.bf16.mxu0 0
    %2474 = vmatpush1.bf16.xpose.msra.mxu0 0
    %2475 = vmatprep.subr.bf16.mxu0 0
    %2476 = vmatpush1.bf16.xpose.msra.mxu0 %v2459
    %2477 = vmatprep.subr.bf16.mxu0 0
    %2478 = vmatpush2.bf16.xpose.msra.mxu0 0
    %2479 = vmatprep.subr.bf16.mxu0 0
    %2480 = vmatpush2.bf16.xpose.msra.mxu0 0
    %2481 = vmatprep.subr.bf16.mxu0 0
    %2482 = vmatpush2.bf16.xpose.msra.mxu0 0
    %2483 = vmatprep.subr.bf16.mxu0 0
    %2484 = vmatpush2.bf16.xpose.msra.mxu0 0
    %2485 = vmatprep.subr.bf16.mxu0 0
    %2486 = vmatpush2.bf16.xpose.msra.mxu0 0
    %2487 = vmatprep.subr.bf16.mxu0 0
    %2488 = vmatpush2.bf16.xpose.msra.mxu0 0
    %2489 = vmatprep.subr.bf16.mxu0 0
    %2490 = vmatpush2.bf16.xpose.msra.mxu0 0
    %2491 = vmatprep.subr.bf16.mxu0 0
    %2492 = vmatpush2.bf16.xpose.msra.mxu0 0
    %2493 = vmatprep.mubr.bf16.mxu0 0
    %2494 = vmatmul.mubr.bf16.gmra.mxu0 %v2456
    %v2495 = vpop.f32.mrf.mxu0
    %v2496 = vadd.f32 %v65, %v2495
    %v2497 = vpop.f32.mrf.mxu0
    %v2498 = vpop.f32.mrf.mxu0
    %v2499 = vadd.f32 %v65, %v2498
    %v2500 = vpop.f32.mrf.mxu0
    %2501 = vdwg.mxu0
    %v2502 = vsel %vm536, %v2496, -inf
    %2503 = vmax.xlane.f32.xlu0 %v2502
    %v2504 = vpop.xlane.xlu0 %2503
    %v2505 = vsel %vm536, %v2499, -inf
    %2506 = vmax.xlane.f32.xlu0 %v2505
    %v2507 = vpop.xlane.xlu0 %2506
    %v2508 = vsub.f32 %v2496, %v2504
    %v2509 = vsub.f32 %v2499, %v2507
    %v2510 = vmul.f32 %v2508, 1.442695
    %v2511 = vpow.pop %v2510
    %v2512 = vmul.f32 %v2509, 1.442695
    %v2513 = vpow.pop %v2512
    %v2514 = vsel %vm536, %v2511, 0.0
    %2515 = vadd.xlane.f32.xlu0 %v2514
    %v2516 = vpop.xlane.xlu0 %2515
    %v2517 = vsel %vm536, %v2513, 0.0
    %2518 = vadd.xlane.f32.xlu0 %v2517
    %v2519 = vpop.xlane.xlu0 %2518
    %v2520 = vrcp.pop %v2516
    %v2521 = vrcp.pop %v2519
    %v2522 = vmul.f32 %v2511, %v2520
    %v2523 = vmul.f32 %v2513, %v2521
    %v2524 = vpack.c.bf16 %v2523, %v2522
    %v2526 = vsel %vm536, %v2524, 0
    %2528 = vmatprep.subr.bf16.mxu0 0
    %2529 = vmatpush1.bf16.msra.mxu0 0
    %2530 = vmatprep.subr.bf16.mxu0 0
    %2531 = vmatpush1.bf16.msra.mxu0 0
    %2532 = vmatprep.subr.bf16.mxu0 0
    %2533 = vmatpush1.bf16.msra.mxu0 0
    %2534 = vmatprep.subr.bf16.mxu0 0
    %2535 = vmatpush1.bf16.msra.mxu0 0
    %2536 = vmatprep.subr.bf16.mxu0 0
    %2537 = vmatpush1.bf16.msra.mxu0 0
    %2538 = vmatprep.subr.bf16.mxu0 0
    %2539 = vmatpush1.bf16.msra.mxu0 0
    %2540 = vmatprep.subr.bf16.mxu0 0
    %2541 = vmatpush1.bf16.msra.mxu0 0
    %2542 = vmatprep.subr.bf16.mxu0 0
    %2543 = vmatpush1.bf16.msra.mxu0 %v2453
    %2544 = vmatprep.subr.bf16.mxu0 0
    %2545 = vmatpush2.bf16.msra.mxu0 0
    %2546 = vmatprep.subr.bf16.mxu0 0
    %2547 = vmatpush2.bf16.msra.mxu0 0
    %2548 = vmatprep.subr.bf16.mxu0 0
    %2549 = vmatpush2.bf16.msra.mxu0 0
    %2550 = vmatprep.subr.bf16.mxu0 0
    %2551 = vmatpush2.bf16.msra.mxu0 0
    %2552 = vmatprep.subr.bf16.mxu0 0
    %2553 = vmatpush2.bf16.msra.mxu0 0
    %2554 = vmatprep.subr.bf16.mxu0 0
    %2555 = vmatpush2.bf16.msra.mxu0 0
    %2556 = vmatprep.subr.bf16.mxu0 0
    %2557 = vmatpush2.bf16.msra.mxu0 0
    %2558 = vmatprep.subr.bf16.mxu0 0
    %2559 = vmatpush2.bf16.msra.mxu0 0
    %2560 = vmatprep.mubr.bf16.mxu0 0
    %2561 = vmatmul.mubr.bf16.gmra.mxu0 %v2526
    %v2562 = vpop.f32.mrf.mxu0
    %v2563 = vadd.f32 0.0, %v2562
    %v2564 = vpop.f32.mrf.mxu0
    %v2565 = vpop.f32.mrf.mxu0
    %v2566 = vadd.f32 0.0, %v2565
    %v2567 = vpop.f32.mrf.mxu0
    %2568 = vdwg.mxu0
    %v2570 = vsel %vm488, %v2450, 0
    %v2573 = vsel %vm488, %v2452, 0
    %2575 = vmatprep.subr.bf16.mxu0 0
    %2576 = vmatpush1.bf16.xpose.msra.mxu0 0
    %2577 = vmatprep.subr.bf16.mxu0 0
    %2578 = vmatpush1.bf16.xpose.msra.mxu0 0
    %2579 = vmatprep.subr.bf16.mxu0 0
    %2580 = vmatpush1.bf16.xpose.msra.mxu0 0
    %2581 = vmatprep.subr.bf16.mxu0 0
    %2582 = vmatpush1.bf16.xpose.msra.mxu0 0
    %2583 = vmatprep.subr.bf16.mxu0 0
    %2584 = vmatpush1.bf16.xpose.msra.mxu0 0
    %2585 = vmatprep.subr.bf16.mxu0 0
    %2586 = vmatpush1.bf16.xpose.msra.mxu0 0
    %2587 = vmatprep.subr.bf16.mxu0 0
    %2588 = vmatpush1.bf16.xpose.msra.mxu0 0
    %2589 = vmatprep.subr.bf16.mxu0 0
    %2590 = vmatpush1.bf16.xpose.msra.mxu0 %v2573
    %2591 = vmatprep.subr.bf16.mxu0 0
    %2592 = vmatpush2.bf16.xpose.msra.mxu0 0
    %2593 = vmatprep.subr.bf16.mxu0 0
    %2594 = vmatpush2.bf16.xpose.msra.mxu0 0
    %2595 = vmatprep.subr.bf16.mxu0 0
    %2596 = vmatpush2.bf16.xpose.msra.mxu0 0
    %2597 = vmatprep.subr.bf16.mxu0 0
    %2598 = vmatpush2.bf16.xpose.msra.mxu0 0
    %2599 = vmatprep.subr.bf16.mxu0 0
    %2600 = vmatpush2.bf16.xpose.msra.mxu0 0
    %2601 = vmatprep.subr.bf16.mxu0 0
    %2602 = vmatpush2.bf16.xpose.msra.mxu0 0
    %2603 = vmatprep.subr.bf16.mxu0 0
    %2604 = vmatpush2.bf16.xpose.msra.mxu0 0
    %2605 = vmatprep.subr.bf16.mxu0 0
    %2606 = vmatpush2.bf16.xpose.msra.mxu0 0
    %2607 = vmatprep.mubr.bf16.mxu0 0
    %2608 = vmatmul.mubr.bf16.gmra.mxu0 %v2570
    %v2609 = vpop.f32.mrf.mxu0
    %v2610 = vadd.f32 %v69, %v2609
    %v2611 = vpop.f32.mrf.mxu0
    %v2612 = vpop.f32.mrf.mxu0
    %v2613 = vadd.f32 %v69, %v2612
    %v2614 = vpop.f32.mrf.mxu0
    %2615 = vdwg.mxu0
    %v2616 = vsel %vm536, %v2610, -inf
    %2617 = vmax.xlane.f32.xlu0 %v2616
    %v2618 = vpop.xlane.xlu0 %2617
    %v2619 = vsel %vm536, %v2613, -inf
    %2620 = vmax.xlane.f32.xlu0 %v2619
    %v2621 = vpop.xlane.xlu0 %2620
    %v2622 = vsub.f32 %v2610, %v2618
    %v2623 = vsub.f32 %v2613, %v2621
    %v2624 = vmul.f32 %v2622, 1.442695
    %v2625 = vpow.pop %v2624
    %v2626 = vmul.f32 %v2623, 1.442695
    %v2627 = vpow.pop %v2626
    %v2628 = vsel %vm536, %v2625, 0.0
    %2629 = vadd.xlane.f32.xlu0 %v2628
    %v2630 = vpop.xlane.xlu0 %2629
    %v2631 = vsel %vm536, %v2627, 0.0
    %2632 = vadd.xlane.f32.xlu0 %v2631
    %v2633 = vpop.xlane.xlu0 %2632
    %v2634 = vrcp.pop %v2630
    %v2635 = vrcp.pop %v2633
    %v2636 = vmul.f32 %v2625, %v2634
    %v2637 = vmul.f32 %v2627, %v2635
    %v2638 = vpack.c.bf16 %v2637, %v2636
    %v2640 = vsel %vm536, %v2638, 0
    %2642 = vmatprep.subr.bf16.mxu0 0
    %2643 = vmatpush1.bf16.msra.mxu0 0
    %2644 = vmatprep.subr.bf16.mxu0 0
    %2645 = vmatpush1.bf16.msra.mxu0 0
    %2646 = vmatprep.subr.bf16.mxu0 0
    %2647 = vmatpush1.bf16.msra.mxu0 0
    %2648 = vmatprep.subr.bf16.mxu0 0
    %2649 = vmatpush1.bf16.msra.mxu0 0
    %2650 = vmatprep.subr.bf16.mxu0 0
    %2651 = vmatpush1.bf16.msra.mxu0 0
    %2652 = vmatprep.subr.bf16.mxu0 0
    %2653 = vmatpush1.bf16.msra.mxu0 0
    %2654 = vmatprep.subr.bf16.mxu0 0
    %2655 = vmatpush1.bf16.msra.mxu0 0
    %2656 = vmatprep.subr.bf16.mxu0 0
    %2657 = vmatpush1.bf16.msra.mxu0 %v2454
    %2658 = vmatprep.subr.bf16.mxu0 0
    %2659 = vmatpush2.bf16.msra.mxu0 0
    %2660 = vmatprep.subr.bf16.mxu0 0
    %2661 = vmatpush2.bf16.msra.mxu0 0
    %2662 = vmatprep.subr.bf16.mxu0 0
    %2663 = vmatpush2.bf16.msra.mxu0 0
    %2664 = vmatprep.subr.bf16.mxu0 0
    %2665 = vmatpush2.bf16.msra.mxu0 0
    %2666 = vmatprep.subr.bf16.mxu0 0
    %2667 = vmatpush2.bf16.msra.mxu0 0
    %2668 = vmatprep.subr.bf16.mxu0 0
    %2669 = vmatpush2.bf16.msra.mxu0 0
    %2670 = vmatprep.subr.bf16.mxu0 0
    %2671 = vmatpush2.bf16.msra.mxu0 0
    %2672 = vmatprep.subr.bf16.mxu0 0
    %2673 = vmatpush2.bf16.msra.mxu0 0
    %2674 = vmatprep.mubr.bf16.mxu0 0
    %2675 = vmatmul.mubr.bf16.gmra.mxu0 %v2640
    %v2676 = vpop.f32.mrf.mxu0
    %v2677 = vadd.f32 0.0, %v2676
    %v2678 = vpop.f32.mrf.mxu0
    %v2679 = vpop.f32.mrf.mxu0
    %v2680 = vadd.f32 0.0, %v2679
    %v2681 = vpop.f32.mrf.mxu0
    %2682 = vdwg.mxu0
    %v2683 = vpack.c.bf16 %v2566, %v2563
    %v2684 = vpack.c.bf16 %v2680, %v2677
    %s2685 = scalar_lea.vmem %s5, 48
    %v2686 = vld [vmem:[%s2685] sm:$0xf]
    %v2687 = vld [vmem:[%s2685 + $0x4] sm:$0xf]
    %v2688 = vld [vmem:[%s2685 + $0x8] sm:$0xf]
    %v2689 = vld [vmem:[%s2685 + $0xc] sm:$0xf]
    %v2694 = vunpack.c.l.b16 %v2686
    %v2695 = vunpack.c.l.b16 %v2687
    %v2696 = vunpack.c.l.b16 %v2688
    %v2697 = vunpack.c.l.b16 %v2689
    %v2698 = vpack.c.b16 %v2695, %v2694
    %v2699 = vpack.c.b16 %v2697, %v2696
    %v2703 = vsel %vm488, %v2683, 0
    %v2706 = vsel %vm488, %v2684, 0
    %2708 = vmatprep.subr.bf16.mxu0 0
    %2709 = vmatpush1.bf16.msra.mxu0 0
    %2710 = vmatprep.subr.bf16.mxu0 0
    %2711 = vmatpush1.bf16.msra.mxu0 0
    %2712 = vmatprep.subr.bf16.mxu0 0
    %2713 = vmatpush1.bf16.msra.mxu0 0
    %2714 = vmatprep.subr.bf16.mxu0 0
    %2715 = vmatpush1.bf16.msra.mxu0 0
    %2716 = vmatprep.subr.bf16.mxu0 0
    %2717 = vmatpush1.bf16.msra.mxu0 0
    %2718 = vmatprep.subr.bf16.mxu0 0
    %2719 = vmatpush1.bf16.msra.mxu0 0
    %2720 = vmatprep.subr.bf16.mxu0 0
    %2721 = vmatpush1.bf16.msra.mxu0 %v2699
    %2722 = vmatprep.subr.bf16.mxu0 0
    %2723 = vmatpush1.bf16.msra.mxu0 %v2698
    %2724 = vmatprep.subr.bf16.mxu0 0
    %2725 = vmatpush2.bf16.msra.mxu0 0
    %2726 = vmatprep.subr.bf16.mxu0 0
    %2727 = vmatpush2.bf16.msra.mxu0 0
    %2728 = vmatprep.subr.bf16.mxu0 0
    %2729 = vmatpush2.bf16.msra.mxu0 0
    %2730 = vmatprep.subr.bf16.mxu0 0
    %2731 = vmatpush2.bf16.msra.mxu0 0
    %2732 = vmatprep.subr.bf16.mxu0 0
    %2733 = vmatpush2.bf16.msra.mxu0 0
    %2734 = vmatprep.subr.bf16.mxu0 0
    %2735 = vmatpush2.bf16.msra.mxu0 0
    %2736 = vmatprep.subr.bf16.mxu0 0
    %2737 = vmatpush2.bf16.msra.mxu0 0
    %2738 = vmatprep.subr.bf16.mxu0 0
    %2739 = vmatpush2.bf16.msra.mxu0 0
    %2740 = vmatprep.mubr.bf16.mxu0 0
    %2741 = vmatmul.mubr.bf16.gmra.mxu0 %v2703
    %v2742 = vpop.f32.mrf.mxu0
    %v2743 = vadd.f32 0.0, %v2742
    %v2744 = vpop.f32.mrf.mxu0
    %v2745 = vpop.f32.mrf.mxu0
    %v2746 = vadd.f32 0.0, %v2745
    %v2747 = vpop.f32.mrf.mxu0
    %2748 = vmatprep.mubr.bf16.mxu0 0
    %2749 = vmatmul.mubr.bf16.gmra.mxu0 %v2706
    %v2750 = vpop.f32.mrf.mxu0
    %v2751 = vadd.f32 0.0, %v2750
    %v2752 = vpop.f32.mrf.mxu0
    %v2753 = vpop.f32.mrf.mxu0
    %v2754 = vadd.f32 0.0, %v2753
    %v2755 = vpop.f32.mrf.mxu0
    %2756 = vdwg.mxu0
    %v2757 = vadd.f32 %v2099, %v2743
    %v2758 = vadd.f32 %v2100, %v2746
    %v2759 = vadd.f32 %v2101, %v2751
    %v2760 = vadd.f32 %v2102, %v2754
    %v2761 = vadd.f32 %v56, %v2757
    %v2762 = vadd.f32 %v57, %v2758
    %v2763 = vadd.f32 %v58, %v2759
    %v2764 = vadd.f32 %v59, %v2760
    %v2765 = vld [vmem:[%s12] sm:$0x1]
    %v2766 = vld [vmem:[%s13] sm:$0x1]
    %2767 = vadd.xlane.f32.xlu0 %v2761
    %v2768 = vpop.xlane.xlu0 %2767
    %2769 = vadd.xlane.f32.xlu0 %v2762
    %v2770 = vpop.xlane.xlu0 %2769
    %2771 = vadd.xlane.f32.xlu0 %v2763
    %v2772 = vpop.xlane.xlu0 %2771
    %2773 = vadd.xlane.f32.xlu0 %v2764
    %v2774 = vpop.xlane.xlu0 %2773
    %v2775 = vmul.f32 %v2768, %v80
    %v2776 = vmul.f32 %v2770, %v80
    %v2777 = vmul.f32 %v2772, %v80
    %v2778 = vmul.f32 %v2774, %v80
    %v2779 = vsub.f32 %v2761, %v2775
    %v2780 = vsub.f32 %v2762, %v2776
    %v2781 = vsub.f32 %v2763, %v2777
    %v2782 = vsub.f32 %v2764, %v2778
    %v2783 = vmul.f32 %v2779, %v2779
    %v2784 = vmul.f32 %v2780, %v2780
    %v2785 = vmul.f32 %v2781, %v2781
    %v2786 = vmul.f32 %v2782, %v2782
    %2787 = vadd.xlane.f32.xlu0 %v2783
    %v2788 = vpop.xlane.xlu0 %2787
    %2789 = vadd.xlane.f32.xlu0 %v2784
    %v2790 = vpop.xlane.xlu0 %2789
    %2791 = vadd.xlane.f32.xlu0 %v2785
    %v2792 = vpop.xlane.xlu0 %2791
    %2793 = vadd.xlane.f32.xlu0 %v2786
    %v2794 = vpop.xlane.xlu0 %2793
    %v2795 = vmul.f32 %v2788, %v80
    %v2796 = vmul.f32 %v2790, %v80
    %v2797 = vmul.f32 %v2792, %v80
    %v2798 = vmul.f32 %v2794, %v80
    %v2799 = vadd.f32 %v2795, 1e-05
    %v2800 = vadd.f32 %v2796, 1e-05
    %v2801 = vadd.f32 %v2797, 1e-05
    %v2802 = vadd.f32 %v2798, 1e-05
    %v2803 = vrsqrt.pop %v2799
    %v2804 = vrsqrt.pop %v2800
    %v2805 = vrsqrt.pop %v2801
    %v2806 = vrsqrt.pop %v2802
    %v2807 = vmul.f32 %v2779, %v2803
    %v2808 = vmul.f32 %v2780, %v2804
    %v2809 = vmul.f32 %v2781, %v2805
    %v2810 = vmul.f32 %v2782, %v2806
    %v2812 = vlaneseq
    %v2813 = vshrl.u32 %v2812, 7
    %v2814 = vsub.s32 0, %v2813
    %v2815 = vrot.slane %v2765, %v2814
    %v2817 = vmul.f32 %v2807, %v2815
    %v2818 = vmul.f32 %v2808, %v2815
    %v2819 = vmul.f32 %v2809, %v2815
    %v2820 = vmul.f32 %v2810, %v2815
    %v2822 = vlaneseq
    %v2823 = vshrl.u32 %v2822, 7
    %v2824 = vsub.s32 0, %v2823
    %v2825 = vrot.slane %v2766, %v2824
    %v2827 = vadd.f32 %v2817, %v2825
    %v2828 = vadd.f32 %v2818, %v2825
    %v2829 = vadd.f32 %v2819, %v2825
    %v2830 = vadd.f32 %v2820, %v2825
    %v2831 = vpack.c.bf16 %v2828, %v2827
    %v2832 = vpack.c.bf16 %v2830, %v2829
    %v2833 = vld [vmem:[%s6] sm:$0xff]
    %v2834 = vld [vmem:[%s6 + $0x8] sm:$0xff]
    %v2835 = vld [vmem:[%s6 + $0x10] sm:$0xff]
    %v2836 = vld [vmem:[%s6 + $0x18] sm:$0xff]
    %v2837 = vld [vmem:[%s6 + $0x20] sm:$0xff]
    %v2838 = vld [vmem:[%s6 + $0x28] sm:$0xff]
    %v2839 = vld [vmem:[%s6 + $0x30] sm:$0xff]
    %v2840 = vld [vmem:[%s6 + $0x38] sm:$0xff]
    %v2841 = vld [vmem:[%s6 + $0x40] sm:$0xff]
    %v2842 = vld [vmem:[%s6 + $0x48] sm:$0xff]
    %v2843 = vld [vmem:[%s6 + $0x50] sm:$0xff]
    %v2844 = vld [vmem:[%s6 + $0x58] sm:$0xff]
    %v2845 = vld [vmem:[%s6 + $0x60] sm:$0xff]
    %v2846 = vld [vmem:[%s6 + $0x68] sm:$0xff]
    %v2847 = vld [vmem:[%s6 + $0x70] sm:$0xff]
    %v2848 = vld [vmem:[%s6 + $0x78] sm:$0xff]
    %v2849 = vld [vmem:[%s6 + $0x80] sm:$0xff]
    %v2850 = vld [vmem:[%s6 + $0x88] sm:$0xff]
    %v2851 = vld [vmem:[%s6 + $0x90] sm:$0xff]
    %v2852 = vld [vmem:[%s6 + $0x98] sm:$0xff]
    %v2853 = vld [vmem:[%s6 + $0xa0] sm:$0xff]
    %v2854 = vld [vmem:[%s6 + $0xa8] sm:$0xff]
    %v2855 = vld [vmem:[%s6 + $0xb0] sm:$0xff]
    %v2856 = vld [vmem:[%s6 + $0xb8] sm:$0xff]
    %v2857 = vld [vmem:[%s6 + $0xc0] sm:$0xff]
    %v2858 = vld [vmem:[%s6 + $0xc8] sm:$0xff]
    %v2859 = vld [vmem:[%s6 + $0xd0] sm:$0xff]
    %v2860 = vld [vmem:[%s6 + $0xd8] sm:$0xff]
    %v2861 = vld [vmem:[%s6 + $0xe0] sm:$0xff]
    %v2862 = vld [vmem:[%s6 + $0xe8] sm:$0xff]
    %v2863 = vld [vmem:[%s6 + $0xf0] sm:$0xff]
    %v2864 = vld [vmem:[%s6 + $0xf8] sm:$0xff]
    %v2865 = vld [vmem:[%s7] sm:$0xf]
    %v2867 = vlaneseq
    %v2868 = vshrl.u32 %v2867, 7
    %v2869 = vsub.s32 0, %v2868
    %v2870 = vrot.slane %v2865, %v2869
    %v2871 = vlaneseq
    %v2872 = vshrl.u32 %v2871, 7
    %v2873 = vsub.s32 1, %v2872
    %v2874 = vrot.slane %v2865, %v2873
    %v2875 = vlaneseq
    %v2876 = vshrl.u32 %v2875, 7
    %v2877 = vsub.s32 2, %v2876
    %v2878 = vrot.slane %v2865, %v2877
    %v2879 = vlaneseq
    %v2880 = vshrl.u32 %v2879, 7
    %v2881 = vsub.s32 3, %v2880
    %v2882 = vrot.slane %v2865, %v2881
    %v2919 = vunpack.c.l.b16 %v2833
    %v2920 = vunpack.c.h.b16 %v2833
    %v2921 = vunpack.c.l.b16 %v2834
    %v2922 = vunpack.c.h.b16 %v2834
    %v2923 = vunpack.c.l.b16 %v2835
    %v2924 = vunpack.c.h.b16 %v2835
    %v2925 = vunpack.c.l.b16 %v2836
    %v2926 = vunpack.c.h.b16 %v2836
    %v2927 = vunpack.c.l.b16 %v2837
    %v2928 = vunpack.c.h.b16 %v2837
    %v2929 = vunpack.c.l.b16 %v2838
    %v2930 = vunpack.c.h.b16 %v2838
    %v2931 = vunpack.c.l.b16 %v2839
    %v2932 = vunpack.c.h.b16 %v2839
    %v2933 = vunpack.c.l.b16 %v2840
    %v2934 = vunpack.c.h.b16 %v2840
    %v2935 = vunpack.c.l.b16 %v2841
    %v2936 = vunpack.c.h.b16 %v2841
    %v2937 = vunpack.c.l.b16 %v2842
    %v2938 = vunpack.c.h.b16 %v2842
    %v2939 = vunpack.c.l.b16 %v2843
    %v2940 = vunpack.c.h.b16 %v2843
    %v2941 = vunpack.c.l.b16 %v2844
    %v2942 = vunpack.c.h.b16 %v2844
    %v2943 = vunpack.c.l.b16 %v2845
    %v2944 = vunpack.c.h.b16 %v2845
    %v2945 = vunpack.c.l.b16 %v2846
    %v2946 = vunpack.c.h.b16 %v2846
    %v2947 = vunpack.c.l.b16 %v2847
    %v2948 = vunpack.c.h.b16 %v2847
    %v2949 = vunpack.c.l.b16 %v2848
    %v2950 = vunpack.c.h.b16 %v2848
    %v2951 = vunpack.c.l.b16 %v2849
    %v2952 = vunpack.c.h.b16 %v2849
    %v2953 = vunpack.c.l.b16 %v2850
    %v2954 = vunpack.c.h.b16 %v2850
    %v2955 = vunpack.c.l.b16 %v2851
    %v2956 = vunpack.c.h.b16 %v2851
    %v2957 = vunpack.c.l.b16 %v2852
    %v2958 = vunpack.c.h.b16 %v2852
    %v2959 = vunpack.c.l.b16 %v2853
    %v2960 = vunpack.c.h.b16 %v2853
    %v2961 = vunpack.c.l.b16 %v2854
    %v2962 = vunpack.c.h.b16 %v2854
    %v2963 = vunpack.c.l.b16 %v2855
    %v2964 = vunpack.c.h.b16 %v2855
    %v2965 = vunpack.c.l.b16 %v2856
    %v2966 = vunpack.c.h.b16 %v2856
    %v2967 = vunpack.c.l.b16 %v2857
    %v2968 = vunpack.c.h.b16 %v2857
    %v2969 = vunpack.c.l.b16 %v2858
    %v2970 = vunpack.c.h.b16 %v2858
    %v2971 = vunpack.c.l.b16 %v2859
    %v2972 = vunpack.c.h.b16 %v2859
    %v2973 = vunpack.c.l.b16 %v2860
    %v2974 = vunpack.c.h.b16 %v2860
    %v2975 = vunpack.c.l.b16 %v2861
    %v2976 = vunpack.c.h.b16 %v2861
    %v2977 = vunpack.c.l.b16 %v2862
    %v2978 = vunpack.c.h.b16 %v2862
    %v2979 = vunpack.c.l.b16 %v2863
    %v2980 = vunpack.c.h.b16 %v2863
    %v2981 = vunpack.c.l.b16 %v2864
    %v2982 = vunpack.c.h.b16 %v2864
    %v2983 = vpack.c.b16 %v2923, %v2919
    %v2984 = vpack.c.b16 %v2924, %v2920
    %v2985 = vpack.c.b16 %v2925, %v2921
    %v2986 = vpack.c.b16 %v2926, %v2922
    %v2987 = vpack.c.b16 %v2931, %v2927
    %v2988 = vpack.c.b16 %v2932, %v2928
    %v2989 = vpack.c.b16 %v2933, %v2929
    %v2990 = vpack.c.b16 %v2934, %v2930
    %v2991 = vpack.c.b16 %v2939, %v2935
    %v2992 = vpack.c.b16 %v2940, %v2936
    %v2993 = vpack.c.b16 %v2941, %v2937
    %v2994 = vpack.c.b16 %v2942, %v2938
    %v2995 = vpack.c.b16 %v2947, %v2943
    %v2996 = vpack.c.b16 %v2948, %v2944
    %v2997 = vpack.c.b16 %v2949, %v2945
    %v2998 = vpack.c.b16 %v2950, %v2946
    %v2999 = vpack.c.b16 %v2955, %v2951
    %v3000 = vpack.c.b16 %v2956, %v2952
    %v3001 = vpack.c.b16 %v2957, %v2953
    %v3002 = vpack.c.b16 %v2958, %v2954
    %v3003 = vpack.c.b16 %v2963, %v2959
    %v3004 = vpack.c.b16 %v2964, %v2960
    %v3005 = vpack.c.b16 %v2965, %v2961
    %v3006 = vpack.c.b16 %v2966, %v2962
    %v3007 = vpack.c.b16 %v2971, %v2967
    %v3008 = vpack.c.b16 %v2972, %v2968
    %v3009 = vpack.c.b16 %v2973, %v2969
    %v3010 = vpack.c.b16 %v2974, %v2970
    %v3011 = vpack.c.b16 %v2979, %v2975
    %v3012 = vpack.c.b16 %v2980, %v2976
    %v3013 = vpack.c.b16 %v2981, %v2977
    %v3014 = vpack.c.b16 %v2982, %v2978
    %3047 = vmatprep.subr.bf16.mxu0 %v3012
    %3048 = vmatpush1.bf16.msra.mxu0 %v3011
    %3049 = vmatprep.subr.bf16.mxu0 %v3008
    %3050 = vmatpush1.bf16.msra.mxu0 %v3007
    %3051 = vmatprep.subr.bf16.mxu0 %v3004
    %3052 = vmatpush1.bf16.msra.mxu0 %v3003
    %3053 = vmatprep.subr.bf16.mxu0 %v3000
    %3054 = vmatpush1.bf16.msra.mxu0 %v2999
    %3055 = vmatprep.subr.bf16.mxu0 %v2996
    %3056 = vmatpush1.bf16.msra.mxu0 %v2995
    %3057 = vmatprep.subr.bf16.mxu0 %v2992
    %3058 = vmatpush1.bf16.msra.mxu0 %v2991
    %3059 = vmatprep.subr.bf16.mxu0 %v2988
    %3060 = vmatpush1.bf16.msra.mxu0 %v2987
    %3061 = vmatprep.subr.bf16.mxu0 %v2984
    %3062 = vmatpush1.bf16.msra.mxu0 %v2983
    %3063 = vmatprep.subr.bf16.mxu0 0
    %3064 = vmatpush2.bf16.msra.mxu0 0
    %3065 = vmatprep.subr.bf16.mxu0 0
    %3066 = vmatpush2.bf16.msra.mxu0 0
    %3067 = vmatprep.subr.bf16.mxu0 0
    %3068 = vmatpush2.bf16.msra.mxu0 0
    %3069 = vmatprep.subr.bf16.mxu0 0
    %3070 = vmatpush2.bf16.msra.mxu0 0
    %3071 = vmatprep.subr.bf16.mxu0 0
    %3072 = vmatpush2.bf16.msra.mxu0 0
    %3073 = vmatprep.subr.bf16.mxu0 0
    %3074 = vmatpush2.bf16.msra.mxu0 0
    %3075 = vmatprep.subr.bf16.mxu0 0
    %3076 = vmatpush2.bf16.msra.mxu0 0
    %3077 = vmatprep.subr.bf16.mxu0 0
    %3078 = vmatpush2.bf16.msra.mxu0 0
    %3079 = vmatprep.mubr.bf16.mxu0 0
    %3080 = vmatmul.mubr.bf16.gmra.mxu0 %v2831
    %v3081 = vpop.f32.mrf.mxu0
    %v3082 = vadd.f32 %v2870, %v3081
    %v3083 = vpop.f32.mrf.mxu0
    %v3084 = vadd.f32 %v2874, %v3083
    %v3085 = vpop.f32.mrf.mxu0
    %v3086 = vadd.f32 %v2870, %v3085
    %v3087 = vpop.f32.mrf.mxu0
    %v3088 = vadd.f32 %v2874, %v3087
    %3089 = vmatprep.mubr.bf16.mxu0 0
    %3090 = vmatmul.mubr.bf16.gmra.mxu0 %v2832
    %v3091 = vpop.f32.mrf.mxu0
    %v3092 = vadd.f32 %v2870, %v3091
    %v3093 = vpop.f32.mrf.mxu0
    %v3094 = vadd.f32 %v2874, %v3093
    %v3095 = vpop.f32.mrf.mxu0
    %v3096 = vadd.f32 %v2870, %v3095
    %v3097 = vpop.f32.mrf.mxu0
    %v3098 = vadd.f32 %v2874, %v3097
    %3099 = vdwg.mxu0
    %3100 = vmatprep.subr.bf16.mxu0 %v3014
    %3101 = vmatpush1.bf16.msra.mxu0 %v3013
    %3102 = vmatprep.subr.bf16.mxu0 %v3010
    %3103 = vmatpush1.bf16.msra.mxu0 %v3009
    %3104 = vmatprep.subr.bf16.mxu0 %v3006
    %3105 = vmatpush1.bf16.msra.mxu0 %v3005
    %3106 = vmatprep.subr.bf16.mxu0 %v3002
    %3107 = vmatpush1.bf16.msra.mxu0 %v3001
    %3108 = vmatprep.subr.bf16.mxu0 %v2998
    %3109 = vmatpush1.bf16.msra.mxu0 %v2997
    %3110 = vmatprep.subr.bf16.mxu0 %v2994
    %3111 = vmatpush1.bf16.msra.mxu0 %v2993
    %3112 = vmatprep.subr.bf16.mxu0 %v2990
    %3113 = vmatpush1.bf16.msra.mxu0 %v2989
    %3114 = vmatprep.subr.bf16.mxu0 %v2986
    %3115 = vmatpush1.bf16.msra.mxu0 %v2985
    %3116 = vmatprep.subr.bf16.mxu0 0
    %3117 = vmatpush2.bf16.msra.mxu0 0
    %3118 = vmatprep.subr.bf16.mxu0 0
    %3119 = vmatpush2.bf16.msra.mxu0 0
    %3120 = vmatprep.subr.bf16.mxu0 0
    %3121 = vmatpush2.bf16.msra.mxu0 0
    %3122 = vmatprep.subr.bf16.mxu0 0
    %3123 = vmatpush2.bf16.msra.mxu0 0
    %3124 = vmatprep.subr.bf16.mxu0 0
    %3125 = vmatpush2.bf16.msra.mxu0 0
    %3126 = vmatprep.subr.bf16.mxu0 0
    %3127 = vmatpush2.bf16.msra.mxu0 0
    %3128 = vmatprep.subr.bf16.mxu0 0
    %3129 = vmatpush2.bf16.msra.mxu0 0
    %3130 = vmatprep.subr.bf16.mxu0 0
    %3131 = vmatpush2.bf16.msra.mxu0 0
    %3132 = vmatprep.mubr.bf16.mxu0 0
    %3133 = vmatmul.mubr.bf16.gmra.mxu0 %v2831
    %v3134 = vpop.f32.mrf.mxu0
    %v3135 = vadd.f32 %v2878, %v3134
    %v3136 = vpop.f32.mrf.mxu0
    %v3137 = vadd.f32 %v2882, %v3136
    %v3138 = vpop.f32.mrf.mxu0
    %v3139 = vadd.f32 %v2878, %v3138
    %v3140 = vpop.f32.mrf.mxu0
    %v3141 = vadd.f32 %v2882, %v3140
    %3142 = vmatprep.mubr.bf16.mxu0 0
    %3143 = vmatmul.mubr.bf16.gmra.mxu0 %v2832
    %v3144 = vpop.f32.mrf.mxu0
    %v3145 = vadd.f32 %v2878, %v3144
    %v3146 = vpop.f32.mrf.mxu0
    %v3147 = vadd.f32 %v2882, %v3146
    %v3148 = vpop.f32.mrf.mxu0
    %v3149 = vadd.f32 %v2878, %v3148
    %v3150 = vpop.f32.mrf.mxu0
    %v3151 = vadd.f32 %v2882, %v3150
    %3152 = vdwg.mxu0
    %v3153 = vmul.f32 %v3082, 0.5
    %v3154 = vmul.f32 %v3084, 0.5
    %v3155 = vmul.f32 %v3135, 0.5
    %v3156 = vmul.f32 %v3137, 0.5
    %v3157 = vmul.f32 %v3086, 0.5
    %v3158 = vmul.f32 %v3088, 0.5
    %v3159 = vmul.f32 %v3139, 0.5
    %v3160 = vmul.f32 %v3141, 0.5
    %v3161 = vmul.f32 %v3092, 0.5
    %v3162 = vmul.f32 %v3094, 0.5
    %v3163 = vmul.f32 %v3145, 0.5
    %v3164 = vmul.f32 %v3147, 0.5
    %v3165 = vmul.f32 %v3096, 0.5
    %v3166 = vmul.f32 %v3098, 0.5
    %v3167 = vmul.f32 %v3149, 0.5
    %v3168 = vmul.f32 %v3151, 0.5
    %v3169 = vmul.f32 %v3082, 0.044715
    %v3170 = vmul.f32 %v3084, 0.044715
    %v3171 = vmul.f32 %v3135, 0.044715
    %v3172 = vmul.f32 %v3137, 0.044715
    %v3173 = vmul.f32 %v3086, 0.044715
    %v3174 = vmul.f32 %v3088, 0.044715
    %v3175 = vmul.f32 %v3139, 0.044715
    %v3176 = vmul.f32 %v3141, 0.044715
    %v3177 = vmul.f32 %v3092, 0.044715
    %v3178 = vmul.f32 %v3094, 0.044715
    %v3179 = vmul.f32 %v3145, 0.044715
    %v3180 = vmul.f32 %v3147, 0.044715
    %v3181 = vmul.f32 %v3096, 0.044715
    %v3182 = vmul.f32 %v3098, 0.044715
    %v3183 = vmul.f32 %v3149, 0.044715
    %v3184 = vmul.f32 %v3151, 0.044715
    %v3185 = vmul.f32 %v3169, %v3082
    %v3186 = vmul.f32 %v3170, %v3084
    %v3187 = vmul.f32 %v3171, %v3135
    %v3188 = vmul.f32 %v3172, %v3137
    %v3189 = vmul.f32 %v3173, %v3086
    %v3190 = vmul.f32 %v3174, %v3088
    %v3191 = vmul.f32 %v3175, %v3139
    %v3192 = vmul.f32 %v3176, %v3141
    %v3193 = vmul.f32 %v3177, %v3092
    %v3194 = vmul.f32 %v3178, %v3094
    %v3195 = vmul.f32 %v3179, %v3145
    %v3196 = vmul.f32 %v3180, %v3147
    %v3197 = vmul.f32 %v3181, %v3096
    %v3198 = vmul.f32 %v3182, %v3098
    %v3199 = vmul.f32 %v3183, %v3149
    %v3200 = vmul.f32 %v3184, %v3151
    %v3201 = vmul.f32 %v3185, %v3082
    %v3202 = vmul.f32 %v3186, %v3084
    %v3203 = vmul.f32 %v3187, %v3135
    %v3204 = vmul.f32 %v3188, %v3137
    %v3205 = vmul.f32 %v3189, %v3086
    %v3206 = vmul.f32 %v3190, %v3088
    %v3207 = vmul.f32 %v3191, %v3139
    %v3208 = vmul.f32 %v3192, %v3141
    %v3209 = vmul.f32 %v3193, %v3092
    %v3210 = vmul.f32 %v3194, %v3094
    %v3211 = vmul.f32 %v3195, %v3145
    %v3212 = vmul.f32 %v3196, %v3147
    %v3213 = vmul.f32 %v3197, %v3096
    %v3214 = vmul.f32 %v3198, %v3098
    %v3215 = vmul.f32 %v3199, %v3149
    %v3216 = vmul.f32 %v3200, %v3151
    %v3217 = vadd.f32 %v3082, %v3201
    %v3218 = vadd.f32 %v3084, %v3202
    %v3219 = vadd.f32 %v3135, %v3203
    %v3220 = vadd.f32 %v3137, %v3204
    %v3221 = vadd.f32 %v3086, %v3205
    %v3222 = vadd.f32 %v3088, %v3206
    %v3223 = vadd.f32 %v3139, %v3207
    %v3224 = vadd.f32 %v3141, %v3208
    %v3225 = vadd.f32 %v3092, %v3209
    %v3226 = vadd.f32 %v3094, %v3210
    %v3227 = vadd.f32 %v3145, %v3211
    %v3228 = vadd.f32 %v3147, %v3212
    %v3229 = vadd.f32 %v3096, %v3213
    %v3230 = vadd.f32 %v3098, %v3214
    %v3231 = vadd.f32 %v3149, %v3215
    %v3232 = vadd.f32 %v3151, %v3216
    %v3233 = vmul.f32 %v3217, 0.7978846
    %v3234 = vmul.f32 %v3218, 0.7978846
    %v3235 = vmul.f32 %v3219, 0.7978846
    %v3236 = vmul.f32 %v3220, 0.7978846
    %v3237 = vmul.f32 %v3221, 0.7978846
    %v3238 = vmul.f32 %v3222, 0.7978846
    %v3239 = vmul.f32 %v3223, 0.7978846
    %v3240 = vmul.f32 %v3224, 0.7978846
    %v3241 = vmul.f32 %v3225, 0.7978846
    %v3242 = vmul.f32 %v3226, 0.7978846
    %v3243 = vmul.f32 %v3227, 0.7978846
    %v3244 = vmul.f32 %v3228, 0.7978846
    %v3245 = vmul.f32 %v3229, 0.7978846
    %v3246 = vmul.f32 %v3230, 0.7978846
    %v3247 = vmul.f32 %v3231, 0.7978846
    %v3248 = vmul.f32 %v3232, 0.7978846
    %v3249 = vtanh.pop %v3233
    %v3250 = vtanh.pop %v3234
    %v3251 = vtanh.pop %v3235
    %v3252 = vtanh.pop %v3236
    %v3253 = vtanh.pop %v3237
    %v3254 = vtanh.pop %v3238
    %v3255 = vtanh.pop %v3239
    %v3256 = vtanh.pop %v3240
    %v3257 = vtanh.pop %v3241
    %v3258 = vtanh.pop %v3242
    %v3259 = vtanh.pop %v3243
    %v3260 = vtanh.pop %v3244
    %v3261 = vtanh.pop %v3245
    %v3262 = vtanh.pop %v3246
    %v3263 = vtanh.pop %v3247
    %v3264 = vtanh.pop %v3248
    %v3265 = vadd.f32 %v3249, 1.0
    %v3266 = vadd.f32 %v3250, 1.0
    %v3267 = vadd.f32 %v3251, 1.0
    %v3268 = vadd.f32 %v3252, 1.0
    %v3269 = vadd.f32 %v3253, 1.0
    %v3270 = vadd.f32 %v3254, 1.0
    %v3271 = vadd.f32 %v3255, 1.0
    %v3272 = vadd.f32 %v3256, 1.0
    %v3273 = vadd.f32 %v3257, 1.0
    %v3274 = vadd.f32 %v3258, 1.0
    %v3275 = vadd.f32 %v3259, 1.0
    %v3276 = vadd.f32 %v3260, 1.0
    %v3277 = vadd.f32 %v3261, 1.0
    %v3278 = vadd.f32 %v3262, 1.0
    %v3279 = vadd.f32 %v3263, 1.0
    %v3280 = vadd.f32 %v3264, 1.0
    %v3281 = vmul.f32 %v3153, %v3265
    %v3282 = vmul.f32 %v3154, %v3266
    %v3283 = vmul.f32 %v3155, %v3267
    %v3284 = vmul.f32 %v3156, %v3268
    %v3285 = vmul.f32 %v3157, %v3269
    %v3286 = vmul.f32 %v3158, %v3270
    %v3287 = vmul.f32 %v3159, %v3271
    %v3288 = vmul.f32 %v3160, %v3272
    %v3289 = vmul.f32 %v3161, %v3273
    %v3290 = vmul.f32 %v3162, %v3274
    %v3291 = vmul.f32 %v3163, %v3275
    %v3292 = vmul.f32 %v3164, %v3276
    %v3293 = vmul.f32 %v3165, %v3277
    %v3294 = vmul.f32 %v3166, %v3278
    %v3295 = vmul.f32 %v3167, %v3279
    %v3296 = vmul.f32 %v3168, %v3280
    %v3297 = vpack.c.bf16 %v3285, %v3281
    %v3298 = vpack.c.bf16 %v3286, %v3282
    %v3299 = vpack.c.bf16 %v3287, %v3283
    %v3300 = vpack.c.bf16 %v3288, %v3284
    %v3301 = vpack.c.bf16 %v3293, %v3289
    %v3302 = vpack.c.bf16 %v3294, %v3290
    %v3303 = vpack.c.bf16 %v3295, %v3291
    %v3304 = vpack.c.bf16 %v3296, %v3292
    %v3305 = vld [vmem:[%s8] sm:$0xf]
    %v3306 = vld [vmem:[%s8 + $0x4] sm:$0xf]
    %v3307 = vld [vmem:[%s8 + $0x8] sm:$0xf]
    %v3308 = vld [vmem:[%s8 + $0xc] sm:$0xf]
    %v3309 = vld [vmem:[%s8 + $0x10] sm:$0xf]
    %v3310 = vld [vmem:[%s8 + $0x14] sm:$0xf]
    %v3311 = vld [vmem:[%s8 + $0x18] sm:$0xf]
    %v3312 = vld [vmem:[%s8 + $0x1c] sm:$0xf]
    %v3313 = vld [vmem:[%s8 + $0x20] sm:$0xf]
    %v3314 = vld [vmem:[%s8 + $0x24] sm:$0xf]
    %v3315 = vld [vmem:[%s8 + $0x28] sm:$0xf]
    %v3316 = vld [vmem:[%s8 + $0x2c] sm:$0xf]
    %v3317 = vld [vmem:[%s8 + $0x30] sm:$0xf]
    %v3318 = vld [vmem:[%s8 + $0x34] sm:$0xf]
    %v3319 = vld [vmem:[%s8 + $0x38] sm:$0xf]
    %v3320 = vld [vmem:[%s8 + $0x3c] sm:$0xf]
    %v3321 = vld [vmem:[%s8 + $0x40] sm:$0xf]
    %v3322 = vld [vmem:[%s8 + $0x44] sm:$0xf]
    %v3323 = vld [vmem:[%s8 + $0x48] sm:$0xf]
    %v3324 = vld [vmem:[%s8 + $0x4c] sm:$0xf]
    %v3325 = vld [vmem:[%s8 + $0x50] sm:$0xf]
    %v3326 = vld [vmem:[%s8 + $0x54] sm:$0xf]
    %v3327 = vld [vmem:[%s8 + $0x58] sm:$0xf]
    %v3328 = vld [vmem:[%s8 + $0x5c] sm:$0xf]
    %v3329 = vld [vmem:[%s8 + $0x60] sm:$0xf]
    %v3330 = vld [vmem:[%s8 + $0x64] sm:$0xf]
    %v3331 = vld [vmem:[%s8 + $0x68] sm:$0xf]
    %v3332 = vld [vmem:[%s8 + $0x6c] sm:$0xf]
    %v3333 = vld [vmem:[%s8 + $0x70] sm:$0xf]
    %v3334 = vld [vmem:[%s8 + $0x74] sm:$0xf]
    %v3335 = vld [vmem:[%s8 + $0x78] sm:$0xf]
    %v3336 = vld [vmem:[%s8 + $0x7c] sm:$0xf]
    %v3337 = vld [vmem:[%s8 + $0x80] sm:$0xf]
    %v3338 = vld [vmem:[%s8 + $0x84] sm:$0xf]
    %v3339 = vld [vmem:[%s8 + $0x88] sm:$0xf]
    %v3340 = vld [vmem:[%s8 + $0x8c] sm:$0xf]
    %v3341 = vld [vmem:[%s8 + $0x90] sm:$0xf]
    %v3342 = vld [vmem:[%s8 + $0x94] sm:$0xf]
    %v3343 = vld [vmem:[%s8 + $0x98] sm:$0xf]
    %v3344 = vld [vmem:[%s8 + $0x9c] sm:$0xf]
    %v3345 = vld [vmem:[%s8 + $0xa0] sm:$0xf]
    %v3346 = vld [vmem:[%s8 + $0xa4] sm:$0xf]
    %v3347 = vld [vmem:[%s8 + $0xa8] sm:$0xf]
    %v3348 = vld [vmem:[%s8 + $0xac] sm:$0xf]
    %v3349 = vld [vmem:[%s8 + $0xb0] sm:$0xf]
    %v3350 = vld [vmem:[%s8 + $0xb4] sm:$0xf]
    %v3351 = vld [vmem:[%s8 + $0xb8] sm:$0xf]
    %v3352 = vld [vmem:[%s8 + $0xbc] sm:$0xf]
    %v3353 = vld [vmem:[%s8 + $0xc0] sm:$0xf]
    %v3354 = vld [vmem:[%s8 + $0xc4] sm:$0xf]
    %v3355 = vld [vmem:[%s8 + $0xc8] sm:$0xf]
    %v3356 = vld [vmem:[%s8 + $0xcc] sm:$0xf]
    %v3357 = vld [vmem:[%s8 + $0xd0] sm:$0xf]
    %v3358 = vld [vmem:[%s8 + $0xd4] sm:$0xf]
    %v3359 = vld [vmem:[%s8 + $0xd8] sm:$0xf]
    %v3360 = vld [vmem:[%s8 + $0xdc] sm:$0xf]
    %v3361 = vld [vmem:[%s8 + $0xe0] sm:$0xf]
    %v3362 = vld [vmem:[%s8 + $0xe4] sm:$0xf]
    %v3363 = vld [vmem:[%s8 + $0xe8] sm:$0xf]
    %v3364 = vld [vmem:[%s8 + $0xec] sm:$0xf]
    %v3365 = vld [vmem:[%s8 + $0xf0] sm:$0xf]
    %v3366 = vld [vmem:[%s8 + $0xf4] sm:$0xf]
    %v3367 = vld [vmem:[%s8 + $0xf8] sm:$0xf]
    %v3368 = vld [vmem:[%s8 + $0xfc] sm:$0xf]
    %v3369 = vld [vmem:[%s9] sm:$0x1]
    %v3371 = vlaneseq
    %v3372 = vshrl.u32 %v3371, 7
    %v3373 = vsub.s32 0, %v3372
    %v3374 = vrot.slane %v3369, %v3373
    %v3440 = vunpack.c.l.b16 %v3305
    %v3441 = vunpack.c.l.b16 %v3306
    %v3442 = vunpack.c.l.b16 %v3307
    %v3443 = vunpack.c.l.b16 %v3308
    %v3444 = vunpack.c.l.b16 %v3309
    %v3445 = vunpack.c.l.b16 %v3310
    %v3446 = vunpack.c.l.b16 %v3311
    %v3447 = vunpack.c.l.b16 %v3312
    %v3448 = vunpack.c.l.b16 %v3313
    %v3449 = vunpack.c.l.b16 %v3314
    %v3450 = vunpack.c.l.b16 %v3315
    %v3451 = vunpack.c.l.b16 %v3316
    %v3452 = vunpack.c.l.b16 %v3317
    %v3453 = vunpack.c.l.b16 %v3318
    %v3454 = vunpack.c.l.b16 %v3319
    %v3455 = vunpack.c.l.b16 %v3320
    %v3456 = vunpack.c.l.b16 %v3321
    %v3457 = vunpack.c.l.b16 %v3322
    %v3458 = vunpack.c.l.b16 %v3323
    %v3459 = vunpack.c.l.b16 %v3324
    %v3460 = vunpack.c.l.b16 %v3325
    %v3461 = vunpack.c.l.b16 %v3326
    %v3462 = vunpack.c.l.b16 %v3327
    %v3463 = vunpack.c.l.b16 %v3328
    %v3464 = vunpack.c.l.b16 %v3329
    %v3465 = vunpack.c.l.b16 %v3330
    %v3466 = vunpack.c.l.b16 %v3331
    %v3467 = vunpack.c.l.b16 %v3332
    %v3468 = vunpack.c.l.b16 %v3333
    %v3469 = vunpack.c.l.b16 %v3334
    %v3470 = vunpack.c.l.b16 %v3335
    %v3471 = vunpack.c.l.b16 %v3336
    %v3472 = vunpack.c.l.b16 %v3337
    %v3473 = vunpack.c.l.b16 %v3338
    %v3474 = vunpack.c.l.b16 %v3339
    %v3475 = vunpack.c.l.b16 %v3340
    %v3476 = vunpack.c.l.b16 %v3341
    %v3477 = vunpack.c.l.b16 %v3342
    %v3478 = vunpack.c.l.b16 %v3343
    %v3479 = vunpack.c.l.b16 %v3344
    %v3480 = vunpack.c.l.b16 %v3345
    %v3481 = vunpack.c.l.b16 %v3346
    %v3482 = vunpack.c.l.b16 %v3347
    %v3483 = vunpack.c.l.b16 %v3348
    %v3484 = vunpack.c.l.b16 %v3349
    %v3485 = vunpack.c.l.b16 %v3350
    %v3486 = vunpack.c.l.b16 %v3351
    %v3487 = vunpack.c.l.b16 %v3352
    %v3488 = vunpack.c.l.b16 %v3353
    %v3489 = vunpack.c.l.b16 %v3354
    %v3490 = vunpack.c.l.b16 %v3355
    %v3491 = vunpack.c.l.b16 %v3356
    %v3492 = vunpack.c.l.b16 %v3357
    %v3493 = vunpack.c.l.b16 %v3358
    %v3494 = vunpack.c.l.b16 %v3359
    %v3495 = vunpack.c.l.b16 %v3360
    %v3496 = vunpack.c.l.b16 %v3361
    %v3497 = vunpack.c.l.b16 %v3362
    %v3498 = vunpack.c.l.b16 %v3363
    %v3499 = vunpack.c.l.b16 %v3364
    %v3500 = vunpack.c.l.b16 %v3365
    %v3501 = vunpack.c.l.b16 %v3366
    %v3502 = vunpack.c.l.b16 %v3367
    %v3503 = vunpack.c.l.b16 %v3368
    %v3504 = vpack.c.b16 %v3441, %v3440
    %v3505 = vpack.c.b16 %v3443, %v3442
    %v3506 = vpack.c.b16 %v3445, %v3444
    %v3507 = vpack.c.b16 %v3447, %v3446
    %v3508 = vpack.c.b16 %v3449, %v3448
    %v3509 = vpack.c.b16 %v3451, %v3450
    %v3510 = vpack.c.b16 %v3453, %v3452
    %v3511 = vpack.c.b16 %v3455, %v3454
    %v3512 = vpack.c.b16 %v3457, %v3456
    %v3513 = vpack.c.b16 %v3459, %v3458
    %v3514 = vpack.c.b16 %v3461, %v3460
    %v3515 = vpack.c.b16 %v3463, %v3462
    %v3516 = vpack.c.b16 %v3465, %v3464
    %v3517 = vpack.c.b16 %v3467, %v3466
    %v3518 = vpack.c.b16 %v3469, %v3468
    %v3519 = vpack.c.b16 %v3471, %v3470
    %v3520 = vpack.c.b16 %v3473, %v3472
    %v3521 = vpack.c.b16 %v3475, %v3474
    %v3522 = vpack.c.b16 %v3477, %v3476
    %v3523 = vpack.c.b16 %v3479, %v3478
    %v3524 = vpack.c.b16 %v3481, %v3480
    %v3525 = vpack.c.b16 %v3483, %v3482
    %v3526 = vpack.c.b16 %v3485, %v3484
    %v3527 = vpack.c.b16 %v3487, %v3486
    %v3528 = vpack.c.b16 %v3489, %v3488
    %v3529 = vpack.c.b16 %v3491, %v3490
    %v3530 = vpack.c.b16 %v3493, %v3492
    %v3531 = vpack.c.b16 %v3495, %v3494
    %v3532 = vpack.c.b16 %v3497, %v3496
    %v3533 = vpack.c.b16 %v3499, %v3498
    %v3534 = vpack.c.b16 %v3501, %v3500
    %v3535 = vpack.c.b16 %v3503, %v3502
    %3568 = vmatprep.subr.bf16.mxu0 0
    %3569 = vmatpush1.bf16.msra.mxu0 %v3511
    %3570 = vmatprep.subr.bf16.mxu0 0
    %3571 = vmatpush1.bf16.msra.mxu0 %v3510
    %3572 = vmatprep.subr.bf16.mxu0 0
    %3573 = vmatpush1.bf16.msra.mxu0 %v3509
    %3574 = vmatprep.subr.bf16.mxu0 0
    %3575 = vmatpush1.bf16.msra.mxu0 %v3508
    %3576 = vmatprep.subr.bf16.mxu0 0
    %3577 = vmatpush1.bf16.msra.mxu0 %v3507
    %3578 = vmatprep.subr.bf16.mxu0 0
    %3579 = vmatpush1.bf16.msra.mxu0 %v3506
    %3580 = vmatprep.subr.bf16.mxu0 0
    %3581 = vmatpush1.bf16.msra.mxu0 %v3505
    %3582 = vmatprep.subr.bf16.mxu0 0
    %3583 = vmatpush1.bf16.msra.mxu0 %v3504
    %3584 = vmatprep.subr.bf16.mxu0 0
    %3585 = vmatpush2.bf16.msra.mxu0 %v3519
    %3586 = vmatprep.subr.bf16.mxu0 0
    %3587 = vmatpush2.bf16.msra.mxu0 %v3518
    %3588 = vmatprep.subr.bf16.mxu0 0
    %3589 = vmatpush2.bf16.msra.mxu0 %v3517
    %3590 = vmatprep.subr.bf16.mxu0 0
    %3591 = vmatpush2.bf16.msra.mxu0 %v3516
    %3592 = vmatprep.subr.bf16.mxu0 0
    %3593 = vmatpush2.bf16.msra.mxu0 %v3515
    %3594 = vmatprep.subr.bf16.mxu0 0
    %3595 = vmatpush2.bf16.msra.mxu0 %v3514
    %3596 = vmatprep.subr.bf16.mxu0 0
    %3597 = vmatpush2.bf16.msra.mxu0 %v3513
    %3598 = vmatprep.subr.bf16.mxu0 0
    %3599 = vmatpush2.bf16.msra.mxu0 %v3512
    %3600 = vmatprep.mubr.bf16.mxu0 %v3298
    %3601 = vmatmul.mubr.bf16.gmra.mxu0 %v3297
    %v3602 = vpop.f32.mrf.mxu0
    %v3603 = vadd.f32 %v3374, %v3602
    %v3604 = vpop.f32.mrf.mxu0
    %v3605 = vpop.f32.mrf.mxu0
    %v3606 = vadd.f32 %v3374, %v3605
    %v3607 = vpop.f32.mrf.mxu0
    %3608 = vmatprep.mubr.bf16.mxu0 %v3302
    %3609 = vmatmul.mubr.bf16.gmra.mxu0 %v3301
    %v3610 = vpop.f32.mrf.mxu0
    %v3611 = vadd.f32 %v3374, %v3610
    %v3612 = vpop.f32.mrf.mxu0
    %v3613 = vpop.f32.mrf.mxu0
    %v3614 = vadd.f32 %v3374, %v3613
    %v3615 = vpop.f32.mrf.mxu0
    %3616 = vdwg.mxu0
    %3617 = vmatprep.subr.bf16.mxu0 0
    %3618 = vmatpush1.bf16.msra.mxu0 %v3527
    %3619 = vmatprep.subr.bf16.mxu0 0
    %3620 = vmatpush1.bf16.msra.mxu0 %v3526
    %3621 = vmatprep.subr.bf16.mxu0 0
    %3622 = vmatpush1.bf16.msra.mxu0 %v3525
    %3623 = vmatprep.subr.bf16.mxu0 0
    %3624 = vmatpush1.bf16.msra.mxu0 %v3524
    %3625 = vmatprep.subr.bf16.mxu0 0
    %3626 = vmatpush1.bf16.msra.mxu0 %v3523
    %3627 = vmatprep.subr.bf16.mxu0 0
    %3628 = vmatpush1.bf16.msra.mxu0 %v3522
    %3629 = vmatprep.subr.bf16.mxu0 0
    %3630 = vmatpush1.bf16.msra.mxu0 %v3521
    %3631 = vmatprep.subr.bf16.mxu0 0
    %3632 = vmatpush1.bf16.msra.mxu0 %v3520
    %3633 = vmatprep.subr.bf16.mxu0 0
    %3634 = vmatpush2.bf16.msra.mxu0 %v3535
    %3635 = vmatprep.subr.bf16.mxu0 0
    %3636 = vmatpush2.bf16.msra.mxu0 %v3534
    %3637 = vmatprep.subr.bf16.mxu0 0
    %3638 = vmatpush2.bf16.msra.mxu0 %v3533
    %3639 = vmatprep.subr.bf16.mxu0 0
    %3640 = vmatpush2.bf16.msra.mxu0 %v3532
    %3641 = vmatprep.subr.bf16.mxu0 0
    %3642 = vmatpush2.bf16.msra.mxu0 %v3531
    %3643 = vmatprep.subr.bf16.mxu0 0
    %3644 = vmatpush2.bf16.msra.mxu0 %v3530
    %3645 = vmatprep.subr.bf16.mxu0 0
    %3646 = vmatpush2.bf16.msra.mxu0 %v3529
    %3647 = vmatprep.subr.bf16.mxu0 0
    %3648 = vmatpush2.bf16.msra.mxu0 %v3528
    %3649 = vmatprep.mubr.bf16.mxu0 %v3300
    %3650 = vmatmul.mubr.bf16.gmra.mxu0 %v3299
    %v3651 = vpop.f32.mrf.mxu0
    %v3652 = vadd.f32 %v3603, %v3651
    %v3653 = vpop.f32.mrf.mxu0
    %v3654 = vpop.f32.mrf.mxu0
    %v3655 = vadd.f32 %v3606, %v3654
    %v3656 = vpop.f32.mrf.mxu0
    %3657 = vmatprep.mubr.bf16.mxu0 %v3304
    %3658 = vmatmul.mubr.bf16.gmra.mxu0 %v3303
    %v3659 = vpop.f32.mrf.mxu0
    %v3660 = vadd.f32 %v3611, %v3659
    %v3661 = vpop.f32.mrf.mxu0
    %v3662 = vpop.f32.mrf.mxu0
    %v3663 = vadd.f32 %v3614, %v3662
    %v3664 = vpop.f32.mrf.mxu0
    %3665 = vdwg.mxu0
    %v3666 = vadd.f32 %v2761, %v3652
    %v3667 = vadd.f32 %v2762, %v3655
    %v3668 = vadd.f32 %v2763, %v3660
    %v3669 = vadd.f32 %v2764, %v3663
    %s3670 = scalar_lea.vmem %s10, 1
    %v3671 = vld [vmem:[%s3670] sm:$0x1]
    %s3672 = scalar_lea.vmem %s11, 1
    %v3673 = vld [vmem:[%s3672] sm:$0x1]
    %3674 = vadd.xlane.f32.xlu0 %v3666
    %v3675 = vpop.xlane.xlu0 %3674
    %3676 = vadd.xlane.f32.xlu0 %v3667
    %v3677 = vpop.xlane.xlu0 %3676
    %3678 = vadd.xlane.f32.xlu0 %v3668
    %v3679 = vpop.xlane.xlu0 %3678
    %3680 = vadd.xlane.f32.xlu0 %v3669
    %v3681 = vpop.xlane.xlu0 %3680
    %v3682 = vmul.f32 %v3675, %v80
    %v3683 = vmul.f32 %v3677, %v80
    %v3684 = vmul.f32 %v3679, %v80
    %v3685 = vmul.f32 %v3681, %v80
    %v3686 = vsub.f32 %v3666, %v3682
    %v3687 = vsub.f32 %v3667, %v3683
    %v3688 = vsub.f32 %v3668, %v3684
    %v3689 = vsub.f32 %v3669, %v3685
    %v3690 = vmul.f32 %v3686, %v3686
    %v3691 = vmul.f32 %v3687, %v3687
    %v3692 = vmul.f32 %v3688, %v3688
    %v3693 = vmul.f32 %v3689, %v3689
    %3694 = vadd.xlane.f32.xlu0 %v3690
    %v3695 = vpop.xlane.xlu0 %3694
    %3696 = vadd.xlane.f32.xlu0 %v3691
    %v3697 = vpop.xlane.xlu0 %3696
    %3698 = vadd.xlane.f32.xlu0 %v3692
    %v3699 = vpop.xlane.xlu0 %3698
    %3700 = vadd.xlane.f32.xlu0 %v3693
    %v3701 = vpop.xlane.xlu0 %3700
    %v3702 = vmul.f32 %v3695, %v80
    %v3703 = vmul.f32 %v3697, %v80
    %v3704 = vmul.f32 %v3699, %v80
    %v3705 = vmul.f32 %v3701, %v80
    %v3706 = vadd.f32 %v3702, 1e-05
    %v3707 = vadd.f32 %v3703, 1e-05
    %v3708 = vadd.f32 %v3704, 1e-05
    %v3709 = vadd.f32 %v3705, 1e-05
    %v3710 = vrsqrt.pop %v3706
    %v3711 = vrsqrt.pop %v3707
    %v3712 = vrsqrt.pop %v3708
    %v3713 = vrsqrt.pop %v3709
    %v3714 = vmul.f32 %v3686, %v3710
    %v3715 = vmul.f32 %v3687, %v3711
    %v3716 = vmul.f32 %v3688, %v3712
    %v3717 = vmul.f32 %v3689, %v3713
    %v3719 = vlaneseq
    %v3720 = vshrl.u32 %v3719, 7
    %v3721 = vsub.s32 0, %v3720
    %v3722 = vrot.slane %v3671, %v3721
    %v3724 = vmul.f32 %v3714, %v3722
    %v3725 = vmul.f32 %v3715, %v3722
    %v3726 = vmul.f32 %v3716, %v3722
    %v3727 = vmul.f32 %v3717, %v3722
    %v3729 = vlaneseq
    %v3730 = vshrl.u32 %v3729, 7
    %v3731 = vsub.s32 0, %v3730
    %v3732 = vrot.slane %v3673, %v3731
    %v3734 = vadd.f32 %v3724, %v3732
    %v3735 = vadd.f32 %v3725, %v3732
    %v3736 = vadd.f32 %v3726, %v3732
    %v3737 = vadd.f32 %v3727, %v3732
    %v3738 = vpack.c.bf16 %v3735, %v3734
    %v3739 = vpack.c.bf16 %v3737, %v3736
    %s3740 = scalar_lea.vmem %s2, 256
    %v3741 = vld [vmem:[%s3740] sm:$0xf]
    %v3742 = vld [vmem:[%s3740 + $0x4] sm:$0xf]
    %v3743 = vld [vmem:[%s3740 + $0x8] sm:$0xf]
    %v3744 = vld [vmem:[%s3740 + $0xc] sm:$0xf]
    %v3745 = vld [vmem:[%s3740 + $0x10] sm:$0xf]
    %v3746 = vld [vmem:[%s3740 + $0x14] sm:$0xf]
    %v3747 = vld [vmem:[%s3740 + $0x18] sm:$0xf]
    %v3748 = vld [vmem:[%s3740 + $0x1c] sm:$0xf]
    %v3749 = vld [vmem:[%s3740 + $0x20] sm:$0xf]
    %v3750 = vld [vmem:[%s3740 + $0x24] sm:$0xf]
    %v3751 = vld [vmem:[%s3740 + $0x28] sm:$0xf]
    %v3752 = vld [vmem:[%s3740 + $0x2c] sm:$0xf]
    %v3753 = vld [vmem:[%s3740 + $0x30] sm:$0xf]
    %v3754 = vld [vmem:[%s3740 + $0x34] sm:$0xf]
    %v3755 = vld [vmem:[%s3740 + $0x38] sm:$0xf]
    %v3756 = vld [vmem:[%s3740 + $0x3c] sm:$0xf]
    %v3773 = vunpack.c.l.b16 %v3741
    %v3774 = vunpack.c.l.b16 %v3742
    %v3775 = vunpack.c.l.b16 %v3743
    %v3776 = vunpack.c.l.b16 %v3744
    %v3777 = vunpack.c.l.b16 %v3745
    %v3778 = vunpack.c.l.b16 %v3746
    %v3779 = vunpack.c.l.b16 %v3747
    %v3780 = vunpack.c.l.b16 %v3748
    %v3781 = vunpack.c.l.b16 %v3749
    %v3782 = vunpack.c.l.b16 %v3750
    %v3783 = vunpack.c.l.b16 %v3751
    %v3784 = vunpack.c.l.b16 %v3752
    %v3785 = vunpack.c.l.b16 %v3753
    %v3786 = vunpack.c.l.b16 %v3754
    %v3787 = vunpack.c.l.b16 %v3755
    %v3788 = vunpack.c.l.b16 %v3756
    %v3789 = vpack.c.b16 %v3774, %v3773
    %v3790 = vpack.c.b16 %v3776, %v3775
    %v3791 = vpack.c.b16 %v3778, %v3777
    %v3792 = vpack.c.b16 %v3780, %v3779
    %v3793 = vpack.c.b16 %v3782, %v3781
    %v3794 = vpack.c.b16 %v3784, %v3783
    %v3795 = vpack.c.b16 %v3786, %v3785
    %v3796 = vpack.c.b16 %v3788, %v3787
    %3805 = vmatprep.subr.bf16.mxu0 0
    %3806 = vmatpush1.bf16.msra.mxu0 %v3796
    %3807 = vmatprep.subr.bf16.mxu0 0
    %3808 = vmatpush1.bf16.msra.mxu0 %v3795
    %3809 = vmatprep.subr.bf16.mxu0 0
    %3810 = vmatpush1.bf16.msra.mxu0 %v3794
    %3811 = vmatprep.subr.bf16.mxu0 0
    %3812 = vmatpush1.bf16.msra.mxu0 %v3793
    %3813 = vmatprep.subr.bf16.mxu0 0
    %3814 = vmatpush1.bf16.msra.mxu0 %v3792
    %3815 = vmatprep.subr.bf16.mxu0 0
    %3816 = vmatpush1.bf16.msra.mxu0 %v3791
    %3817 = vmatprep.subr.bf16.mxu0 0
    %3818 = vmatpush1.bf16.msra.mxu0 %v3790
    %3819 = vmatprep.subr.bf16.mxu0 0
    %3820 = vmatpush1.bf16.msra.mxu0 %v3789
    %3821 = vmatprep.subr.bf16.mxu0 0
    %3822 = vmatpush2.bf16.msra.mxu0 0
    %3823 = vmatprep.subr.bf16.mxu0 0
    %3824 = vmatpush2.bf16.msra.mxu0 0
    %3825 = vmatprep.subr.bf16.mxu0 0
    %3826 = vmatpush2.bf16.msra.mxu0 0
    %3827 = vmatprep.subr.bf16.mxu0 0
    %3828 = vmatpush2.bf16.msra.mxu0 0
    %3829 = vmatprep.subr.bf16.mxu0 0
    %3830 = vmatpush2.bf16.msra.mxu0 0
    %3831 = vmatprep.subr.bf16.mxu0 0
    %3832 = vmatpush2.bf16.msra.mxu0 0
    %3833 = vmatprep.subr.bf16.mxu0 0
    %3834 = vmatpush2.bf16.msra.mxu0 0
    %3835 = vmatprep.subr.bf16.mxu0 0
    %3836 = vmatpush2.bf16.msra.mxu0 0
    %3837 = vmatprep.mubr.bf16.mxu0 0
    %3838 = vmatmul.mubr.bf16.gmra.mxu0 %v3738
    %v3839 = vpop.f32.mrf.mxu0
    %v3840 = vadd.f32 0.0, %v3839
    %v3841 = vpop.f32.mrf.mxu0
    %v3842 = vpop.f32.mrf.mxu0
    %v3843 = vadd.f32 0.0, %v3842
    %v3844 = vpop.f32.mrf.mxu0
    %3845 = vmatprep.mubr.bf16.mxu0 0
    %3846 = vmatmul.mubr.bf16.gmra.mxu0 %v3739
    %v3847 = vpop.f32.mrf.mxu0
    %v3848 = vadd.f32 0.0, %v3847
    %v3849 = vpop.f32.mrf.mxu0
    %v3850 = vpop.f32.mrf.mxu0
    %v3851 = vadd.f32 0.0, %v3850
    %v3852 = vpop.f32.mrf.mxu0
    %3853 = vdwg.mxu0
    %s3854 = scalar_lea.vmem %s3, 256
    %v3855 = vld [vmem:[%s3854] sm:$0xf]
    %v3856 = vld [vmem:[%s3854 + $0x4] sm:$0xf]
    %v3857 = vld [vmem:[%s3854 + $0x8] sm:$0xf]
    %v3858 = vld [vmem:[%s3854 + $0xc] sm:$0xf]
    %v3859 = vld [vmem:[%s3854 + $0x10] sm:$0xf]
    %v3860 = vld [vmem:[%s3854 + $0x14] sm:$0xf]
    %v3861 = vld [vmem:[%s3854 + $0x18] sm:$0xf]
    %v3862 = vld [vmem:[%s3854 + $0x1c] sm:$0xf]
    %v3863 = vld [vmem:[%s3854 + $0x20] sm:$0xf]
    %v3864 = vld [vmem:[%s3854 + $0x24] sm:$0xf]
    %v3865 = vld [vmem:[%s3854 + $0x28] sm:$0xf]
    %v3866 = vld [vmem:[%s3854 + $0x2c] sm:$0xf]
    %v3867 = vld [vmem:[%s3854 + $0x30] sm:$0xf]
    %v3868 = vld [vmem:[%s3854 + $0x34] sm:$0xf]
    %v3869 = vld [vmem:[%s3854 + $0x38] sm:$0xf]
    %v3870 = vld [vmem:[%s3854 + $0x3c] sm:$0xf]
    %v3887 = vunpack.c.l.b16 %v3855
    %v3888 = vunpack.c.l.b16 %v3856
    %v3889 = vunpack.c.l.b16 %v3857
    %v3890 = vunpack.c.l.b16 %v3858
    %v3891 = vunpack.c.l.b16 %v3859
    %v3892 = vunpack.c.l.b16 %v3860
    %v3893 = vunpack.c.l.b16 %v3861
    %v3894 = vunpack.c.l.b16 %v3862
    %v3895 = vunpack.c.l.b16 %v3863
    %v3896 = vunpack.c.l.b16 %v3864
    %v3897 = vunpack.c.l.b16 %v3865
    %v3898 = vunpack.c.l.b16 %v3866
    %v3899 = vunpack.c.l.b16 %v3867
    %v3900 = vunpack.c.l.b16 %v3868
    %v3901 = vunpack.c.l.b16 %v3869
    %v3902 = vunpack.c.l.b16 %v3870
    %v3903 = vpack.c.b16 %v3888, %v3887
    %v3904 = vpack.c.b16 %v3890, %v3889
    %v3905 = vpack.c.b16 %v3892, %v3891
    %v3906 = vpack.c.b16 %v3894, %v3893
    %v3907 = vpack.c.b16 %v3896, %v3895
    %v3908 = vpack.c.b16 %v3898, %v3897
    %v3909 = vpack.c.b16 %v3900, %v3899
    %v3910 = vpack.c.b16 %v3902, %v3901
    %3919 = vmatprep.subr.bf16.mxu0 0
    %3920 = vmatpush1.bf16.msra.mxu0 %v3910
    %3921 = vmatprep.subr.bf16.mxu0 0
    %3922 = vmatpush1.bf16.msra.mxu0 %v3909
    %3923 = vmatprep.subr.bf16.mxu0 0
    %3924 = vmatpush1.bf16.msra.mxu0 %v3908
    %3925 = vmatprep.subr.bf16.mxu0 0
    %3926 = vmatpush1.bf16.msra.mxu0 %v3907
    %3927 = vmatprep.subr.bf16.mxu0 0
    %3928 = vmatpush1.bf16.msra.mxu0 %v3906
    %3929 = vmatprep.subr.bf16.mxu0 0
    %3930 = vmatpush1.bf16.msra.mxu0 %v3905
    %3931 = vmatprep.subr.bf16.mxu0 0
    %3932 = vmatpush1.bf16.msra.mxu0 %v3904
    %3933 = vmatprep.subr.bf16.mxu0 0
    %3934 = vmatpush1.bf16.msra.mxu0 %v3903
    %3935 = vmatprep.subr.bf16.mxu0 0
    %3936 = vmatpush2.bf16.msra.mxu0 0
    %3937 = vmatprep.subr.bf16.mxu0 0
    %3938 = vmatpush2.bf16.msra.mxu0 0
    %3939 = vmatprep.subr.bf16.mxu0 0
    %3940 = vmatpush2.bf16.msra.mxu0 0
    %3941 = vmatprep.subr.bf16.mxu0 0
    %3942 = vmatpush2.bf16.msra.mxu0 0
    %3943 = vmatprep.subr.bf16.mxu0 0
    %3944 = vmatpush2.bf16.msra.mxu0 0
    %3945 = vmatprep.subr.bf16.mxu0 0
    %3946 = vmatpush2.bf16.msra.mxu0 0
    %3947 = vmatprep.subr.bf16.mxu0 0
    %3948 = vmatpush2.bf16.msra.mxu0 0
    %3949 = vmatprep.subr.bf16.mxu0 0
    %3950 = vmatpush2.bf16.msra.mxu0 0
    %3951 = vmatprep.mubr.bf16.mxu0 0
    %3952 = vmatmul.mubr.bf16.gmra.mxu0 %v3738
    %v3953 = vpop.f32.mrf.mxu0
    %v3954 = vadd.f32 0.0, %v3953
    %v3955 = vpop.f32.mrf.mxu0
    %v3956 = vpop.f32.mrf.mxu0
    %v3957 = vadd.f32 0.0, %v3956
    %v3958 = vpop.f32.mrf.mxu0
    %3959 = vmatprep.mubr.bf16.mxu0 0
    %3960 = vmatmul.mubr.bf16.gmra.mxu0 %v3739
    %v3961 = vpop.f32.mrf.mxu0
    %v3962 = vadd.f32 0.0, %v3961
    %v3963 = vpop.f32.mrf.mxu0
    %v3964 = vpop.f32.mrf.mxu0
    %v3965 = vadd.f32 0.0, %v3964
    %v3966 = vpop.f32.mrf.mxu0
    %3967 = vdwg.mxu0
    %s3968 = scalar_lea.vmem %s4, 256
    %v3969 = vld [vmem:[%s3968] sm:$0xf]
    %v3970 = vld [vmem:[%s3968 + $0x4] sm:$0xf]
    %v3971 = vld [vmem:[%s3968 + $0x8] sm:$0xf]
    %v3972 = vld [vmem:[%s3968 + $0xc] sm:$0xf]
    %v3973 = vld [vmem:[%s3968 + $0x10] sm:$0xf]
    %v3974 = vld [vmem:[%s3968 + $0x14] sm:$0xf]
    %v3975 = vld [vmem:[%s3968 + $0x18] sm:$0xf]
    %v3976 = vld [vmem:[%s3968 + $0x1c] sm:$0xf]
    %v3977 = vld [vmem:[%s3968 + $0x20] sm:$0xf]
    %v3978 = vld [vmem:[%s3968 + $0x24] sm:$0xf]
    %v3979 = vld [vmem:[%s3968 + $0x28] sm:$0xf]
    %v3980 = vld [vmem:[%s3968 + $0x2c] sm:$0xf]
    %v3981 = vld [vmem:[%s3968 + $0x30] sm:$0xf]
    %v3982 = vld [vmem:[%s3968 + $0x34] sm:$0xf]
    %v3983 = vld [vmem:[%s3968 + $0x38] sm:$0xf]
    %v3984 = vld [vmem:[%s3968 + $0x3c] sm:$0xf]
    %v4001 = vunpack.c.l.b16 %v3969
    %v4002 = vunpack.c.l.b16 %v3970
    %v4003 = vunpack.c.l.b16 %v3971
    %v4004 = vunpack.c.l.b16 %v3972
    %v4005 = vunpack.c.l.b16 %v3973
    %v4006 = vunpack.c.l.b16 %v3974
    %v4007 = vunpack.c.l.b16 %v3975
    %v4008 = vunpack.c.l.b16 %v3976
    %v4009 = vunpack.c.l.b16 %v3977
    %v4010 = vunpack.c.l.b16 %v3978
    %v4011 = vunpack.c.l.b16 %v3979
    %v4012 = vunpack.c.l.b16 %v3980
    %v4013 = vunpack.c.l.b16 %v3981
    %v4014 = vunpack.c.l.b16 %v3982
    %v4015 = vunpack.c.l.b16 %v3983
    %v4016 = vunpack.c.l.b16 %v3984
    %v4017 = vpack.c.b16 %v4002, %v4001
    %v4018 = vpack.c.b16 %v4004, %v4003
    %v4019 = vpack.c.b16 %v4006, %v4005
    %v4020 = vpack.c.b16 %v4008, %v4007
    %v4021 = vpack.c.b16 %v4010, %v4009
    %v4022 = vpack.c.b16 %v4012, %v4011
    %v4023 = vpack.c.b16 %v4014, %v4013
    %v4024 = vpack.c.b16 %v4016, %v4015
    %4033 = vmatprep.subr.bf16.mxu0 0
    %4034 = vmatpush1.bf16.msra.mxu0 %v4024
    %4035 = vmatprep.subr.bf16.mxu0 0
    %4036 = vmatpush1.bf16.msra.mxu0 %v4023
    %4037 = vmatprep.subr.bf16.mxu0 0
    %4038 = vmatpush1.bf16.msra.mxu0 %v4022
    %4039 = vmatprep.subr.bf16.mxu0 0
    %4040 = vmatpush1.bf16.msra.mxu0 %v4021
    %4041 = vmatprep.subr.bf16.mxu0 0
    %4042 = vmatpush1.bf16.msra.mxu0 %v4020
    %4043 = vmatprep.subr.bf16.mxu0 0
    %4044 = vmatpush1.bf16.msra.mxu0 %v4019
    %4045 = vmatprep.subr.bf16.mxu0 0
    %4046 = vmatpush1.bf16.msra.mxu0 %v4018
    %4047 = vmatprep.subr.bf16.mxu0 0
    %4048 = vmatpush1.bf16.msra.mxu0 %v4017
    %4049 = vmatprep.subr.bf16.mxu0 0
    %4050 = vmatpush2.bf16.msra.mxu0 0
    %4051 = vmatprep.subr.bf16.mxu0 0
    %4052 = vmatpush2.bf16.msra.mxu0 0
    %4053 = vmatprep.subr.bf16.mxu0 0
    %4054 = vmatpush2.bf16.msra.mxu0 0
    %4055 = vmatprep.subr.bf16.mxu0 0
    %4056 = vmatpush2.bf16.msra.mxu0 0
    %4057 = vmatprep.subr.bf16.mxu0 0
    %4058 = vmatpush2.bf16.msra.mxu0 0
    %4059 = vmatprep.subr.bf16.mxu0 0
    %4060 = vmatpush2.bf16.msra.mxu0 0
    %4061 = vmatprep.subr.bf16.mxu0 0
    %4062 = vmatpush2.bf16.msra.mxu0 0
    %4063 = vmatprep.subr.bf16.mxu0 0
    %4064 = vmatpush2.bf16.msra.mxu0 0
    %4065 = vmatprep.mubr.bf16.mxu0 0
    %4066 = vmatmul.mubr.bf16.gmra.mxu0 %v3738
    %v4067 = vpop.f32.mrf.mxu0
    %v4068 = vadd.f32 0.0, %v4067
    %v4069 = vpop.f32.mrf.mxu0
    %v4070 = vpop.f32.mrf.mxu0
    %v4071 = vadd.f32 0.0, %v4070
    %v4072 = vpop.f32.mrf.mxu0
    %4073 = vmatprep.mubr.bf16.mxu0 0
    %4074 = vmatmul.mubr.bf16.gmra.mxu0 %v3739
    %v4075 = vpop.f32.mrf.mxu0
    %v4076 = vadd.f32 0.0, %v4075
    %v4077 = vpop.f32.mrf.mxu0
    %v4078 = vpop.f32.mrf.mxu0
    %v4079 = vadd.f32 0.0, %v4078
    %v4080 = vpop.f32.mrf.mxu0
    %4081 = vdwg.mxu0
    %v4082 = vmul.f32 %v3840, 0.17677669
    %v4083 = vmul.f32 %v3843, 0.17677669
    %v4084 = vmul.f32 %v3848, 0.17677669
    %v4085 = vmul.f32 %v3851, 0.17677669
    %v4086 = vpack.c.bf16 %v4083, %v4082
    %v4087 = vpack.c.bf16 %v4085, %v4084
    %v4088 = vpack.c.bf16 %v3957, %v3954
    %v4089 = vpack.c.bf16 %v3965, %v3962
    %v4090 = vpack.c.bf16 %v4071, %v4068
    %v4091 = vpack.c.bf16 %v4079, %v4076
    %v4093 = vsel %vm488, %v4086, 0
    %v4096 = vsel %vm488, %v4088, 0
    %4098 = vmatprep.subr.bf16.mxu0 0
    %4099 = vmatpush1.bf16.xpose.msra.mxu0 0
    %4100 = vmatprep.subr.bf16.mxu0 0
    %4101 = vmatpush1.bf16.xpose.msra.mxu0 0
    %4102 = vmatprep.subr.bf16.mxu0 0
    %4103 = vmatpush1.bf16.xpose.msra.mxu0 0
    %4104 = vmatprep.subr.bf16.mxu0 0
    %4105 = vmatpush1.bf16.xpose.msra.mxu0 0
    %4106 = vmatprep.subr.bf16.mxu0 0
    %4107 = vmatpush1.bf16.xpose.msra.mxu0 0
    %4108 = vmatprep.subr.bf16.mxu0 0
    %4109 = vmatpush1.bf16.xpose.msra.mxu0 0
    %4110 = vmatprep.subr.bf16.mxu0 0
    %4111 = vmatpush1.bf16.xpose.msra.mxu0 0
    %4112 = vmatprep.subr.bf16.mxu0 0
    %4113 = vmatpush1.bf16.xpose.msra.mxu0 %v4096
    %4114 = vmatprep.subr.bf16.mxu0 0
    %4115 = vmatpush2.bf16.xpose.msra.mxu0 0
    %4116 = vmatprep.subr.bf16.mxu0 0
    %4117 = vmatpush2.bf16.xpose.msra.mxu0 0
    %4118 = vmatprep.subr.bf16.mxu0 0
    %4119 = vmatpush2.bf16.xpose.msra.mxu0 0
    %4120 = vmatprep.subr.bf16.mxu0 0
    %4121 = vmatpush2.bf16.xpose.msra.mxu0 0
    %4122 = vmatprep.subr.bf16.mxu0 0
    %4123 = vmatpush2.bf16.xpose.msra.mxu0 0
    %4124 = vmatprep.subr.bf16.mxu0 0
    %4125 = vmatpush2.bf16.xpose.msra.mxu0 0
    %4126 = vmatprep.subr.bf16.mxu0 0
    %4127 = vmatpush2.bf16.xpose.msra.mxu0 0
    %4128 = vmatprep.subr.bf16.mxu0 0
    %4129 = vmatpush2.bf16.xpose.msra.mxu0 0
    %4130 = vmatprep.mubr.bf16.mxu0 0
    %4131 = vmatmul.mubr.bf16.gmra.mxu0 %v4093
    %v4132 = vpop.f32.mrf.mxu0
    %v4133 = vadd.f32 %v65, %v4132
    %v4134 = vpop.f32.mrf.mxu0
    %v4135 = vpop.f32.mrf.mxu0
    %v4136 = vadd.f32 %v65, %v4135
    %v4137 = vpop.f32.mrf.mxu0
    %4138 = vdwg.mxu0
    %v4139 = vsel %vm536, %v4133, -inf
    %4140 = vmax.xlane.f32.xlu0 %v4139
    %v4141 = vpop.xlane.xlu0 %4140
    %v4142 = vsel %vm536, %v4136, -inf
    %4143 = vmax.xlane.f32.xlu0 %v4142
    %v4144 = vpop.xlane.xlu0 %4143
    %v4145 = vsub.f32 %v4133, %v4141
    %v4146 = vsub.f32 %v4136, %v4144
    %v4147 = vmul.f32 %v4145, 1.442695
    %v4148 = vpow.pop %v4147
    %v4149 = vmul.f32 %v4146, 1.442695
    %v4150 = vpow.pop %v4149
    %v4151 = vsel %vm536, %v4148, 0.0
    %4152 = vadd.xlane.f32.xlu0 %v4151
    %v4153 = vpop.xlane.xlu0 %4152
    %v4154 = vsel %vm536, %v4150, 0.0
    %4155 = vadd.xlane.f32.xlu0 %v4154
    %v4156 = vpop.xlane.xlu0 %4155
    %v4157 = vrcp.pop %v4153
    %v4158 = vrcp.pop %v4156
    %v4159 = vmul.f32 %v4148, %v4157
    %v4160 = vmul.f32 %v4150, %v4158
    %v4161 = vpack.c.bf16 %v4160, %v4159
    %v4163 = vsel %vm536, %v4161, 0
    %4165 = vmatprep.subr.bf16.mxu0 0
    %4166 = vmatpush1.bf16.msra.mxu0 0
    %4167 = vmatprep.subr.bf16.mxu0 0
    %4168 = vmatpush1.bf16.msra.mxu0 0
    %4169 = vmatprep.subr.bf16.mxu0 0
    %4170 = vmatpush1.bf16.msra.mxu0 0
    %4171 = vmatprep.subr.bf16.mxu0 0
    %4172 = vmatpush1.bf16.msra.mxu0 0
    %4173 = vmatprep.subr.bf16.mxu0 0
    %4174 = vmatpush1.bf16.msra.mxu0 0
    %4175 = vmatprep.subr.bf16.mxu0 0
    %4176 = vmatpush1.bf16.msra.mxu0 0
    %4177 = vmatprep.subr.bf16.mxu0 0
    %4178 = vmatpush1.bf16.msra.mxu0 0
    %4179 = vmatprep.subr.bf16.mxu0 0
    %4180 = vmatpush1.bf16.msra.mxu0 %v4090
    %4181 = vmatprep.subr.bf16.mxu0 0
    %4182 = vmatpush2.bf16.msra.mxu0 0
    %4183 = vmatprep.subr.bf16.mxu0 0
    %4184 = vmatpush2.bf16.msra.mxu0 0
    %4185 = vmatprep.subr.bf16.mxu0 0
    %4186 = vmatpush2.bf16.msra.mxu0 0
    %4187 = vmatprep.subr.bf16.mxu0 0
    %4188 = vmatpush2.bf16.msra.mxu0 0
    %4189 = vmatprep.subr.bf16.mxu0 0
    %4190 = vmatpush2.bf16.msra.mxu0 0
    %4191 = vmatprep.subr.bf16.mxu0 0
    %4192 = vmatpush2.bf16.msra.mxu0 0
    %4193 = vmatprep.subr.bf16.mxu0 0
    %4194 = vmatpush2.bf16.msra.mxu0 0
    %4195 = vmatprep.subr.bf16.mxu0 0
    %4196 = vmatpush2.bf16.msra.mxu0 0
    %4197 = vmatprep.mubr.bf16.mxu0 0
    %4198 = vmatmul.mubr.bf16.gmra.mxu0 %v4163
    %v4199 = vpop.f32.mrf.mxu0
    %v4200 = vadd.f32 0.0, %v4199
    %v4201 = vpop.f32.mrf.mxu0
    %v4202 = vpop.f32.mrf.mxu0
    %v4203 = vadd.f32 0.0, %v4202
    %v4204 = vpop.f32.mrf.mxu0
    %4205 = vdwg.mxu0
    %v4207 = vsel %vm488, %v4087, 0
    %v4210 = vsel %vm488, %v4089, 0
    %4212 = vmatprep.subr.bf16.mxu0 0
    %4213 = vmatpush1.bf16.xpose.msra.mxu0 0
    %4214 = vmatprep.subr.bf16.mxu0 0
    %4215 = vmatpush1.bf16.xpose.msra.mxu0 0
    %4216 = vmatprep.subr.bf16.mxu0 0
    %4217 = vmatpush1.bf16.xpose.msra.mxu0 0
    %4218 = vmatprep.subr.bf16.mxu0 0
    %4219 = vmatpush1.bf16.xpose.msra.mxu0 0
    %4220 = vmatprep.subr.bf16.mxu0 0
    %4221 = vmatpush1.bf16.xpose.msra.mxu0 0
    %4222 = vmatprep.subr.bf16.mxu0 0
    %4223 = vmatpush1.bf16.xpose.msra.mxu0 0
    %4224 = vmatprep.subr.bf16.mxu0 0
    %4225 = vmatpush1.bf16.xpose.msra.mxu0 0
    %4226 = vmatprep.subr.bf16.mxu0 0
    %4227 = vmatpush1.bf16.xpose.msra.mxu0 %v4210
    %4228 = vmatprep.subr.bf16.mxu0 0
    %4229 = vmatpush2.bf16.xpose.msra.mxu0 0
    %4230 = vmatprep.subr.bf16.mxu0 0
    %4231 = vmatpush2.bf16.xpose.msra.mxu0 0
    %4232 = vmatprep.subr.bf16.mxu0 0
    %4233 = vmatpush2.bf16.xpose.msra.mxu0 0
    %4234 = vmatprep.subr.bf16.mxu0 0
    %4235 = vmatpush2.bf16.xpose.msra.mxu0 0
    %4236 = vmatprep.subr.bf16.mxu0 0
    %4237 = vmatpush2.bf16.xpose.msra.mxu0 0
    %4238 = vmatprep.subr.bf16.mxu0 0
    %4239 = vmatpush2.bf16.xpose.msra.mxu0 0
    %4240 = vmatprep.subr.bf16.mxu0 0
    %4241 = vmatpush2.bf16.xpose.msra.mxu0 0
    %4242 = vmatprep.subr.bf16.mxu0 0
    %4243 = vmatpush2.bf16.xpose.msra.mxu0 0
    %4244 = vmatprep.mubr.bf16.mxu0 0
    %4245 = vmatmul.mubr.bf16.gmra.mxu0 %v4207
    %v4246 = vpop.f32.mrf.mxu0
    %v4247 = vadd.f32 %v69, %v4246
    %v4248 = vpop.f32.mrf.mxu0
    %v4249 = vpop.f32.mrf.mxu0
    %v4250 = vadd.f32 %v69, %v4249
    %v4251 = vpop.f32.mrf.mxu0
    %4252 = vdwg.mxu0
    %v4253 = vsel %vm536, %v4247, -inf
    %4254 = vmax.xlane.f32.xlu0 %v4253
    %v4255 = vpop.xlane.xlu0 %4254
    %v4256 = vsel %vm536, %v4250, -inf
    %4257 = vmax.xlane.f32.xlu0 %v4256
    %v4258 = vpop.xlane.xlu0 %4257
    %v4259 = vsub.f32 %v4247, %v4255
    %v4260 = vsub.f32 %v4250, %v4258
    %v4261 = vmul.f32 %v4259, 1.442695
    %v4262 = vpow.pop %v4261
    %v4263 = vmul.f32 %v4260, 1.442695
    %v4264 = vpow.pop %v4263
    %v4265 = vsel %vm536, %v4262, 0.0
    %4266 = vadd.xlane.f32.xlu0 %v4265
    %v4267 = vpop.xlane.xlu0 %4266
    %v4268 = vsel %vm536, %v4264, 0.0
    %4269 = vadd.xlane.f32.xlu0 %v4268
    %v4270 = vpop.xlane.xlu0 %4269
    %v4271 = vrcp.pop %v4267
    %v4272 = vrcp.pop %v4270
    %v4273 = vmul.f32 %v4262, %v4271
    %v4274 = vmul.f32 %v4264, %v4272
    %v4275 = vpack.c.bf16 %v4274, %v4273
    %v4277 = vsel %vm536, %v4275, 0
    %4279 = vmatprep.subr.bf16.mxu0 0
    %4280 = vmatpush1.bf16.msra.mxu0 0
    %4281 = vmatprep.subr.bf16.mxu0 0
    %4282 = vmatpush1.bf16.msra.mxu0 0
    %4283 = vmatprep.subr.bf16.mxu0 0
    %4284 = vmatpush1.bf16.msra.mxu0 0
    %4285 = vmatprep.subr.bf16.mxu0 0
    %4286 = vmatpush1.bf16.msra.mxu0 0
    %4287 = vmatprep.subr.bf16.mxu0 0
    %4288 = vmatpush1.bf16.msra.mxu0 0
    %4289 = vmatprep.subr.bf16.mxu0 0
    %4290 = vmatpush1.bf16.msra.mxu0 0
    %4291 = vmatprep.subr.bf16.mxu0 0
    %4292 = vmatpush1.bf16.msra.mxu0 0
    %4293 = vmatprep.subr.bf16.mxu0 0
    %4294 = vmatpush1.bf16.msra.mxu0 %v4091
    %4295 = vmatprep.subr.bf16.mxu0 0
    %4296 = vmatpush2.bf16.msra.mxu0 0
    %4297 = vmatprep.subr.bf16.mxu0 0
    %4298 = vmatpush2.bf16.msra.mxu0 0
    %4299 = vmatprep.subr.bf16.mxu0 0
    %4300 = vmatpush2.bf16.msra.mxu0 0
    %4301 = vmatprep.subr.bf16.mxu0 0
    %4302 = vmatpush2.bf16.msra.mxu0 0
    %4303 = vmatprep.subr.bf16.mxu0 0
    %4304 = vmatpush2.bf16.msra.mxu0 0
    %4305 = vmatprep.subr.bf16.mxu0 0
    %4306 = vmatpush2.bf16.msra.mxu0 0
    %4307 = vmatprep.subr.bf16.mxu0 0
    %4308 = vmatpush2.bf16.msra.mxu0 0
    %4309 = vmatprep.subr.bf16.mxu0 0
    %4310 = vmatpush2.bf16.msra.mxu0 0
    %4311 = vmatprep.mubr.bf16.mxu0 0
    %4312 = vmatmul.mubr.bf16.gmra.mxu0 %v4277
    %v4313 = vpop.f32.mrf.mxu0
    %v4314 = vadd.f32 0.0, %v4313
    %v4315 = vpop.f32.mrf.mxu0
    %v4316 = vpop.f32.mrf.mxu0
    %v4317 = vadd.f32 0.0, %v4316
    %v4318 = vpop.f32.mrf.mxu0
    %4319 = vdwg.mxu0
    %v4320 = vpack.c.bf16 %v4203, %v4200
    %v4321 = vpack.c.bf16 %v4317, %v4314
    %s4322 = scalar_lea.vmem %s5, 64
    %v4323 = vld [vmem:[%s4322] sm:$0xf]
    %v4324 = vld [vmem:[%s4322 + $0x4] sm:$0xf]
    %v4325 = vld [vmem:[%s4322 + $0x8] sm:$0xf]
    %v4326 = vld [vmem:[%s4322 + $0xc] sm:$0xf]
    %s4327 = scalar_lea.vmem %s2, 320
    %v4328 = vld [vmem:[%s4327] sm:$0xf]
    %v4329 = vld [vmem:[%s4327 + $0x4] sm:$0xf]
    %v4330 = vld [vmem:[%s4327 + $0x8] sm:$0xf]
    %v4331 = vld [vmem:[%s4327 + $0xc] sm:$0xf]
    %v4332 = vld [vmem:[%s4327 + $0x10] sm:$0xf]
    %v4333 = vld [vmem:[%s4327 + $0x14] sm:$0xf]
    %v4334 = vld [vmem:[%s4327 + $0x18] sm:$0xf]
    %v4335 = vld [vmem:[%s4327 + $0x1c] sm:$0xf]
    %v4336 = vld [vmem:[%s4327 + $0x20] sm:$0xf]
    %v4337 = vld [vmem:[%s4327 + $0x24] sm:$0xf]
    %v4338 = vld [vmem:[%s4327 + $0x28] sm:$0xf]
    %v4339 = vld [vmem:[%s4327 + $0x2c] sm:$0xf]
    %v4340 = vld [vmem:[%s4327 + $0x30] sm:$0xf]
    %v4341 = vld [vmem:[%s4327 + $0x34] sm:$0xf]
    %v4342 = vld [vmem:[%s4327 + $0x38] sm:$0xf]
    %v4343 = vld [vmem:[%s4327 + $0x3c] sm:$0xf]
    %v4360 = vunpack.c.l.b16 %v4328
    %v4361 = vunpack.c.l.b16 %v4329
    %v4362 = vunpack.c.l.b16 %v4330
    %v4363 = vunpack.c.l.b16 %v4331
    %v4364 = vunpack.c.l.b16 %v4332
    %v4365 = vunpack.c.l.b16 %v4333
    %v4366 = vunpack.c.l.b16 %v4334
    %v4367 = vunpack.c.l.b16 %v4335
    %v4368 = vunpack.c.l.b16 %v4336
    %v4369 = vunpack.c.l.b16 %v4337
    %v4370 = vunpack.c.l.b16 %v4338
    %v4371 = vunpack.c.l.b16 %v4339
    %v4372 = vunpack.c.l.b16 %v4340
    %v4373 = vunpack.c.l.b16 %v4341
    %v4374 = vunpack.c.l.b16 %v4342
    %v4375 = vunpack.c.l.b16 %v4343
    %v4376 = vpack.c.b16 %v4361, %v4360
    %v4377 = vpack.c.b16 %v4363, %v4362
    %v4378 = vpack.c.b16 %v4365, %v4364
    %v4379 = vpack.c.b16 %v4367, %v4366
    %v4380 = vpack.c.b16 %v4369, %v4368
    %v4381 = vpack.c.b16 %v4371, %v4370
    %v4382 = vpack.c.b16 %v4373, %v4372
    %v4383 = vpack.c.b16 %v4375, %v4374
    %4392 = vmatprep.subr.bf16.mxu0 0
    %4393 = vmatpush1.bf16.msra.mxu0 %v4383
    %4394 = vmatprep.subr.bf16.mxu0 0
    %4395 = vmatpush1.bf16.msra.mxu0 %v4382
    %4396 = vmatprep.subr.bf16.mxu0 0
    %4397 = vmatpush1.bf16.msra.mxu0 %v4381
    %4398 = vmatprep.subr.bf16.mxu0 0
    %4399 = vmatpush1.bf16.msra.mxu0 %v4380
    %4400 = vmatprep.subr.bf16.mxu0 0
    %4401 = vmatpush1.bf16.msra.mxu0 %v4379
    %4402 = vmatprep.subr.bf16.mxu0 0
    %4403 = vmatpush1.bf16.msra.mxu0 %v4378
    %4404 = vmatprep.subr.bf16.mxu0 0
    %4405 = vmatpush1.bf16.msra.mxu0 %v4377
    %4406 = vmatprep.subr.bf16.mxu0 0
    %4407 = vmatpush1.bf16.msra.mxu0 %v4376
    %4408 = vmatprep.subr.bf16.mxu0 0
    %4409 = vmatpush2.bf16.msra.mxu0 0
    %4410 = vmatprep.subr.bf16.mxu0 0
    %4411 = vmatpush2.bf16.msra.mxu0 0
    %4412 = vmatprep.subr.bf16.mxu0 0
    %4413 = vmatpush2.bf16.msra.mxu0 0
    %4414 = vmatprep.subr.bf16.mxu0 0
    %4415 = vmatpush2.bf16.msra.mxu0 0
    %4416 = vmatprep.subr.bf16.mxu0 0
    %4417 = vmatpush2.bf16.msra.mxu0 0
    %4418 = vmatprep.subr.bf16.mxu0 0
    %4419 = vmatpush2.bf16.msra.mxu0 0
    %4420 = vmatprep.subr.bf16.mxu0 0
    %4421 = vmatpush2.bf16.msra.mxu0 0
    %4422 = vmatprep.subr.bf16.mxu0 0
    %4423 = vmatpush2.bf16.msra.mxu0 0
    %4424 = vmatprep.mubr.bf16.mxu0 0
    %4425 = vmatmul.mubr.bf16.gmra.mxu0 %v3738
    %v4426 = vpop.f32.mrf.mxu0
    %v4427 = vadd.f32 0.0, %v4426
    %v4428 = vpop.f32.mrf.mxu0
    %v4429 = vpop.f32.mrf.mxu0
    %v4430 = vadd.f32 0.0, %v4429
    %v4431 = vpop.f32.mrf.mxu0
    %4432 = vmatprep.mubr.bf16.mxu0 0
    %4433 = vmatmul.mubr.bf16.gmra.mxu0 %v3739
    %v4434 = vpop.f32.mrf.mxu0
    %v4435 = vadd.f32 0.0, %v4434
    %v4436 = vpop.f32.mrf.mxu0
    %v4437 = vpop.f32.mrf.mxu0
    %v4438 = vadd.f32 0.0, %v4437
    %v4439 = vpop.f32.mrf.mxu0
    %4440 = vdwg.mxu0
    %s4441 = scalar_lea.vmem %s3, 320
    %v4442 = vld [vmem:[%s4441] sm:$0xf]
    %v4443 = vld [vmem:[%s4441 + $0x4] sm:$0xf]
    %v4444 = vld [vmem:[%s4441 + $0x8] sm:$0xf]
    %v4445 = vld [vmem:[%s4441 + $0xc] sm:$0xf]
    %v4446 = vld [vmem:[%s4441 + $0x10] sm:$0xf]
    %v4447 = vld [vmem:[%s4441 + $0x14] sm:$0xf]
    %v4448 = vld [vmem:[%s4441 + $0x18] sm:$0xf]
    %v4449 = vld [vmem:[%s4441 + $0x1c] sm:$0xf]
    %v4450 = vld [vmem:[%s4441 + $0x20] sm:$0xf]
    %v4451 = vld [vmem:[%s4441 + $0x24] sm:$0xf]
    %v4452 = vld [vmem:[%s4441 + $0x28] sm:$0xf]
    %v4453 = vld [vmem:[%s4441 + $0x2c] sm:$0xf]
    %v4454 = vld [vmem:[%s4441 + $0x30] sm:$0xf]
    %v4455 = vld [vmem:[%s4441 + $0x34] sm:$0xf]
    %v4456 = vld [vmem:[%s4441 + $0x38] sm:$0xf]
    %v4457 = vld [vmem:[%s4441 + $0x3c] sm:$0xf]
    %v4474 = vunpack.c.l.b16 %v4442
    %v4475 = vunpack.c.l.b16 %v4443
    %v4476 = vunpack.c.l.b16 %v4444
    %v4477 = vunpack.c.l.b16 %v4445
    %v4478 = vunpack.c.l.b16 %v4446
    %v4479 = vunpack.c.l.b16 %v4447
    %v4480 = vunpack.c.l.b16 %v4448
    %v4481 = vunpack.c.l.b16 %v4449
    %v4482 = vunpack.c.l.b16 %v4450
    %v4483 = vunpack.c.l.b16 %v4451
    %v4484 = vunpack.c.l.b16 %v4452
    %v4485 = vunpack.c.l.b16 %v4453
    %v4486 = vunpack.c.l.b16 %v4454
    %v4487 = vunpack.c.l.b16 %v4455
    %v4488 = vunpack.c.l.b16 %v4456
    %v4489 = vunpack.c.l.b16 %v4457
    %v4490 = vpack.c.b16 %v4475, %v4474
    %v4491 = vpack.c.b16 %v4477, %v4476
    %v4492 = vpack.c.b16 %v4479, %v4478
    %v4493 = vpack.c.b16 %v4481, %v4480
    %v4494 = vpack.c.b16 %v4483, %v4482
    %v4495 = vpack.c.b16 %v4485, %v4484
    %v4496 = vpack.c.b16 %v4487, %v4486
    %v4497 = vpack.c.b16 %v4489, %v4488
    %4506 = vmatprep.subr.bf16.mxu0 0
    %4507 = vmatpush1.bf16.msra.mxu0 %v4497
    %4508 = vmatprep.subr.bf16.mxu0 0
    %4509 = vmatpush1.bf16.msra.mxu0 %v4496
    %4510 = vmatprep.subr.bf16.mxu0 0
    %4511 = vmatpush1.bf16.msra.mxu0 %v4495
    %4512 = vmatprep.subr.bf16.mxu0 0
    %4513 = vmatpush1.bf16.msra.mxu0 %v4494
    %4514 = vmatprep.subr.bf16.mxu0 0
    %4515 = vmatpush1.bf16.msra.mxu0 %v4493
    %4516 = vmatprep.subr.bf16.mxu0 0
    %4517 = vmatpush1.bf16.msra.mxu0 %v4492
    %4518 = vmatprep.subr.bf16.mxu0 0
    %4519 = vmatpush1.bf16.msra.mxu0 %v4491
    %4520 = vmatprep.subr.bf16.mxu0 0
    %4521 = vmatpush1.bf16.msra.mxu0 %v4490
    %4522 = vmatprep.subr.bf16.mxu0 0
    %4523 = vmatpush2.bf16.msra.mxu0 0
    %4524 = vmatprep.subr.bf16.mxu0 0
    %4525 = vmatpush2.bf16.msra.mxu0 0
    %4526 = vmatprep.subr.bf16.mxu0 0
    %4527 = vmatpush2.bf16.msra.mxu0 0
    %4528 = vmatprep.subr.bf16.mxu0 0
    %4529 = vmatpush2.bf16.msra.mxu0 0
    %4530 = vmatprep.subr.bf16.mxu0 0
    %4531 = vmatpush2.bf16.msra.mxu0 0
    %4532 = vmatprep.subr.bf16.mxu0 0
    %4533 = vmatpush2.bf16.msra.mxu0 0
    %4534 = vmatprep.subr.bf16.mxu0 0
    %4535 = vmatpush2.bf16.msra.mxu0 0
    %4536 = vmatprep.subr.bf16.mxu0 0
    %4537 = vmatpush2.bf16.msra.mxu0 0
    %4538 = vmatprep.mubr.bf16.mxu0 0
    %4539 = vmatmul.mubr.bf16.gmra.mxu0 %v3738
    %v4540 = vpop.f32.mrf.mxu0
    %v4541 = vadd.f32 0.0, %v4540
    %v4542 = vpop.f32.mrf.mxu0
    %v4543 = vpop.f32.mrf.mxu0
    %v4544 = vadd.f32 0.0, %v4543
    %v4545 = vpop.f32.mrf.mxu0
    %4546 = vmatprep.mubr.bf16.mxu0 0
    %4547 = vmatmul.mubr.bf16.gmra.mxu0 %v3739
    %v4548 = vpop.f32.mrf.mxu0
    %v4549 = vadd.f32 0.0, %v4548
    %v4550 = vpop.f32.mrf.mxu0
    %v4551 = vpop.f32.mrf.mxu0
    %v4552 = vadd.f32 0.0, %v4551
    %v4553 = vpop.f32.mrf.mxu0
    %4554 = vdwg.mxu0
    %s4555 = scalar_lea.vmem %s4, 320
    %v4556 = vld [vmem:[%s4555] sm:$0xf]
    %v4557 = vld [vmem:[%s4555 + $0x4] sm:$0xf]
    %v4558 = vld [vmem:[%s4555 + $0x8] sm:$0xf]
    %v4559 = vld [vmem:[%s4555 + $0xc] sm:$0xf]
    %v4560 = vld [vmem:[%s4555 + $0x10] sm:$0xf]
    %v4561 = vld [vmem:[%s4555 + $0x14] sm:$0xf]
    %v4562 = vld [vmem:[%s4555 + $0x18] sm:$0xf]
    %v4563 = vld [vmem:[%s4555 + $0x1c] sm:$0xf]
    %v4564 = vld [vmem:[%s4555 + $0x20] sm:$0xf]
    %v4565 = vld [vmem:[%s4555 + $0x24] sm:$0xf]
    %v4566 = vld [vmem:[%s4555 + $0x28] sm:$0xf]
    %v4567 = vld [vmem:[%s4555 + $0x2c] sm:$0xf]
    %v4568 = vld [vmem:[%s4555 + $0x30] sm:$0xf]
    %v4569 = vld [vmem:[%s4555 + $0x34] sm:$0xf]
    %v4570 = vld [vmem:[%s4555 + $0x38] sm:$0xf]
    %v4571 = vld [vmem:[%s4555 + $0x3c] sm:$0xf]
    %v4588 = vunpack.c.l.b16 %v4556
    %v4589 = vunpack.c.l.b16 %v4557
    %v4590 = vunpack.c.l.b16 %v4558
    %v4591 = vunpack.c.l.b16 %v4559
    %v4592 = vunpack.c.l.b16 %v4560
    %v4593 = vunpack.c.l.b16 %v4561
    %v4594 = vunpack.c.l.b16 %v4562
    %v4595 = vunpack.c.l.b16 %v4563
    %v4596 = vunpack.c.l.b16 %v4564
    %v4597 = vunpack.c.l.b16 %v4565
    %v4598 = vunpack.c.l.b16 %v4566
    %v4599 = vunpack.c.l.b16 %v4567
    %v4600 = vunpack.c.l.b16 %v4568
    %v4601 = vunpack.c.l.b16 %v4569
    %v4602 = vunpack.c.l.b16 %v4570
    %v4603 = vunpack.c.l.b16 %v4571
    %v4604 = vpack.c.b16 %v4589, %v4588
    %v4605 = vpack.c.b16 %v4591, %v4590
    %v4606 = vpack.c.b16 %v4593, %v4592
    %v4607 = vpack.c.b16 %v4595, %v4594
    %v4608 = vpack.c.b16 %v4597, %v4596
    %v4609 = vpack.c.b16 %v4599, %v4598
    %v4610 = vpack.c.b16 %v4601, %v4600
    %v4611 = vpack.c.b16 %v4603, %v4602
    %4620 = vmatprep.subr.bf16.mxu0 0
    %4621 = vmatpush1.bf16.msra.mxu0 %v4611
    %4622 = vmatprep.subr.bf16.mxu0 0
    %4623 = vmatpush1.bf16.msra.mxu0 %v4610
    %4624 = vmatprep.subr.bf16.mxu0 0
    %4625 = vmatpush1.bf16.msra.mxu0 %v4609
    %4626 = vmatprep.subr.bf16.mxu0 0
    %4627 = vmatpush1.bf16.msra.mxu0 %v4608
    %4628 = vmatprep.subr.bf16.mxu0 0
    %4629 = vmatpush1.bf16.msra.mxu0 %v4607
    %4630 = vmatprep.subr.bf16.mxu0 0
    %4631 = vmatpush1.bf16.msra.mxu0 %v4606
    %4632 = vmatprep.subr.bf16.mxu0 0
    %4633 = vmatpush1.bf16.msra.mxu0 %v4605
    %4634 = vmatprep.subr.bf16.mxu0 0
    %4635 = vmatpush1.bf16.msra.mxu0 %v4604
    %4636 = vmatprep.subr.bf16.mxu0 0
    %4637 = vmatpush2.bf16.msra.mxu0 0
    %4638 = vmatprep.subr.bf16.mxu0 0
    %4639 = vmatpush2.bf16.msra.mxu0 0
    %4640 = vmatprep.subr.bf16.mxu0 0
    %4641 = vmatpush2.bf16.msra.mxu0 0
    %4642 = vmatprep.subr.bf16.mxu0 0
    %4643 = vmatpush2.bf16.msra.mxu0 0
    %4644 = vmatprep.subr.bf16.mxu0 0
    %4645 = vmatpush2.bf16.msra.mxu0 0
    %4646 = vmatprep.subr.bf16.mxu0 0
    %4647 = vmatpush2.bf16.msra.mxu0 0
    %4648 = vmatprep.subr.bf16.mxu0 0
    %4649 = vmatpush2.bf16.msra.mxu0 0
    %4650 = vmatprep.subr.bf16.mxu0 0
    %4651 = vmatpush2.bf16.msra.mxu0 0
    %4652 = vmatprep.mubr.bf16.mxu0 0
    %4653 = vmatmul.mubr.bf16.gmra.mxu0 %v3738
    %v4654 = vpop.f32.mrf.mxu0
    %v4655 = vadd.f32 0.0, %v4654
    %v4656 = vpop.f32.mrf.mxu0
    %v4657 = vpop.f32.mrf.mxu0
    %v4658 = vadd.f32 0.0, %v4657
    %v4659 = vpop.f32.mrf.mxu0
    %4660 = vmatprep.mubr.bf16.mxu0 0
    %4661 = vmatmul.mubr.bf16.gmra.mxu0 %v3739
    %v4662 = vpop.f32.mrf.mxu0
    %v4663 = vadd.f32 0.0, %v4662
    %v4664 = vpop.f32.mrf.mxu0
    %v4665 = vpop.f32.mrf.mxu0
    %v4666 = vadd.f32 0.0, %v4665
    %v4667 = vpop.f32.mrf.mxu0
    %4668 = vdwg.mxu0
    %v4669 = vmul.f32 %v4427, 0.17677669
    %v4670 = vmul.f32 %v4430, 0.17677669
    %v4671 = vmul.f32 %v4435, 0.17677669
    %v4672 = vmul.f32 %v4438, 0.17677669
    %v4673 = vpack.c.bf16 %v4670, %v4669
    %v4674 = vpack.c.bf16 %v4672, %v4671
    %v4675 = vpack.c.bf16 %v4544, %v4541
    %v4676 = vpack.c.bf16 %v4552, %v4549
    %v4677 = vpack.c.bf16 %v4658, %v4655
    %v4678 = vpack.c.bf16 %v4666, %v4663
    %v4680 = vsel %vm488, %v4673, 0
    %v4683 = vsel %vm488, %v4675, 0
    %4685 = vmatprep.subr.bf16.mxu0 0
    %4686 = vmatpush1.bf16.xpose.msra.mxu0 0
    %4687 = vmatprep.subr.bf16.mxu0 0
    %4688 = vmatpush1.bf16.xpose.msra.mxu0 0
    %4689 = vmatprep.subr.bf16.mxu0 0
    %4690 = vmatpush1.bf16.xpose.msra.mxu0 0
    %4691 = vmatprep.subr.bf16.mxu0 0
    %4692 = vmatpush1.bf16.xpose.msra.mxu0 0
    %4693 = vmatprep.subr.bf16.mxu0 0
    %4694 = vmatpush1.bf16.xpose.msra.mxu0 0
    %4695 = vmatprep.subr.bf16.mxu0 0
    %4696 = vmatpush1.bf16.xpose.msra.mxu0 0
    %4697 = vmatprep.subr.bf16.mxu0 0
    %4698 = vmatpush1.bf16.xpose.msra.mxu0 0
    %4699 = vmatprep.subr.bf16.mxu0 0
    %4700 = vmatpush1.bf16.xpose.msra.mxu0 %v4683
    %4701 = vmatprep.subr.bf16.mxu0 0
    %4702 = vmatpush2.bf16.xpose.msra.mxu0 0
    %4703 = vmatprep.subr.bf16.mxu0 0
    %4704 = vmatpush2.bf16.xpose.msra.mxu0 0
    %4705 = vmatprep.subr.bf16.mxu0 0
    %4706 = vmatpush2.bf16.xpose.msra.mxu0 0
    %4707 = vmatprep.subr.bf16.mxu0 0
    %4708 = vmatpush2.bf16.xpose.msra.mxu0 0
    %4709 = vmatprep.subr.bf16.mxu0 0
    %4710 = vmatpush2.bf16.xpose.msra.mxu0 0
    %4711 = vmatprep.subr.bf16.mxu0 0
    %4712 = vmatpush2.bf16.xpose.msra.mxu0 0
    %4713 = vmatprep.subr.bf16.mxu0 0
    %4714 = vmatpush2.bf16.xpose.msra.mxu0 0
    %4715 = vmatprep.subr.bf16.mxu0 0
    %4716 = vmatpush2.bf16.xpose.msra.mxu0 0
    %4717 = vmatprep.mubr.bf16.mxu0 0
    %4718 = vmatmul.mubr.bf16.gmra.mxu0 %v4680
    %v4719 = vpop.f32.mrf.mxu0
    %v4720 = vadd.f32 %v65, %v4719
    %v4721 = vpop.f32.mrf.mxu0
    %v4722 = vpop.f32.mrf.mxu0
    %v4723 = vadd.f32 %v65, %v4722
    %v4724 = vpop.f32.mrf.mxu0
    %4725 = vdwg.mxu0
    %v4726 = vsel %vm536, %v4720, -inf
    %4727 = vmax.xlane.f32.xlu0 %v4726
    %v4728 = vpop.xlane.xlu0 %4727
    %v4729 = vsel %vm536, %v4723, -inf
    %4730 = vmax.xlane.f32.xlu0 %v4729
    %v4731 = vpop.xlane.xlu0 %4730
    %v4732 = vsub.f32 %v4720, %v4728
    %v4733 = vsub.f32 %v4723, %v4731
    %v4734 = vmul.f32 %v4732, 1.442695
    %v4735 = vpow.pop %v4734
    %v4736 = vmul.f32 %v4733, 1.442695
    %v4737 = vpow.pop %v4736
    %v4738 = vsel %vm536, %v4735, 0.0
    %4739 = vadd.xlane.f32.xlu0 %v4738
    %v4740 = vpop.xlane.xlu0 %4739
    %v4741 = vsel %vm536, %v4737, 0.0
    %4742 = vadd.xlane.f32.xlu0 %v4741
    %v4743 = vpop.xlane.xlu0 %4742
    %v4744 = vrcp.pop %v4740
    %v4745 = vrcp.pop %v4743
    %v4746 = vmul.f32 %v4735, %v4744
    %v4747 = vmul.f32 %v4737, %v4745
    %v4748 = vpack.c.bf16 %v4747, %v4746
    %v4750 = vsel %vm536, %v4748, 0
    %4752 = vmatprep.subr.bf16.mxu0 0
    %4753 = vmatpush1.bf16.msra.mxu0 0
    %4754 = vmatprep.subr.bf16.mxu0 0
    %4755 = vmatpush1.bf16.msra.mxu0 0
    %4756 = vmatprep.subr.bf16.mxu0 0
    %4757 = vmatpush1.bf16.msra.mxu0 0
    %4758 = vmatprep.subr.bf16.mxu0 0
    %4759 = vmatpush1.bf16.msra.mxu0 0
    %4760 = vmatprep.subr.bf16.mxu0 0
    %4761 = vmatpush1.bf16.msra.mxu0 0
    %4762 = vmatprep.subr.bf16.mxu0 0
    %4763 = vmatpush1.bf16.msra.mxu0 0
    %4764 = vmatprep.subr.bf16.mxu0 0
    %4765 = vmatpush1.bf16.msra.mxu0 0
    %4766 = vmatprep.subr.bf16.mxu0 0
    %4767 = vmatpush1.bf16.msra.mxu0 %v4677
    %4768 = vmatprep.subr.bf16.mxu0 0
    %4769 = vmatpush2.bf16.msra.mxu0 0
    %4770 = vmatprep.subr.bf16.mxu0 0
    %4771 = vmatpush2.bf16.msra.mxu0 0
    %4772 = vmatprep.subr.bf16.mxu0 0
    %4773 = vmatpush2.bf16.msra.mxu0 0
    %4774 = vmatprep.subr.bf16.mxu0 0
    %4775 = vmatpush2.bf16.msra.mxu0 0
    %4776 = vmatprep.subr.bf16.mxu0 0
    %4777 = vmatpush2.bf16.msra.mxu0 0
    %4778 = vmatprep.subr.bf16.mxu0 0
    %4779 = vmatpush2.bf16.msra.mxu0 0
    %4780 = vmatprep.subr.bf16.mxu0 0
    %4781 = vmatpush2.bf16.msra.mxu0 0
    %4782 = vmatprep.subr.bf16.mxu0 0
    %4783 = vmatpush2.bf16.msra.mxu0 0
    %4784 = vmatprep.mubr.bf16.mxu0 0
    %4785 = vmatmul.mubr.bf16.gmra.mxu0 %v4750
    %v4786 = vpop.f32.mrf.mxu0
    %v4787 = vadd.f32 0.0, %v4786
    %v4788 = vpop.f32.mrf.mxu0
    %v4789 = vpop.f32.mrf.mxu0
    %v4790 = vadd.f32 0.0, %v4789
    %v4791 = vpop.f32.mrf.mxu0
    %4792 = vdwg.mxu0
    %v4794 = vsel %vm488, %v4674, 0
    %v4797 = vsel %vm488, %v4676, 0
    %4799 = vmatprep.subr.bf16.mxu0 0
    %4800 = vmatpush1.bf16.xpose.msra.mxu0 0
    %4801 = vmatprep.subr.bf16.mxu0 0
    %4802 = vmatpush1.bf16.xpose.msra.mxu0 0
    %4803 = vmatprep.subr.bf16.mxu0 0
    %4804 = vmatpush1.bf16.xpose.msra.mxu0 0
    %4805 = vmatprep.subr.bf16.mxu0 0
    %4806 = vmatpush1.bf16.xpose.msra.mxu0 0
    %4807 = vmatprep.subr.bf16.mxu0 0
    %4808 = vmatpush1.bf16.xpose.msra.mxu0 0
    %4809 = vmatprep.subr.bf16.mxu0 0
    %4810 = vmatpush1.bf16.xpose.msra.mxu0 0
    %4811 = vmatprep.subr.bf16.mxu0 0
    %4812 = vmatpush1.bf16.xpose.msra.mxu0 0
    %4813 = vmatprep.subr.bf16.mxu0 0
    %4814 = vmatpush1.bf16.xpose.msra.mxu0 %v4797
    %4815 = vmatprep.subr.bf16.mxu0 0
    %4816 = vmatpush2.bf16.xpose.msra.mxu0 0
    %4817 = vmatprep.subr.bf16.mxu0 0
    %4818 = vmatpush2.bf16.xpose.msra.mxu0 0
    %4819 = vmatprep.subr.bf16.mxu0 0
    %4820 = vmatpush2.bf16.xpose.msra.mxu0 0
    %4821 = vmatprep.subr.bf16.mxu0 0
    %4822 = vmatpush2.bf16.xpose.msra.mxu0 0
    %4823 = vmatprep.subr.bf16.mxu0 0
    %4824 = vmatpush2.bf16.xpose.msra.mxu0 0
    %4825 = vmatprep.subr.bf16.mxu0 0
    %4826 = vmatpush2.bf16.xpose.msra.mxu0 0
    %4827 = vmatprep.subr.bf16.mxu0 0
    %4828 = vmatpush2.bf16.xpose.msra.mxu0 0
    %4829 = vmatprep.subr.bf16.mxu0 0
    %4830 = vmatpush2.bf16.xpose.msra.mxu0 0
    %4831 = vmatprep.mubr.bf16.mxu0 0
    %4832 = vmatmul.mubr.bf16.gmra.mxu0 %v4794
    %v4833 = vpop.f32.mrf.mxu0
    %v4834 = vadd.f32 %v69, %v4833
    %v4835 = vpop.f32.mrf.mxu0
    %v4836 = vpop.f32.mrf.mxu0
    %v4837 = vadd.f32 %v69, %v4836
    %v4838 = vpop.f32.mrf.mxu0
    %4839 = vdwg.mxu0
    %v4840 = vsel %vm536, %v4834, -inf
    %4841 = vmax.xlane.f32.xlu0 %v4840
    %v4842 = vpop.xlane.xlu0 %4841
    %v4843 = vsel %vm536, %v4837, -inf
    %4844 = vmax.xlane.f32.xlu0 %v4843
    %v4845 = vpop.xlane.xlu0 %4844
    %v4846 = vsub.f32 %v4834, %v4842
    %v4847 = vsub.f32 %v4837, %v4845
    %v4848 = vmul.f32 %v4846, 1.442695
    %v4849 = vpow.pop %v4848
    %v4850 = vmul.f32 %v4847, 1.442695
    %v4851 = vpow.pop %v4850
    %v4852 = vsel %vm536, %v4849, 0.0
    %4853 = vadd.xlane.f32.xlu0 %v4852
    %v4854 = vpop.xlane.xlu0 %4853
    %v4855 = vsel %vm536, %v4851, 0.0
    %4856 = vadd.xlane.f32.xlu0 %v4855
    %v4857 = vpop.xlane.xlu0 %4856
    %v4858 = vrcp.pop %v4854
    %v4859 = vrcp.pop %v4857
    %v4860 = vmul.f32 %v4849, %v4858
    %v4861 = vmul.f32 %v4851, %v4859
    %v4862 = vpack.c.bf16 %v4861, %v4860
    %v4864 = vsel %vm536, %v4862, 0
    %4866 = vmatprep.subr.bf16.mxu0 0
    %4867 = vmatpush1.bf16.msra.mxu0 0
    %4868 = vmatprep.subr.bf16.mxu0 0
    %4869 = vmatpush1.bf16.msra.mxu0 0
    %4870 = vmatprep.subr.bf16.mxu0 0
    %4871 = vmatpush1.bf16.msra.mxu0 0
    %4872 = vmatprep.subr.bf16.mxu0 0
    %4873 = vmatpush1.bf16.msra.mxu0 0
    %4874 = vmatprep.subr.bf16.mxu0 0
    %4875 = vmatpush1.bf16.msra.mxu0 0
    %4876 = vmatprep.subr.bf16.mxu0 0
    %4877 = vmatpush1.bf16.msra.mxu0 0
    %4878 = vmatprep.subr.bf16.mxu0 0
    %4879 = vmatpush1.bf16.msra.mxu0 0
    %4880 = vmatprep.subr.bf16.mxu0 0
    %4881 = vmatpush1.bf16.msra.mxu0 %v4678
    %4882 = vmatprep.subr.bf16.mxu0 0
    %4883 = vmatpush2.bf16.msra.mxu0 0
    %4884 = vmatprep.subr.bf16.mxu0 0
    %4885 = vmatpush2.bf16.msra.mxu0 0
    %4886 = vmatprep.subr.bf16.mxu0 0
    %4887 = vmatpush2.bf16.msra.mxu0 0
    %4888 = vmatprep.subr.bf16.mxu0 0
    %4889 = vmatpush2.bf16.msra.mxu0 0
    %4890 = vmatprep.subr.bf16.mxu0 0
    %4891 = vmatpush2.bf16.msra.mxu0 0
    %4892 = vmatprep.subr.bf16.mxu0 0
    %4893 = vmatpush2.bf16.msra.mxu0 0
    %4894 = vmatprep.subr.bf16.mxu0 0
    %4895 = vmatpush2.bf16.msra.mxu0 0
    %4896 = vmatprep.subr.bf16.mxu0 0
    %4897 = vmatpush2.bf16.msra.mxu0 0
    %4898 = vmatprep.mubr.bf16.mxu0 0
    %4899 = vmatmul.mubr.bf16.gmra.mxu0 %v4864
    %v4900 = vpop.f32.mrf.mxu0
    %v4901 = vadd.f32 0.0, %v4900
    %v4902 = vpop.f32.mrf.mxu0
    %v4903 = vpop.f32.mrf.mxu0
    %v4904 = vadd.f32 0.0, %v4903
    %v4905 = vpop.f32.mrf.mxu0
    %4906 = vdwg.mxu0
    %v4907 = vpack.c.bf16 %v4790, %v4787
    %v4908 = vpack.c.bf16 %v4904, %v4901
    %s4909 = scalar_lea.vmem %s5, 80
    %v4910 = vld [vmem:[%s4909] sm:$0xf]
    %v4911 = vld [vmem:[%s4909 + $0x4] sm:$0xf]
    %v4912 = vld [vmem:[%s4909 + $0x8] sm:$0xf]
    %v4913 = vld [vmem:[%s4909 + $0xc] sm:$0xf]
    %v4918 = vunpack.c.l.b16 %v4910
    %v4919 = vunpack.c.l.b16 %v4911
    %v4920 = vunpack.c.l.b16 %v4912
    %v4921 = vunpack.c.l.b16 %v4913
    %v4922 = vpack.c.b16 %v4919, %v4918
    %v4923 = vpack.c.b16 %v4921, %v4920
    %v4927 = vsel %vm488, %v4907, 0
    %v4930 = vsel %vm488, %v4908, 0
    %4932 = vmatprep.subr.bf16.mxu0 0
    %4933 = vmatpush1.bf16.msra.mxu0 0
    %4934 = vmatprep.subr.bf16.mxu0 0
    %4935 = vmatpush1.bf16.msra.mxu0 0
    %4936 = vmatprep.subr.bf16.mxu0 0
    %4937 = vmatpush1.bf16.msra.mxu0 0
    %4938 = vmatprep.subr.bf16.mxu0 0
    %4939 = vmatpush1.bf16.msra.mxu0 0
    %4940 = vmatprep.subr.bf16.mxu0 0
    %4941 = vmatpush1.bf16.msra.mxu0 0
    %4942 = vmatprep.subr.bf16.mxu0 0
    %4943 = vmatpush1.bf16.msra.mxu0 0
    %4944 = vmatprep.subr.bf16.mxu0 0
    %4945 = vmatpush1.bf16.msra.mxu0 %v4923
    %4946 = vmatprep.subr.bf16.mxu0 0
    %4947 = vmatpush1.bf16.msra.mxu0 %v4922
    %4948 = vmatprep.subr.bf16.mxu0 0
    %4949 = vmatpush2.bf16.msra.mxu0 0
    %4950 = vmatprep.subr.bf16.mxu0 0
    %4951 = vmatpush2.bf16.msra.mxu0 0
    %4952 = vmatprep.subr.bf16.mxu0 0
    %4953 = vmatpush2.bf16.msra.mxu0 0
    %4954 = vmatprep.subr.bf16.mxu0 0
    %4955 = vmatpush2.bf16.msra.mxu0 0
    %4956 = vmatprep.subr.bf16.mxu0 0
    %4957 = vmatpush2.bf16.msra.mxu0 0
    %4958 = vmatprep.subr.bf16.mxu0 0
    %4959 = vmatpush2.bf16.msra.mxu0 0
    %4960 = vmatprep.subr.bf16.mxu0 0
    %4961 = vmatpush2.bf16.msra.mxu0 0
    %4962 = vmatprep.subr.bf16.mxu0 0
    %4963 = vmatpush2.bf16.msra.mxu0 0
    %4964 = vmatprep.mubr.bf16.mxu0 0
    %4965 = vmatmul.mubr.bf16.gmra.mxu0 %v4927
    %v4966 = vpop.f32.mrf.mxu0
    %v4967 = vadd.f32 0.0, %v4966
    %v4968 = vpop.f32.mrf.mxu0
    %v4969 = vpop.f32.mrf.mxu0
    %v4970 = vadd.f32 0.0, %v4969
    %v4971 = vpop.f32.mrf.mxu0
    %4972 = vmatprep.mubr.bf16.mxu0 0
    %4973 = vmatmul.mubr.bf16.gmra.mxu0 %v4930
    %v4974 = vpop.f32.mrf.mxu0
    %v4975 = vadd.f32 0.0, %v4974
    %v4976 = vpop.f32.mrf.mxu0
    %v4977 = vpop.f32.mrf.mxu0
    %v4978 = vadd.f32 0.0, %v4977
    %v4979 = vpop.f32.mrf.mxu0
    %4980 = vdwg.mxu0
    %v4985 = vunpack.c.l.b16 %v4323
    %v4986 = vunpack.c.l.b16 %v4324
    %v4987 = vunpack.c.l.b16 %v4325
    %v4988 = vunpack.c.l.b16 %v4326
    %v4989 = vpack.c.b16 %v4986, %v4985
    %v4990 = vpack.c.b16 %v4988, %v4987
    %v4994 = vsel %vm488, %v4320, 0
    %v4997 = vsel %vm488, %v4321, 0
    %4999 = vmatprep.subr.bf16.mxu0 0
    %5000 = vmatpush1.bf16.msra.mxu0 0
    %5001 = vmatprep.subr.bf16.mxu0 0
    %5002 = vmatpush1.bf16.msra.mxu0 0
    %5003 = vmatprep.subr.bf16.mxu0 0
    %5004 = vmatpush1.bf16.msra.mxu0 0
    %5005 = vmatprep.subr.bf16.mxu0 0
    %5006 = vmatpush1.bf16.msra.mxu0 0
    %5007 = vmatprep.subr.bf16.mxu0 0
    %5008 = vmatpush1.bf16.msra.mxu0 0
    %5009 = vmatprep.subr.bf16.mxu0 0
    %5010 = vmatpush1.bf16.msra.mxu0 0
    %5011 = vmatprep.subr.bf16.mxu0 0
    %5012 = vmatpush1.bf16.msra.mxu0 %v4990
    %5013 = vmatprep.subr.bf16.mxu0 0
    %5014 = vmatpush1.bf16.msra.mxu0 %v4989
    %5015 = vmatprep.subr.bf16.mxu0 0
    %5016 = vmatpush2.bf16.msra.mxu0 0
    %5017 = vmatprep.subr.bf16.mxu0 0
    %5018 = vmatpush2.bf16.msra.mxu0 0
    %5019 = vmatprep.subr.bf16.mxu0 0
    %5020 = vmatpush2.bf16.msra.mxu0 0
    %5021 = vmatprep.subr.bf16.mxu0 0
    %5022 = vmatpush2.bf16.msra.mxu0 0
    %5023 = vmatprep.subr.bf16.mxu0 0
    %5024 = vmatpush2.bf16.msra.mxu0 0
    %5025 = vmatprep.subr.bf16.mxu0 0
    %5026 = vmatpush2.bf16.msra.mxu0 0
    %5027 = vmatprep.subr.bf16.mxu0 0
    %5028 = vmatpush2.bf16.msra.mxu0 0
    %5029 = vmatprep.subr.bf16.mxu0 0
    %5030 = vmatpush2.bf16.msra.mxu0 0
    %5031 = vmatprep.mubr.bf16.mxu0 0
    %5032 = vmatmul.mubr.bf16.gmra.mxu0 %v4994
    %v5033 = vpop.f32.mrf.mxu0
    %v5034 = vadd.f32 %v4967, %v5033
    %v5035 = vpop.f32.mrf.mxu0
    %v5036 = vpop.f32.mrf.mxu0
    %v5037 = vadd.f32 %v4970, %v5036
    %v5038 = vpop.f32.mrf.mxu0
    %5039 = vmatprep.mubr.bf16.mxu0 0
    %5040 = vmatmul.mubr.bf16.gmra.mxu0 %v4997
    %v5041 = vpop.f32.mrf.mxu0
    %v5042 = vadd.f32 %v4975, %v5041
    %v5043 = vpop.f32.mrf.mxu0
    %v5044 = vpop.f32.mrf.mxu0
    %v5045 = vadd.f32 %v4978, %v5044
    %v5046 = vpop.f32.mrf.mxu0
    %5047 = vdwg.mxu0
    %s5048 = scalar_lea.vmem %s2, 384
    %v5049 = vld [vmem:[%s5048] sm:$0xf]
    %v5050 = vld [vmem:[%s5048 + $0x4] sm:$0xf]
    %v5051 = vld [vmem:[%s5048 + $0x8] sm:$0xf]
    %v5052 = vld [vmem:[%s5048 + $0xc] sm:$0xf]
    %v5053 = vld [vmem:[%s5048 + $0x10] sm:$0xf]
    %v5054 = vld [vmem:[%s5048 + $0x14] sm:$0xf]
    %v5055 = vld [vmem:[%s5048 + $0x18] sm:$0xf]
    %v5056 = vld [vmem:[%s5048 + $0x1c] sm:$0xf]
    %v5057 = vld [vmem:[%s5048 + $0x20] sm:$0xf]
    %v5058 = vld [vmem:[%s5048 + $0x24] sm:$0xf]
    %v5059 = vld [vmem:[%s5048 + $0x28] sm:$0xf]
    %v5060 = vld [vmem:[%s5048 + $0x2c] sm:$0xf]
    %v5061 = vld [vmem:[%s5048 + $0x30] sm:$0xf]
    %v5062 = vld [vmem:[%s5048 + $0x34] sm:$0xf]
    %v5063 = vld [vmem:[%s5048 + $0x38] sm:$0xf]
    %v5064 = vld [vmem:[%s5048 + $0x3c] sm:$0xf]
    %v5081 = vunpack.c.l.b16 %v5049
    %v5082 = vunpack.c.l.b16 %v5050
    %v5083 = vunpack.c.l.b16 %v5051
    %v5084 = vunpack.c.l.b16 %v5052
    %v5085 = vunpack.c.l.b16 %v5053
    %v5086 = vunpack.c.l.b16 %v5054
    %v5087 = vunpack.c.l.b16 %v5055
    %v5088 = vunpack.c.l.b16 %v5056
    %v5089 = vunpack.c.l.b16 %v5057
    %v5090 = vunpack.c.l.b16 %v5058
    %v5091 = vunpack.c.l.b16 %v5059
    %v5092 = vunpack.c.l.b16 %v5060
    %v5093 = vunpack.c.l.b16 %v5061
    %v5094 = vunpack.c.l.b16 %v5062
    %v5095 = vunpack.c.l.b16 %v5063
    %v5096 = vunpack.c.l.b16 %v5064
    %v5097 = vpack.c.b16 %v5082, %v5081
    %v5098 = vpack.c.b16 %v5084, %v5083
    %v5099 = vpack.c.b16 %v5086, %v5085
    %v5100 = vpack.c.b16 %v5088, %v5087
    %v5101 = vpack.c.b16 %v5090, %v5089
    %v5102 = vpack.c.b16 %v5092, %v5091
    %v5103 = vpack.c.b16 %v5094, %v5093
    %v5104 = vpack.c.b16 %v5096, %v5095
    %5113 = vmatprep.subr.bf16.mxu0 0
    %5114 = vmatpush1.bf16.msra.mxu0 %v5104
    %5115 = vmatprep.subr.bf16.mxu0 0
    %5116 = vmatpush1.bf16.msra.mxu0 %v5103
    %5117 = vmatprep.subr.bf16.mxu0 0
    %5118 = vmatpush1.bf16.msra.mxu0 %v5102
    %5119 = vmatprep.subr.bf16.mxu0 0
    %5120 = vmatpush1.bf16.msra.mxu0 %v5101
    %5121 = vmatprep.subr.bf16.mxu0 0
    %5122 = vmatpush1.bf16.msra.mxu0 %v5100
    %5123 = vmatprep.subr.bf16.mxu0 0
    %5124 = vmatpush1.bf16.msra.mxu0 %v5099
    %5125 = vmatprep.subr.bf16.mxu0 0
    %5126 = vmatpush1.bf16.msra.mxu0 %v5098
    %5127 = vmatprep.subr.bf16.mxu0 0
    %5128 = vmatpush1.bf16.msra.mxu0 %v5097
    %5129 = vmatprep.subr.bf16.mxu0 0
    %5130 = vmatpush2.bf16.msra.mxu0 0
    %5131 = vmatprep.subr.bf16.mxu0 0
    %5132 = vmatpush2.bf16.msra.mxu0 0
    %5133 = vmatprep.subr.bf16.mxu0 0
    %5134 = vmatpush2.bf16.msra.mxu0 0
    %5135 = vmatprep.subr.bf16.mxu0 0
    %5136 = vmatpush2.bf16.msra.mxu0 0
    %5137 = vmatprep.subr.bf16.mxu0 0
    %5138 = vmatpush2.bf16.msra.mxu0 0
    %5139 = vmatprep.subr.bf16.mxu0 0
    %5140 = vmatpush2.bf16.msra.mxu0 0
    %5141 = vmatprep.subr.bf16.mxu0 0
    %5142 = vmatpush2.bf16.msra.mxu0 0
    %5143 = vmatprep.subr.bf16.mxu0 0
    %5144 = vmatpush2.bf16.msra.mxu0 0
    %5145 = vmatprep.mubr.bf16.mxu0 0
    %5146 = vmatmul.mubr.bf16.gmra.mxu0 %v3738
    %v5147 = vpop.f32.mrf.mxu0
    %v5148 = vadd.f32 0.0, %v5147
    %v5149 = vpop.f32.mrf.mxu0
    %v5150 = vpop.f32.mrf.mxu0
    %v5151 = vadd.f32 0.0, %v5150
    %v5152 = vpop.f32.mrf.mxu0
    %5153 = vmatprep.mubr.bf16.mxu0 0
    %5154 = vmatmul.mubr.bf16.gmra.mxu0 %v3739
    %v5155 = vpop.f32.mrf.mxu0
    %v5156 = vadd.f32 0.0, %v5155
    %v5157 = vpop.f32.mrf.mxu0
    %v5158 = vpop.f32.mrf.mxu0
    %v5159 = vadd.f32 0.0, %v5158
    %v5160 = vpop.f32.mrf.mxu0
    %5161 = vdwg.mxu0
    %s5162 = scalar_lea.vmem %s3, 384
    %v5163 = vld [vmem:[%s5162] sm:$0xf]
    %v5164 = vld [vmem:[%s5162 + $0x4] sm:$0xf]
    %v5165 = vld [vmem:[%s5162 + $0x8] sm:$0xf]
    %v5166 = vld [vmem:[%s5162 + $0xc] sm:$0xf]
    %v5167 = vld [vmem:[%s5162 + $0x10] sm:$0xf]
    %v5168 = vld [vmem:[%s5162 + $0x14] sm:$0xf]
    %v5169 = vld [vmem:[%s5162 + $0x18] sm:$0xf]
    %v5170 = vld [vmem:[%s5162 + $0x1c] sm:$0xf]
    %v5171 = vld [vmem:[%s5162 + $0x20] sm:$0xf]
    %v5172 = vld [vmem:[%s5162 + $0x24] sm:$0xf]
    %v5173 = vld [vmem:[%s5162 + $0x28] sm:$0xf]
    %v5174 = vld [vmem:[%s5162 + $0x2c] sm:$0xf]
    %v5175 = vld [vmem:[%s5162 + $0x30] sm:$0xf]
    %v5176 = vld [vmem:[%s5162 + $0x34] sm:$0xf]
    %v5177 = vld [vmem:[%s5162 + $0x38] sm:$0xf]
    %v5178 = vld [vmem:[%s5162 + $0x3c] sm:$0xf]
    %v5195 = vunpack.c.l.b16 %v5163
    %v5196 = vunpack.c.l.b16 %v5164
    %v5197 = vunpack.c.l.b16 %v5165
    %v5198 = vunpack.c.l.b16 %v5166
    %v5199 = vunpack.c.l.b16 %v5167
    %v5200 = vunpack.c.l.b16 %v5168
    %v5201 = vunpack.c.l.b16 %v5169
    %v5202 = vunpack.c.l.b16 %v5170
    %v5203 = vunpack.c.l.b16 %v5171
    %v5204 = vunpack.c.l.b16 %v5172
    %v5205 = vunpack.c.l.b16 %v5173
    %v5206 = vunpack.c.l.b16 %v5174
    %v5207 = vunpack.c.l.b16 %v5175
    %v5208 = vunpack.c.l.b16 %v5176
    %v5209 = vunpack.c.l.b16 %v5177
    %v5210 = vunpack.c.l.b16 %v5178
    %v5211 = vpack.c.b16 %v5196, %v5195
    %v5212 = vpack.c.b16 %v5198, %v5197
    %v5213 = vpack.c.b16 %v5200, %v5199
    %v5214 = vpack.c.b16 %v5202, %v5201
    %v5215 = vpack.c.b16 %v5204, %v5203
    %v5216 = vpack.c.b16 %v5206, %v5205
    %v5217 = vpack.c.b16 %v5208, %v5207
    %v5218 = vpack.c.b16 %v5210, %v5209
    %5227 = vmatprep.subr.bf16.mxu0 0
    %5228 = vmatpush1.bf16.msra.mxu0 %v5218
    %5229 = vmatprep.subr.bf16.mxu0 0
    %5230 = vmatpush1.bf16.msra.mxu0 %v5217
    %5231 = vmatprep.subr.bf16.mxu0 0
    %5232 = vmatpush1.bf16.msra.mxu0 %v5216
    %5233 = vmatprep.subr.bf16.mxu0 0
    %5234 = vmatpush1.bf16.msra.mxu0 %v5215
    %5235 = vmatprep.subr.bf16.mxu0 0
    %5236 = vmatpush1.bf16.msra.mxu0 %v5214
    %5237 = vmatprep.subr.bf16.mxu0 0
    %5238 = vmatpush1.bf16.msra.mxu0 %v5213
    %5239 = vmatprep.subr.bf16.mxu0 0
    %5240 = vmatpush1.bf16.msra.mxu0 %v5212
    %5241 = vmatprep.subr.bf16.mxu0 0
    %5242 = vmatpush1.bf16.msra.mxu0 %v5211
    %5243 = vmatprep.subr.bf16.mxu0 0
    %5244 = vmatpush2.bf16.msra.mxu0 0
    %5245 = vmatprep.subr.bf16.mxu0 0
    %5246 = vmatpush2.bf16.msra.mxu0 0
    %5247 = vmatprep.subr.bf16.mxu0 0
    %5248 = vmatpush2.bf16.msra.mxu0 0
    %5249 = vmatprep.subr.bf16.mxu0 0
    %5250 = vmatpush2.bf16.msra.mxu0 0
    %5251 = vmatprep.subr.bf16.mxu0 0
    %5252 = vmatpush2.bf16.msra.mxu0 0
    %5253 = vmatprep.subr.bf16.mxu0 0
    %5254 = vmatpush2.bf16.msra.mxu0 0
    %5255 = vmatprep.subr.bf16.mxu0 0
    %5256 = vmatpush2.bf16.msra.mxu0 0
    %5257 = vmatprep.subr.bf16.mxu0 0
    %5258 = vmatpush2.bf16.msra.mxu0 0
    %5259 = vmatprep.mubr.bf16.mxu0 0
    %5260 = vmatmul.mubr.bf16.gmra.mxu0 %v3738
    %v5261 = vpop.f32.mrf.mxu0
    %v5262 = vadd.f32 0.0, %v5261
    %v5263 = vpop.f32.mrf.mxu0
    %v5264 = vpop.f32.mrf.mxu0
    %v5265 = vadd.f32 0.0, %v5264
    %v5266 = vpop.f32.mrf.mxu0
    %5267 = vmatprep.mubr.bf16.mxu0 0
    %5268 = vmatmul.mubr.bf16.gmra.mxu0 %v3739
    %v5269 = vpop.f32.mrf.mxu0
    %v5270 = vadd.f32 0.0, %v5269
    %v5271 = vpop.f32.mrf.mxu0
    %v5272 = vpop.f32.mrf.mxu0
    %v5273 = vadd.f32 0.0, %v5272
    %v5274 = vpop.f32.mrf.mxu0
    %5275 = vdwg.mxu0
    %s5276 = scalar_lea.vmem %s4, 384
    %v5277 = vld [vmem:[%s5276] sm:$0xf]
    %v5278 = vld [vmem:[%s5276 + $0x4] sm:$0xf]
    %v5279 = vld [vmem:[%s5276 + $0x8] sm:$0xf]
    %v5280 = vld [vmem:[%s5276 + $0xc] sm:$0xf]
    %v5281 = vld [vmem:[%s5276 + $0x10] sm:$0xf]
    %v5282 = vld [vmem:[%s5276 + $0x14] sm:$0xf]
    %v5283 = vld [vmem:[%s5276 + $0x18] sm:$0xf]
    %v5284 = vld [vmem:[%s5276 + $0x1c] sm:$0xf]
    %v5285 = vld [vmem:[%s5276 + $0x20] sm:$0xf]
    %v5286 = vld [vmem:[%s5276 + $0x24] sm:$0xf]
    %v5287 = vld [vmem:[%s5276 + $0x28] sm:$0xf]
    %v5288 = vld [vmem:[%s5276 + $0x2c] sm:$0xf]
    %v5289 = vld [vmem:[%s5276 + $0x30] sm:$0xf]
    %v5290 = vld [vmem:[%s5276 + $0x34] sm:$0xf]
    %v5291 = vld [vmem:[%s5276 + $0x38] sm:$0xf]
    %v5292 = vld [vmem:[%s5276 + $0x3c] sm:$0xf]
    %v5309 = vunpack.c.l.b16 %v5277
    %v5310 = vunpack.c.l.b16 %v5278
    %v5311 = vunpack.c.l.b16 %v5279
    %v5312 = vunpack.c.l.b16 %v5280
    %v5313 = vunpack.c.l.b16 %v5281
    %v5314 = vunpack.c.l.b16 %v5282
    %v5315 = vunpack.c.l.b16 %v5283
    %v5316 = vunpack.c.l.b16 %v5284
    %v5317 = vunpack.c.l.b16 %v5285
    %v5318 = vunpack.c.l.b16 %v5286
    %v5319 = vunpack.c.l.b16 %v5287
    %v5320 = vunpack.c.l.b16 %v5288
    %v5321 = vunpack.c.l.b16 %v5289
    %v5322 = vunpack.c.l.b16 %v5290
    %v5323 = vunpack.c.l.b16 %v5291
    %v5324 = vunpack.c.l.b16 %v5292
    %v5325 = vpack.c.b16 %v5310, %v5309
    %v5326 = vpack.c.b16 %v5312, %v5311
    %v5327 = vpack.c.b16 %v5314, %v5313
    %v5328 = vpack.c.b16 %v5316, %v5315
    %v5329 = vpack.c.b16 %v5318, %v5317
    %v5330 = vpack.c.b16 %v5320, %v5319
    %v5331 = vpack.c.b16 %v5322, %v5321
    %v5332 = vpack.c.b16 %v5324, %v5323
    %5341 = vmatprep.subr.bf16.mxu0 0
    %5342 = vmatpush1.bf16.msra.mxu0 %v5332
    %5343 = vmatprep.subr.bf16.mxu0 0
    %5344 = vmatpush1.bf16.msra.mxu0 %v5331
    %5345 = vmatprep.subr.bf16.mxu0 0
    %5346 = vmatpush1.bf16.msra.mxu0 %v5330
    %5347 = vmatprep.subr.bf16.mxu0 0
    %5348 = vmatpush1.bf16.msra.mxu0 %v5329
    %5349 = vmatprep.subr.bf16.mxu0 0
    %5350 = vmatpush1.bf16.msra.mxu0 %v5328
    %5351 = vmatprep.subr.bf16.mxu0 0
    %5352 = vmatpush1.bf16.msra.mxu0 %v5327
    %5353 = vmatprep.subr.bf16.mxu0 0
    %5354 = vmatpush1.bf16.msra.mxu0 %v5326
    %5355 = vmatprep.subr.bf16.mxu0 0
    %5356 = vmatpush1.bf16.msra.mxu0 %v5325
    %5357 = vmatprep.subr.bf16.mxu0 0
    %5358 = vmatpush2.bf16.msra.mxu0 0
    %5359 = vmatprep.subr.bf16.mxu0 0
    %5360 = vmatpush2.bf16.msra.mxu0 0
    %5361 = vmatprep.subr.bf16.mxu0 0
    %5362 = vmatpush2.bf16.msra.mxu0 0
    %5363 = vmatprep.subr.bf16.mxu0 0
    %5364 = vmatpush2.bf16.msra.mxu0 0
    %5365 = vmatprep.subr.bf16.mxu0 0
    %5366 = vmatpush2.bf16.msra.mxu0 0
    %5367 = vmatprep.subr.bf16.mxu0 0
    %5368 = vmatpush2.bf16.msra.mxu0 0
    %5369 = vmatprep.subr.bf16.mxu0 0
    %5370 = vmatpush2.bf16.msra.mxu0 0
    %5371 = vmatprep.subr.bf16.mxu0 0
    %5372 = vmatpush2.bf16.msra.mxu0 0
    %5373 = vmatprep.mubr.bf16.mxu0 0
    %5374 = vmatmul.mubr.bf16.gmra.mxu0 %v3738
    %v5375 = vpop.f32.mrf.mxu0
    %v5376 = vadd.f32 0.0, %v5375
    %v5377 = vpop.f32.mrf.mxu0
    %v5378 = vpop.f32.mrf.mxu0
    %v5379 = vadd.f32 0.0, %v5378
    %v5380 = vpop.f32.mrf.mxu0
    %5381 = vmatprep.mubr.bf16.mxu0 0
    %5382 = vmatmul.mubr.bf16.gmra.mxu0 %v3739
    %v5383 = vpop.f32.mrf.mxu0
    %v5384 = vadd.f32 0.0, %v5383
    %v5385 = vpop.f32.mrf.mxu0
    %v5386 = vpop.f32.mrf.mxu0
    %v5387 = vadd.f32 0.0, %v5386
    %v5388 = vpop.f32.mrf.mxu0
    %5389 = vdwg.mxu0
    %v5390 = vmul.f32 %v5148, 0.17677669
    %v5391 = vmul.f32 %v5151, 0.17677669
    %v5392 = vmul.f32 %v5156, 0.17677669
    %v5393 = vmul.f32 %v5159, 0.17677669
    %v5394 = vpack.c.bf16 %v5391, %v5390
    %v5395 = vpack.c.bf16 %v5393, %v5392
    %v5396 = vpack.c.bf16 %v5265, %v5262
    %v5397 = vpack.c.bf16 %v5273, %v5270
    %v5398 = vpack.c.bf16 %v5379, %v5376
    %v5399 = vpack.c.bf16 %v5387, %v5384
    %v5401 = vsel %vm488, %v5394, 0
    %v5404 = vsel %vm488, %v5396, 0
    %5406 = vmatprep.subr.bf16.mxu0 0
    %5407 = vmatpush1.bf16.xpose.msra.mxu0 0
    %5408 = vmatprep.subr.bf16.mxu0 0
    %5409 = vmatpush1.bf16.xpose.msra.mxu0 0
    %5410 = vmatprep.subr.bf16.mxu0 0
    %5411 = vmatpush1.bf16.xpose.msra.mxu0 0
    %5412 = vmatprep.subr.bf16.mxu0 0
    %5413 = vmatpush1.bf16.xpose.msra.mxu0 0
    %5414 = vmatprep.subr.bf16.mxu0 0
    %5415 = vmatpush1.bf16.xpose.msra.mxu0 0
    %5416 = vmatprep.subr.bf16.mxu0 0
    %5417 = vmatpush1.bf16.xpose.msra.mxu0 0
    %5418 = vmatprep.subr.bf16.mxu0 0
    %5419 = vmatpush1.bf16.xpose.msra.mxu0 0
    %5420 = vmatprep.subr.bf16.mxu0 0
    %5421 = vmatpush1.bf16.xpose.msra.mxu0 %v5404
    %5422 = vmatprep.subr.bf16.mxu0 0
    %5423 = vmatpush2.bf16.xpose.msra.mxu0 0
    %5424 = vmatprep.subr.bf16.mxu0 0
    %5425 = vmatpush2.bf16.xpose.msra.mxu0 0
    %5426 = vmatprep.subr.bf16.mxu0 0
    %5427 = vmatpush2.bf16.xpose.msra.mxu0 0
    %5428 = vmatprep.subr.bf16.mxu0 0
    %5429 = vmatpush2.bf16.xpose.msra.mxu0 0
    %5430 = vmatprep.subr.bf16.mxu0 0
    %5431 = vmatpush2.bf16.xpose.msra.mxu0 0
    %5432 = vmatprep.subr.bf16.mxu0 0
    %5433 = vmatpush2.bf16.xpose.msra.mxu0 0
    %5434 = vmatprep.subr.bf16.mxu0 0
    %5435 = vmatpush2.bf16.xpose.msra.mxu0 0
    %5436 = vmatprep.subr.bf16.mxu0 0
    %5437 = vmatpush2.bf16.xpose.msra.mxu0 0
    %5438 = vmatprep.mubr.bf16.mxu0 0
    %5439 = vmatmul.mubr.bf16.gmra.mxu0 %v5401
    %v5440 = vpop.f32.mrf.mxu0
    %v5441 = vadd.f32 %v65, %v5440
    %v5442 = vpop.f32.mrf.mxu0
    %v5443 = vpop.f32.mrf.mxu0
    %v5444 = vadd.f32 %v65, %v5443
    %v5445 = vpop.f32.mrf.mxu0
    %5446 = vdwg.mxu0
    %v5447 = vsel %vm536, %v5441, -inf
    %5448 = vmax.xlane.f32.xlu0 %v5447
    %v5449 = vpop.xlane.xlu0 %5448
    %v5450 = vsel %vm536, %v5444, -inf
    %5451 = vmax.xlane.f32.xlu0 %v5450
    %v5452 = vpop.xlane.xlu0 %5451
    %v5453 = vsub.f32 %v5441, %v5449
    %v5454 = vsub.f32 %v5444, %v5452
    %v5455 = vmul.f32 %v5453, 1.442695
    %v5456 = vpow.pop %v5455
    %v5457 = vmul.f32 %v5454, 1.442695
    %v5458 = vpow.pop %v5457
    %v5459 = vsel %vm536, %v5456, 0.0
    %5460 = vadd.xlane.f32.xlu0 %v5459
    %v5461 = vpop.xlane.xlu0 %5460
    %v5462 = vsel %vm536, %v5458, 0.0
    %5463 = vadd.xlane.f32.xlu0 %v5462
    %v5464 = vpop.xlane.xlu0 %5463
    %v5465 = vrcp.pop %v5461
    %v5466 = vrcp.pop %v5464
    %v5467 = vmul.f32 %v5456, %v5465
    %v5468 = vmul.f32 %v5458, %v5466
    %v5469 = vpack.c.bf16 %v5468, %v5467
    %v5471 = vsel %vm536, %v5469, 0
    %5473 = vmatprep.subr.bf16.mxu0 0
    %5474 = vmatpush1.bf16.msra.mxu0 0
    %5475 = vmatprep.subr.bf16.mxu0 0
    %5476 = vmatpush1.bf16.msra.mxu0 0
    %5477 = vmatprep.subr.bf16.mxu0 0
    %5478 = vmatpush1.bf16.msra.mxu0 0
    %5479 = vmatprep.subr.bf16.mxu0 0
    %5480 = vmatpush1.bf16.msra.mxu0 0
    %5481 = vmatprep.subr.bf16.mxu0 0
    %5482 = vmatpush1.bf16.msra.mxu0 0
    %5483 = vmatprep.subr.bf16.mxu0 0
    %5484 = vmatpush1.bf16.msra.mxu0 0
    %5485 = vmatprep.subr.bf16.mxu0 0
    %5486 = vmatpush1.bf16.msra.mxu0 0
    %5487 = vmatprep.subr.bf16.mxu0 0
    %5488 = vmatpush1.bf16.msra.mxu0 %v5398
    %5489 = vmatprep.subr.bf16.mxu0 0
    %5490 = vmatpush2.bf16.msra.mxu0 0
    %5491 = vmatprep.subr.bf16.mxu0 0
    %5492 = vmatpush2.bf16.msra.mxu0 0
    %5493 = vmatprep.subr.bf16.mxu0 0
    %5494 = vmatpush2.bf16.msra.mxu0 0
    %5495 = vmatprep.subr.bf16.mxu0 0
    %5496 = vmatpush2.bf16.msra.mxu0 0
    %5497 = vmatprep.subr.bf16.mxu0 0
    %5498 = vmatpush2.bf16.msra.mxu0 0
    %5499 = vmatprep.subr.bf16.mxu0 0
    %5500 = vmatpush2.bf16.msra.mxu0 0
    %5501 = vmatprep.subr.bf16.mxu0 0
    %5502 = vmatpush2.bf16.msra.mxu0 0
    %5503 = vmatprep.subr.bf16.mxu0 0
    %5504 = vmatpush2.bf16.msra.mxu0 0
    %5505 = vmatprep.mubr.bf16.mxu0 0
    %5506 = vmatmul.mubr.bf16.gmra.mxu0 %v5471
    %v5507 = vpop.f32.mrf.mxu0
    %v5508 = vadd.f32 0.0, %v5507
    %v5509 = vpop.f32.mrf.mxu0
    %v5510 = vpop.f32.mrf.mxu0
    %v5511 = vadd.f32 0.0, %v5510
    %v5512 = vpop.f32.mrf.mxu0
    %5513 = vdwg.mxu0
    %v5515 = vsel %vm488, %v5395, 0
    %v5518 = vsel %vm488, %v5397, 0
    %5520 = vmatprep.subr.bf16.mxu0 0
    %5521 = vmatpush1.bf16.xpose.msra.mxu0 0
    %5522 = vmatprep.subr.bf16.mxu0 0
    %5523 = vmatpush1.bf16.xpose.msra.mxu0 0
    %5524 = vmatprep.subr.bf16.mxu0 0
    %5525 = vmatpush1.bf16.xpose.msra.mxu0 0
    %5526 = vmatprep.subr.bf16.mxu0 0
    %5527 = vmatpush1.bf16.xpose.msra.mxu0 0
    %5528 = vmatprep.subr.bf16.mxu0 0
    %5529 = vmatpush1.bf16.xpose.msra.mxu0 0
    %5530 = vmatprep.subr.bf16.mxu0 0
    %5531 = vmatpush1.bf16.xpose.msra.mxu0 0
    %5532 = vmatprep.subr.bf16.mxu0 0
    %5533 = vmatpush1.bf16.xpose.msra.mxu0 0
    %5534 = vmatprep.subr.bf16.mxu0 0
    %5535 = vmatpush1.bf16.xpose.msra.mxu0 %v5518
    %5536 = vmatprep.subr.bf16.mxu0 0
    %5537 = vmatpush2.bf16.xpose.msra.mxu0 0
    %5538 = vmatprep.subr.bf16.mxu0 0
    %5539 = vmatpush2.bf16.xpose.msra.mxu0 0
    %5540 = vmatprep.subr.bf16.mxu0 0
    %5541 = vmatpush2.bf16.xpose.msra.mxu0 0
    %5542 = vmatprep.subr.bf16.mxu0 0
    %5543 = vmatpush2.bf16.xpose.msra.mxu0 0
    %5544 = vmatprep.subr.bf16.mxu0 0
    %5545 = vmatpush2.bf16.xpose.msra.mxu0 0
    %5546 = vmatprep.subr.bf16.mxu0 0
    %5547 = vmatpush2.bf16.xpose.msra.mxu0 0
    %5548 = vmatprep.subr.bf16.mxu0 0
    %5549 = vmatpush2.bf16.xpose.msra.mxu0 0
    %5550 = vmatprep.subr.bf16.mxu0 0
    %5551 = vmatpush2.bf16.xpose.msra.mxu0 0
    %5552 = vmatprep.mubr.bf16.mxu0 0
    %5553 = vmatmul.mubr.bf16.gmra.mxu0 %v5515
    %v5554 = vpop.f32.mrf.mxu0
    %v5555 = vadd.f32 %v69, %v5554
    %v5556 = vpop.f32.mrf.mxu0
    %v5557 = vpop.f32.mrf.mxu0
    %v5558 = vadd.f32 %v69, %v5557
    %v5559 = vpop.f32.mrf.mxu0
    %5560 = vdwg.mxu0
    %v5561 = vsel %vm536, %v5555, -inf
    %5562 = vmax.xlane.f32.xlu0 %v5561
    %v5563 = vpop.xlane.xlu0 %5562
    %v5564 = vsel %vm536, %v5558, -inf
    %5565 = vmax.xlane.f32.xlu0 %v5564
    %v5566 = vpop.xlane.xlu0 %5565
    %v5567 = vsub.f32 %v5555, %v5563
    %v5568 = vsub.f32 %v5558, %v5566
    %v5569 = vmul.f32 %v5567, 1.442695
    %v5570 = vpow.pop %v5569
    %v5571 = vmul.f32 %v5568, 1.442695
    %v5572 = vpow.pop %v5571
    %v5573 = vsel %vm536, %v5570, 0.0
    %5574 = vadd.xlane.f32.xlu0 %v5573
    %v5575 = vpop.xlane.xlu0 %5574
    %v5576 = vsel %vm536, %v5572, 0.0
    %5577 = vadd.xlane.f32.xlu0 %v5576
    %v5578 = vpop.xlane.xlu0 %5577
    %v5579 = vrcp.pop %v5575
    %v5580 = vrcp.pop %v5578
    %v5581 = vmul.f32 %v5570, %v5579
    %v5582 = vmul.f32 %v5572, %v5580
    %v5583 = vpack.c.bf16 %v5582, %v5581
    %v5585 = vsel %vm536, %v5583, 0
    %5587 = vmatprep.subr.bf16.mxu0 0
    %5588 = vmatpush1.bf16.msra.mxu0 0
    %5589 = vmatprep.subr.bf16.mxu0 0
    %5590 = vmatpush1.bf16.msra.mxu0 0
    %5591 = vmatprep.subr.bf16.mxu0 0
    %5592 = vmatpush1.bf16.msra.mxu0 0
    %5593 = vmatprep.subr.bf16.mxu0 0
    %5594 = vmatpush1.bf16.msra.mxu0 0
    %5595 = vmatprep.subr.bf16.mxu0 0
    %5596 = vmatpush1.bf16.msra.mxu0 0
    %5597 = vmatprep.subr.bf16.mxu0 0
    %5598 = vmatpush1.bf16.msra.mxu0 0
    %5599 = vmatprep.subr.bf16.mxu0 0
    %5600 = vmatpush1.bf16.msra.mxu0 0
    %5601 = vmatprep.subr.bf16.mxu0 0
    %5602 = vmatpush1.bf16.msra.mxu0 %v5399
    %5603 = vmatprep.subr.bf16.mxu0 0
    %5604 = vmatpush2.bf16.msra.mxu0 0
    %5605 = vmatprep.subr.bf16.mxu0 0
    %5606 = vmatpush2.bf16.msra.mxu0 0
    %5607 = vmatprep.subr.bf16.mxu0 0
    %5608 = vmatpush2.bf16.msra.mxu0 0
    %5609 = vmatprep.subr.bf16.mxu0 0
    %5610 = vmatpush2.bf16.msra.mxu0 0
    %5611 = vmatprep.subr.bf16.mxu0 0
    %5612 = vmatpush2.bf16.msra.mxu0 0
    %5613 = vmatprep.subr.bf16.mxu0 0
    %5614 = vmatpush2.bf16.msra.mxu0 0
    %5615 = vmatprep.subr.bf16.mxu0 0
    %5616 = vmatpush2.bf16.msra.mxu0 0
    %5617 = vmatprep.subr.bf16.mxu0 0
    %5618 = vmatpush2.bf16.msra.mxu0 0
    %5619 = vmatprep.mubr.bf16.mxu0 0
    %5620 = vmatmul.mubr.bf16.gmra.mxu0 %v5585
    %v5621 = vpop.f32.mrf.mxu0
    %v5622 = vadd.f32 0.0, %v5621
    %v5623 = vpop.f32.mrf.mxu0
    %v5624 = vpop.f32.mrf.mxu0
    %v5625 = vadd.f32 0.0, %v5624
    %v5626 = vpop.f32.mrf.mxu0
    %5627 = vdwg.mxu0
    %v5628 = vpack.c.bf16 %v5511, %v5508
    %v5629 = vpack.c.bf16 %v5625, %v5622
    %s5630 = scalar_lea.vmem %s5, 96
    %v5631 = vld [vmem:[%s5630] sm:$0xf]
    %v5632 = vld [vmem:[%s5630 + $0x4] sm:$0xf]
    %v5633 = vld [vmem:[%s5630 + $0x8] sm:$0xf]
    %v5634 = vld [vmem:[%s5630 + $0xc] sm:$0xf]
    %v5639 = vunpack.c.l.b16 %v5631
    %v5640 = vunpack.c.l.b16 %v5632
    %v5641 = vunpack.c.l.b16 %v5633
    %v5642 = vunpack.c.l.b16 %v5634
    %v5643 = vpack.c.b16 %v5640, %v5639
    %v5644 = vpack.c.b16 %v5642, %v5641
    %v5648 = vsel %vm488, %v5628, 0
    %v5651 = vsel %vm488, %v5629, 0
    %5653 = vmatprep.subr.bf16.mxu0 0
    %5654 = vmatpush1.bf16.msra.mxu0 0
    %5655 = vmatprep.subr.bf16.mxu0 0
    %5656 = vmatpush1.bf16.msra.mxu0 0
    %5657 = vmatprep.subr.bf16.mxu0 0
    %5658 = vmatpush1.bf16.msra.mxu0 0
    %5659 = vmatprep.subr.bf16.mxu0 0
    %5660 = vmatpush1.bf16.msra.mxu0 0
    %5661 = vmatprep.subr.bf16.mxu0 0
    %5662 = vmatpush1.bf16.msra.mxu0 0
    %5663 = vmatprep.subr.bf16.mxu0 0
    %5664 = vmatpush1.bf16.msra.mxu0 0
    %5665 = vmatprep.subr.bf16.mxu0 0
    %5666 = vmatpush1.bf16.msra.mxu0 %v5644
    %5667 = vmatprep.subr.bf16.mxu0 0
    %5668 = vmatpush1.bf16.msra.mxu0 %v5643
    %5669 = vmatprep.subr.bf16.mxu0 0
    %5670 = vmatpush2.bf16.msra.mxu0 0
    %5671 = vmatprep.subr.bf16.mxu0 0
    %5672 = vmatpush2.bf16.msra.mxu0 0
    %5673 = vmatprep.subr.bf16.mxu0 0
    %5674 = vmatpush2.bf16.msra.mxu0 0
    %5675 = vmatprep.subr.bf16.mxu0 0
    %5676 = vmatpush2.bf16.msra.mxu0 0
    %5677 = vmatprep.subr.bf16.mxu0 0
    %5678 = vmatpush2.bf16.msra.mxu0 0
    %5679 = vmatprep.subr.bf16.mxu0 0
    %5680 = vmatpush2.bf16.msra.mxu0 0
    %5681 = vmatprep.subr.bf16.mxu0 0
    %5682 = vmatpush2.bf16.msra.mxu0 0
    %5683 = vmatprep.subr.bf16.mxu0 0
    %5684 = vmatpush2.bf16.msra.mxu0 0
    %5685 = vmatprep.mubr.bf16.mxu0 0
    %5686 = vmatmul.mubr.bf16.gmra.mxu0 %v5648
    %v5687 = vpop.f32.mrf.mxu0
    %v5688 = vadd.f32 0.0, %v5687
    %v5689 = vpop.f32.mrf.mxu0
    %v5690 = vpop.f32.mrf.mxu0
    %v5691 = vadd.f32 0.0, %v5690
    %v5692 = vpop.f32.mrf.mxu0
    %5693 = vmatprep.mubr.bf16.mxu0 0
    %5694 = vmatmul.mubr.bf16.gmra.mxu0 %v5651
    %v5695 = vpop.f32.mrf.mxu0
    %v5696 = vadd.f32 0.0, %v5695
    %v5697 = vpop.f32.mrf.mxu0
    %v5698 = vpop.f32.mrf.mxu0
    %v5699 = vadd.f32 0.0, %v5698
    %v5700 = vpop.f32.mrf.mxu0
    %5701 = vdwg.mxu0
    %v5702 = vadd.f32 %v5034, %v5688
    %v5703 = vadd.f32 %v5037, %v5691
    %v5704 = vadd.f32 %v5042, %v5696
    %v5705 = vadd.f32 %v5045, %v5699
    %s5706 = scalar_lea.vmem %s2, 448
    %v5707 = vld [vmem:[%s5706] sm:$0xf]
    %v5708 = vld [vmem:[%s5706 + $0x4] sm:$0xf]
    %v5709 = vld [vmem:[%s5706 + $0x8] sm:$0xf]
    %v5710 = vld [vmem:[%s5706 + $0xc] sm:$0xf]
    %v5711 = vld [vmem:[%s5706 + $0x10] sm:$0xf]
    %v5712 = vld [vmem:[%s5706 + $0x14] sm:$0xf]
    %v5713 = vld [vmem:[%s5706 + $0x18] sm:$0xf]
    %v5714 = vld [vmem:[%s5706 + $0x1c] sm:$0xf]
    %v5715 = vld [vmem:[%s5706 + $0x20] sm:$0xf]
    %v5716 = vld [vmem:[%s5706 + $0x24] sm:$0xf]
    %v5717 = vld [vmem:[%s5706 + $0x28] sm:$0xf]
    %v5718 = vld [vmem:[%s5706 + $0x2c] sm:$0xf]
    %v5719 = vld [vmem:[%s5706 + $0x30] sm:$0xf]
    %v5720 = vld [vmem:[%s5706 + $0x34] sm:$0xf]
    %v5721 = vld [vmem:[%s5706 + $0x38] sm:$0xf]
    %v5722 = vld [vmem:[%s5706 + $0x3c] sm:$0xf]
    %v5739 = vunpack.c.l.b16 %v5707
    %v5740 = vunpack.c.l.b16 %v5708
    %v5741 = vunpack.c.l.b16 %v5709
    %v5742 = vunpack.c.l.b16 %v5710
    %v5743 = vunpack.c.l.b16 %v5711
    %v5744 = vunpack.c.l.b16 %v5712
    %v5745 = vunpack.c.l.b16 %v5713
    %v5746 = vunpack.c.l.b16 %v5714
    %v5747 = vunpack.c.l.b16 %v5715
    %v5748 = vunpack.c.l.b16 %v5716
    %v5749 = vunpack.c.l.b16 %v5717
    %v5750 = vunpack.c.l.b16 %v5718
    %v5751 = vunpack.c.l.b16 %v5719
    %v5752 = vunpack.c.l.b16 %v5720
    %v5753 = vunpack.c.l.b16 %v5721
    %v5754 = vunpack.c.l.b16 %v5722
    %v5755 = vpack.c.b16 %v5740, %v5739
    %v5756 = vpack.c.b16 %v5742, %v5741
    %v5757 = vpack.c.b16 %v5744, %v5743
    %v5758 = vpack.c.b16 %v5746, %v5745
    %v5759 = vpack.c.b16 %v5748, %v5747
    %v5760 = vpack.c.b16 %v5750, %v5749
    %v5761 = vpack.c.b16 %v5752, %v5751
    %v5762 = vpack.c.b16 %v5754, %v5753
    %5771 = vmatprep.subr.bf16.mxu0 0
    %5772 = vmatpush1.bf16.msra.mxu0 %v5762
    %5773 = vmatprep.subr.bf16.mxu0 0
    %5774 = vmatpush1.bf16.msra.mxu0 %v5761
    %5775 = vmatprep.subr.bf16.mxu0 0
    %5776 = vmatpush1.bf16.msra.mxu0 %v5760
    %5777 = vmatprep.subr.bf16.mxu0 0
    %5778 = vmatpush1.bf16.msra.mxu0 %v5759
    %5779 = vmatprep.subr.bf16.mxu0 0
    %5780 = vmatpush1.bf16.msra.mxu0 %v5758
    %5781 = vmatprep.subr.bf16.mxu0 0
    %5782 = vmatpush1.bf16.msra.mxu0 %v5757
    %5783 = vmatprep.subr.bf16.mxu0 0
    %5784 = vmatpush1.bf16.msra.mxu0 %v5756
    %5785 = vmatprep.subr.bf16.mxu0 0
    %5786 = vmatpush1.bf16.msra.mxu0 %v5755
    %5787 = vmatprep.subr.bf16.mxu0 0
    %5788 = vmatpush2.bf16.msra.mxu0 0
    %5789 = vmatprep.subr.bf16.mxu0 0
    %5790 = vmatpush2.bf16.msra.mxu0 0
    %5791 = vmatprep.subr.bf16.mxu0 0
    %5792 = vmatpush2.bf16.msra.mxu0 0
    %5793 = vmatprep.subr.bf16.mxu0 0
    %5794 = vmatpush2.bf16.msra.mxu0 0
    %5795 = vmatprep.subr.bf16.mxu0 0
    %5796 = vmatpush2.bf16.msra.mxu0 0
    %5797 = vmatprep.subr.bf16.mxu0 0
    %5798 = vmatpush2.bf16.msra.mxu0 0
    %5799 = vmatprep.subr.bf16.mxu0 0
    %5800 = vmatpush2.bf16.msra.mxu0 0
    %5801 = vmatprep.subr.bf16.mxu0 0
    %5802 = vmatpush2.bf16.msra.mxu0 0
    %5803 = vmatprep.mubr.bf16.mxu0 0
    %5804 = vmatmul.mubr.bf16.gmra.mxu0 %v3738
    %v5805 = vpop.f32.mrf.mxu0
    %v5806 = vadd.f32 0.0, %v5805
    %v5807 = vpop.f32.mrf.mxu0
    %v5808 = vpop.f32.mrf.mxu0
    %v5809 = vadd.f32 0.0, %v5808
    %v5810 = vpop.f32.mrf.mxu0
    %5811 = vmatprep.mubr.bf16.mxu0 0
    %5812 = vmatmul.mubr.bf16.gmra.mxu0 %v3739
    %v5813 = vpop.f32.mrf.mxu0
    %v5814 = vadd.f32 0.0, %v5813
    %v5815 = vpop.f32.mrf.mxu0
    %v5816 = vpop.f32.mrf.mxu0
    %v5817 = vadd.f32 0.0, %v5816
    %v5818 = vpop.f32.mrf.mxu0
    %5819 = vdwg.mxu0
    %s5820 = scalar_lea.vmem %s3, 448
    %v5821 = vld [vmem:[%s5820] sm:$0xf]
    %v5822 = vld [vmem:[%s5820 + $0x4] sm:$0xf]
    %v5823 = vld [vmem:[%s5820 + $0x8] sm:$0xf]
    %v5824 = vld [vmem:[%s5820 + $0xc] sm:$0xf]
    %v5825 = vld [vmem:[%s5820 + $0x10] sm:$0xf]
    %v5826 = vld [vmem:[%s5820 + $0x14] sm:$0xf]
    %v5827 = vld [vmem:[%s5820 + $0x18] sm:$0xf]
    %v5828 = vld [vmem:[%s5820 + $0x1c] sm:$0xf]
    %v5829 = vld [vmem:[%s5820 + $0x20] sm:$0xf]
    %v5830 = vld [vmem:[%s5820 + $0x24] sm:$0xf]
    %v5831 = vld [vmem:[%s5820 + $0x28] sm:$0xf]
    %v5832 = vld [vmem:[%s5820 + $0x2c] sm:$0xf]
    %v5833 = vld [vmem:[%s5820 + $0x30] sm:$0xf]
    %v5834 = vld [vmem:[%s5820 + $0x34] sm:$0xf]
    %v5835 = vld [vmem:[%s5820 + $0x38] sm:$0xf]
    %v5836 = vld [vmem:[%s5820 + $0x3c] sm:$0xf]
    %v5853 = vunpack.c.l.b16 %v5821
    %v5854 = vunpack.c.l.b16 %v5822
    %v5855 = vunpack.c.l.b16 %v5823
    %v5856 = vunpack.c.l.b16 %v5824
    %v5857 = vunpack.c.l.b16 %v5825
    %v5858 = vunpack.c.l.b16 %v5826
    %v5859 = vunpack.c.l.b16 %v5827
    %v5860 = vunpack.c.l.b16 %v5828
    %v5861 = vunpack.c.l.b16 %v5829
    %v5862 = vunpack.c.l.b16 %v5830
    %v5863 = vunpack.c.l.b16 %v5831
    %v5864 = vunpack.c.l.b16 %v5832
    %v5865 = vunpack.c.l.b16 %v5833
    %v5866 = vunpack.c.l.b16 %v5834
    %v5867 = vunpack.c.l.b16 %v5835
    %v5868 = vunpack.c.l.b16 %v5836
    %v5869 = vpack.c.b16 %v5854, %v5853
    %v5870 = vpack.c.b16 %v5856, %v5855
    %v5871 = vpack.c.b16 %v5858, %v5857
    %v5872 = vpack.c.b16 %v5860, %v5859
    %v5873 = vpack.c.b16 %v5862, %v5861
    %v5874 = vpack.c.b16 %v5864, %v5863
    %v5875 = vpack.c.b16 %v5866, %v5865
    %v5876 = vpack.c.b16 %v5868, %v5867
    %5885 = vmatprep.subr.bf16.mxu0 0
    %5886 = vmatpush1.bf16.msra.mxu0 %v5876
    %5887 = vmatprep.subr.bf16.mxu0 0
    %5888 = vmatpush1.bf16.msra.mxu0 %v5875
    %5889 = vmatprep.subr.bf16.mxu0 0
    %5890 = vmatpush1.bf16.msra.mxu0 %v5874
    %5891 = vmatprep.subr.bf16.mxu0 0
    %5892 = vmatpush1.bf16.msra.mxu0 %v5873
    %5893 = vmatprep.subr.bf16.mxu0 0
    %5894 = vmatpush1.bf16.msra.mxu0 %v5872
    %5895 = vmatprep.subr.bf16.mxu0 0
    %5896 = vmatpush1.bf16.msra.mxu0 %v5871
    %5897 = vmatprep.subr.bf16.mxu0 0
    %5898 = vmatpush1.bf16.msra.mxu0 %v5870
    %5899 = vmatprep.subr.bf16.mxu0 0
    %5900 = vmatpush1.bf16.msra.mxu0 %v5869
    %5901 = vmatprep.subr.bf16.mxu0 0
    %5902 = vmatpush2.bf16.msra.mxu0 0
    %5903 = vmatprep.subr.bf16.mxu0 0
    %5904 = vmatpush2.bf16.msra.mxu0 0
    %5905 = vmatprep.subr.bf16.mxu0 0
    %5906 = vmatpush2.bf16.msra.mxu0 0
    %5907 = vmatprep.subr.bf16.mxu0 0
    %5908 = vmatpush2.bf16.msra.mxu0 0
    %5909 = vmatprep.subr.bf16.mxu0 0
    %5910 = vmatpush2.bf16.msra.mxu0 0
    %5911 = vmatprep.subr.bf16.mxu0 0
    %5912 = vmatpush2.bf16.msra.mxu0 0
    %5913 = vmatprep.subr.bf16.mxu0 0
    %5914 = vmatpush2.bf16.msra.mxu0 0
    %5915 = vmatprep.subr.bf16.mxu0 0
    %5916 = vmatpush2.bf16.msra.mxu0 0
    %5917 = vmatprep.mubr.bf16.mxu0 0
    %5918 = vmatmul.mubr.bf16.gmra.mxu0 %v3738
    %v5919 = vpop.f32.mrf.mxu0
    %v5920 = vadd.f32 0.0, %v5919
    %v5921 = vpop.f32.mrf.mxu0
    %v5922 = vpop.f32.mrf.mxu0
    %v5923 = vadd.f32 0.0, %v5922
    %v5924 = vpop.f32.mrf.mxu0
    %5925 = vmatprep.mubr.bf16.mxu0 0
    %5926 = vmatmul.mubr.bf16.gmra.mxu0 %v3739
    %v5927 = vpop.f32.mrf.mxu0
    %v5928 = vadd.f32 0.0, %v5927
    %v5929 = vpop.f32.mrf.mxu0
    %v5930 = vpop.f32.mrf.mxu0
    %v5931 = vadd.f32 0.0, %v5930
    %v5932 = vpop.f32.mrf.mxu0
    %5933 = vdwg.mxu0
    %s5934 = scalar_lea.vmem %s4, 448
    %v5935 = vld [vmem:[%s5934] sm:$0xf]
    %v5936 = vld [vmem:[%s5934 + $0x4] sm:$0xf]
    %v5937 = vld [vmem:[%s5934 + $0x8] sm:$0xf]
    %v5938 = vld [vmem:[%s5934 + $0xc] sm:$0xf]
    %v5939 = vld [vmem:[%s5934 + $0x10] sm:$0xf]
    %v5940 = vld [vmem:[%s5934 + $0x14] sm:$0xf]
    %v5941 = vld [vmem:[%s5934 + $0x18] sm:$0xf]
    %v5942 = vld [vmem:[%s5934 + $0x1c] sm:$0xf]
    %v5943 = vld [vmem:[%s5934 + $0x20] sm:$0xf]
    %v5944 = vld [vmem:[%s5934 + $0x24] sm:$0xf]
    %v5945 = vld [vmem:[%s5934 + $0x28] sm:$0xf]
    %v5946 = vld [vmem:[%s5934 + $0x2c] sm:$0xf]
    %v5947 = vld [vmem:[%s5934 + $0x30] sm:$0xf]
    %v5948 = vld [vmem:[%s5934 + $0x34] sm:$0xf]
    %v5949 = vld [vmem:[%s5934 + $0x38] sm:$0xf]
    %v5950 = vld [vmem:[%s5934 + $0x3c] sm:$0xf]
    %v5967 = vunpack.c.l.b16 %v5935
    %v5968 = vunpack.c.l.b16 %v5936
    %v5969 = vunpack.c.l.b16 %v5937
    %v5970 = vunpack.c.l.b16 %v5938
    %v5971 = vunpack.c.l.b16 %v5939
    %v5972 = vunpack.c.l.b16 %v5940
    %v5973 = vunpack.c.l.b16 %v5941
    %v5974 = vunpack.c.l.b16 %v5942
    %v5975 = vunpack.c.l.b16 %v5943
    %v5976 = vunpack.c.l.b16 %v5944
    %v5977 = vunpack.c.l.b16 %v5945
    %v5978 = vunpack.c.l.b16 %v5946
    %v5979 = vunpack.c.l.b16 %v5947
    %v5980 = vunpack.c.l.b16 %v5948
    %v5981 = vunpack.c.l.b16 %v5949
    %v5982 = vunpack.c.l.b16 %v5950
    %v5983 = vpack.c.b16 %v5968, %v5967
    %v5984 = vpack.c.b16 %v5970, %v5969
    %v5985 = vpack.c.b16 %v5972, %v5971
    %v5986 = vpack.c.b16 %v5974, %v5973
    %v5987 = vpack.c.b16 %v5976, %v5975
    %v5988 = vpack.c.b16 %v5978, %v5977
    %v5989 = vpack.c.b16 %v5980, %v5979
    %v5990 = vpack.c.b16 %v5982, %v5981
    %5999 = vmatprep.subr.bf16.mxu0 0
    %6000 = vmatpush1.bf16.msra.mxu0 %v5990
    %6001 = vmatprep.subr.bf16.mxu0 0
    %6002 = vmatpush1.bf16.msra.mxu0 %v5989
    %6003 = vmatprep.subr.bf16.mxu0 0
    %6004 = vmatpush1.bf16.msra.mxu0 %v5988
    %6005 = vmatprep.subr.bf16.mxu0 0
    %6006 = vmatpush1.bf16.msra.mxu0 %v5987
    %6007 = vmatprep.subr.bf16.mxu0 0
    %6008 = vmatpush1.bf16.msra.mxu0 %v5986
    %6009 = vmatprep.subr.bf16.mxu0 0
    %6010 = vmatpush1.bf16.msra.mxu0 %v5985
    %6011 = vmatprep.subr.bf16.mxu0 0
    %6012 = vmatpush1.bf16.msra.mxu0 %v5984
    %6013 = vmatprep.subr.bf16.mxu0 0
    %6014 = vmatpush1.bf16.msra.mxu0 %v5983
    %6015 = vmatprep.subr.bf16.mxu0 0
    %6016 = vmatpush2.bf16.msra.mxu0 0
    %6017 = vmatprep.subr.bf16.mxu0 0
    %6018 = vmatpush2.bf16.msra.mxu0 0
    %6019 = vmatprep.subr.bf16.mxu0 0
    %6020 = vmatpush2.bf16.msra.mxu0 0
    %6021 = vmatprep.subr.bf16.mxu0 0
    %6022 = vmatpush2.bf16.msra.mxu0 0
    %6023 = vmatprep.subr.bf16.mxu0 0
    %6024 = vmatpush2.bf16.msra.mxu0 0
    %6025 = vmatprep.subr.bf16.mxu0 0
    %6026 = vmatpush2.bf16.msra.mxu0 0
    %6027 = vmatprep.subr.bf16.mxu0 0
    %6028 = vmatpush2.bf16.msra.mxu0 0
    %6029 = vmatprep.subr.bf16.mxu0 0
    %6030 = vmatpush2.bf16.msra.mxu0 0
    %6031 = vmatprep.mubr.bf16.mxu0 0
    %6032 = vmatmul.mubr.bf16.gmra.mxu0 %v3738
    %v6033 = vpop.f32.mrf.mxu0
    %v6034 = vadd.f32 0.0, %v6033
    %v6035 = vpop.f32.mrf.mxu0
    %v6036 = vpop.f32.mrf.mxu0
    %v6037 = vadd.f32 0.0, %v6036
    %v6038 = vpop.f32.mrf.mxu0
    %6039 = vmatprep.mubr.bf16.mxu0 0
    %6040 = vmatmul.mubr.bf16.gmra.mxu0 %v3739
    %v6041 = vpop.f32.mrf.mxu0
    %v6042 = vadd.f32 0.0, %v6041
    %v6043 = vpop.f32.mrf.mxu0
    %v6044 = vpop.f32.mrf.mxu0
    %v6045 = vadd.f32 0.0, %v6044
    %v6046 = vpop.f32.mrf.mxu0
    %6047 = vdwg.mxu0
    %v6048 = vmul.f32 %v5806, 0.17677669
    %v6049 = vmul.f32 %v5809, 0.17677669
    %v6050 = vmul.f32 %v5814, 0.17677669
    %v6051 = vmul.f32 %v5817, 0.17677669
    %v6052 = vpack.c.bf16 %v6049, %v6048
    %v6053 = vpack.c.bf16 %v6051, %v6050
    %v6054 = vpack.c.bf16 %v5923, %v5920
    %v6055 = vpack.c.bf16 %v5931, %v5928
    %v6056 = vpack.c.bf16 %v6037, %v6034
    %v6057 = vpack.c.bf16 %v6045, %v6042
    %v6059 = vsel %vm488, %v6052, 0
    %v6062 = vsel %vm488, %v6054, 0
    %6064 = vmatprep.subr.bf16.mxu0 0
    %6065 = vmatpush1.bf16.xpose.msra.mxu0 0
    %6066 = vmatprep.subr.bf16.mxu0 0
    %6067 = vmatpush1.bf16.xpose.msra.mxu0 0
    %6068 = vmatprep.subr.bf16.mxu0 0
    %6069 = vmatpush1.bf16.xpose.msra.mxu0 0
    %6070 = vmatprep.subr.bf16.mxu0 0
    %6071 = vmatpush1.bf16.xpose.msra.mxu0 0
    %6072 = vmatprep.subr.bf16.mxu0 0
    %6073 = vmatpush1.bf16.xpose.msra.mxu0 0
    %6074 = vmatprep.subr.bf16.mxu0 0
    %6075 = vmatpush1.bf16.xpose.msra.mxu0 0
    %6076 = vmatprep.subr.bf16.mxu0 0
    %6077 = vmatpush1.bf16.xpose.msra.mxu0 0
    %6078 = vmatprep.subr.bf16.mxu0 0
    %6079 = vmatpush1.bf16.xpose.msra.mxu0 %v6062
    %6080 = vmatprep.subr.bf16.mxu0 0
    %6081 = vmatpush2.bf16.xpose.msra.mxu0 0
    %6082 = vmatprep.subr.bf16.mxu0 0
    %6083 = vmatpush2.bf16.xpose.msra.mxu0 0
    %6084 = vmatprep.subr.bf16.mxu0 0
    %6085 = vmatpush2.bf16.xpose.msra.mxu0 0
    %6086 = vmatprep.subr.bf16.mxu0 0
    %6087 = vmatpush2.bf16.xpose.msra.mxu0 0
    %6088 = vmatprep.subr.bf16.mxu0 0
    %6089 = vmatpush2.bf16.xpose.msra.mxu0 0
    %6090 = vmatprep.subr.bf16.mxu0 0
    %6091 = vmatpush2.bf16.xpose.msra.mxu0 0
    %6092 = vmatprep.subr.bf16.mxu0 0
    %6093 = vmatpush2.bf16.xpose.msra.mxu0 0
    %6094 = vmatprep.subr.bf16.mxu0 0
    %6095 = vmatpush2.bf16.xpose.msra.mxu0 0
    %6096 = vmatprep.mubr.bf16.mxu0 0
    %6097 = vmatmul.mubr.bf16.gmra.mxu0 %v6059
    %v6098 = vpop.f32.mrf.mxu0
    %v6099 = vadd.f32 %v65, %v6098
    %v6100 = vpop.f32.mrf.mxu0
    %v6101 = vpop.f32.mrf.mxu0
    %v6102 = vadd.f32 %v65, %v6101
    %v6103 = vpop.f32.mrf.mxu0
    %6104 = vdwg.mxu0
    %v6105 = vsel %vm536, %v6099, -inf
    %6106 = vmax.xlane.f32.xlu0 %v6105
    %v6107 = vpop.xlane.xlu0 %6106
    %v6108 = vsel %vm536, %v6102, -inf
    %6109 = vmax.xlane.f32.xlu0 %v6108
    %v6110 = vpop.xlane.xlu0 %6109
    %v6111 = vsub.f32 %v6099, %v6107
    %v6112 = vsub.f32 %v6102, %v6110
    %v6113 = vmul.f32 %v6111, 1.442695
    %v6114 = vpow.pop %v6113
    %v6115 = vmul.f32 %v6112, 1.442695
    %v6116 = vpow.pop %v6115
    %v6117 = vsel %vm536, %v6114, 0.0
    %6118 = vadd.xlane.f32.xlu0 %v6117
    %v6119 = vpop.xlane.xlu0 %6118
    %v6120 = vsel %vm536, %v6116, 0.0
    %6121 = vadd.xlane.f32.xlu0 %v6120
    %v6122 = vpop.xlane.xlu0 %6121
    %v6123 = vrcp.pop %v6119
    %v6124 = vrcp.pop %v6122
    %v6125 = vmul.f32 %v6114, %v6123
    %v6126 = vmul.f32 %v6116, %v6124
    %v6127 = vpack.c.bf16 %v6126, %v6125
    %v6129 = vsel %vm536, %v6127, 0
    %6131 = vmatprep.subr.bf16.mxu0 0
    %6132 = vmatpush1.bf16.msra.mxu0 0
    %6133 = vmatprep.subr.bf16.mxu0 0
    %6134 = vmatpush1.bf16.msra.mxu0 0
    %6135 = vmatprep.subr.bf16.mxu0 0
    %6136 = vmatpush1.bf16.msra.mxu0 0
    %6137 = vmatprep.subr.bf16.mxu0 0
    %6138 = vmatpush1.bf16.msra.mxu0 0
    %6139 = vmatprep.subr.bf16.mxu0 0
    %6140 = vmatpush1.bf16.msra.mxu0 0
    %6141 = vmatprep.subr.bf16.mxu0 0
    %6142 = vmatpush1.bf16.msra.mxu0 0
    %6143 = vmatprep.subr.bf16.mxu0 0
    %6144 = vmatpush1.bf16.msra.mxu0 0
    %6145 = vmatprep.subr.bf16.mxu0 0
    %6146 = vmatpush1.bf16.msra.mxu0 %v6056
    %6147 = vmatprep.subr.bf16.mxu0 0
    %6148 = vmatpush2.bf16.msra.mxu0 0
    %6149 = vmatprep.subr.bf16.mxu0 0
    %6150 = vmatpush2.bf16.msra.mxu0 0
    %6151 = vmatprep.subr.bf16.mxu0 0
    %6152 = vmatpush2.bf16.msra.mxu0 0
    %6153 = vmatprep.subr.bf16.mxu0 0
    %6154 = vmatpush2.bf16.msra.mxu0 0
    %6155 = vmatprep.subr.bf16.mxu0 0
    %6156 = vmatpush2.bf16.msra.mxu0 0
    %6157 = vmatprep.subr.bf16.mxu0 0
    %6158 = vmatpush2.bf16.msra.mxu0 0
    %6159 = vmatprep.subr.bf16.mxu0 0
    %6160 = vmatpush2.bf16.msra.mxu0 0
    %6161 = vmatprep.subr.bf16.mxu0 0
    %6162 = vmatpush2.bf16.msra.mxu0 0
    %6163 = vmatprep.mubr.bf16.mxu0 0
    %6164 = vmatmul.mubr.bf16.gmra.mxu0 %v6129
    %v6165 = vpop.f32.mrf.mxu0
    %v6166 = vadd.f32 0.0, %v6165
    %v6167 = vpop.f32.mrf.mxu0
    %v6168 = vpop.f32.mrf.mxu0
    %v6169 = vadd.f32 0.0, %v6168
    %v6170 = vpop.f32.mrf.mxu0
    %6171 = vdwg.mxu0
    %v6173 = vsel %vm488, %v6053, 0
    %v6176 = vsel %vm488, %v6055, 0
    %6178 = vmatprep.subr.bf16.mxu0 0
    %6179 = vmatpush1.bf16.xpose.msra.mxu0 0
    %6180 = vmatprep.subr.bf16.mxu0 0
    %6181 = vmatpush1.bf16.xpose.msra.mxu0 0
    %6182 = vmatprep.subr.bf16.mxu0 0
    %6183 = vmatpush1.bf16.xpose.msra.mxu0 0
    %6184 = vmatprep.subr.bf16.mxu0 0
    %6185 = vmatpush1.bf16.xpose.msra.mxu0 0
    %6186 = vmatprep.subr.bf16.mxu0 0
    %6187 = vmatpush1.bf16.xpose.msra.mxu0 0
    %6188 = vmatprep.subr.bf16.mxu0 0
    %6189 = vmatpush1.bf16.xpose.msra.mxu0 0
    %6190 = vmatprep.subr.bf16.mxu0 0
    %6191 = vmatpush1.bf16.xpose.msra.mxu0 0
    %6192 = vmatprep.subr.bf16.mxu0 0
    %6193 = vmatpush1.bf16.xpose.msra.mxu0 %v6176
    %6194 = vmatprep.subr.bf16.mxu0 0
    %6195 = vmatpush2.bf16.xpose.msra.mxu0 0
    %6196 = vmatprep.subr.bf16.mxu0 0
    %6197 = vmatpush2.bf16.xpose.msra.mxu0 0
    %6198 = vmatprep.subr.bf16.mxu0 0
    %6199 = vmatpush2.bf16.xpose.msra.mxu0 0
    %6200 = vmatprep.subr.bf16.mxu0 0
    %6201 = vmatpush2.bf16.xpose.msra.mxu0 0
    %6202 = vmatprep.subr.bf16.mxu0 0
    %6203 = vmatpush2.bf16.xpose.msra.mxu0 0
    %6204 = vmatprep.subr.bf16.mxu0 0
    %6205 = vmatpush2.bf16.xpose.msra.mxu0 0
    %6206 = vmatprep.subr.bf16.mxu0 0
    %6207 = vmatpush2.bf16.xpose.msra.mxu0 0
    %6208 = vmatprep.subr.bf16.mxu0 0
    %6209 = vmatpush2.bf16.xpose.msra.mxu0 0
    %6210 = vmatprep.mubr.bf16.mxu0 0
    %6211 = vmatmul.mubr.bf16.gmra.mxu0 %v6173
    %v6212 = vpop.f32.mrf.mxu0
    %v6213 = vadd.f32 %v69, %v6212
    %v6214 = vpop.f32.mrf.mxu0
    %v6215 = vpop.f32.mrf.mxu0
    %v6216 = vadd.f32 %v69, %v6215
    %v6217 = vpop.f32.mrf.mxu0
    %6218 = vdwg.mxu0
    %v6219 = vsel %vm536, %v6213, -inf
    %6220 = vmax.xlane.f32.xlu0 %v6219
    %v6221 = vpop.xlane.xlu0 %6220
    %v6222 = vsel %vm536, %v6216, -inf
    %6223 = vmax.xlane.f32.xlu0 %v6222
    %v6224 = vpop.xlane.xlu0 %6223
    %v6225 = vsub.f32 %v6213, %v6221
    %v6226 = vsub.f32 %v6216, %v6224
    %v6227 = vmul.f32 %v6225, 1.442695
    %v6228 = vpow.pop %v6227
    %v6229 = vmul.f32 %v6226, 1.442695
    %v6230 = vpow.pop %v6229
    %v6231 = vsel %vm536, %v6228, 0.0
    %6232 = vadd.xlane.f32.xlu0 %v6231
    %v6233 = vpop.xlane.xlu0 %6232
    %v6234 = vsel %vm536, %v6230, 0.0
    %6235 = vadd.xlane.f32.xlu0 %v6234
    %v6236 = vpop.xlane.xlu0 %6235
    %v6237 = vrcp.pop %v6233
    %v6238 = vrcp.pop %v6236
    %v6239 = vmul.f32 %v6228, %v6237
    %v6240 = vmul.f32 %v6230, %v6238
    %v6241 = vpack.c.bf16 %v6240, %v6239
    %v6243 = vsel %vm536, %v6241, 0
    %6245 = vmatprep.subr.bf16.mxu0 0
    %6246 = vmatpush1.bf16.msra.mxu0 0
    %6247 = vmatprep.subr.bf16.mxu0 0
    %6248 = vmatpush1.bf16.msra.mxu0 0
    %6249 = vmatprep.subr.bf16.mxu0 0
    %6250 = vmatpush1.bf16.msra.mxu0 0
    %6251 = vmatprep.subr.bf16.mxu0 0
    %6252 = vmatpush1.bf16.msra.mxu0 0
    %6253 = vmatprep.subr.bf16.mxu0 0
    %6254 = vmatpush1.bf16.msra.mxu0 0
    %6255 = vmatprep.subr.bf16.mxu0 0
    %6256 = vmatpush1.bf16.msra.mxu0 0
    %6257 = vmatprep.subr.bf16.mxu0 0
    %6258 = vmatpush1.bf16.msra.mxu0 0
    %6259 = vmatprep.subr.bf16.mxu0 0
    %6260 = vmatpush1.bf16.msra.mxu0 %v6057
    %6261 = vmatprep.subr.bf16.mxu0 0
    %6262 = vmatpush2.bf16.msra.mxu0 0
    %6263 = vmatprep.subr.bf16.mxu0 0
    %6264 = vmatpush2.bf16.msra.mxu0 0
    %6265 = vmatprep.subr.bf16.mxu0 0
    %6266 = vmatpush2.bf16.msra.mxu0 0
    %6267 = vmatprep.subr.bf16.mxu0 0
    %6268 = vmatpush2.bf16.msra.mxu0 0
    %6269 = vmatprep.subr.bf16.mxu0 0
    %6270 = vmatpush2.bf16.msra.mxu0 0
    %6271 = vmatprep.subr.bf16.mxu0 0
    %6272 = vmatpush2.bf16.msra.mxu0 0
    %6273 = vmatprep.subr.bf16.mxu0 0
    %6274 = vmatpush2.bf16.msra.mxu0 0
    %6275 = vmatprep.subr.bf16.mxu0 0
    %6276 = vmatpush2.bf16.msra.mxu0 0
    %6277 = vmatprep.mubr.bf16.mxu0 0
    %6278 = vmatmul.mubr.bf16.gmra.mxu0 %v6243
    %v6279 = vpop.f32.mrf.mxu0
    %v6280 = vadd.f32 0.0, %v6279
    %v6281 = vpop.f32.mrf.mxu0
    %v6282 = vpop.f32.mrf.mxu0
    %v6283 = vadd.f32 0.0, %v6282
    %v6284 = vpop.f32.mrf.mxu0
    %6285 = vdwg.mxu0
    %v6286 = vpack.c.bf16 %v6169, %v6166
    %v6287 = vpack.c.bf16 %v6283, %v6280
    %s6288 = scalar_lea.vmem %s5, 112
    %v6289 = vld [vmem:[%s6288] sm:$0xf]
    %v6290 = vld [vmem:[%s6288 + $0x4] sm:$0xf]
    %v6291 = vld [vmem:[%s6288 + $0x8] sm:$0xf]
    %v6292 = vld [vmem:[%s6288 + $0xc] sm:$0xf]
    %v6297 = vunpack.c.l.b16 %v6289
    %v6298 = vunpack.c.l.b16 %v6290
    %v6299 = vunpack.c.l.b16 %v6291
    %v6300 = vunpack.c.l.b16 %v6292
    %v6301 = vpack.c.b16 %v6298, %v6297
    %v6302 = vpack.c.b16 %v6300, %v6299
    %v6306 = vsel %vm488, %v6286, 0
    %v6309 = vsel %vm488, %v6287, 0
    %6311 = vmatprep.subr.bf16.mxu0 0
    %6312 = vmatpush1.bf16.msra.mxu0 0
    %6313 = vmatprep.subr.bf16.mxu0 0
    %6314 = vmatpush1.bf16.msra.mxu0 0
    %6315 = vmatprep.subr.bf16.mxu0 0
    %6316 = vmatpush1.bf16.msra.mxu0 0
    %6317 = vmatprep.subr.bf16.mxu0 0
    %6318 = vmatpush1.bf16.msra.mxu0 0
    %6319 = vmatprep.subr.bf16.mxu0 0
    %6320 = vmatpush1.bf16.msra.mxu0 0
    %6321 = vmatprep.subr.bf16.mxu0 0
    %6322 = vmatpush1.bf16.msra.mxu0 0
    %6323 = vmatprep.subr.bf16.mxu0 0
    %6324 = vmatpush1.bf16.msra.mxu0 %v6302
    %6325 = vmatprep.subr.bf16.mxu0 0
    %6326 = vmatpush1.bf16.msra.mxu0 %v6301
    %6327 = vmatprep.subr.bf16.mxu0 0
    %6328 = vmatpush2.bf16.msra.mxu0 0
    %6329 = vmatprep.subr.bf16.mxu0 0
    %6330 = vmatpush2.bf16.msra.mxu0 0
    %6331 = vmatprep.subr.bf16.mxu0 0
    %6332 = vmatpush2.bf16.msra.mxu0 0
    %6333 = vmatprep.subr.bf16.mxu0 0
    %6334 = vmatpush2.bf16.msra.mxu0 0
    %6335 = vmatprep.subr.bf16.mxu0 0
    %6336 = vmatpush2.bf16.msra.mxu0 0
    %6337 = vmatprep.subr.bf16.mxu0 0
    %6338 = vmatpush2.bf16.msra.mxu0 0
    %6339 = vmatprep.subr.bf16.mxu0 0
    %6340 = vmatpush2.bf16.msra.mxu0 0
    %6341 = vmatprep.subr.bf16.mxu0 0
    %6342 = vmatpush2.bf16.msra.mxu0 0
    %6343 = vmatprep.mubr.bf16.mxu0 0
    %6344 = vmatmul.mubr.bf16.gmra.mxu0 %v6306
    %v6345 = vpop.f32.mrf.mxu0
    %v6346 = vadd.f32 0.0, %v6345
    %v6347 = vpop.f32.mrf.mxu0
    %v6348 = vpop.f32.mrf.mxu0
    %v6349 = vadd.f32 0.0, %v6348
    %v6350 = vpop.f32.mrf.mxu0
    %6351 = vmatprep.mubr.bf16.mxu0 0
    %6352 = vmatmul.mubr.bf16.gmra.mxu0 %v6309
    %v6353 = vpop.f32.mrf.mxu0
    %v6354 = vadd.f32 0.0, %v6353
    %v6355 = vpop.f32.mrf.mxu0
    %v6356 = vpop.f32.mrf.mxu0
    %v6357 = vadd.f32 0.0, %v6356
    %v6358 = vpop.f32.mrf.mxu0
    %6359 = vdwg.mxu0
    %v6360 = vadd.f32 %v5702, %v6346
    %v6361 = vadd.f32 %v5703, %v6349
    %v6362 = vadd.f32 %v5704, %v6354
    %v6363 = vadd.f32 %v5705, %v6357
    %v6364 = vadd.f32 %v3666, %v6360
    %v6365 = vadd.f32 %v3667, %v6361
    %v6366 = vadd.f32 %v3668, %v6362
    %v6367 = vadd.f32 %v3669, %v6363
    %s6368 = scalar_lea.vmem %s12, 1
    %v6369 = vld [vmem:[%s6368] sm:$0x1]
    %s6370 = scalar_lea.vmem %s13, 1
    %v6371 = vld [vmem:[%s6370] sm:$0x1]
    %6372 = vadd.xlane.f32.xlu0 %v6364
    %v6373 = vpop.xlane.xlu0 %6372
    %6374 = vadd.xlane.f32.xlu0 %v6365
    %v6375 = vpop.xlane.xlu0 %6374
    %6376 = vadd.xlane.f32.xlu0 %v6366
    %v6377 = vpop.xlane.xlu0 %6376
    %6378 = vadd.xlane.f32.xlu0 %v6367
    %v6379 = vpop.xlane.xlu0 %6378
    %v6380 = vmul.f32 %v6373, %v80
    %v6381 = vmul.f32 %v6375, %v80
    %v6382 = vmul.f32 %v6377, %v80
    %v6383 = vmul.f32 %v6379, %v80
    %v6384 = vsub.f32 %v6364, %v6380
    %v6385 = vsub.f32 %v6365, %v6381
    %v6386 = vsub.f32 %v6366, %v6382
    %v6387 = vsub.f32 %v6367, %v6383
    %v6388 = vmul.f32 %v6384, %v6384
    %v6389 = vmul.f32 %v6385, %v6385
    %v6390 = vmul.f32 %v6386, %v6386
    %v6391 = vmul.f32 %v6387, %v6387
    %6392 = vadd.xlane.f32.xlu0 %v6388
    %v6393 = vpop.xlane.xlu0 %6392
    %6394 = vadd.xlane.f32.xlu0 %v6389
    %v6395 = vpop.xlane.xlu0 %6394
    %6396 = vadd.xlane.f32.xlu0 %v6390
    %v6397 = vpop.xlane.xlu0 %6396
    %6398 = vadd.xlane.f32.xlu0 %v6391
    %v6399 = vpop.xlane.xlu0 %6398
    %v6400 = vmul.f32 %v6393, %v80
    %v6401 = vmul.f32 %v6395, %v80
    %v6402 = vmul.f32 %v6397, %v80
    %v6403 = vmul.f32 %v6399, %v80
    %v6404 = vadd.f32 %v6400, 1e-05
    %v6405 = vadd.f32 %v6401, 1e-05
    %v6406 = vadd.f32 %v6402, 1e-05
    %v6407 = vadd.f32 %v6403, 1e-05
    %v6408 = vrsqrt.pop %v6404
    %v6409 = vrsqrt.pop %v6405
    %v6410 = vrsqrt.pop %v6406
    %v6411 = vrsqrt.pop %v6407
    %v6412 = vmul.f32 %v6384, %v6408
    %v6413 = vmul.f32 %v6385, %v6409
    %v6414 = vmul.f32 %v6386, %v6410
    %v6415 = vmul.f32 %v6387, %v6411
    %v6417 = vlaneseq
    %v6418 = vshrl.u32 %v6417, 7
    %v6419 = vsub.s32 0, %v6418
    %v6420 = vrot.slane %v6369, %v6419
    %v6422 = vmul.f32 %v6412, %v6420
    %v6423 = vmul.f32 %v6413, %v6420
    %v6424 = vmul.f32 %v6414, %v6420
    %v6425 = vmul.f32 %v6415, %v6420
    %v6427 = vlaneseq
    %v6428 = vshrl.u32 %v6427, 7
    %v6429 = vsub.s32 0, %v6428
    %v6430 = vrot.slane %v6371, %v6429
    %v6432 = vadd.f32 %v6422, %v6430
    %v6433 = vadd.f32 %v6423, %v6430
    %v6434 = vadd.f32 %v6424, %v6430
    %v6435 = vadd.f32 %v6425, %v6430
    %v6436 = vpack.c.bf16 %v6433, %v6432
    %v6437 = vpack.c.bf16 %v6435, %v6434
    %s6438 = scalar_lea.vmem %s6, 256
    %v6439 = vld [vmem:[%s6438] sm:$0xff]
    %v6440 = vld [vmem:[%s6438 + $0x8] sm:$0xff]
    %v6441 = vld [vmem:[%s6438 + $0x10] sm:$0xff]
    %v6442 = vld [vmem:[%s6438 + $0x18] sm:$0xff]
    %v6443 = vld [vmem:[%s6438 + $0x20] sm:$0xff]
    %v6444 = vld [vmem:[%s6438 + $0x28] sm:$0xff]
    %v6445 = vld [vmem:[%s6438 + $0x30] sm:$0xff]
    %v6446 = vld [vmem:[%s6438 + $0x38] sm:$0xff]
    %v6447 = vld [vmem:[%s6438 + $0x40] sm:$0xff]
    %v6448 = vld [vmem:[%s6438 + $0x48] sm:$0xff]
    %v6449 = vld [vmem:[%s6438 + $0x50] sm:$0xff]
    %v6450 = vld [vmem:[%s6438 + $0x58] sm:$0xff]
    %v6451 = vld [vmem:[%s6438 + $0x60] sm:$0xff]
    %v6452 = vld [vmem:[%s6438 + $0x68] sm:$0xff]
    %v6453 = vld [vmem:[%s6438 + $0x70] sm:$0xff]
    %v6454 = vld [vmem:[%s6438 + $0x78] sm:$0xff]
    %v6455 = vld [vmem:[%s6438 + $0x80] sm:$0xff]
    %v6456 = vld [vmem:[%s6438 + $0x88] sm:$0xff]
    %v6457 = vld [vmem:[%s6438 + $0x90] sm:$0xff]
    %v6458 = vld [vmem:[%s6438 + $0x98] sm:$0xff]
    %v6459 = vld [vmem:[%s6438 + $0xa0] sm:$0xff]
    %v6460 = vld [vmem:[%s6438 + $0xa8] sm:$0xff]
    %v6461 = vld [vmem:[%s6438 + $0xb0] sm:$0xff]
    %v6462 = vld [vmem:[%s6438 + $0xb8] sm:$0xff]
    %v6463 = vld [vmem:[%s6438 + $0xc0] sm:$0xff]
    %v6464 = vld [vmem:[%s6438 + $0xc8] sm:$0xff]
    %v6465 = vld [vmem:[%s6438 + $0xd0] sm:$0xff]
    %v6466 = vld [vmem:[%s6438 + $0xd8] sm:$0xff]
    %v6467 = vld [vmem:[%s6438 + $0xe0] sm:$0xff]
    %v6468 = vld [vmem:[%s6438 + $0xe8] sm:$0xff]
    %v6469 = vld [vmem:[%s6438 + $0xf0] sm:$0xff]
    %v6470 = vld [vmem:[%s6438 + $0xf8] sm:$0xff]
    %s6471 = scalar_lea.vmem %s7, 4
    %v6472 = vld [vmem:[%s6471] sm:$0xf]
    %v6474 = vlaneseq
    %v6475 = vshrl.u32 %v6474, 7
    %v6476 = vsub.s32 0, %v6475
    %v6477 = vrot.slane %v6472, %v6476
    %v6478 = vlaneseq
    %v6479 = vshrl.u32 %v6478, 7
    %v6480 = vsub.s32 1, %v6479
    %v6481 = vrot.slane %v6472, %v6480
    %v6482 = vlaneseq
    %v6483 = vshrl.u32 %v6482, 7
    %v6484 = vsub.s32 2, %v6483
    %v6485 = vrot.slane %v6472, %v6484
    %v6486 = vlaneseq
    %v6487 = vshrl.u32 %v6486, 7
    %v6488 = vsub.s32 3, %v6487
    %v6489 = vrot.slane %v6472, %v6488
    %v6526 = vunpack.c.l.b16 %v6439
    %v6527 = vunpack.c.h.b16 %v6439
    %v6528 = vunpack.c.l.b16 %v6440
    %v6529 = vunpack.c.h.b16 %v6440
    %v6530 = vunpack.c.l.b16 %v6441
    %v6531 = vunpack.c.h.b16 %v6441
    %v6532 = vunpack.c.l.b16 %v6442
    %v6533 = vunpack.c.h.b16 %v6442
    %v6534 = vunpack.c.l.b16 %v6443
    %v6535 = vunpack.c.h.b16 %v6443
    %v6536 = vunpack.c.l.b16 %v6444
    %v6537 = vunpack.c.h.b16 %v6444
    %v6538 = vunpack.c.l.b16 %v6445
    %v6539 = vunpack.c.h.b16 %v6445
    %v6540 = vunpack.c.l.b16 %v6446
    %v6541 = vunpack.c.h.b16 %v6446
    %v6542 = vunpack.c.l.b16 %v6447
    %v6543 = vunpack.c.h.b16 %v6447
    %v6544 = vunpack.c.l.b16 %v6448
    %v6545 = vunpack.c.h.b16 %v6448
    %v6546 = vunpack.c.l.b16 %v6449
    %v6547 = vunpack.c.h.b16 %v6449
    %v6548 = vunpack.c.l.b16 %v6450
    %v6549 = vunpack.c.h.b16 %v6450
    %v6550 = vunpack.c.l.b16 %v6451
    %v6551 = vunpack.c.h.b16 %v6451
    %v6552 = vunpack.c.l.b16 %v6452
    %v6553 = vunpack.c.h.b16 %v6452
    %v6554 = vunpack.c.l.b16 %v6453
    %v6555 = vunpack.c.h.b16 %v6453
    %v6556 = vunpack.c.l.b16 %v6454
    %v6557 = vunpack.c.h.b16 %v6454
    %v6558 = vunpack.c.l.b16 %v6455
    %v6559 = vunpack.c.h.b16 %v6455
    %v6560 = vunpack.c.l.b16 %v6456
    %v6561 = vunpack.c.h.b16 %v6456
    %v6562 = vunpack.c.l.b16 %v6457
    %v6563 = vunpack.c.h.b16 %v6457
    %v6564 = vunpack.c.l.b16 %v6458
    %v6565 = vunpack.c.h.b16 %v6458
    %v6566 = vunpack.c.l.b16 %v6459
    %v6567 = vunpack.c.h.b16 %v6459
    %v6568 = vunpack.c.l.b16 %v6460
    %v6569 = vunpack.c.h.b16 %v6460
    %v6570 = vunpack.c.l.b16 %v6461
    %v6571 = vunpack.c.h.b16 %v6461
    %v6572 = vunpack.c.l.b16 %v6462
    %v6573 = vunpack.c.h.b16 %v6462
    %v6574 = vunpack.c.l.b16 %v6463
    %v6575 = vunpack.c.h.b16 %v6463
    %v6576 = vunpack.c.l.b16 %v6464
    %v6577 = vunpack.c.h.b16 %v6464
    %v6578 = vunpack.c.l.b16 %v6465
    %v6579 = vunpack.c.h.b16 %v6465
    %v6580 = vunpack.c.l.b16 %v6466
    %v6581 = vunpack.c.h.b16 %v6466
    %v6582 = vunpack.c.l.b16 %v6467
    %v6583 = vunpack.c.h.b16 %v6467
    %v6584 = vunpack.c.l.b16 %v6468
    %v6585 = vunpack.c.h.b16 %v6468
    %v6586 = vunpack.c.l.b16 %v6469
    %v6587 = vunpack.c.h.b16 %v6469
    %v6588 = vunpack.c.l.b16 %v6470
    %v6589 = vunpack.c.h.b16 %v6470
    %v6590 = vpack.c.b16 %v6530, %v6526
    %v6591 = vpack.c.b16 %v6531, %v6527
    %v6592 = vpack.c.b16 %v6532, %v6528
    %v6593 = vpack.c.b16 %v6533, %v6529
    %v6594 = vpack.c.b16 %v6538, %v6534
    %v6595 = vpack.c.b16 %v6539, %v6535
    %v6596 = vpack.c.b16 %v6540, %v6536
    %v6597 = vpack.c.b16 %v6541, %v6537
    %v6598 = vpack.c.b16 %v6546, %v6542
    %v6599 = vpack.c.b16 %v6547, %v6543
    %v6600 = vpack.c.b16 %v6548, %v6544
    %v6601 = vpack.c.b16 %v6549, %v6545
    %v6602 = vpack.c.b16 %v6554, %v6550
    %v6603 = vpack.c.b16 %v6555, %v6551
    %v6604 = vpack.c.b16 %v6556, %v6552
    %v6605 = vpack.c.b16 %v6557, %v6553
    %v6606 = vpack.c.b16 %v6562, %v6558
    %v6607 = vpack.c.b16 %v6563, %v6559
    %v6608 = vpack.c.b16 %v6564, %v6560
    %v6609 = vpack.c.b16 %v6565, %v6561
    %v6610 = vpack.c.b16 %v6570, %v6566
    %v6611 = vpack.c.b16 %v6571, %v6567
    %v6612 = vpack.c.b16 %v6572, %v6568
    %v6613 = vpack.c.b16 %v6573, %v6569
    %v6614 = vpack.c.b16 %v6578, %v6574
    %v6615 = vpack.c.b16 %v6579, %v6575
    %v6616 = vpack.c.b16 %v6580, %v6576
    %v6617 = vpack.c.b16 %v6581, %v6577
    %v6618 = vpack.c.b16 %v6586, %v6582
    %v6619 = vpack.c.b16 %v6587, %v6583
    %v6620 = vpack.c.b16 %v6588, %v6584
    %v6621 = vpack.c.b16 %v6589, %v6585
    %6654 = vmatprep.subr.bf16.mxu0 %v6619
    %6655 = vmatpush1.bf16.msra.mxu0 %v6618
    %6656 = vmatprep.subr.bf16.mxu0 %v6615
    %6657 = vmatpush1.bf16.msra.mxu0 %v6614
    %6658 = vmatprep.subr.bf16.mxu0 %v6611
    %6659 = vmatpush1.bf16.msra.mxu0 %v6610
    %6660 = vmatprep.subr.bf16.mxu0 %v6607
    %6661 = vmatpush1.bf16.msra.mxu0 %v6606
    %6662 = vmatprep.subr.bf16.mxu0 %v6603
    %6663 = vmatpush1.bf16.msra.mxu0 %v6602
    %6664 = vmatprep.subr.bf16.mxu0 %v6599
    %6665 = vmatpush1.bf16.msra.mxu0 %v6598
    %6666 = vmatprep.subr.bf16.mxu0 %v6595
    %6667 = vmatpush1.bf16.msra.mxu0 %v6594
    %6668 = vmatprep.subr.bf16.mxu0 %v6591
    %6669 = vmatpush1.bf16.msra.mxu0 %v6590
    %6670 = vmatprep.subr.bf16.mxu0 0
    %6671 = vmatpush2.bf16.msra.mxu0 0
    %6672 = vmatprep.subr.bf16.mxu0 0
    %6673 = vmatpush2.bf16.msra.mxu0 0
    %6674 = vmatprep.subr.bf16.mxu0 0
    %6675 = vmatpush2.bf16.msra.mxu0 0
    %6676 = vmatprep.subr.bf16.mxu0 0
    %6677 = vmatpush2.bf16.msra.mxu0 0
    %6678 = vmatprep.subr.bf16.mxu0 0
    %6679 = vmatpush2.bf16.msra.mxu0 0
    %6680 = vmatprep.subr.bf16.mxu0 0
    %6681 = vmatpush2.bf16.msra.mxu0 0
    %6682 = vmatprep.subr.bf16.mxu0 0
    %6683 = vmatpush2.bf16.msra.mxu0 0
    %6684 = vmatprep.subr.bf16.mxu0 0
    %6685 = vmatpush2.bf16.msra.mxu0 0
    %6686 = vmatprep.mubr.bf16.mxu0 0
    %6687 = vmatmul.mubr.bf16.gmra.mxu0 %v6436
    %v6688 = vpop.f32.mrf.mxu0
    %v6689 = vadd.f32 %v6477, %v6688
    %v6690 = vpop.f32.mrf.mxu0
    %v6691 = vadd.f32 %v6481, %v6690
    %v6692 = vpop.f32.mrf.mxu0
    %v6693 = vadd.f32 %v6477, %v6692
    %v6694 = vpop.f32.mrf.mxu0
    %v6695 = vadd.f32 %v6481, %v6694
    %6696 = vmatprep.mubr.bf16.mxu0 0
    %6697 = vmatmul.mubr.bf16.gmra.mxu0 %v6437
    %v6698 = vpop.f32.mrf.mxu0
    %v6699 = vadd.f32 %v6477, %v6698
    %v6700 = vpop.f32.mrf.mxu0
    %v6701 = vadd.f32 %v6481, %v6700
    %v6702 = vpop.f32.mrf.mxu0
    %v6703 = vadd.f32 %v6477, %v6702
    %v6704 = vpop.f32.mrf.mxu0
    %v6705 = vadd.f32 %v6481, %v6704
    %6706 = vdwg.mxu0
    %6707 = vmatprep.subr.bf16.mxu0 %v6621
    %6708 = vmatpush1.bf16.msra.mxu0 %v6620
    %6709 = vmatprep.subr.bf16.mxu0 %v6617
    %6710 = vmatpush1.bf16.msra.mxu0 %v6616
    %6711 = vmatprep.subr.bf16.mxu0 %v6613
    %6712 = vmatpush1.bf16.msra.mxu0 %v6612
    %6713 = vmatprep.subr.bf16.mxu0 %v6609
    %6714 = vmatpush1.bf16.msra.mxu0 %v6608
    %6715 = vmatprep.subr.bf16.mxu0 %v6605
    %6716 = vmatpush1.bf16.msra.mxu0 %v6604
    %6717 = vmatprep.subr.bf16.mxu0 %v6601
    %6718 = vmatpush1.bf16.msra.mxu0 %v6600
    %6719 = vmatprep.subr.bf16.mxu0 %v6597
    %6720 = vmatpush1.bf16.msra.mxu0 %v6596
    %6721 = vmatprep.subr.bf16.mxu0 %v6593
    %6722 = vmatpush1.bf16.msra.mxu0 %v6592
    %6723 = vmatprep.subr.bf16.mxu0 0
    %6724 = vmatpush2.bf16.msra.mxu0 0
    %6725 = vmatprep.subr.bf16.mxu0 0
    %6726 = vmatpush2.bf16.msra.mxu0 0
    %6727 = vmatprep.subr.bf16.mxu0 0
    %6728 = vmatpush2.bf16.msra.mxu0 0
    %6729 = vmatprep.subr.bf16.mxu0 0
    %6730 = vmatpush2.bf16.msra.mxu0 0
    %6731 = vmatprep.subr.bf16.mxu0 0
    %6732 = vmatpush2.bf16.msra.mxu0 0
    %6733 = vmatprep.subr.bf16.mxu0 0
    %6734 = vmatpush2.bf16.msra.mxu0 0
    %6735 = vmatprep.subr.bf16.mxu0 0
    %6736 = vmatpush2.bf16.msra.mxu0 0
    %6737 = vmatprep.subr.bf16.mxu0 0
    %6738 = vmatpush2.bf16.msra.mxu0 0
    %6739 = vmatprep.mubr.bf16.mxu0 0
    %6740 = vmatmul.mubr.bf16.gmra.mxu0 %v6436
    %v6741 = vpop.f32.mrf.mxu0
    %v6742 = vadd.f32 %v6485, %v6741
    %v6743 = vpop.f32.mrf.mxu0
    %v6744 = vadd.f32 %v6489, %v6743
    %v6745 = vpop.f32.mrf.mxu0
    %v6746 = vadd.f32 %v6485, %v6745
    %v6747 = vpop.f32.mrf.mxu0
    %v6748 = vadd.f32 %v6489, %v6747
    %6749 = vmatprep.mubr.bf16.mxu0 0
    %6750 = vmatmul.mubr.bf16.gmra.mxu0 %v6437
    %v6751 = vpop.f32.mrf.mxu0
    %v6752 = vadd.f32 %v6485, %v6751
    %v6753 = vpop.f32.mrf.mxu0
    %v6754 = vadd.f32 %v6489, %v6753
    %v6755 = vpop.f32.mrf.mxu0
    %v6756 = vadd.f32 %v6485, %v6755
    %v6757 = vpop.f32.mrf.mxu0
    %v6758 = vadd.f32 %v6489, %v6757
    %6759 = vdwg.mxu0
    %v6760 = vmul.f32 %v6689, 0.5
    %v6761 = vmul.f32 %v6691, 0.5
    %v6762 = vmul.f32 %v6742, 0.5
    %v6763 = vmul.f32 %v6744, 0.5
    %v6764 = vmul.f32 %v6693, 0.5
    %v6765 = vmul.f32 %v6695, 0.5
    %v6766 = vmul.f32 %v6746, 0.5
    %v6767 = vmul.f32 %v6748, 0.5
    %v6768 = vmul.f32 %v6699, 0.5
    %v6769 = vmul.f32 %v6701, 0.5
    %v6770 = vmul.f32 %v6752, 0.5
    %v6771 = vmul.f32 %v6754, 0.5
    %v6772 = vmul.f32 %v6703, 0.5
    %v6773 = vmul.f32 %v6705, 0.5
    %v6774 = vmul.f32 %v6756, 0.5
    %v6775 = vmul.f32 %v6758, 0.5
    %v6776 = vmul.f32 %v6689, 0.044715
    %v6777 = vmul.f32 %v6691, 0.044715
    %v6778 = vmul.f32 %v6742, 0.044715
    %v6779 = vmul.f32 %v6744, 0.044715
    %v6780 = vmul.f32 %v6693, 0.044715
    %v6781 = vmul.f32 %v6695, 0.044715
    %v6782 = vmul.f32 %v6746, 0.044715
    %v6783 = vmul.f32 %v6748, 0.044715
    %v6784 = vmul.f32 %v6699, 0.044715
    %v6785 = vmul.f32 %v6701, 0.044715
    %v6786 = vmul.f32 %v6752, 0.044715
    %v6787 = vmul.f32 %v6754, 0.044715
    %v6788 = vmul.f32 %v6703, 0.044715
    %v6789 = vmul.f32 %v6705, 0.044715
    %v6790 = vmul.f32 %v6756, 0.044715
    %v6791 = vmul.f32 %v6758, 0.044715
    %v6792 = vmul.f32 %v6776, %v6689
    %v6793 = vmul.f32 %v6777, %v6691
    %v6794 = vmul.f32 %v6778, %v6742
    %v6795 = vmul.f32 %v6779, %v6744
    %v6796 = vmul.f32 %v6780, %v6693
    %v6797 = vmul.f32 %v6781, %v6695
    %v6798 = vmul.f32 %v6782, %v6746
    %v6799 = vmul.f32 %v6783, %v6748
    %v6800 = vmul.f32 %v6784, %v6699
    %v6801 = vmul.f32 %v6785, %v6701
    %v6802 = vmul.f32 %v6786, %v6752
    %v6803 = vmul.f32 %v6787, %v6754
    %v6804 = vmul.f32 %v6788, %v6703
    %v6805 = vmul.f32 %v6789, %v6705
    %v6806 = vmul.f32 %v6790, %v6756
    %v6807 = vmul.f32 %v6791, %v6758
    %v6808 = vmul.f32 %v6792, %v6689
    %v6809 = vmul.f32 %v6793, %v6691
    %v6810 = vmul.f32 %v6794, %v6742
    %v6811 = vmul.f32 %v6795, %v6744
    %v6812 = vmul.f32 %v6796, %v6693
    %v6813 = vmul.f32 %v6797, %v6695
    %v6814 = vmul.f32 %v6798, %v6746
    %v6815 = vmul.f32 %v6799, %v6748
    %v6816 = vmul.f32 %v6800, %v6699
    %v6817 = vmul.f32 %v6801, %v6701
    %v6818 = vmul.f32 %v6802, %v6752
    %v6819 = vmul.f32 %v6803, %v6754
    %v6820 = vmul.f32 %v6804, %v6703
    %v6821 = vmul.f32 %v6805, %v6705
    %v6822 = vmul.f32 %v6806, %v6756
    %v6823 = vmul.f32 %v6807, %v6758
    %v6824 = vadd.f32 %v6689, %v6808
    %v6825 = vadd.f32 %v6691, %v6809
    %v6826 = vadd.f32 %v6742, %v6810
    %v6827 = vadd.f32 %v6744, %v6811
    %v6828 = vadd.f32 %v6693, %v6812
    %v6829 = vadd.f32 %v6695, %v6813
    %v6830 = vadd.f32 %v6746, %v6814
    %v6831 = vadd.f32 %v6748, %v6815
    %v6832 = vadd.f32 %v6699, %v6816
    %v6833 = vadd.f32 %v6701, %v6817
    %v6834 = vadd.f32 %v6752, %v6818
    %v6835 = vadd.f32 %v6754, %v6819
    %v6836 = vadd.f32 %v6703, %v6820
    %v6837 = vadd.f32 %v6705, %v6821
    %v6838 = vadd.f32 %v6756, %v6822
    %v6839 = vadd.f32 %v6758, %v6823
    %v6840 = vmul.f32 %v6824, 0.7978846
    %v6841 = vmul.f32 %v6825, 0.7978846
    %v6842 = vmul.f32 %v6826, 0.7978846
    %v6843 = vmul.f32 %v6827, 0.7978846
    %v6844 = vmul.f32 %v6828, 0.7978846
    %v6845 = vmul.f32 %v6829, 0.7978846
    %v6846 = vmul.f32 %v6830, 0.7978846
    %v6847 = vmul.f32 %v6831, 0.7978846
    %v6848 = vmul.f32 %v6832, 0.7978846
    %v6849 = vmul.f32 %v6833, 0.7978846
    %v6850 = vmul.f32 %v6834, 0.7978846
    %v6851 = vmul.f32 %v6835, 0.7978846
    %v6852 = vmul.f32 %v6836, 0.7978846
    %v6853 = vmul.f32 %v6837, 0.7978846
    %v6854 = vmul.f32 %v6838, 0.7978846
    %v6855 = vmul.f32 %v6839, 0.7978846
    %v6856 = vtanh.pop %v6840
    %v6857 = vtanh.pop %v6841
    %v6858 = vtanh.pop %v6842
    %v6859 = vtanh.pop %v6843
    %v6860 = vtanh.pop %v6844
    %v6861 = vtanh.pop %v6845
    %v6862 = vtanh.pop %v6846
    %v6863 = vtanh.pop %v6847
    %v6864 = vtanh.pop %v6848
    %v6865 = vtanh.pop %v6849
    %v6866 = vtanh.pop %v6850
    %v6867 = vtanh.pop %v6851
    %v6868 = vtanh.pop %v6852
    %v6869 = vtanh.pop %v6853
    %v6870 = vtanh.pop %v6854
    %v6871 = vtanh.pop %v6855
    %v6872 = vadd.f32 %v6856, 1.0
    %v6873 = vadd.f32 %v6857, 1.0
    %v6874 = vadd.f32 %v6858, 1.0
    %v6875 = vadd.f32 %v6859, 1.0
    %v6876 = vadd.f32 %v6860, 1.0
    %v6877 = vadd.f32 %v6861, 1.0
    %v6878 = vadd.f32 %v6862, 1.0
    %v6879 = vadd.f32 %v6863, 1.0
    %v6880 = vadd.f32 %v6864, 1.0
    %v6881 = vadd.f32 %v6865, 1.0
    %v6882 = vadd.f32 %v6866, 1.0
    %v6883 = vadd.f32 %v6867, 1.0
    %v6884 = vadd.f32 %v6868, 1.0
    %v6885 = vadd.f32 %v6869, 1.0
    %v6886 = vadd.f32 %v6870, 1.0
    %v6887 = vadd.f32 %v6871, 1.0
    %v6888 = vmul.f32 %v6760, %v6872
    %v6889 = vmul.f32 %v6761, %v6873
    %v6890 = vmul.f32 %v6762, %v6874
    %v6891 = vmul.f32 %v6763, %v6875
    %v6892 = vmul.f32 %v6764, %v6876
    %v6893 = vmul.f32 %v6765, %v6877
    %v6894 = vmul.f32 %v6766, %v6878
    %v6895 = vmul.f32 %v6767, %v6879
    %v6896 = vmul.f32 %v6768, %v6880
    %v6897 = vmul.f32 %v6769, %v6881
    %v6898 = vmul.f32 %v6770, %v6882
    %v6899 = vmul.f32 %v6771, %v6883
    %v6900 = vmul.f32 %v6772, %v6884
    %v6901 = vmul.f32 %v6773, %v6885
    %v6902 = vmul.f32 %v6774, %v6886
    %v6903 = vmul.f32 %v6775, %v6887
    %v6904 = vpack.c.bf16 %v6892, %v6888
    %v6905 = vpack.c.bf16 %v6893, %v6889
    %v6906 = vpack.c.bf16 %v6894, %v6890
    %v6907 = vpack.c.bf16 %v6895, %v6891
    %v6908 = vpack.c.bf16 %v6900, %v6896
    %v6909 = vpack.c.bf16 %v6901, %v6897
    %v6910 = vpack.c.bf16 %v6902, %v6898
    %v6911 = vpack.c.bf16 %v6903, %v6899
    %s6912 = scalar_lea.vmem %s8, 256
    %v6913 = vld [vmem:[%s6912] sm:$0xf]
    %v6914 = vld [vmem:[%s6912 + $0x4] sm:$0xf]
    %v6915 = vld [vmem:[%s6912 + $0x8] sm:$0xf]
    %v6916 = vld [vmem:[%s6912 + $0xc] sm:$0xf]
    %v6917 = vld [vmem:[%s6912 + $0x10] sm:$0xf]
    %v6918 = vld [vmem:[%s6912 + $0x14] sm:$0xf]
    %v6919 = vld [vmem:[%s6912 + $0x18] sm:$0xf]
    %v6920 = vld [vmem:[%s6912 + $0x1c] sm:$0xf]
    %v6921 = vld [vmem:[%s6912 + $0x20] sm:$0xf]
    %v6922 = vld [vmem:[%s6912 + $0x24] sm:$0xf]
    %v6923 = vld [vmem:[%s6912 + $0x28] sm:$0xf]
    %v6924 = vld [vmem:[%s6912 + $0x2c] sm:$0xf]
    %v6925 = vld [vmem:[%s6912 + $0x30] sm:$0xf]
    %v6926 = vld [vmem:[%s6912 + $0x34] sm:$0xf]
    %v6927 = vld [vmem:[%s6912 + $0x38] sm:$0xf]
    %v6928 = vld [vmem:[%s6912 + $0x3c] sm:$0xf]
    %v6929 = vld [vmem:[%s6912 + $0x40] sm:$0xf]
    %v6930 = vld [vmem:[%s6912 + $0x44] sm:$0xf]
    %v6931 = vld [vmem:[%s6912 + $0x48] sm:$0xf]
    %v6932 = vld [vmem:[%s6912 + $0x4c] sm:$0xf]
    %v6933 = vld [vmem:[%s6912 + $0x50] sm:$0xf]
    %v6934 = vld [vmem:[%s6912 + $0x54] sm:$0xf]
    %v6935 = vld [vmem:[%s6912 + $0x58] sm:$0xf]
    %v6936 = vld [vmem:[%s6912 + $0x5c] sm:$0xf]
    %v6937 = vld [vmem:[%s6912 + $0x60] sm:$0xf]
    %v6938 = vld [vmem:[%s6912 + $0x64] sm:$0xf]
    %v6939 = vld [vmem:[%s6912 + $0x68] sm:$0xf]
    %v6940 = vld [vmem:[%s6912 + $0x6c] sm:$0xf]
    %v6941 = vld [vmem:[%s6912 + $0x70] sm:$0xf]
    %v6942 = vld [vmem:[%s6912 + $0x74] sm:$0xf]
    %v6943 = vld [vmem:[%s6912 + $0x78] sm:$0xf]
    %v6944 = vld [vmem:[%s6912 + $0x7c] sm:$0xf]
    %v6945 = vld [vmem:[%s6912 + $0x80] sm:$0xf]
    %v6946 = vld [vmem:[%s6912 + $0x84] sm:$0xf]
    %v6947 = vld [vmem:[%s6912 + $0x88] sm:$0xf]
    %v6948 = vld [vmem:[%s6912 + $0x8c] sm:$0xf]
    %v6949 = vld [vmem:[%s6912 + $0x90] sm:$0xf]
    %v6950 = vld [vmem:[%s6912 + $0x94] sm:$0xf]
    %v6951 = vld [vmem:[%s6912 + $0x98] sm:$0xf]
    %v6952 = vld [vmem:[%s6912 + $0x9c] sm:$0xf]
    %v6953 = vld [vmem:[%s6912 + $0xa0] sm:$0xf]
    %v6954 = vld [vmem:[%s6912 + $0xa4] sm:$0xf]
    %v6955 = vld [vmem:[%s6912 + $0xa8] sm:$0xf]
    %v6956 = vld [vmem:[%s6912 + $0xac] sm:$0xf]
    %v6957 = vld [vmem:[%s6912 + $0xb0] sm:$0xf]
    %v6958 = vld [vmem:[%s6912 + $0xb4] sm:$0xf]
    %v6959 = vld [vmem:[%s6912 + $0xb8] sm:$0xf]
    %v6960 = vld [vmem:[%s6912 + $0xbc] sm:$0xf]
    %v6961 = vld [vmem:[%s6912 + $0xc0] sm:$0xf]
    %v6962 = vld [vmem:[%s6912 + $0xc4] sm:$0xf]
    %v6963 = vld [vmem:[%s6912 + $0xc8] sm:$0xf]
    %v6964 = vld [vmem:[%s6912 + $0xcc] sm:$0xf]
    %v6965 = vld [vmem:[%s6912 + $0xd0] sm:$0xf]
    %v6966 = vld [vmem:[%s6912 + $0xd4] sm:$0xf]
    %v6967 = vld [vmem:[%s6912 + $0xd8] sm:$0xf]
    %v6968 = vld [vmem:[%s6912 + $0xdc] sm:$0xf]
    %v6969 = vld [vmem:[%s6912 + $0xe0] sm:$0xf]
    %v6970 = vld [vmem:[%s6912 + $0xe4] sm:$0xf]
    %v6971 = vld [vmem:[%s6912 + $0xe8] sm:$0xf]
    %v6972 = vld [vmem:[%s6912 + $0xec] sm:$0xf]
    %v6973 = vld [vmem:[%s6912 + $0xf0] sm:$0xf]
    %v6974 = vld [vmem:[%s6912 + $0xf4] sm:$0xf]
    %v6975 = vld [vmem:[%s6912 + $0xf8] sm:$0xf]
    %v6976 = vld [vmem:[%s6912 + $0xfc] sm:$0xf]
    %s6977 = scalar_lea.vmem %s9, 1
    %v6978 = vld [vmem:[%s6977] sm:$0x1]
    %v6980 = vlaneseq
    %v6981 = vshrl.u32 %v6980, 7
    %v6982 = vsub.s32 0, %v6981
    %v6983 = vrot.slane %v6978, %v6982
    %v7049 = vunpack.c.l.b16 %v6913
    %v7050 = vunpack.c.l.b16 %v6914
    %v7051 = vunpack.c.l.b16 %v6915
    %v7052 = vunpack.c.l.b16 %v6916
    %v7053 = vunpack.c.l.b16 %v6917
    %v7054 = vunpack.c.l.b16 %v6918
    %v7055 = vunpack.c.l.b16 %v6919
    %v7056 = vunpack.c.l.b16 %v6920
    %v7057 = vunpack.c.l.b16 %v6921
    %v7058 = vunpack.c.l.b16 %v6922
    %v7059 = vunpack.c.l.b16 %v6923
    %v7060 = vunpack.c.l.b16 %v6924
    %v7061 = vunpack.c.l.b16 %v6925
    %v7062 = vunpack.c.l.b16 %v6926
    %v7063 = vunpack.c.l.b16 %v6927
    %v7064 = vunpack.c.l.b16 %v6928
    %v7065 = vunpack.c.l.b16 %v6929
    %v7066 = vunpack.c.l.b16 %v6930
    %v7067 = vunpack.c.l.b16 %v6931
    %v7068 = vunpack.c.l.b16 %v6932
    %v7069 = vunpack.c.l.b16 %v6933
    %v7070 = vunpack.c.l.b16 %v6934
    %v7071 = vunpack.c.l.b16 %v6935
    %v7072 = vunpack.c.l.b16 %v6936
    %v7073 = vunpack.c.l.b16 %v6937
    %v7074 = vunpack.c.l.b16 %v6938
    %v7075 = vunpack.c.l.b16 %v6939
    %v7076 = vunpack.c.l.b16 %v6940
    %v7077 = vunpack.c.l.b16 %v6941
    %v7078 = vunpack.c.l.b16 %v6942
    %v7079 = vunpack.c.l.b16 %v6943
    %v7080 = vunpack.c.l.b16 %v6944
    %v7081 = vunpack.c.l.b16 %v6945
    %v7082 = vunpack.c.l.b16 %v6946
    %v7083 = vunpack.c.l.b16 %v6947
    %v7084 = vunpack.c.l.b16 %v6948
    %v7085 = vunpack.c.l.b16 %v6949
    %v7086 = vunpack.c.l.b16 %v6950
    %v7087 = vunpack.c.l.b16 %v6951
    %v7088 = vunpack.c.l.b16 %v6952
    %v7089 = vunpack.c.l.b16 %v6953
    %v7090 = vunpack.c.l.b16 %v6954
    %v7091 = vunpack.c.l.b16 %v6955
    %v7092 = vunpack.c.l.b16 %v6956
    %v7093 = vunpack.c.l.b16 %v6957
    %v7094 = vunpack.c.l.b16 %v6958
    %v7095 = vunpack.c.l.b16 %v6959
    %v7096 = vunpack.c.l.b16 %v6960
    %v7097 = vunpack.c.l.b16 %v6961
    %v7098 = vunpack.c.l.b16 %v6962
    %v7099 = vunpack.c.l.b16 %v6963
    %v7100 = vunpack.c.l.b16 %v6964
    %v7101 = vunpack.c.l.b16 %v6965
    %v7102 = vunpack.c.l.b16 %v6966
    %v7103 = vunpack.c.l.b16 %v6967
    %v7104 = vunpack.c.l.b16 %v6968
    %v7105 = vunpack.c.l.b16 %v6969
    %v7106 = vunpack.c.l.b16 %v6970
    %v7107 = vunpack.c.l.b16 %v6971
    %v7108 = vunpack.c.l.b16 %v6972
    %v7109 = vunpack.c.l.b16 %v6973
    %v7110 = vunpack.c.l.b16 %v6974
    %v7111 = vunpack.c.l.b16 %v6975
    %v7112 = vunpack.c.l.b16 %v6976
    %v7113 = vpack.c.b16 %v7050, %v7049
    %v7114 = vpack.c.b16 %v7052, %v7051
    %v7115 = vpack.c.b16 %v7054, %v7053
    %v7116 = vpack.c.b16 %v7056, %v7055
    %v7117 = vpack.c.b16 %v7058, %v7057
    %v7118 = vpack.c.b16 %v7060, %v7059
    %v7119 = vpack.c.b16 %v7062, %v7061
    %v7120 = vpack.c.b16 %v7064, %v7063
    %v7121 = vpack.c.b16 %v7066, %v7065
    %v7122 = vpack.c.b16 %v7068, %v7067
    %v7123 = vpack.c.b16 %v7070, %v7069
    %v7124 = vpack.c.b16 %v7072, %v7071
    %v7125 = vpack.c.b16 %v7074, %v7073
    %v7126 = vpack.c.b16 %v7076, %v7075
    %v7127 = vpack.c.b16 %v7078, %v7077
    %v7128 = vpack.c.b16 %v7080, %v7079
    %v7129 = vpack.c.b16 %v7082, %v7081
    %v7130 = vpack.c.b16 %v7084, %v7083
    %v7131 = vpack.c.b16 %v7086, %v7085
    %v7132 = vpack.c.b16 %v7088, %v7087
    %v7133 = vpack.c.b16 %v7090, %v7089
    %v7134 = vpack.c.b16 %v7092, %v7091
    %v7135 = vpack.c.b16 %v7094, %v7093
    %v7136 = vpack.c.b16 %v7096, %v7095
    %v7137 = vpack.c.b16 %v7098, %v7097
    %v7138 = vpack.c.b16 %v7100, %v7099
    %v7139 = vpack.c.b16 %v7102, %v7101
    %v7140 = vpack.c.b16 %v7104, %v7103
    %v7141 = vpack.c.b16 %v7106, %v7105
    %v7142 = vpack.c.b16 %v7108, %v7107
    %v7143 = vpack.c.b16 %v7110, %v7109
    %v7144 = vpack.c.b16 %v7112, %v7111
    %7177 = vmatprep.subr.bf16.mxu0 0
    %7178 = vmatpush1.bf16.msra.mxu0 %v7120
    %7179 = vmatprep.subr.bf16.mxu0 0
    %7180 = vmatpush1.bf16.msra.mxu0 %v7119
    %7181 = vmatprep.subr.bf16.mxu0 0
    %7182 = vmatpush1.bf16.msra.mxu0 %v7118
    %7183 = vmatprep.subr.bf16.mxu0 0
    %7184 = vmatpush1.bf16.msra.mxu0 %v7117
    %7185 = vmatprep.subr.bf16.mxu0 0
    %7186 = vmatpush1.bf16.msra.mxu0 %v7116
    %7187 = vmatprep.subr.bf16.mxu0 0
    %7188 = vmatpush1.bf16.msra.mxu0 %v7115
    %7189 = vmatprep.subr.bf16.mxu0 0
    %7190 = vmatpush1.bf16.msra.mxu0 %v7114
    %7191 = vmatprep.subr.bf16.mxu0 0
    %7192 = vmatpush1.bf16.msra.mxu0 %v7113
    %7193 = vmatprep.subr.bf16.mxu0 0
    %7194 = vmatpush2.bf16.msra.mxu0 %v7128
    %7195 = vmatprep.subr.bf16.mxu0 0
    %7196 = vmatpush2.bf16.msra.mxu0 %v7127
    %7197 = vmatprep.subr.bf16.mxu0 0
    %7198 = vmatpush2.bf16.msra.mxu0 %v7126
    %7199 = vmatprep.subr.bf16.mxu0 0
    %7200 = vmatpush2.bf16.msra.mxu0 %v7125
    %7201 = vmatprep.subr.bf16.mxu0 0
    %7202 = vmatpush2.bf16.msra.mxu0 %v7124
    %7203 = vmatprep.subr.bf16.mxu0 0
    %7204 = vmatpush2.bf16.msra.mxu0 %v7123
    %7205 = vmatprep.subr.bf16.mxu0 0
    %7206 = vmatpush2.bf16.msra.mxu0 %v7122
    %7207 = vmatprep.subr.bf16.mxu0 0
    %7208 = vmatpush2.bf16.msra.mxu0 %v7121
    %7209 = vmatprep.mubr.bf16.mxu0 %v6905
    %7210 = vmatmul.mubr.bf16.gmra.mxu0 %v6904
    %v7211 = vpop.f32.mrf.mxu0
    %v7212 = vadd.f32 %v6983, %v7211
    %v7213 = vpop.f32.mrf.mxu0
    %v7214 = vpop.f32.mrf.mxu0
    %v7215 = vadd.f32 %v6983, %v7214
    %v7216 = vpop.f32.mrf.mxu0
    %7217 = vmatprep.mubr.bf16.mxu0 %v6909
    %7218 = vmatmul.mubr.bf16.gmra.mxu0 %v6908
    %v7219 = vpop.f32.mrf.mxu0
    %v7220 = vadd.f32 %v6983, %v7219
    %v7221 = vpop.f32.mrf.mxu0
    %v7222 = vpop.f32.mrf.mxu0
    %v7223 = vadd.f32 %v6983, %v7222
    %v7224 = vpop.f32.mrf.mxu0
    %7225 = vdwg.mxu0
    %7226 = vmatprep.subr.bf16.mxu0 0
    %7227 = vmatpush1.bf16.msra.mxu0 %v7136
    %7228 = vmatprep.subr.bf16.mxu0 0
    %7229 = vmatpush1.bf16.msra.mxu0 %v7135
    %7230 = vmatprep.subr.bf16.mxu0 0
    %7231 = vmatpush1.bf16.msra.mxu0 %v7134
    %7232 = vmatprep.subr.bf16.mxu0 0
    %7233 = vmatpush1.bf16.msra.mxu0 %v7133
    %7234 = vmatprep.subr.bf16.mxu0 0
    %7235 = vmatpush1.bf16.msra.mxu0 %v7132
    %7236 = vmatprep.subr.bf16.mxu0 0
    %7237 = vmatpush1.bf16.msra.mxu0 %v7131
    %7238 = vmatprep.subr.bf16.mxu0 0
    %7239 = vmatpush1.bf16.msra.mxu0 %v7130
    %7240 = vmatprep.subr.bf16.mxu0 0
    %7241 = vmatpush1.bf16.msra.mxu0 %v7129
    %7242 = vmatprep.subr.bf16.mxu0 0
    %7243 = vmatpush2.bf16.msra.mxu0 %v7144
    %7244 = vmatprep.subr.bf16.mxu0 0
    %7245 = vmatpush2.bf16.msra.mxu0 %v7143
    %7246 = vmatprep.subr.bf16.mxu0 0
    %7247 = vmatpush2.bf16.msra.mxu0 %v7142
    %7248 = vmatprep.subr.bf16.mxu0 0
    %7249 = vmatpush2.bf16.msra.mxu0 %v7141
    %7250 = vmatprep.subr.bf16.mxu0 0
    %7251 = vmatpush2.bf16.msra.mxu0 %v7140
    %7252 = vmatprep.subr.bf16.mxu0 0
    %7253 = vmatpush2.bf16.msra.mxu0 %v7139
    %7254 = vmatprep.subr.bf16.mxu0 0
    %7255 = vmatpush2.bf16.msra.mxu0 %v7138
    %7256 = vmatprep.subr.bf16.mxu0 0
    %7257 = vmatpush2.bf16.msra.mxu0 %v7137
    %7258 = vmatprep.mubr.bf16.mxu0 %v6907
    %7259 = vmatmul.mubr.bf16.gmra.mxu0 %v6906
    %v7260 = vpop.f32.mrf.mxu0
    %v7261 = vadd.f32 %v7212, %v7260
    %v7262 = vpop.f32.mrf.mxu0
    %v7263 = vpop.f32.mrf.mxu0
    %v7264 = vadd.f32 %v7215, %v7263
    %v7265 = vpop.f32.mrf.mxu0
    %7266 = vmatprep.mubr.bf16.mxu0 %v6911
    %7267 = vmatmul.mubr.bf16.gmra.mxu0 %v6910
    %v7268 = vpop.f32.mrf.mxu0
    %v7269 = vadd.f32 %v7220, %v7268
    %v7270 = vpop.f32.mrf.mxu0
    %v7271 = vpop.f32.mrf.mxu0
    %v7272 = vadd.f32 %v7223, %v7271
    %v7273 = vpop.f32.mrf.mxu0
    %7274 = vdwg.mxu0
    %v7275 = vadd.f32 %v6364, %v7261
    %v7276 = vadd.f32 %v6365, %v7264
    %v7277 = vadd.f32 %v6366, %v7269
    %v7278 = vadd.f32 %v6367, %v7272
    %7279 = vst [vmem:[#allocation4] sm:$0xff] %v7275
    %7280 = vst [vmem:[#allocation4 + $0x8] sm:$0xff] %v7276
    %7281 = vst [vmem:[#allocation4 + $0x10] sm:$0xff] %v7277
    %7282 = vst [vmem:[#allocation4 + $0x18] sm:$0xff] %v7278
    %v7283 = vlaneseq
    %v7284 = vshrl.u32 %v7283, 7
    %v7285 = vadd.s32 %v7284, 8
    %s7286 = sld [smem:[#allocation3]]
    %v7287 = vstv %s7286
    %vm7288 = vcmp.lt.s32.totalorder %v7284, %v7287
    %vm7289 = vcmp.lt.s32.totalorder %v7285, %v7287
    %v7290 = vsel %vm7288, 1, 0
    %v7291 = vsel %vm7289, 1, 0
    %v7292 = vcvt.s32.f32 %v7290
    %v7293 = vcvt.s32.f32 %v7291
    %v7294 = vmul.f32 %v7275, %v7292
    %v7295 = vmul.f32 %v7276, %v7293
    %v7296 = vadd.f32 %v7294, %v7295
    %v7297 = vrot.slane %v7296, 4
    %v7298 = vadd.f32 %v7296, %v7297
    %v7299 = vrot.slane %v7298, 2
    %v7300 = vadd.f32 %v7298, %v7299
    %v7301 = vrot.slane %v7300, 1
    %v7302 = vadd.f32 %v7300, %v7301
    %p7303 = scmp.gt.s32.totalorder %s7286, 1
    %s7304 = scalar_select %p7303, %s7286, 1
    %s7305 = scvt.s32.f32 %s7304
    %v7306 = vstv %s7305
    %v7307 = vrcp.pop %v7306
    %v7308 = vmul.f32 %v7302, %v7307
    %s7309 = sld [smem:[#allocation3 + $0x1]]
    %v7310 = vstv %s7309
    %vm7311 = vcmp.lt.s32.totalorder %v7284, %v7310
    %vm7312 = vcmp.lt.s32.totalorder %v7285, %v7310
    %v7313 = vsel %vm7311, 1, 0
    %v7314 = vsel %vm7312, 1, 0
    %v7315 = vcvt.s32.f32 %v7313
    %v7316 = vcvt.s32.f32 %v7314
    %v7317 = vmul.f32 %v7277, %v7315
    %v7318 = vmul.f32 %v7278, %v7316
    %v7319 = vadd.f32 %v7317, %v7318
    %v7320 = vrot.slane %v7319, 4
    %v7321 = vadd.f32 %v7319, %v7320
    %v7322 = vrot.slane %v7321, 2
    %v7323 = vadd.f32 %v7321, %v7322
    %v7324 = vrot.slane %v7323, 1
    %v7325 = vadd.f32 %v7323, %v7324
    %p7326 = scmp.gt.s32.totalorder %s7309, 1
    %s7327 = scalar_select %p7326, %s7309, 1
    %s7328 = scvt.s32.f32 %s7327
    %v7329 = vstv %s7328
    %v7330 = vrcp.pop %v7329
    %v7331 = vmul.f32 %v7325, %v7330
    %vm7332 = vcmask 1040384
    %v7333 = vsel %vm7332, %v7308, %v7331
    %7334 = vst [vmem:[#allocation6] sm:$0x3] %v7333
    // Predicated region
    $region54: #{forward_and_pool.1} parent=1 // pred_check
      _
    $region55: #{forward_and_pool.1} parent=1 // pred_check_branch
      %7336 = sbr.rel (0) target = $region57
    $region56: #{forward_and_pool.1} parent=1 // pred_region
      %s7338 = ssub.s32 512, 512
      %7339 = vsyncadd [#allocation5], %s7338
      %s7340 = sshll.u32 [#allocation4], 4
      %s7341 = int_to_ptr.vmem [resolvable:$true] %s7340
      %7346 = dma.vmem_to_hbm [thread:$0]  %s7341, 512, %s14, [#allocation5], 128, 128, 8
    $region57: #{forward_and_pool.1} parent=1 // pred_fallthru
      _
    // Predicated region
    $region58: #{forward_and_pool.1} parent=1 // pred_check
      _
    $region59: #{forward_and_pool.1} parent=1 // pred_check_branch
      %7348 = sbr.rel (0) target = $region61
    $region60: #{forward_and_pool.1} parent=1 // pred_region
      %s7350 = ssub.s32 32, 32
      %7351 = vsyncadd [#allocation7], %s7350
      %s7353 = sshll.u32 [#allocation6], 4
      %s7354 = int_to_ptr.vmem [resolvable:$true] %s7353
      %7356 = dma.vmem_to_hbm [thread:$0]  %s7354, 32, %s15, [#allocation7]
    $region61: #{forward_and_pool.1} parent=1 // pred_fallthru
      _
    // Predicated region
    $region62: #{forward_and_pool.1} parent=1 // pred_check
      _
    $region63: #{forward_and_pool.1} parent=1 // pred_check_branch
      %7358 = sbr.rel (0) target = $region65
    $region64: #{forward_and_pool.1} parent=1 // pred_region
      %7359 = dma.done [#allocation5], 512
    $region65: #{forward_and_pool.1} parent=1 // pred_fallthru
      _
    // Predicated region
    $region66: #{forward_and_pool.1} parent=1 // pred_check
      _
    $region67: #{forward_and_pool.1} parent=1 // pred_check_branch
      %7361 = sbr.rel (0) target = $region69
    $region68: #{forward_and_pool.1} parent=1 // pred_region
      %7362 = dma.done [#allocation7], 32
    $region69: #{forward_and_pool.1} parent=1 // pred_fallthru
      _
    %7363 = vsyncpa [#allocation5], 1
    %7364 = vsyncpa [#allocation7], 1

</llo_original>
